<compile_context>
chip_gen: v7x
topology: tpu7x:2x2x1
jax: 0.10.0
libtpu: 0.0.40
codegen_flags: <defaults>
</compile_context>

<pallas_src>
import functools

import jax
import jax.numpy as jnp
from jax import lax
from jax.experimental import pallas as pl
from jax.experimental.pallas import tpu as pltpu


# ----------------------------------------------------------------------------
# Fused kernel: 3x3 conv + ReLU, channel attention, spatial attention (7x7 conv
# + folded BN + sigmoid), fused/augmented 1x1 heads with lane-dense outputs.
# One grid step per batch element.
# ----------------------------------------------------------------------------
def _casa_rpn_kernel(xpad_ref, wc_ref, bc_ref,
                     w1_ref, b1_ref, w2_ref, b2_ref,
                     wobj_ref, wdel_ref, wsa_ref, shift_ref,
                     obj_ref, del_ref,
                     pad_scr,
                     *, H, W, C, A, A4):
    HW = H * W

    # ---- 3x3 conv as 9 shifted (HW, C) @ (C, C) matmuls (no im2col) ----------
    x = xpad_ref[0].astype(jnp.float32)                      # (H+2, W+2, C)
    acc = jnp.zeros((HW, C), jnp.float32)
    for k in range(9):
        dy, dx = divmod(k, 3)
        win = x[dy:dy + H, dx:dx + W, :].reshape(HW, C)      # (HW, C)
        acc = acc + jnp.dot(win, wc_ref[k],
                            preferred_element_type=jnp.float32)
    t = jnp.maximum(acc + bc_ref[...], 0.0)                  # (HW, C)

    # ---- channel attention: one shared-MLP pass over stacked (2, C) pools ----
    pooled = jnp.concatenate(
        [jnp.mean(t, axis=0, keepdims=True),
         jnp.max(t, axis=0, keepdims=True)], axis=0)         # (2, C)
    h = jnp.maximum(
        jnp.dot(pooled, w1_ref[...],
                preferred_element_type=jnp.float32) + b1_ref[...], 0.0)
    mlp = jnp.dot(h, w2_ref[...],
                  preferred_element_type=jnp.float32) + b2_ref[...]   # (2, C)
    ca = jax.nn.sigmoid(mlp[0:1, :] + mlp[1:2, :])           # (1, C)
    t2 = t * ca                                              # (HW, C)

    # ---- spatial-attention input maps: mean / max over channels --------------
    maps = jnp.concatenate(
        [jnp.mean(t2, axis=1, keepdims=True),
         jnp.max(t2, axis=1, keepdims=True)], axis=1)        # (HW, 2)

    # Zero-padded scratch; maps stored at a sublane-aligned column offset (8).
    pad_scr[...] = jnp.zeros_like(pad_scr)
    pad_scr[3:3 + H, 8:8 + W, :] = maps.reshape(H, W, 2)
    padded = pad_scr[...]                                    # (H+6, W+16, 2)

    # ---- 7x7 spatial-attention conv (2 -> 1, no bias) + folded BN + sigmoid --
    wsa = wsa_ref[...]                                       # (7, 7, 2)
    sa_acc = jnp.zeros((H, W, 1), jnp.float32)
    for dy in range(7):
        for dx in range(7):
            win2 = padded[dy:dy + H, 5 + dx:5 + dx + W, :]   # (H, W, 2)
            tap = wsa[dy:dy + 1, dx:dx + 1, :]               # (1, 1, 2)
            sa_acc = sa_acc + jnp.sum(win2 * tap, axis=-1, keepdims=True)
    sa = jax.nn.sigmoid(sa_acc + shift_ref[...])             # (H, W, 1)
    sa_col = sa.reshape(HW, 1)                               # (HW, 1)

    # ---- 1x1 heads, computed transposed -> lane-dense (A, HW) / (A4, HW) -----
    # Bias and the spatial-attention multiply are folded in via an augmented
    # column:  obj = Wobj @ (t*sa)^T + bobj*sa ;  del = Wdel @ t^T + bdel.
    ones_col = jnp.ones((HW, 1), jnp.float32)
    u_obj = jnp.concatenate([t * sa_col, sa_col], axis=1)    # (HW, C+1)
    u_del = jnp.concatenate([t, ones_col], axis=1)           # (HW, C+1)
    dn = (((1,), (1,)), ((), ()))                            # contract channel axes
    obj_ref[0] = lax.dot_general(wobj_ref[...], u_obj, dn,
                                 preferred_element_type=jnp.float32)  # (A, HW)
    del_ref[0] = lax.dot_general(wdel_ref[...], u_del, dn,
                                 preferred_element_type=jnp.float32)  # (A4, HW)


# ----------------------------------------------------------------------------
# Host-side glue (padding, weight packing / BN folding), fully jit-able.
# ----------------------------------------------------------------------------
@jax.jit
def _forward_one_level(x_nchw, p):
    N, C, H, W = x_nchw.shape
    A = p["obj_w"].shape[0]
    A4 = p["del_w"].shape[0]
    Cr = p["fc1_w"].shape[0]
    HW = H * W
    assert W % 8 == 0, "W must be a multiple of 8 (in-kernel window reshape)"

    # Padded NHWC activation, stored bf16 (dominant HBM stream).
    x = jnp.transpose(x_nchw, (0, 2, 3, 1)).astype(jnp.float32)
    xpad = jnp.pad(x, ((0, 0), (1, 1), (1, 1), (0, 0))).astype(jnp.bfloat16)

    # 3x3 conv weight as 9 (C_in, C_out) taps, tap index = ky*3 + kx.
    wc = jnp.transpose(p["conv_w"], (2, 3, 1, 0)).reshape(9, C, C)
    bc = p["conv_b"].reshape(1, C)

    # Channel-attention MLP.
    w1 = jnp.transpose(p["fc1_w"][:, :, 0, 0])               # (C, Cr)
    b1 = p["fc1_b"].reshape(1, Cr)
    w2 = jnp.transpose(p["fc2_w"][:, :, 0, 0])               # (Cr, C)
    b2 = p["fc2_b"].reshape(1, C)

    # 1x1 heads with bias folded into an extra column.
    wobj = jnp.concatenate([p["obj_w"][:, :, 0, 0],
                            p["obj_b"][:, None]], axis=1)    # (A, C+1)
    wdel = jnp.concatenate([p["del_w"][:, :, 0, 0],
                            p["del_b"][:, None]], axis=1)    # (A4, C+1)

    # Fold eval-mode BatchNorm into the 7x7 conv weight (scale) + scalar shift.
    eps = 1e-5
    scale = p["bn_gamma"][0] * lax.rsqrt(p["bn_var"][0] + eps)
    shift = (p["bn_beta"][0] - p["bn_mean"][0] * scale).reshape(1, 1)
    wsa = jnp.transpose(p["sa_w"][0], (1, 2, 0)) * scale     # (7, 7, 2)

    kernel = functools.partial(_casa_rpn_kernel, H=H, W=W, C=C, A=A, A4=A4)

    grid_spec = pltpu.PrefetchScalarGridSpec(
        num_scalar_prefetch=0,
        grid=(N,),
        in_specs=[
            pl.BlockSpec((1, H + 2, W + 2, C), lambda b: (b, 0, 0, 0)),
            pl.BlockSpec((9, C, C), lambda b: (0, 0, 0)),
            pl.BlockSpec((1, C), lambda b: (0, 0)),
            pl.BlockSpec((C, Cr), lambda b: (0, 0)),
            pl.BlockSpec((1, Cr), lambda b: (0, 0)),
            pl.BlockSpec((Cr, C), lambda b: (0, 0)),
            pl.BlockSpec((1, C), lambda b: (0, 0)),
            pl.BlockSpec((A, C + 1), lambda b: (0, 0)),
            pl.BlockSpec((A4, C + 1), lambda b: (0, 0)),
            pl.BlockSpec((7, 7, 2), lambda b: (0, 0, 0)),
            pl.BlockSpec((1, 1), lambda b: (0, 0)),
        ],
        out_specs=[
            pl.BlockSpec((1, A, HW), lambda b: (b, 0, 0)),
            pl.BlockSpec((1, A4, HW), lambda b: (b, 0, 0)),
        ],
        scratch_shapes=[pltpu.VMEM((H + 6, W + 16, 2), jnp.float32)],
    )

    obj, deltas = pl.pallas_call(
        kernel,
        out_shape=(jax.ShapeDtypeStruct((N, A, HW), jnp.float32),
                   jax.ShapeDtypeStruct((N, A4, HW), jnp.float32)),
        grid_spec=grid_spec,
        compiler_params=pltpu.CompilerParams(
            dimension_semantics=("parallel",),
            vmem_limit_bytes=32 * 1024 * 1024),
    )(xpad, wc, bc, w1, b1, w2, b2, wobj, wdel, wsa, shift)

    # Lane-dense (·, HW) tiles reshape for free to NCHW -- no host transposes.
    return obj.reshape(N, A, H, W), deltas.reshape(N, A4, H, W)


def casa_rpn_head_forward(features_nchw, params):
    pred_obj, pred_del = [], []
    for x in features_nchw:
        o, d = _forward_one_level(x, params)
        pred_obj.append(o)
        pred_del.append(d)
    return pred_obj, pred_del


# ----------------------------------------------------------------------------
# Deterministic parameter init (matches the module's __init__ shapes)
# ----------------------------------------------------------------------------
def init_params(key, C, A, box_dim=4, reduction=16):
    Cr = C // reduction
    ks = jax.random.split(key, 8)

    def normal(k, shape, std):
        return std * jax.random.normal(k, shape, jnp.float32)

    return {
        # conv / heads: normal(std=0.01), bias 0 (as in the module init)
        "conv_w": normal(ks[0], (C, C, 3, 3), 0.01),
        "conv_b": jnp.zeros((C,), jnp.float32),
        "obj_w": normal(ks[1], (A, C, 1, 1), 0.01),
        "obj_b": jnp.zeros((A,), jnp.float32),
        "del_w": normal(ks[2], (A * box_dim, C, 1, 1), 0.01),
        "del_b": jnp.zeros((A * box_dim,), jnp.float32),
        # channel-attention MLP (deterministic synthetic init)
        "fc1_w": normal(ks[3], (Cr, C, 1, 1), 0.1),
        "fc1_b": normal(ks[4], (Cr,), 0.1),
        "fc2_w": normal(ks[5], (C, Cr, 1, 1), 0.1),
        "fc2_b": normal(ks[6], (C,), 0.1),
        # spatial attention 7x7 conv (no bias) + BN(1) defaults
        "sa_w": normal(ks[7], (1, 2, 7, 7), 0.1),
        "bn_gamma": jnp.ones((1,), jnp.float32),
        "bn_beta": jnp.zeros((1,), jnp.float32),
        "bn_mean": jnp.zeros((1,), jnp.float32),
        "bn_var": jnp.ones((1,), jnp.float32),
    }


# ----------------------------------------------------------------------------
# Pure-JAX NCHW reference (mirrors the PyTorch forward) for sanity checking
# ----------------------------------------------------------------------------
def _conv_nchw(x, w, b=None, padding=0):
    out = lax.conv_general_dilated(
        x, w, (1, 1), [(padding, padding)] * 2,
        dimension_numbers=("NCHW", "OIHW", "NCHW"))
    if b is not None:
        out = out + b[None, :, None, None]
    return out


def reference_forward_one(x, p):
    t = jax.nn.relu(_conv_nchw(x, p["conv_w"], p["conv_b"], padding=1))
    avg = jnp.mean(t, axis=(2, 3), keepdims=True)
    mx = jnp.max(t, axis=(2, 3), keepdims=True)

    def fc(v):
        h = jax.nn.relu(_conv_nchw(v, p["fc1_w"], p["fc1_b"]))
        return _conv_nchw(h, p["fc2_w"], p["fc2_b"])

    ca = jax.nn.sigmoid(fc(avg) + fc(mx))
    t2 = ca * t
    s = jnp.concatenate([jnp.mean(t2, axis=1, keepdims=True),
                         jnp.max(t2, axis=1, keepdims=True)], axis=1)
    s = _conv_nchw(s, p["sa_w"], None, padding=3)
    eps = 1e-5
    s = (s - p["bn_mean"][None, :, None, None]) / jnp.sqrt(
        p["bn_var"][None, :, None, None] + eps)
    s = s * p["bn_gamma"][None, :, None, None] + p["bn_beta"][None, :, None, None]
    sa = jax.nn.sigmoid(s)
    obj = _conv_nchw(t, p["obj_w"], p["obj_b"]) * sa
    dl = _conv_nchw(t, p["del_w"], p["del_b"])
    return obj, dl


if __name__ == "__main__":
    C, A, box_dim = 32, 3, 4          # C >= 16 so reduction_ratio=16 is valid
    root = jax.random.PRNGKey(0)
    kp, k1, k2 = jax.random.split(root, 3)
    params = init_params(kp, C, A, box_dim)

    features = [
        jax.random.normal(k1, (2, C, 8, 8), jnp.float32),
        jax.random.normal(k2, (2, C, 16, 16), jnp.float32),
    ]

    objs, dels = casa_rpn_head_forward(features, params)
    objs = [jax.block_until_ready(o) for o in objs]
    dels = [jax.block_until_ready(d) for d in dels]

    ok = True
    for x, o, d in zip(features, objs, dels):
        ro, rd = reference_forward_one(x, params)
        ok &= bool(jnp.allclose(o, ro, rtol=5e-2, atol=2e-3))
        ok &= bool(jnp.allclose(d, rd, rtol=5e-2, atol=2e-3))
    assert ok, "Pallas output mismatch vs pure-JAX reference"

    print("KERNEL_OK")
</pallas_src>

<mosaic_0001>
module attributes {stable_mosaic.version = 11 : i64} {
  func.func @_casa_rpn_kernel(%arg0: i32, %arg1: memref<1x10x10x32xbf16, #tpu.memory_space<vmem>>, %arg2: memref<9x32x32xf32, #tpu.memory_space<vmem>>, %arg3: memref<1x32xf32, #tpu.memory_space<vmem>>, %arg4: memref<32x2xf32, #tpu.memory_space<vmem>>, %arg5: memref<1x2xf32, #tpu.memory_space<vmem>>, %arg6: memref<2x32xf32, #tpu.memory_space<vmem>>, %arg7: memref<1x32xf32, #tpu.memory_space<vmem>>, %arg8: memref<3x33xf32, #tpu.memory_space<vmem>>, %arg9: memref<12x33xf32, #tpu.memory_space<vmem>>, %arg10: memref<7x7x2xf32, #tpu.memory_space<vmem>>, %arg11: memref<1x1xf32, #tpu.memory_space<vmem>>, %arg12: memref<1x3x64xf32, #tpu.memory_space<vmem>>, %arg13: memref<1x12x64xf32, #tpu.memory_space<vmem>>, %arg14: memref<14x24x2xf32, #tpu.memory_space<vmem>>) attributes {dimension_semantics = [#tpu.dimension_semantics<parallel>], iteration_bounds = array<i64: 2>, scalar_prefetch = 0 : i64, scratch_operands = 1 : i64, tpu.core_type = #tpu.core_type<tc>, window_params = [{transform_indices = @transform_0, window_bounds = array<i64: 1, 10, 10, 32>}, {pipeline_mode = #tpu.pipeline_mode<synchronous>, transform_indices = @transform_1, window_bounds = array<i64: 9, 32, 32>}, {pipeline_mode = #tpu.pipeline_mode<synchronous>, transform_indices = @transform_2, window_bounds = array<i64: 1, 32>}, {pipeline_mode = #tpu.pipeline_mode<synchronous>, transform_indices = @transform_3, window_bounds = array<i64: 32, 2>}, {pipeline_mode = #tpu.pipeline_mode<synchronous>, transform_indices = @transform_4, window_bounds = array<i64: 1, 2>}, {pipeline_mode = #tpu.pipeline_mode<synchronous>, transform_indices = @transform_5, window_bounds = array<i64: 2, 32>}, {pipeline_mode = #tpu.pipeline_mode<synchronous>, transform_indices = @transform_6, window_bounds = array<i64: 1, 32>}, {pipeline_mode = #tpu.pipeline_mode<synchronous>, transform_indices = @transform_7, window_bounds = array<i64: 3, 33>}, {pipeline_mode = #tpu.pipeline_mode<synchronous>, transform_indices = @transform_8, window_bounds = array<i64: 12, 33>}, {pipeline_mode = #tpu.pipeline_mode<synchronous>, transform_indices = @transform_9, window_bounds = array<i64: 7, 7, 2>}, {pipeline_mode = #tpu.pipeline_mode<synchronous>, transform_indices = @transform_10, window_bounds = array<i64: 1, 1>}, {transform_indices = @transform_11, window_bounds = array<i64: 1, 3, 64>}, {transform_indices = @transform_12, window_bounds = array<i64: 1, 12, 64>}]} {
    %c0 = arith.constant 0 : index
    %c0_0 = arith.constant 0 : index
    %c0_1 = arith.constant 0 : index
    %c0_2 = arith.constant 0 : index
    %0 = vector.load %arg1[%c0, %c0_0, %c0_1, %c0_2] : memref<1x10x10x32xbf16, #tpu.memory_space<vmem>>, vector<1x10x10x32xbf16>
    %1 = vector.shape_cast %0 : vector<1x10x10x32xbf16> to vector<10x10x32xbf16>
    %2 = arith.extf %1 : vector<10x10x32xbf16> to vector<10x10x32xf32>
    %cst = arith.constant 0.000000e+00 : f32
    %3 = vector.broadcast %cst : f32 to vector<64x32xf32>
    %4 = vector.extract_strided_slice %2 {offsets = [0, 0, 0], sizes = [8, 8, 32], strides = [1, 1, 1]} : vector<10x10x32xf32> to vector<8x8x32xf32>
    %5 = vector.shape_cast %4 : vector<8x8x32xf32> to vector<64x32xf32>
    %c0_3 = arith.constant 0 : index
    %c0_4 = arith.constant 0 : index
    %c0_5 = arith.constant 0 : index
    %6 = vector.load %arg2[%c0_3, %c0_4, %c0_5] : memref<9x32x32xf32, #tpu.memory_space<vmem>>, vector<1x32x32xf32>
    %7 = vector.shape_cast %6 : vector<1x32x32xf32> to vector<32x32xf32>
    %cst_6 = arith.constant dense<0.000000e+00> : vector<64x32xf32>
    %8 = tpu.matmul %5, %7, %cst_6 {dimension_numbers = #tpu.dot_dimension_numbers<[1], [0], [0], [1], [0, 0, 1, 1], [], []>} : vector<64x32xf32>, vector<32x32xf32>, vector<64x32xf32> -> vector<64x32xf32>
    %9 = arith.addf %3, %8 : vector<64x32xf32>
    %10 = vector.extract_strided_slice %2 {offsets = [0, 1, 0], sizes = [8, 8, 32], strides = [1, 1, 1]} : vector<10x10x32xf32> to vector<8x8x32xf32>
    %11 = vector.shape_cast %10 : vector<8x8x32xf32> to vector<64x32xf32>
    %c1 = arith.constant 1 : index
    %c0_7 = arith.constant 0 : index
    %c0_8 = arith.constant 0 : index
    %12 = vector.load %arg2[%c1, %c0_7, %c0_8] : memref<9x32x32xf32, #tpu.memory_space<vmem>>, vector<1x32x32xf32>
    %13 = vector.shape_cast %12 : vector<1x32x32xf32> to vector<32x32xf32>
    %cst_9 = arith.constant dense<0.000000e+00> : vector<64x32xf32>
    %14 = tpu.matmul %11, %13, %cst_9 {dimension_numbers = #tpu.dot_dimension_numbers<[1], [0], [0], [1], [0, 0, 1, 1], [], []>} : vector<64x32xf32>, vector<32x32xf32>, vector<64x32xf32> -> vector<64x32xf32>
    %15 = arith.addf %9, %14 : vector<64x32xf32>
    %16 = vector.extract_strided_slice %2 {offsets = [0, 2, 0], sizes = [8, 8, 32], strides = [1, 1, 1]} : vector<10x10x32xf32> to vector<8x8x32xf32>
    %17 = vector.shape_cast %16 : vector<8x8x32xf32> to vector<64x32xf32>
    %c2 = arith.constant 2 : index
    %c0_10 = arith.constant 0 : index
    %c0_11 = arith.constant 0 : index
    %18 = vector.load %arg2[%c2, %c0_10, %c0_11] : memref<9x32x32xf32, #tpu.memory_space<vmem>>, vector<1x32x32xf32>
    %19 = vector.shape_cast %18 : vector<1x32x32xf32> to vector<32x32xf32>
    %cst_12 = arith.constant dense<0.000000e+00> : vector<64x32xf32>
    %20 = tpu.matmul %17, %19, %cst_12 {dimension_numbers = #tpu.dot_dimension_numbers<[1], [0], [0], [1], [0, 0, 1, 1], [], []>} : vector<64x32xf32>, vector<32x32xf32>, vector<64x32xf32> -> vector<64x32xf32>
    %21 = arith.addf %15, %20 : vector<64x32xf32>
    %22 = vector.extract_strided_slice %2 {offsets = [1, 0, 0], sizes = [8, 8, 32], strides = [1, 1, 1]} : vector<10x10x32xf32> to vector<8x8x32xf32>
    %23 = vector.shape_cast %22 : vector<8x8x32xf32> to vector<64x32xf32>
    %c3 = arith.constant 3 : index
    %c0_13 = arith.constant 0 : index
    %c0_14 = arith.constant 0 : index
    %24 = vector.load %arg2[%c3, %c0_13, %c0_14] : memref<9x32x32xf32, #tpu.memory_space<vmem>>, vector<1x32x32xf32>
    %25 = vector.shape_cast %24 : vector<1x32x32xf32> to vector<32x32xf32>
    %cst_15 = arith.constant dense<0.000000e+00> : vector<64x32xf32>
    %26 = tpu.matmul %23, %25, %cst_15 {dimension_numbers = #tpu.dot_dimension_numbers<[1], [0], [0], [1], [0, 0, 1, 1], [], []>} : vector<64x32xf32>, vector<32x32xf32>, vector<64x32xf32> -> vector<64x32xf32>
    %27 = arith.addf %21, %26 : vector<64x32xf32>
    %28 = vector.extract_strided_slice %2 {offsets = [1, 1, 0], sizes = [8, 8, 32], strides = [1, 1, 1]} : vector<10x10x32xf32> to vector<8x8x32xf32>
    %29 = vector.shape_cast %28 : vector<8x8x32xf32> to vector<64x32xf32>
    %c4 = arith.constant 4 : index
    %c0_16 = arith.constant 0 : index
    %c0_17 = arith.constant 0 : index
    %30 = vector.load %arg2[%c4, %c0_16, %c0_17] : memref<9x32x32xf32, #tpu.memory_space<vmem>>, vector<1x32x32xf32>
    %31 = vector.shape_cast %30 : vector<1x32x32xf32> to vector<32x32xf32>
    %cst_18 = arith.constant dense<0.000000e+00> : vector<64x32xf32>
    %32 = tpu.matmul %29, %31, %cst_18 {dimension_numbers = #tpu.dot_dimension_numbers<[1], [0], [0], [1], [0, 0, 1, 1], [], []>} : vector<64x32xf32>, vector<32x32xf32>, vector<64x32xf32> -> vector<64x32xf32>
    %33 = arith.addf %27, %32 : vector<64x32xf32>
    %34 = vector.extract_strided_slice %2 {offsets = [1, 2, 0], sizes = [8, 8, 32], strides = [1, 1, 1]} : vector<10x10x32xf32> to vector<8x8x32xf32>
    %35 = vector.shape_cast %34 : vector<8x8x32xf32> to vector<64x32xf32>
    %c5 = arith.constant 5 : index
    %c0_19 = arith.constant 0 : index
    %c0_20 = arith.constant 0 : index
    %36 = vector.load %arg2[%c5, %c0_19, %c0_20] : memref<9x32x32xf32, #tpu.memory_space<vmem>>, vector<1x32x32xf32>
    %37 = vector.shape_cast %36 : vector<1x32x32xf32> to vector<32x32xf32>
    %cst_21 = arith.constant dense<0.000000e+00> : vector<64x32xf32>
    %38 = tpu.matmul %35, %37, %cst_21 {dimension_numbers = #tpu.dot_dimension_numbers<[1], [0], [0], [1], [0, 0, 1, 1], [], []>} : vector<64x32xf32>, vector<32x32xf32>, vector<64x32xf32> -> vector<64x32xf32>
    %39 = arith.addf %33, %38 : vector<64x32xf32>
    %40 = vector.extract_strided_slice %2 {offsets = [2, 0, 0], sizes = [8, 8, 32], strides = [1, 1, 1]} : vector<10x10x32xf32> to vector<8x8x32xf32>
    %41 = vector.shape_cast %40 : vector<8x8x32xf32> to vector<64x32xf32>
    %c6 = arith.constant 6 : index
    %c0_22 = arith.constant 0 : index
    %c0_23 = arith.constant 0 : index
    %42 = vector.load %arg2[%c6, %c0_22, %c0_23] : memref<9x32x32xf32, #tpu.memory_space<vmem>>, vector<1x32x32xf32>
    %43 = vector.shape_cast %42 : vector<1x32x32xf32> to vector<32x32xf32>
    %cst_24 = arith.constant dense<0.000000e+00> : vector<64x32xf32>
    %44 = tpu.matmul %41, %43, %cst_24 {dimension_numbers = #tpu.dot_dimension_numbers<[1], [0], [0], [1], [0, 0, 1, 1], [], []>} : vector<64x32xf32>, vector<32x32xf32>, vector<64x32xf32> -> vector<64x32xf32>
    %45 = arith.addf %39, %44 : vector<64x32xf32>
    %46 = vector.extract_strided_slice %2 {offsets = [2, 1, 0], sizes = [8, 8, 32], strides = [1, 1, 1]} : vector<10x10x32xf32> to vector<8x8x32xf32>
    %47 = vector.shape_cast %46 : vector<8x8x32xf32> to vector<64x32xf32>
    %c7 = arith.constant 7 : index
    %c0_25 = arith.constant 0 : index
    %c0_26 = arith.constant 0 : index
    %48 = vector.load %arg2[%c7, %c0_25, %c0_26] : memref<9x32x32xf32, #tpu.memory_space<vmem>>, vector<1x32x32xf32>
    %49 = vector.shape_cast %48 : vector<1x32x32xf32> to vector<32x32xf32>
    %cst_27 = arith.constant dense<0.000000e+00> : vector<64x32xf32>
    %50 = tpu.matmul %47, %49, %cst_27 {dimension_numbers = #tpu.dot_dimension_numbers<[1], [0], [0], [1], [0, 0, 1, 1], [], []>} : vector<64x32xf32>, vector<32x32xf32>, vector<64x32xf32> -> vector<64x32xf32>
    %51 = arith.addf %45, %50 : vector<64x32xf32>
    %52 = vector.extract_strided_slice %2 {offsets = [2, 2, 0], sizes = [8, 8, 32], strides = [1, 1, 1]} : vector<10x10x32xf32> to vector<8x8x32xf32>
    %53 = vector.shape_cast %52 : vector<8x8x32xf32> to vector<64x32xf32>
    %c8 = arith.constant 8 : index
    %c0_28 = arith.constant 0 : index
    %c0_29 = arith.constant 0 : index
    %54 = vector.load %arg2[%c8, %c0_28, %c0_29] : memref<9x32x32xf32, #tpu.memory_space<vmem>>, vector<1x32x32xf32>
    %55 = vector.shape_cast %54 : vector<1x32x32xf32> to vector<32x32xf32>
    %cst_30 = arith.constant dense<0.000000e+00> : vector<64x32xf32>
    %56 = tpu.matmul %53, %55, %cst_30 {dimension_numbers = #tpu.dot_dimension_numbers<[1], [0], [0], [1], [0, 0, 1, 1], [], []>} : vector<64x32xf32>, vector<32x32xf32>, vector<64x32xf32> -> vector<64x32xf32>
    %57 = arith.addf %51, %56 : vector<64x32xf32>
    %c0_31 = arith.constant 0 : index
    %c0_32 = arith.constant 0 : index
    %58 = vector.load %arg3[%c0_31, %c0_32] : memref<1x32xf32, #tpu.memory_space<vmem>>, vector<1x32xf32>
    %59 = vector.broadcast %58 : vector<1x32xf32> to vector<64x32xf32>
    %60 = arith.addf %57, %59 : vector<64x32xf32>
    %cst_33 = arith.constant 0.000000e+00 : f32
    %61 = vector.broadcast %cst_33 : f32 to vector<64x32xf32>
    %62 = arith.maximumf %60, %61 : vector<64x32xf32>
    %cst_34 = arith.constant dense<0.000000e+00> : vector<32xf32>
    %63 = vector.multi_reduction <add>, %62, %cst_34 [0] : vector<64x32xf32> to vector<32xf32>
    %64 = vector.shape_cast %63 : vector<32xf32> to vector<1x32xf32>
    %cst_35 = arith.constant 6.400000e+01 : f32
    %65 = vector.broadcast %cst_35 : f32 to vector<1x32xf32>
    %66 = arith.divf %64, %65 : vector<1x32xf32>
    %cst_36 = arith.constant dense<0xFF800000> : vector<32xf32>
    %67 = vector.multi_reduction <maximumf>, %62, %cst_36 [0] : vector<64x32xf32> to vector<32xf32>
    %68 = vector.shape_cast %67 : vector<32xf32> to vector<1x32xf32>
    %69 = tpu.concatenate %66, %68 in 0 : vector<1x32xf32>, vector<1x32xf32> -> vector<2x32xf32>
    %c0_37 = arith.constant 0 : index
    %c0_38 = arith.constant 0 : index
    %70 = vector.load %arg4[%c0_37, %c0_38] : memref<32x2xf32, #tpu.memory_space<vmem>>, vector<32x2xf32>
    %cst_39 = arith.constant dense<0.000000e+00> : vector<2x2xf32>
    %71 = tpu.matmul %69, %70, %cst_39 {dimension_numbers = #tpu.dot_dimension_numbers<[1], [0], [0], [1], [0, 0, 1, 1], [], []>} : vector<2x32xf32>, vector<32x2xf32>, vector<2x2xf32> -> vector<2x2xf32>
    %c0_40 = arith.constant 0 : index
    %c0_41 = arith.constant 0 : index
    %72 = vector.load %arg5[%c0_40, %c0_41] : memref<1x2xf32, #tpu.memory_space<vmem>>, vector<1x2xf32>
    %73 = vector.broadcast %72 : vector<1x2xf32> to vector<2x2xf32>
    %74 = arith.addf %71, %73 : vector<2x2xf32>
    %cst_42 = arith.constant 0.000000e+00 : f32
    %75 = vector.broadcast %cst_42 : f32 to vector<2x2xf32>
    %76 = arith.maximumf %74, %75 : vector<2x2xf32>
    %c0_43 = arith.constant 0 : index
    %c0_44 = arith.constant 0 : index
    %77 = vector.load %arg6[%c0_43, %c0_44] : memref<2x32xf32, #tpu.memory_space<vmem>>, vector<2x32xf32>
    %cst_45 = arith.constant dense<0.000000e+00> : vector<2x32xf32>
    %78 = tpu.matmul %76, %77, %cst_45 {dimension_numbers = #tpu.dot_dimension_numbers<[1], [0], [0], [1], [0, 0, 1, 1], [], []>} : vector<2x2xf32>, vector<2x32xf32>, vector<2x32xf32> -> vector<2x32xf32>
    %c0_46 = arith.constant 0 : index
    %c0_47 = arith.constant 0 : index
    %79 = vector.load %arg7[%c0_46, %c0_47] : memref<1x32xf32, #tpu.memory_space<vmem>>, vector<1x32xf32>
    %80 = vector.broadcast %79 : vector<1x32xf32> to vector<2x32xf32>
    %81 = arith.addf %78, %80 : vector<2x32xf32>
    %82 = vector.extract_strided_slice %81 {offsets = [0, 0], sizes = [1, 32], strides = [1, 1]} : vector<2x32xf32> to vector<1x32xf32>
    %83 = vector.extract_strided_slice %81 {offsets = [1, 0], sizes = [1, 32], strides = [1, 1]} : vector<2x32xf32> to vector<1x32xf32>
    %84 = arith.addf %82, %83 : vector<1x32xf32>
    %85 = arith.negf %84 : vector<1x32xf32>
    %86 = math.exp %85 : vector<1x32xf32>
    %cst_48 = arith.constant 1.000000e+00 : f32
    %87 = vector.broadcast %cst_48 : f32 to vector<1x32xf32>
    %88 = arith.addf %87, %86 : vector<1x32xf32>
    %89 = arith.divf %87, %88 : vector<1x32xf32>
    %90 = vector.broadcast %89 : vector<1x32xf32> to vector<64x32xf32>
    %91 = arith.mulf %62, %90 : vector<64x32xf32>
    %cst_49 = arith.constant dense<0.000000e+00> : vector<64xf32>
    %92 = vector.multi_reduction <add>, %91, %cst_49 [1] : vector<64x32xf32> to vector<64xf32>
    %93 = vector.shape_cast %92 : vector<64xf32> to vector<64x1xf32>
    %cst_50 = arith.constant 3.200000e+01 : f32
    %94 = vector.broadcast %cst_50 : f32 to vector<64x1xf32>
    %95 = arith.divf %93, %94 : vector<64x1xf32>
    %cst_51 = arith.constant dense<0xFF800000> : vector<64xf32>
    %96 = vector.multi_reduction <maximumf>, %91, %cst_51 [1] : vector<64x32xf32> to vector<64xf32>
    %97 = vector.shape_cast %96 : vector<64xf32> to vector<64x1xf32>
    %98 = tpu.concatenate %95, %97 in 1 : vector<64x1xf32>, vector<64x1xf32> -> vector<64x2xf32>
    %cst_52 = arith.constant 0.000000e+00 : f32
    %99 = vector.broadcast %cst_52 : f32 to vector<14x24x2xf32>
    %c0_53 = arith.constant 0 : index
    %c0_54 = arith.constant 0 : index
    %c0_55 = arith.constant 0 : index
    %100 = vector.load %arg14[%c0_53, %c0_54, %c0_55] : memref<14x24x2xf32, #tpu.memory_space<vmem>>, vector<14x24x2xf32>
    tpu.vector_store %arg14[%c0_53, %c0_54, %c0_55], %99 {strides = array<i32>} : memref<14x24x2xf32, #tpu.memory_space<vmem>>, vector<14x24x2xf32>,
    %101 = vector.shape_cast %98 : vector<64x2xf32> to vector<8x8x2xf32>
    %c3_56 = arith.constant 3 : index
    %c8_57 = arith.constant 8 : index
    %c0_58 = arith.constant 0 : index
    %102 = vector.load %arg14[%c3_56, %c8_57, %c0_58] : memref<14x24x2xf32, #tpu.memory_space<vmem>>, vector<8x8x2xf32>
    tpu.vector_store %arg14[%c3_56, %c8_57, %c0_58], %101 {strides = array<i32>} : memref<14x24x2xf32, #tpu.memory_space<vmem>>, vector<8x8x2xf32>,
    %c0_59 = arith.constant 0 : index
    %c0_60 = arith.constant 0 : index
    %c0_61 = arith.constant 0 : index
    %103 = vector.load %arg14[%c0_59, %c0_60, %c0_61] : memref<14x24x2xf32, #tpu.memory_space<vmem>>, vector<14x24x2xf32>
    %c0_62 = arith.constant 0 : index
    %c0_63 = arith.constant 0 : index
    %c0_64 = arith.constant 0 : index
    %104 = vector.load %arg10[%c0_62, %c0_63, %c0_64] : memref<7x7x2xf32, #tpu.memory_space<vmem>>, vector<7x7x2xf32>
    %cst_65 = arith.constant 0.000000e+00 : f32
    %105 = vector.broadcast %cst_65 : f32 to vector<8x8x1xf32>
    %106 = vector.extract_strided_slice %103 {offsets = [0, 5, 0], sizes = [8, 8, 2], strides = [1, 1, 1]} : vector<14x24x2xf32> to vector<8x8x2xf32>
    %107 = vector.extract_strided_slice %104 {offsets = [0, 0, 0], sizes = [1, 1, 2], strides = [1, 1, 1]} : vector<7x7x2xf32> to vector<1x1x2xf32>
    %108 = vector.broadcast %107 : vector<1x1x2xf32> to vector<8x8x2xf32>
    %109 = arith.mulf %106, %108 : vector<8x8x2xf32>
    %cst_66 = arith.constant dense<0.000000e+00> : vector<8x8xf32>
    %110 = vector.multi_reduction <add>, %109, %cst_66 [2] : vector<8x8x2xf32> to vector<8x8xf32>
    %111 = vector.shape_cast %110 : vector<8x8xf32> to vector<8x8x1xf32>
    %112 = arith.addf %105, %111 : vector<8x8x1xf32>
    %113 = vector.extract_strided_slice %103 {offsets = [0, 6, 0], sizes = [8, 8, 2], strides = [1, 1, 1]} : vector<14x24x2xf32> to vector<8x8x2xf32>
    %114 = vector.extract_strided_slice %104 {offsets = [0, 1, 0], sizes = [1, 1, 2], strides = [1, 1, 1]} : vector<7x7x2xf32> to vector<1x1x2xf32>
    %115 = vector.broadcast %114 : vector<1x1x2xf32> to vector<8x8x2xf32>
    %116 = arith.mulf %113, %115 : vector<8x8x2xf32>
    %cst_67 = arith.constant dense<0.000000e+00> : vector<8x8xf32>
    %117 = vector.multi_reduction <add>, %116, %cst_67 [2] : vector<8x8x2xf32> to vector<8x8xf32>
    %118 = vector.shape_cast %117 : vector<8x8xf32> to vector<8x8x1xf32>
    %119 = arith.addf %112, %118 : vector<8x8x1xf32>
    %120 = vector.extract_strided_slice %103 {offsets = [0, 7, 0], sizes = [8, 8, 2], strides = [1, 1, 1]} : vector<14x24x2xf32> to vector<8x8x2xf32>
    %121 = vector.extract_strided_slice %104 {offsets = [0, 2, 0], sizes = [1, 1, 2], strides = [1, 1, 1]} : vector<7x7x2xf32> to vector<1x1x2xf32>
    %122 = vector.broadcast %121 : vector<1x1x2xf32> to vector<8x8x2xf32>
    %123 = arith.mulf %120, %122 : vector<8x8x2xf32>
    %cst_68 = arith.constant dense<0.000000e+00> : vector<8x8xf32>
    %124 = vector.multi_reduction <add>, %123, %cst_68 [2] : vector<8x8x2xf32> to vector<8x8xf32>
    %125 = vector.shape_cast %124 : vector<8x8xf32> to vector<8x8x1xf32>
    %126 = arith.addf %119, %125 : vector<8x8x1xf32>
    %127 = vector.extract_strided_slice %103 {offsets = [0, 8, 0], sizes = [8, 8, 2], strides = [1, 1, 1]} : vector<14x24x2xf32> to vector<8x8x2xf32>
    %128 = vector.extract_strided_slice %104 {offsets = [0, 3, 0], sizes = [1, 1, 2], strides = [1, 1, 1]} : vector<7x7x2xf32> to vector<1x1x2xf32>
    %129 = vector.broadcast %128 : vector<1x1x2xf32> to vector<8x8x2xf32>
    %130 = arith.mulf %127, %129 : vector<8x8x2xf32>
    %cst_69 = arith.constant dense<0.000000e+00> : vector<8x8xf32>
    %131 = vector.multi_reduction <add>, %130, %cst_69 [2] : vector<8x8x2xf32> to vector<8x8xf32>
    %132 = vector.shape_cast %131 : vector<8x8xf32> to vector<8x8x1xf32>
    %133 = arith.addf %126, %132 : vector<8x8x1xf32>
    %134 = vector.extract_strided_slice %103 {offsets = [0, 9, 0], sizes = [8, 8, 2], strides = [1, 1, 1]} : vector<14x24x2xf32> to vector<8x8x2xf32>
    %135 = vector.extract_strided_slice %104 {offsets = [0, 4, 0], sizes = [1, 1, 2], strides = [1, 1, 1]} : vector<7x7x2xf32> to vector<1x1x2xf32>
    %136 = vector.broadcast %135 : vector<1x1x2xf32> to vector<8x8x2xf32>
    %137 = arith.mulf %134, %136 : vector<8x8x2xf32>
    %cst_70 = arith.constant dense<0.000000e+00> : vector<8x8xf32>
    %138 = vector.multi_reduction <add>, %137, %cst_70 [2] : vector<8x8x2xf32> to vector<8x8xf32>
    %139 = vector.shape_cast %138 : vector<8x8xf32> to vector<8x8x1xf32>
    %140 = arith.addf %133, %139 : vector<8x8x1xf32>
    %141 = vector.extract_strided_slice %103 {offsets = [0, 10, 0], sizes = [8, 8, 2], strides = [1, 1, 1]} : vector<14x24x2xf32> to vector<8x8x2xf32>
    %142 = vector.extract_strided_slice %104 {offsets = [0, 5, 0], sizes = [1, 1, 2], strides = [1, 1, 1]} : vector<7x7x2xf32> to vector<1x1x2xf32>
    %143 = vector.broadcast %142 : vector<1x1x2xf32> to vector<8x8x2xf32>
    %144 = arith.mulf %141, %143 : vector<8x8x2xf32>
    %cst_71 = arith.constant dense<0.000000e+00> : vector<8x8xf32>
    %145 = vector.multi_reduction <add>, %144, %cst_71 [2] : vector<8x8x2xf32> to vector<8x8xf32>
    %146 = vector.shape_cast %145 : vector<8x8xf32> to vector<8x8x1xf32>
    %147 = arith.addf %140, %146 : vector<8x8x1xf32>
    %148 = vector.extract_strided_slice %103 {offsets = [0, 11, 0], sizes = [8, 8, 2], strides = [1, 1, 1]} : vector<14x24x2xf32> to vector<8x8x2xf32>
    %149 = vector.extract_strided_slice %104 {offsets = [0, 6, 0], sizes = [1, 1, 2], strides = [1, 1, 1]} : vector<7x7x2xf32> to vector<1x1x2xf32>
    %150 = vector.broadcast %149 : vector<1x1x2xf32> to vector<8x8x2xf32>
    %151 = arith.mulf %148, %150 : vector<8x8x2xf32>
    %cst_72 = arith.constant dense<0.000000e+00> : vector<8x8xf32>
    %152 = vector.multi_reduction <add>, %151, %cst_72 [2] : vector<8x8x2xf32> to vector<8x8xf32>
    %153 = vector.shape_cast %152 : vector<8x8xf32> to vector<8x8x1xf32>
    %154 = arith.addf %147, %153 : vector<8x8x1xf32>
    %155 = vector.extract_strided_slice %103 {offsets = [1, 5, 0], sizes = [8, 8, 2], strides = [1, 1, 1]} : vector<14x24x2xf32> to vector<8x8x2xf32>
    %156 = vector.extract_strided_slice %104 {offsets = [1, 0, 0], sizes = [1, 1, 2], strides = [1, 1, 1]} : vector<7x7x2xf32> to vector<1x1x2xf32>
    %157 = vector.broadcast %156 : vector<1x1x2xf32> to vector<8x8x2xf32>
    %158 = arith.mulf %155, %157 : vector<8x8x2xf32>
    %cst_73 = arith.constant dense<0.000000e+00> : vector<8x8xf32>
    %159 = vector.multi_reduction <add>, %158, %cst_73 [2] : vector<8x8x2xf32> to vector<8x8xf32>
    %160 = vector.shape_cast %159 : vector<8x8xf32> to vector<8x8x1xf32>
    %161 = arith.addf %154, %160 : vector<8x8x1xf32>
    %162 = vector.extract_strided_slice %103 {offsets = [1, 6, 0], sizes = [8, 8, 2], strides = [1, 1, 1]} : vector<14x24x2xf32> to vector<8x8x2xf32>
    %163 = vector.extract_strided_slice %104 {offsets = [1, 1, 0], sizes = [1, 1, 2], strides = [1, 1, 1]} : vector<7x7x2xf32> to vector<1x1x2xf32>
    %164 = vector.broadcast %163 : vector<1x1x2xf32> to vector<8x8x2xf32>
    %165 = arith.mulf %162, %164 : vector<8x8x2xf32>
    %cst_74 = arith.constant dense<0.000000e+00> : vector<8x8xf32>
    %166 = vector.multi_reduction <add>, %165, %cst_74 [2] : vector<8x8x2xf32> to vector<8x8xf32>
    %167 = vector.shape_cast %166 : vector<8x8xf32> to vector<8x8x1xf32>
    %168 = arith.addf %161, %167 : vector<8x8x1xf32>
    %169 = vector.extract_strided_slice %103 {offsets = [1, 7, 0], sizes = [8, 8, 2], strides = [1, 1, 1]} : vector<14x24x2xf32> to vector<8x8x2xf32>
    %170 = vector.extract_strided_slice %104 {offsets = [1, 2, 0], sizes = [1, 1, 2], strides = [1, 1, 1]} : vector<7x7x2xf32> to vector<1x1x2xf32>
    %171 = vector.broadcast %170 : vector<1x1x2xf32> to vector<8x8x2xf32>
    %172 = arith.mulf %169, %171 : vector<8x8x2xf32>
    %cst_75 = arith.constant dense<0.000000e+00> : vector<8x8xf32>
    %173 = vector.multi_reduction <add>, %172, %cst_75 [2] : vector<8x8x2xf32> to vector<8x8xf32>
    %174 = vector.shape_cast %173 : vector<8x8xf32> to vector<8x8x1xf32>
    %175 = arith.addf %168, %174 : vector<8x8x1xf32>
    %176 = vector.extract_strided_slice %103 {offsets = [1, 8, 0], sizes = [8, 8, 2], strides = [1, 1, 1]} : vector<14x24x2xf32> to vector<8x8x2xf32>
    %177 = vector.extract_strided_slice %104 {offsets = [1, 3, 0], sizes = [1, 1, 2], strides = [1, 1, 1]} : vector<7x7x2xf32> to vector<1x1x2xf32>
    %178 = vector.broadcast %177 : vector<1x1x2xf32> to vector<8x8x2xf32>
    %179 = arith.mulf %176, %178 : vector<8x8x2xf32>
    %cst_76 = arith.constant dense<0.000000e+00> : vector<8x8xf32>
    %180 = vector.multi_reduction <add>, %179, %cst_76 [2] : vector<8x8x2xf32> to vector<8x8xf32>
    %181 = vector.shape_cast %180 : vector<8x8xf32> to vector<8x8x1xf32>
    %182 = arith.addf %175, %181 : vector<8x8x1xf32>
    %183 = vector.extract_strided_slice %103 {offsets = [1, 9, 0], sizes = [8, 8, 2], strides = [1, 1, 1]} : vector<14x24x2xf32> to vector<8x8x2xf32>
    %184 = vector.extract_strided_slice %104 {offsets = [1, 4, 0], sizes = [1, 1, 2], strides = [1, 1, 1]} : vector<7x7x2xf32> to vector<1x1x2xf32>
    %185 = vector.broadcast %184 : vector<1x1x2xf32> to vector<8x8x2xf32>
    %186 = arith.mulf %183, %185 : vector<8x8x2xf32>
    %cst_77 = arith.constant dense<0.000000e+00> : vector<8x8xf32>
    %187 = vector.multi_reduction <add>, %186, %cst_77 [2] : vector<8x8x2xf32> to vector<8x8xf32>
    %188 = vector.shape_cast %187 : vector<8x8xf32> to vector<8x8x1xf32>
    %189 = arith.addf %182, %188 : vector<8x8x1xf32>
    %190 = vector.extract_strided_slice %103 {offsets = [1, 10, 0], sizes = [8, 8, 2], strides = [1, 1, 1]} : vector<14x24x2xf32> to vector<8x8x2xf32>
    %191 = vector.extract_strided_slice %104 {offsets = [1, 5, 0], sizes = [1, 1, 2], strides = [1, 1, 1]} : vector<7x7x2xf32> to vector<1x1x2xf32>
    %192 = vector.broadcast %191 : vector<1x1x2xf32> to vector<8x8x2xf32>
    %193 = arith.mulf %190, %192 : vector<8x8x2xf32>
    %cst_78 = arith.constant dense<0.000000e+00> : vector<8x8xf32>
    %194 = vector.multi_reduction <add>, %193, %cst_78 [2] : vector<8x8x2xf32> to vector<8x8xf32>
    %195 = vector.shape_cast %194 : vector<8x8xf32> to vector<8x8x1xf32>
    %196 = arith.addf %189, %195 : vector<8x8x1xf32>
    %197 = vector.extract_strided_slice %103 {offsets = [1, 11, 0], sizes = [8, 8, 2], strides = [1, 1, 1]} : vector<14x24x2xf32> to vector<8x8x2xf32>
    %198 = vector.extract_strided_slice %104 {offsets = [1, 6, 0], sizes = [1, 1, 2], strides = [1, 1, 1]} : vector<7x7x2xf32> to vector<1x1x2xf32>
    %199 = vector.broadcast %198 : vector<1x1x2xf32> to vector<8x8x2xf32>
    %200 = arith.mulf %197, %199 : vector<8x8x2xf32>
    %cst_79 = arith.constant dense<0.000000e+00> : vector<8x8xf32>
    %201 = vector.multi_reduction <add>, %200, %cst_79 [2] : vector<8x8x2xf32> to vector<8x8xf32>
    %202 = vector.shape_cast %201 : vector<8x8xf32> to vector<8x8x1xf32>
    %203 = arith.addf %196, %202 : vector<8x8x1xf32>
    %204 = vector.extract_strided_slice %103 {offsets = [2, 5, 0], sizes = [8, 8, 2], strides = [1, 1, 1]} : vector<14x24x2xf32> to vector<8x8x2xf32>
    %205 = vector.extract_strided_slice %104 {offsets = [2, 0, 0], sizes = [1, 1, 2], strides = [1, 1, 1]} : vector<7x7x2xf32> to vector<1x1x2xf32>
    %206 = vector.broadcast %205 : vector<1x1x2xf32> to vector<8x8x2xf32>
    %207 = arith.mulf %204, %206 : vector<8x8x2xf32>
    %cst_80 = arith.constant dense<0.000000e+00> : vector<8x8xf32>
    %208 = vector.multi_reduction <add>, %207, %cst_80 [2] : vector<8x8x2xf32> to vector<8x8xf32>
    %209 = vector.shape_cast %208 : vector<8x8xf32> to vector<8x8x1xf32>
    %210 = arith.addf %203, %209 : vector<8x8x1xf32>
    %211 = vector.extract_strided_slice %103 {offsets = [2, 6, 0], sizes = [8, 8, 2], strides = [1, 1, 1]} : vector<14x24x2xf32> to vector<8x8x2xf32>
    %212 = vector.extract_strided_slice %104 {offsets = [2, 1, 0], sizes = [1, 1, 2], strides = [1, 1, 1]} : vector<7x7x2xf32> to vector<1x1x2xf32>
    %213 = vector.broadcast %212 : vector<1x1x2xf32> to vector<8x8x2xf32>
    %214 = arith.mulf %211, %213 : vector<8x8x2xf32>
    %cst_81 = arith.constant dense<0.000000e+00> : vector<8x8xf32>
    %215 = vector.multi_reduction <add>, %214, %cst_81 [2] : vector<8x8x2xf32> to vector<8x8xf32>
    %216 = vector.shape_cast %215 : vector<8x8xf32> to vector<8x8x1xf32>
    %217 = arith.addf %210, %216 : vector<8x8x1xf32>
    %218 = vector.extract_strided_slice %103 {offsets = [2, 7, 0], sizes = [8, 8, 2], strides = [1, 1, 1]} : vector<14x24x2xf32> to vector<8x8x2xf32>
    %219 = vector.extract_strided_slice %104 {offsets = [2, 2, 0], sizes = [1, 1, 2], strides = [1, 1, 1]} : vector<7x7x2xf32> to vector<1x1x2xf32>
    %220 = vector.broadcast %219 : vector<1x1x2xf32> to vector<8x8x2xf32>
    %221 = arith.mulf %218, %220 : vector<8x8x2xf32>
    %cst_82 = arith.constant dense<0.000000e+00> : vector<8x8xf32>
    %222 = vector.multi_reduction <add>, %221, %cst_82 [2] : vector<8x8x2xf32> to vector<8x8xf32>
    %223 = vector.shape_cast %222 : vector<8x8xf32> to vector<8x8x1xf32>
    %224 = arith.addf %217, %223 : vector<8x8x1xf32>
    %225 = vector.extract_strided_slice %103 {offsets = [2, 8, 0], sizes = [8, 8, 2], strides = [1, 1, 1]} : vector<14x24x2xf32> to vector<8x8x2xf32>
    %226 = vector.extract_strided_slice %104 {offsets = [2, 3, 0], sizes = [1, 1, 2], strides = [1, 1, 1]} : vector<7x7x2xf32> to vector<1x1x2xf32>
    %227 = vector.broadcast %226 : vector<1x1x2xf32> to vector<8x8x2xf32>
    %228 = arith.mulf %225, %227 : vector<8x8x2xf32>
    %cst_83 = arith.constant dense<0.000000e+00> : vector<8x8xf32>
    %229 = vector.multi_reduction <add>, %228, %cst_83 [2] : vector<8x8x2xf32> to vector<8x8xf32>
    %230 = vector.shape_cast %229 : vector<8x8xf32> to vector<8x8x1xf32>
    %231 = arith.addf %224, %230 : vector<8x8x1xf32>
    %232 = vector.extract_strided_slice %103 {offsets = [2, 9, 0], sizes = [8, 8, 2], strides = [1, 1, 1]} : vector<14x24x2xf32> to vector<8x8x2xf32>
    %233 = vector.extract_strided_slice %104 {offsets = [2, 4, 0], sizes = [1, 1, 2], strides = [1, 1, 1]} : vector<7x7x2xf32> to vector<1x1x2xf32>
    %234 = vector.broadcast %233 : vector<1x1x2xf32> to vector<8x8x2xf32>
    %235 = arith.mulf %232, %234 : vector<8x8x2xf32>
    %cst_84 = arith.constant dense<0.000000e+00> : vector<8x8xf32>
    %236 = vector.multi_reduction <add>, %235, %cst_84 [2] : vector<8x8x2xf32> to vector<8x8xf32>
    %237 = vector.shape_cast %236 : vector<8x8xf32> to vector<8x8x1xf32>
    %238 = arith.addf %231, %237 : vector<8x8x1xf32>
    %239 = vector.extract_strided_slice %103 {offsets = [2, 10, 0], sizes = [8, 8, 2], strides = [1, 1, 1]} : vector<14x24x2xf32> to vector<8x8x2xf32>
    %240 = vector.extract_strided_slice %104 {offsets = [2, 5, 0], sizes = [1, 1, 2], strides = [1, 1, 1]} : vector<7x7x2xf32> to vector<1x1x2xf32>
    %241 = vector.broadcast %240 : vector<1x1x2xf32> to vector<8x8x2xf32>
    %242 = arith.mulf %239, %241 : vector<8x8x2xf32>
    %cst_85 = arith.constant dense<0.000000e+00> : vector<8x8xf32>
    %243 = vector.multi_reduction <add>, %242, %cst_85 [2] : vector<8x8x2xf32> to vector<8x8xf32>
    %244 = vector.shape_cast %243 : vector<8x8xf32> to vector<8x8x1xf32>
    %245 = arith.addf %238, %244 : vector<8x8x1xf32>
    %246 = vector.extract_strided_slice %103 {offsets = [2, 11, 0], sizes = [8, 8, 2], strides = [1, 1, 1]} : vector<14x24x2xf32> to vector<8x8x2xf32>
    %247 = vector.extract_strided_slice %104 {offsets = [2, 6, 0], sizes = [1, 1, 2], strides = [1, 1, 1]} : vector<7x7x2xf32> to vector<1x1x2xf32>
    %248 = vector.broadcast %247 : vector<1x1x2xf32> to vector<8x8x2xf32>
    %249 = arith.mulf %246, %248 : vector<8x8x2xf32>
    %cst_86 = arith.constant dense<0.000000e+00> : vector<8x8xf32>
    %250 = vector.multi_reduction <add>, %249, %cst_86 [2] : vector<8x8x2xf32> to vector<8x8xf32>
    %251 = vector.shape_cast %250 : vector<8x8xf32> to vector<8x8x1xf32>
    %252 = arith.addf %245, %251 : vector<8x8x1xf32>
    %253 = vector.extract_strided_slice %103 {offsets = [3, 5, 0], sizes = [8, 8, 2], strides = [1, 1, 1]} : vector<14x24x2xf32> to vector<8x8x2xf32>
    %254 = vector.extract_strided_slice %104 {offsets = [3, 0, 0], sizes = [1, 1, 2], strides = [1, 1, 1]} : vector<7x7x2xf32> to vector<1x1x2xf32>
    %255 = vector.broadcast %254 : vector<1x1x2xf32> to vector<8x8x2xf32>
    %256 = arith.mulf %253, %255 : vector<8x8x2xf32>
    %cst_87 = arith.constant dense<0.000000e+00> : vector<8x8xf32>
    %257 = vector.multi_reduction <add>, %256, %cst_87 [2] : vector<8x8x2xf32> to vector<8x8xf32>
    %258 = vector.shape_cast %257 : vector<8x8xf32> to vector<8x8x1xf32>
    %259 = arith.addf %252, %258 : vector<8x8x1xf32>
    %260 = vector.extract_strided_slice %103 {offsets = [3, 6, 0], sizes = [8, 8, 2], strides = [1, 1, 1]} : vector<14x24x2xf32> to vector<8x8x2xf32>
    %261 = vector.extract_strided_slice %104 {offsets = [3, 1, 0], sizes = [1, 1, 2], strides = [1, 1, 1]} : vector<7x7x2xf32> to vector<1x1x2xf32>
    %262 = vector.broadcast %261 : vector<1x1x2xf32> to vector<8x8x2xf32>
    %263 = arith.mulf %260, %262 : vector<8x8x2xf32>
    %cst_88 = arith.constant dense<0.000000e+00> : vector<8x8xf32>
    %264 = vector.multi_reduction <add>, %263, %cst_88 [2] : vector<8x8x2xf32> to vector<8x8xf32>
    %265 = vector.shape_cast %264 : vector<8x8xf32> to vector<8x8x1xf32>
    %266 = arith.addf %259, %265 : vector<8x8x1xf32>
    %267 = vector.extract_strided_slice %103 {offsets = [3, 7, 0], sizes = [8, 8, 2], strides = [1, 1, 1]} : vector<14x24x2xf32> to vector<8x8x2xf32>
    %268 = vector.extract_strided_slice %104 {offsets = [3, 2, 0], sizes = [1, 1, 2], strides = [1, 1, 1]} : vector<7x7x2xf32> to vector<1x1x2xf32>
    %269 = vector.broadcast %268 : vector<1x1x2xf32> to vector<8x8x2xf32>
    %270 = arith.mulf %267, %269 : vector<8x8x2xf32>
    %cst_89 = arith.constant dense<0.000000e+00> : vector<8x8xf32>
    %271 = vector.multi_reduction <add>, %270, %cst_89 [2] : vector<8x8x2xf32> to vector<8x8xf32>
    %272 = vector.shape_cast %271 : vector<8x8xf32> to vector<8x8x1xf32>
    %273 = arith.addf %266, %272 : vector<8x8x1xf32>
    %274 = vector.extract_strided_slice %103 {offsets = [3, 8, 0], sizes = [8, 8, 2], strides = [1, 1, 1]} : vector<14x24x2xf32> to vector<8x8x2xf32>
    %275 = vector.extract_strided_slice %104 {offsets = [3, 3, 0], sizes = [1, 1, 2], strides = [1, 1, 1]} : vector<7x7x2xf32> to vector<1x1x2xf32>
    %276 = vector.broadcast %275 : vector<1x1x2xf32> to vector<8x8x2xf32>
    %277 = arith.mulf %274, %276 : vector<8x8x2xf32>
    %cst_90 = arith.constant dense<0.000000e+00> : vector<8x8xf32>
    %278 = vector.multi_reduction <add>, %277, %cst_90 [2] : vector<8x8x2xf32> to vector<8x8xf32>
    %279 = vector.shape_cast %278 : vector<8x8xf32> to vector<8x8x1xf32>
    %280 = arith.addf %273, %279 : vector<8x8x1xf32>
    %281 = vector.extract_strided_slice %103 {offsets = [3, 9, 0], sizes = [8, 8, 2], strides = [1, 1, 1]} : vector<14x24x2xf32> to vector<8x8x2xf32>
    %282 = vector.extract_strided_slice %104 {offsets = [3, 4, 0], sizes = [1, 1, 2], strides = [1, 1, 1]} : vector<7x7x2xf32> to vector<1x1x2xf32>
    %283 = vector.broadcast %282 : vector<1x1x2xf32> to vector<8x8x2xf32>
    %284 = arith.mulf %281, %283 : vector<8x8x2xf32>
    %cst_91 = arith.constant dense<0.000000e+00> : vector<8x8xf32>
    %285 = vector.multi_reduction <add>, %284, %cst_91 [2] : vector<8x8x2xf32> to vector<8x8xf32>
    %286 = vector.shape_cast %285 : vector<8x8xf32> to vector<8x8x1xf32>
    %287 = arith.addf %280, %286 : vector<8x8x1xf32>
    %288 = vector.extract_strided_slice %103 {offsets = [3, 10, 0], sizes = [8, 8, 2], strides = [1, 1, 1]} : vector<14x24x2xf32> to vector<8x8x2xf32>
    %289 = vector.extract_strided_slice %104 {offsets = [3, 5, 0], sizes = [1, 1, 2], strides = [1, 1, 1]} : vector<7x7x2xf32> to vector<1x1x2xf32>
    %290 = vector.broadcast %289 : vector<1x1x2xf32> to vector<8x8x2xf32>
    %291 = arith.mulf %288, %290 : vector<8x8x2xf32>
    %cst_92 = arith.constant dense<0.000000e+00> : vector<8x8xf32>
    %292 = vector.multi_reduction <add>, %291, %cst_92 [2] : vector<8x8x2xf32> to vector<8x8xf32>
    %293 = vector.shape_cast %292 : vector<8x8xf32> to vector<8x8x1xf32>
    %294 = arith.addf %287, %293 : vector<8x8x1xf32>
    %295 = vector.extract_strided_slice %103 {offsets = [3, 11, 0], sizes = [8, 8, 2], strides = [1, 1, 1]} : vector<14x24x2xf32> to vector<8x8x2xf32>
    %296 = vector.extract_strided_slice %104 {offsets = [3, 6, 0], sizes = [1, 1, 2], strides = [1, 1, 1]} : vector<7x7x2xf32> to vector<1x1x2xf32>
    %297 = vector.broadcast %296 : vector<1x1x2xf32> to vector<8x8x2xf32>
    %298 = arith.mulf %295, %297 : vector<8x8x2xf32>
    %cst_93 = arith.constant dense<0.000000e+00> : vector<8x8xf32>
    %299 = vector.multi_reduction <add>, %298, %cst_93 [2] : vector<8x8x2xf32> to vector<8x8xf32>
    %300 = vector.shape_cast %299 : vector<8x8xf32> to vector<8x8x1xf32>
    %301 = arith.addf %294, %300 : vector<8x8x1xf32>
    %302 = vector.extract_strided_slice %103 {offsets = [4, 5, 0], sizes = [8, 8, 2], strides = [1, 1, 1]} : vector<14x24x2xf32> to vector<8x8x2xf32>
    %303 = vector.extract_strided_slice %104 {offsets = [4, 0, 0], sizes = [1, 1, 2], strides = [1, 1, 1]} : vector<7x7x2xf32> to vector<1x1x2xf32>
    %304 = vector.broadcast %303 : vector<1x1x2xf32> to vector<8x8x2xf32>
    %305 = arith.mulf %302, %304 : vector<8x8x2xf32>
    %cst_94 = arith.constant dense<0.000000e+00> : vector<8x8xf32>
    %306 = vector.multi_reduction <add>, %305, %cst_94 [2] : vector<8x8x2xf32> to vector<8x8xf32>
    %307 = vector.shape_cast %306 : vector<8x8xf32> to vector<8x8x1xf32>
    %308 = arith.addf %301, %307 : vector<8x8x1xf32>
    %309 = vector.extract_strided_slice %103 {offsets = [4, 6, 0], sizes = [8, 8, 2], strides = [1, 1, 1]} : vector<14x24x2xf32> to vector<8x8x2xf32>
    %310 = vector.extract_strided_slice %104 {offsets = [4, 1, 0], sizes = [1, 1, 2], strides = [1, 1, 1]} : vector<7x7x2xf32> to vector<1x1x2xf32>
    %311 = vector.broadcast %310 : vector<1x1x2xf32> to vector<8x8x2xf32>
    %312 = arith.mulf %309, %311 : vector<8x8x2xf32>
    %cst_95 = arith.constant dense<0.000000e+00> : vector<8x8xf32>
    %313 = vector.multi_reduction <add>, %312, %cst_95 [2] : vector<8x8x2xf32> to vector<8x8xf32>
    %314 = vector.shape_cast %313 : vector<8x8xf32> to vector<8x8x1xf32>
    %315 = arith.addf %308, %314 : vector<8x8x1xf32>
    %316 = vector.extract_strided_slice %103 {offsets = [4, 7, 0], sizes = [8, 8, 2], strides = [1, 1, 1]} : vector<14x24x2xf32> to vector<8x8x2xf32>
    %317 = vector.extract_strided_slice %104 {offsets = [4, 2, 0], sizes = [1, 1, 2], strides = [1, 1, 1]} : vector<7x7x2xf32> to vector<1x1x2xf32>
    %318 = vector.broadcast %317 : vector<1x1x2xf32> to vector<8x8x2xf32>
    %319 = arith.mulf %316, %318 : vector<8x8x2xf32>
    %cst_96 = arith.constant dense<0.000000e+00> : vector<8x8xf32>
    %320 = vector.multi_reduction <add>, %319, %cst_96 [2] : vector<8x8x2xf32> to vector<8x8xf32>
    %321 = vector.shape_cast %320 : vector<8x8xf32> to vector<8x8x1xf32>
    %322 = arith.addf %315, %321 : vector<8x8x1xf32>
    %323 = vector.extract_strided_slice %103 {offsets = [4, 8, 0], sizes = [8, 8, 2], strides = [1, 1, 1]} : vector<14x24x2xf32> to vector<8x8x2xf32>
    %324 = vector.extract_strided_slice %104 {offsets = [4, 3, 0], sizes = [1, 1, 2], strides = [1, 1, 1]} : vector<7x7x2xf32> to vector<1x1x2xf32>
    %325 = vector.broadcast %324 : vector<1x1x2xf32> to vector<8x8x2xf32>
    %326 = arith.mulf %323, %325 : vector<8x8x2xf32>
    %cst_97 = arith.constant dense<0.000000e+00> : vector<8x8xf32>
    %327 = vector.multi_reduction <add>, %326, %cst_97 [2] : vector<8x8x2xf32> to vector<8x8xf32>
    %328 = vector.shape_cast %327 : vector<8x8xf32> to vector<8x8x1xf32>
    %329 = arith.addf %322, %328 : vector<8x8x1xf32>
    %330 = vector.extract_strided_slice %103 {offsets = [4, 9, 0], sizes = [8, 8, 2], strides = [1, 1, 1]} : vector<14x24x2xf32> to vector<8x8x2xf32>
    %331 = vector.extract_strided_slice %104 {offsets = [4, 4, 0], sizes = [1, 1, 2], strides = [1, 1, 1]} : vector<7x7x2xf32> to vector<1x1x2xf32>
    %332 = vector.broadcast %331 : vector<1x1x2xf32> to vector<8x8x2xf32>
    %333 = arith.mulf %330, %332 : vector<8x8x2xf32>
    %cst_98 = arith.constant dense<0.000000e+00> : vector<8x8xf32>
    %334 = vector.multi_reduction <add>, %333, %cst_98 [2] : vector<8x8x2xf32> to vector<8x8xf32>
    %335 = vector.shape_cast %334 : vector<8x8xf32> to vector<8x8x1xf32>
    %336 = arith.addf %329, %335 : vector<8x8x1xf32>
    %337 = vector.extract_strided_slice %103 {offsets = [4, 10, 0], sizes = [8, 8, 2], strides = [1, 1, 1]} : vector<14x24x2xf32> to vector<8x8x2xf32>
    %338 = vector.extract_strided_slice %104 {offsets = [4, 5, 0], sizes = [1, 1, 2], strides = [1, 1, 1]} : vector<7x7x2xf32> to vector<1x1x2xf32>
    %339 = vector.broadcast %338 : vector<1x1x2xf32> to vector<8x8x2xf32>
    %340 = arith.mulf %337, %339 : vector<8x8x2xf32>
    %cst_99 = arith.constant dense<0.000000e+00> : vector<8x8xf32>
    %341 = vector.multi_reduction <add>, %340, %cst_99 [2] : vector<8x8x2xf32> to vector<8x8xf32>
    %342 = vector.shape_cast %341 : vector<8x8xf32> to vector<8x8x1xf32>
    %343 = arith.addf %336, %342 : vector<8x8x1xf32>
    %344 = vector.extract_strided_slice %103 {offsets = [4, 11, 0], sizes = [8, 8, 2], strides = [1, 1, 1]} : vector<14x24x2xf32> to vector<8x8x2xf32>
    %345 = vector.extract_strided_slice %104 {offsets = [4, 6, 0], sizes = [1, 1, 2], strides = [1, 1, 1]} : vector<7x7x2xf32> to vector<1x1x2xf32>
    %346 = vector.broadcast %345 : vector<1x1x2xf32> to vector<8x8x2xf32>
    %347 = arith.mulf %344, %346 : vector<8x8x2xf32>
    %cst_100 = arith.constant dense<0.000000e+00> : vector<8x8xf32>
    %348 = vector.multi_reduction <add>, %347, %cst_100 [2] : vector<8x8x2xf32> to vector<8x8xf32>
    %349 = vector.shape_cast %348 : vector<8x8xf32> to vector<8x8x1xf32>
    %350 = arith.addf %343, %349 : vector<8x8x1xf32>
    %351 = vector.extract_strided_slice %103 {offsets = [5, 5, 0], sizes = [8, 8, 2], strides = [1, 1, 1]} : vector<14x24x2xf32> to vector<8x8x2xf32>
    %352 = vector.extract_strided_slice %104 {offsets = [5, 0, 0], sizes = [1, 1, 2], strides = [1, 1, 1]} : vector<7x7x2xf32> to vector<1x1x2xf32>
    %353 = vector.broadcast %352 : vector<1x1x2xf32> to vector<8x8x2xf32>
    %354 = arith.mulf %351, %353 : vector<8x8x2xf32>
    %cst_101 = arith.constant dense<0.000000e+00> : vector<8x8xf32>
    %355 = vector.multi_reduction <add>, %354, %cst_101 [2] : vector<8x8x2xf32> to vector<8x8xf32>
    %356 = vector.shape_cast %355 : vector<8x8xf32> to vector<8x8x1xf32>
    %357 = arith.addf %350, %356 : vector<8x8x1xf32>
    %358 = vector.extract_strided_slice %103 {offsets = [5, 6, 0], sizes = [8, 8, 2], strides = [1, 1, 1]} : vector<14x24x2xf32> to vector<8x8x2xf32>
    %359 = vector.extract_strided_slice %104 {offsets = [5, 1, 0], sizes = [1, 1, 2], strides = [1, 1, 1]} : vector<7x7x2xf32> to vector<1x1x2xf32>
    %360 = vector.broadcast %359 : vector<1x1x2xf32> to vector<8x8x2xf32>
    %361 = arith.mulf %358, %360 : vector<8x8x2xf32>
    %cst_102 = arith.constant dense<0.000000e+00> : vector<8x8xf32>
    %362 = vector.multi_reduction <add>, %361, %cst_102 [2] : vector<8x8x2xf32> to vector<8x8xf32>
    %363 = vector.shape_cast %362 : vector<8x8xf32> to vector<8x8x1xf32>
    %364 = arith.addf %357, %363 : vector<8x8x1xf32>
    %365 = vector.extract_strided_slice %103 {offsets = [5, 7, 0], sizes = [8, 8, 2], strides = [1, 1, 1]} : vector<14x24x2xf32> to vector<8x8x2xf32>
    %366 = vector.extract_strided_slice %104 {offsets = [5, 2, 0], sizes = [1, 1, 2], strides = [1, 1, 1]} : vector<7x7x2xf32> to vector<1x1x2xf32>
    %367 = vector.broadcast %366 : vector<1x1x2xf32> to vector<8x8x2xf32>
    %368 = arith.mulf %365, %367 : vector<8x8x2xf32>
    %cst_103 = arith.constant dense<0.000000e+00> : vector<8x8xf32>
    %369 = vector.multi_reduction <add>, %368, %cst_103 [2] : vector<8x8x2xf32> to vector<8x8xf32>
    %370 = vector.shape_cast %369 : vector<8x8xf32> to vector<8x8x1xf32>
    %371 = arith.addf %364, %370 : vector<8x8x1xf32>
    %372 = vector.extract_strided_slice %103 {offsets = [5, 8, 0], sizes = [8, 8, 2], strides = [1, 1, 1]} : vector<14x24x2xf32> to vector<8x8x2xf32>
    %373 = vector.extract_strided_slice %104 {offsets = [5, 3, 0], sizes = [1, 1, 2], strides = [1, 1, 1]} : vector<7x7x2xf32> to vector<1x1x2xf32>
    %374 = vector.broadcast %373 : vector<1x1x2xf32> to vector<8x8x2xf32>
    %375 = arith.mulf %372, %374 : vector<8x8x2xf32>
    %cst_104 = arith.constant dense<0.000000e+00> : vector<8x8xf32>
    %376 = vector.multi_reduction <add>, %375, %cst_104 [2] : vector<8x8x2xf32> to vector<8x8xf32>
    %377 = vector.shape_cast %376 : vector<8x8xf32> to vector<8x8x1xf32>
    %378 = arith.addf %371, %377 : vector<8x8x1xf32>
    %379 = vector.extract_strided_slice %103 {offsets = [5, 9, 0], sizes = [8, 8, 2], strides = [1, 1, 1]} : vector<14x24x2xf32> to vector<8x8x2xf32>
    %380 = vector.extract_strided_slice %104 {offsets = [5, 4, 0], sizes = [1, 1, 2], strides = [1, 1, 1]} : vector<7x7x2xf32> to vector<1x1x2xf32>
    %381 = vector.broadcast %380 : vector<1x1x2xf32> to vector<8x8x2xf32>
    %382 = arith.mulf %379, %381 : vector<8x8x2xf32>
    %cst_105 = arith.constant dense<0.000000e+00> : vector<8x8xf32>
    %383 = vector.multi_reduction <add>, %382, %cst_105 [2] : vector<8x8x2xf32> to vector<8x8xf32>
    %384 = vector.shape_cast %383 : vector<8x8xf32> to vector<8x8x1xf32>
    %385 = arith.addf %378, %384 : vector<8x8x1xf32>
    %386 = vector.extract_strided_slice %103 {offsets = [5, 10, 0], sizes = [8, 8, 2], strides = [1, 1, 1]} : vector<14x24x2xf32> to vector<8x8x2xf32>
    %387 = vector.extract_strided_slice %104 {offsets = [5, 5, 0], sizes = [1, 1, 2], strides = [1, 1, 1]} : vector<7x7x2xf32> to vector<1x1x2xf32>
    %388 = vector.broadcast %387 : vector<1x1x2xf32> to vector<8x8x2xf32>
    %389 = arith.mulf %386, %388 : vector<8x8x2xf32>
    %cst_106 = arith.constant dense<0.000000e+00> : vector<8x8xf32>
    %390 = vector.multi_reduction <add>, %389, %cst_106 [2] : vector<8x8x2xf32> to vector<8x8xf32>
    %391 = vector.shape_cast %390 : vector<8x8xf32> to vector<8x8x1xf32>
    %392 = arith.addf %385, %391 : vector<8x8x1xf32>
    %393 = vector.extract_strided_slice %103 {offsets = [5, 11, 0], sizes = [8, 8, 2], strides = [1, 1, 1]} : vector<14x24x2xf32> to vector<8x8x2xf32>
    %394 = vector.extract_strided_slice %104 {offsets = [5, 6, 0], sizes = [1, 1, 2], strides = [1, 1, 1]} : vector<7x7x2xf32> to vector<1x1x2xf32>
    %395 = vector.broadcast %394 : vector<1x1x2xf32> to vector<8x8x2xf32>
    %396 = arith.mulf %393, %395 : vector<8x8x2xf32>
    %cst_107 = arith.constant dense<0.000000e+00> : vector<8x8xf32>
    %397 = vector.multi_reduction <add>, %396, %cst_107 [2] : vector<8x8x2xf32> to vector<8x8xf32>
    %398 = vector.shape_cast %397 : vector<8x8xf32> to vector<8x8x1xf32>
    %399 = arith.addf %392, %398 : vector<8x8x1xf32>
    %400 = vector.extract_strided_slice %103 {offsets = [6, 5, 0], sizes = [8, 8, 2], strides = [1, 1, 1]} : vector<14x24x2xf32> to vector<8x8x2xf32>
    %401 = vector.extract_strided_slice %104 {offsets = [6, 0, 0], sizes = [1, 1, 2], strides = [1, 1, 1]} : vector<7x7x2xf32> to vector<1x1x2xf32>
    %402 = vector.broadcast %401 : vector<1x1x2xf32> to vector<8x8x2xf32>
    %403 = arith.mulf %400, %402 : vector<8x8x2xf32>
    %cst_108 = arith.constant dense<0.000000e+00> : vector<8x8xf32>
    %404 = vector.multi_reduction <add>, %403, %cst_108 [2] : vector<8x8x2xf32> to vector<8x8xf32>
    %405 = vector.shape_cast %404 : vector<8x8xf32> to vector<8x8x1xf32>
    %406 = arith.addf %399, %405 : vector<8x8x1xf32>
    %407 = vector.extract_strided_slice %103 {offsets = [6, 6, 0], sizes = [8, 8, 2], strides = [1, 1, 1]} : vector<14x24x2xf32> to vector<8x8x2xf32>
    %408 = vector.extract_strided_slice %104 {offsets = [6, 1, 0], sizes = [1, 1, 2], strides = [1, 1, 1]} : vector<7x7x2xf32> to vector<1x1x2xf32>
    %409 = vector.broadcast %408 : vector<1x1x2xf32> to vector<8x8x2xf32>
    %410 = arith.mulf %407, %409 : vector<8x8x2xf32>
    %cst_109 = arith.constant dense<0.000000e+00> : vector<8x8xf32>
    %411 = vector.multi_reduction <add>, %410, %cst_109 [2] : vector<8x8x2xf32> to vector<8x8xf32>
    %412 = vector.shape_cast %411 : vector<8x8xf32> to vector<8x8x1xf32>
    %413 = arith.addf %406, %412 : vector<8x8x1xf32>
    %414 = vector.extract_strided_slice %103 {offsets = [6, 7, 0], sizes = [8, 8, 2], strides = [1, 1, 1]} : vector<14x24x2xf32> to vector<8x8x2xf32>
    %415 = vector.extract_strided_slice %104 {offsets = [6, 2, 0], sizes = [1, 1, 2], strides = [1, 1, 1]} : vector<7x7x2xf32> to vector<1x1x2xf32>
    %416 = vector.broadcast %415 : vector<1x1x2xf32> to vector<8x8x2xf32>
    %417 = arith.mulf %414, %416 : vector<8x8x2xf32>
    %cst_110 = arith.constant dense<0.000000e+00> : vector<8x8xf32>
    %418 = vector.multi_reduction <add>, %417, %cst_110 [2] : vector<8x8x2xf32> to vector<8x8xf32>
    %419 = vector.shape_cast %418 : vector<8x8xf32> to vector<8x8x1xf32>
    %420 = arith.addf %413, %419 : vector<8x8x1xf32>
    %421 = vector.extract_strided_slice %103 {offsets = [6, 8, 0], sizes = [8, 8, 2], strides = [1, 1, 1]} : vector<14x24x2xf32> to vector<8x8x2xf32>
    %422 = vector.extract_strided_slice %104 {offsets = [6, 3, 0], sizes = [1, 1, 2], strides = [1, 1, 1]} : vector<7x7x2xf32> to vector<1x1x2xf32>
    %423 = vector.broadcast %422 : vector<1x1x2xf32> to vector<8x8x2xf32>
    %424 = arith.mulf %421, %423 : vector<8x8x2xf32>
    %cst_111 = arith.constant dense<0.000000e+00> : vector<8x8xf32>
    %425 = vector.multi_reduction <add>, %424, %cst_111 [2] : vector<8x8x2xf32> to vector<8x8xf32>
    %426 = vector.shape_cast %425 : vector<8x8xf32> to vector<8x8x1xf32>
    %427 = arith.addf %420, %426 : vector<8x8x1xf32>
    %428 = vector.extract_strided_slice %103 {offsets = [6, 9, 0], sizes = [8, 8, 2], strides = [1, 1, 1]} : vector<14x24x2xf32> to vector<8x8x2xf32>
    %429 = vector.extract_strided_slice %104 {offsets = [6, 4, 0], sizes = [1, 1, 2], strides = [1, 1, 1]} : vector<7x7x2xf32> to vector<1x1x2xf32>
    %430 = vector.broadcast %429 : vector<1x1x2xf32> to vector<8x8x2xf32>
    %431 = arith.mulf %428, %430 : vector<8x8x2xf32>
    %cst_112 = arith.constant dense<0.000000e+00> : vector<8x8xf32>
    %432 = vector.multi_reduction <add>, %431, %cst_112 [2] : vector<8x8x2xf32> to vector<8x8xf32>
    %433 = vector.shape_cast %432 : vector<8x8xf32> to vector<8x8x1xf32>
    %434 = arith.addf %427, %433 : vector<8x8x1xf32>
    %435 = vector.extract_strided_slice %103 {offsets = [6, 10, 0], sizes = [8, 8, 2], strides = [1, 1, 1]} : vector<14x24x2xf32> to vector<8x8x2xf32>
    %436 = vector.extract_strided_slice %104 {offsets = [6, 5, 0], sizes = [1, 1, 2], strides = [1, 1, 1]} : vector<7x7x2xf32> to vector<1x1x2xf32>
    %437 = vector.broadcast %436 : vector<1x1x2xf32> to vector<8x8x2xf32>
    %438 = arith.mulf %435, %437 : vector<8x8x2xf32>
    %cst_113 = arith.constant dense<0.000000e+00> : vector<8x8xf32>
    %439 = vector.multi_reduction <add>, %438, %cst_113 [2] : vector<8x8x2xf32> to vector<8x8xf32>
    %440 = vector.shape_cast %439 : vector<8x8xf32> to vector<8x8x1xf32>
    %441 = arith.addf %434, %440 : vector<8x8x1xf32>
    %442 = vector.extract_strided_slice %103 {offsets = [6, 11, 0], sizes = [8, 8, 2], strides = [1, 1, 1]} : vector<14x24x2xf32> to vector<8x8x2xf32>
    %443 = vector.extract_strided_slice %104 {offsets = [6, 6, 0], sizes = [1, 1, 2], strides = [1, 1, 1]} : vector<7x7x2xf32> to vector<1x1x2xf32>
    %444 = vector.broadcast %443 : vector<1x1x2xf32> to vector<8x8x2xf32>
    %445 = arith.mulf %442, %444 : vector<8x8x2xf32>
    %cst_114 = arith.constant dense<0.000000e+00> : vector<8x8xf32>
    %446 = vector.multi_reduction <add>, %445, %cst_114 [2] : vector<8x8x2xf32> to vector<8x8xf32>
    %447 = vector.shape_cast %446 : vector<8x8xf32> to vector<8x8x1xf32>
    %448 = arith.addf %441, %447 : vector<8x8x1xf32>
    %c0_115 = arith.constant 0 : index
    %c0_116 = arith.constant 0 : index
    %449 = vector.load %arg11[%c0_115, %c0_116] : memref<1x1xf32, #tpu.memory_space<vmem>>, vector<1x1xf32>
    %450 = vector.shape_cast %449 : vector<1x1xf32> to vector<1x1x1xf32>
    %451 = vector.broadcast %450 : vector<1x1x1xf32> to vector<8x8x1xf32>
    %452 = arith.addf %448, %451 : vector<8x8x1xf32>
    %453 = arith.negf %452 : vector<8x8x1xf32>
    %454 = math.exp %453 : vector<8x8x1xf32>
    %cst_117 = arith.constant 1.000000e+00 : f32
    %455 = vector.broadcast %cst_117 : f32 to vector<8x8x1xf32>
    %456 = arith.addf %455, %454 : vector<8x8x1xf32>
    %457 = arith.divf %455, %456 : vector<8x8x1xf32>
    %458 = vector.shape_cast %457 : vector<8x8x1xf32> to vector<64x1xf32>
    %cst_118 = arith.constant 1.000000e+00 : f32
    %459 = vector.broadcast %cst_118 : f32 to vector<64x1xf32>
    %460 = vector.broadcast %458 : vector<64x1xf32> to vector<64x32xf32>
    %461 = arith.mulf %62, %460 : vector<64x32xf32>
    %462 = tpu.concatenate %461, %458 in 1 : vector<64x32xf32>, vector<64x1xf32> -> vector<64x33xf32>
    %463 = tpu.concatenate %62, %459 in 1 : vector<64x32xf32>, vector<64x1xf32> -> vector<64x33xf32>
    %c0_119 = arith.constant 0 : index
    %c0_120 = arith.constant 0 : index
    %464 = vector.load %arg8[%c0_119, %c0_120] : memref<3x33xf32, #tpu.memory_space<vmem>>, vector<3x33xf32>
    %cst_121 = arith.constant dense<0.000000e+00> : vector<3x64xf32>
    %465 = tpu.matmul %464, %462, %cst_121 {dimension_numbers = #tpu.dot_dimension_numbers<[1], [1], [0], [0], [0, 0, 1, 0], [], []>} : vector<3x33xf32>, vector<64x33xf32>, vector<3x64xf32> -> vector<3x64xf32>
    %c0_122 = arith.constant 0 : index
    %c0_123 = arith.constant 0 : index
    %c0_124 = arith.constant 0 : index
    %466 = vector.load %arg12[%c0_122, %c0_123, %c0_124] : memref<1x3x64xf32, #tpu.memory_space<vmem>>, vector<1x3x64xf32>
    %467 = vector.shape_cast %466 : vector<1x3x64xf32> to vector<3x64xf32>
    %468 = vector.shape_cast %465 : vector<3x64xf32> to vector<1x3x64xf32>
    tpu.vector_store %arg12[%c0_122, %c0_123, %c0_124], %468 {strides = array<i32>} : memref<1x3x64xf32, #tpu.memory_space<vmem>>, vector<1x3x64xf32>,
    %c0_125 = arith.constant 0 : index
    %c0_126 = arith.constant 0 : index
    %469 = vector.load %arg9[%c0_125, %c0_126] : memref<12x33xf32, #tpu.memory_space<vmem>>, vector<12x33xf32>
    %cst_127 = arith.constant dense<0.000000e+00> : vector<12x64xf32>
    %470 = tpu.matmul %469, %463, %cst_127 {dimension_numbers = #tpu.dot_dimension_numbers<[1], [1], [0], [0], [0, 0, 1, 0], [], []>} : vector<12x33xf32>, vector<64x33xf32>, vector<12x64xf32> -> vector<12x64xf32>
    %c0_128 = arith.constant 0 : index
    %c0_129 = arith.constant 0 : index
    %c0_130 = arith.constant 0 : index
    %471 = vector.load %arg13[%c0_128, %c0_129, %c0_130] : memref<1x12x64xf32, #tpu.memory_space<vmem>>, vector<1x12x64xf32>
    %472 = vector.shape_cast %471 : vector<1x12x64xf32> to vector<12x64xf32>
    %473 = vector.shape_cast %470 : vector<12x64xf32> to vector<1x12x64xf32>
    tpu.vector_store %arg13[%c0_128, %c0_129, %c0_130], %473 {strides = array<i32>} : memref<1x12x64xf32, #tpu.memory_space<vmem>>, vector<1x12x64xf32>,
    return
  }
  func.func @transform_0(%arg0: i32) -> (i32, i32, i32, i32) {
    %c0_i32 = arith.constant 0 : i32
    %c0_i32_0 = arith.constant 0 : i32
    %c0_i32_1 = arith.constant 0 : i32
    %c0_i32_2 = arith.constant 0 : i32
    return %arg0, %c0_i32, %c0_i32_0, %c0_i32_1 : i32, i32, i32, i32
  }
  func.func @transform_1(%arg0: i32) -> (i32, i32, i32) {
    %c0_i32 = arith.constant 0 : i32
    %c0_i32_0 = arith.constant 0 : i32
    %c0_i32_1 = arith.constant 0 : i32
    %c0_i32_2 = arith.constant 0 : i32
    return %c0_i32, %c0_i32_0, %c0_i32_1 : i32, i32, i32
  }
  func.func @transform_2(%arg0: i32) -> (i32, i32) {
    %c0_i32 = arith.constant 0 : i32
    %c0_i32_0 = arith.constant 0 : i32
    %c0_i32_1 = arith.constant 0 : i32
    return %c0_i32, %c0_i32_0 : i32, i32
  }
  func.func @transform_3(%arg0: i32) -> (i32, i32) {
    %c0_i32 = arith.constant 0 : i32
    %c0_i32_0 = arith.constant 0 : i32
    %c0_i32_1 = arith.constant 0 : i32
    return %c0_i32, %c0_i32_0 : i32, i32
  }
  func.func @transform_4(%arg0: i32) -> (i32, i32) {
    %c0_i32 = arith.constant 0 : i32
    %c0_i32_0 = arith.constant 0 : i32
    %c0_i32_1 = arith.constant 0 : i32
    return %c0_i32, %c0_i32_0 : i32, i32
  }
  func.func @transform_5(%arg0: i32) -> (i32, i32) {
    %c0_i32 = arith.constant 0 : i32
    %c0_i32_0 = arith.constant 0 : i32
    %c0_i32_1 = arith.constant 0 : i32
    return %c0_i32, %c0_i32_0 : i32, i32
  }
  func.func @transform_6(%arg0: i32) -> (i32, i32) {
    %c0_i32 = arith.constant 0 : i32
    %c0_i32_0 = arith.constant 0 : i32
    %c0_i32_1 = arith.constant 0 : i32
    return %c0_i32, %c0_i32_0 : i32, i32
  }
  func.func @transform_7(%arg0: i32) -> (i32, i32) {
    %c0_i32 = arith.constant 0 : i32
    %c0_i32_0 = arith.constant 0 : i32
    %c0_i32_1 = arith.constant 0 : i32
    return %c0_i32, %c0_i32_0 : i32, i32
  }
  func.func @transform_8(%arg0: i32) -> (i32, i32) {
    %c0_i32 = arith.constant 0 : i32
    %c0_i32_0 = arith.constant 0 : i32
    %c0_i32_1 = arith.constant 0 : i32
    return %c0_i32, %c0_i32_0 : i32, i32
  }
  func.func @transform_9(%arg0: i32) -> (i32, i32, i32) {
    %c0_i32 = arith.constant 0 : i32
    %c0_i32_0 = arith.constant 0 : i32
    %c0_i32_1 = arith.constant 0 : i32
    %c0_i32_2 = arith.constant 0 : i32
    return %c0_i32, %c0_i32_0, %c0_i32_1 : i32, i32, i32
  }
  func.func @transform_10(%arg0: i32) -> (i32, i32) {
    %c0_i32 = arith.constant 0 : i32
    %c0_i32_0 = arith.constant 0 : i32
    %c0_i32_1 = arith.constant 0 : i32
    return %c0_i32, %c0_i32_0 : i32, i32
  }
  func.func @transform_11(%arg0: i32) -> (i32, i32, i32) {
    %c0_i32 = arith.constant 0 : i32
    %c0_i32_0 = arith.constant 0 : i32
    %c0_i32_1 = arith.constant 0 : i32
    return %arg0, %c0_i32, %c0_i32_0 : i32, i32, i32
  }
  func.func @transform_12(%arg0: i32) -> (i32, i32, i32) {
    %c0_i32 = arith.constant 0 : i32
    %c0_i32_0 = arith.constant 0 : i32
    %c0_i32_1 = arith.constant 0 : i32
    return %arg0, %c0_i32, %c0_i32_0 : i32, i32, i32
  }
}

</mosaic_0001>

<llo_original>
// kernel: _forward_one_level.1
$region0: #{_forward_one_level.1}
  #allocation0 [shape = 'u32[]', space=smem, size = 0x4, offset = 0x4, fixed_abs, tag = 'smem constant byte address 0x4 - core index']
  #allocation1 [shape = 'u32[144,128]{1,0:T(1,128)}', space=vmem, size = 0x12000, scoped, tag = 'internal scratch']
  #allocation2 [shape = 'f32[14,24,2]{2,1,0:T(8,128)}', space=vmem, size = 0x2a000, scoped, tag = 'scratch operand']
  #allocation3 [shape = 'f32[1,1]{1,0:T(1,128)S(1)}', space=vmem, size = 0x200, scoped, tag = 'scoped memory for _forward_one_level.1']
  %s0 = inlined_call_operand.vmem [shape: bf16[2,10,10,32], index: 0, kind: input, shape index: {}]
  %s1 = inlined_call_operand.vmem [shape: f32[9,32,32], index: 1, kind: input, shape index: {}]
  %s2 = inlined_call_operand.vmem [shape: f32[1,32], index: 2, kind: input, shape index: {}]
  %s3 = inlined_call_operand.vmem [shape: f32[32,2], index: 3, kind: input, shape index: {}]
  %s4 = inlined_call_operand.vmem [shape: f32[1,2], index: 4, kind: input, shape index: {}]
  %s5 = inlined_call_operand.vmem [shape: f32[2,32], index: 5, kind: input, shape index: {}]
  %s6 = inlined_call_operand.vmem [shape: f32[1,32], index: 6, kind: input, shape index: {}]
  %s7 = inlined_call_operand.vmem [shape: f32[3,33], index: 7, kind: input, shape index: {}]
  %s8 = inlined_call_operand.vmem [shape: f32[12,33], index: 8, kind: input, shape index: {}]
  %s9 = inlined_call_operand.vmem [shape: f32[7,7,2], index: 9, kind: input, shape index: {}]
  %s10 = inlined_call_operand.<no memory space> [shape: f32[1,1], index: 10, kind: input, shape index: {}]
  %s11 = inlined_call_operand.vmem [shape: f32[2,3,64], index: 11, kind: output, shape index: {0}]
  %s12 = inlined_call_operand.vmem [shape: f32[2,12,64], index: 12, kind: output, shape index: {1}]
  %13 = xla_tuple %s11, %s12
  %s14 = sld [smem:[#allocation0]]
  $region85: #{_forward_one_level.1} parent=0
    _
  %s16 = ssub.s32 1, %s14
  %s17 = scalar_select 0, %s16, %s14
  %v18 = vstv %s10
  %19 = vst [vmem:[#allocation3] sm:$0x1] %v18
  loop: start=0, step=1, limit=4
  $region2: #{_forward_one_level.1} parent=0 // loop_pre_header
    _
  $region3: #{_forward_one_level.1} parent=0 // loop_header
    %s21 = sphi 0, %s25
    %p22 = scmp.ge.s32.totalorder %s21, 4
    %s31 = sphi 0, %s33
    %s34 = sphi 0, %s31
    %s35 = sphi 0, %s34
    %s51 = sphi 0, %s35
    %s55 = sphi 0, %s55
    %s57 = sphi 0, %s55
    %s58 = sphi 0, %s57
    %s72 = sphi 0, %s58
    %s76 = sphi 0, %s76
    %s78 = sphi 0, %s76
    %s79 = sphi 0, %s78
    %s93 = sphi 0, %s79
    %s97 = sphi 0, %s97
    %s99 = sphi 0, %s97
    %s100 = sphi 0, %s99
    %s114 = sphi 0, %s100
    %s118 = sphi 0, %s118
    %s120 = sphi 0, %s118
    %s121 = sphi 0, %s120
    %s135 = sphi 0, %s121
    %s139 = sphi 0, %s139
    %s141 = sphi 0, %s139
    %s142 = sphi 0, %s141
    %s156 = sphi 0, %s142
    %s160 = sphi 0, %s160
    %s162 = sphi 0, %s160
    %s163 = sphi 0, %s162
    %s177 = sphi 0, %s163
    %s181 = sphi 0, %s181
    %s183 = sphi 0, %s181
    %s184 = sphi 0, %s183
    %s198 = sphi 0, %s184
    %s202 = sphi 0, %s202
    %s204 = sphi 0, %s202
    %s205 = sphi 0, %s204
    %s219 = sphi 0, %s205
    %s223 = sphi 0, %s223
    %s225 = sphi 0, %s223
    %s226 = sphi 0, %s225
    %s240 = sphi 0, %s226
    %s244 = sphi 0, %s244
    %s246 = sphi 0, %s244
    %s247 = sphi 0, %s246
    %s261 = sphi 0, %s247
    %s267 = sphi 0, %s269
    %s270 = sphi 0, %s267
    %s271 = sphi 0, %s270
    %s287 = sphi 0, %s271
    %s293 = sphi 0, %s295
    %s296 = sphi 0, %s293
    %s297 = sphi 0, %s296
    %s313 = sphi 0, %s297
  $region4: #{_forward_one_level.1} parent=0 // loop_header_branch
    %24 = sbr.rel (%p22) target = $region8
  $region5: #{_forward_one_level.1} parent=0 // loop_body
    %s26 = ssub.s32 %s21, 1
    %s27 = ssub.s32 %s21, 2
    %s28 = sadd.s32 %s21, 1
    %s29 = ssub.s32 %s21, %s28
    %p30 = scmp.eq.s32.totalorder %s29, 0
    %s32 = sadd.s32 %s31, 1
    %s33 = scalar_select %p30, %s31, %s32
    %p36 = pneg %p30
    %p37 = scmp.eq.s32.totalorder %s21, 1
    %p38 = por %p36, %p37
    %p39 = scmp.ne.s32.totalorder %s31, %s34
    %p40 = scmp.eq.s32.totalorder %s21, 0
    %p41 = por %p39, %p40
    %p42 = scmp.ne.s32.totalorder %s31, %s34
    %p43 = scmp.eq.s32.totalorder %s26, 1
    %p44 = por %p42, %p43
    %p45 = scmp.ne.s32.totalorder %s34, %s35
    %p46 = scmp.eq.s32.totalorder %s26, 0
    %p47 = por %p45, %p46
    %p48 = scmp.ne.s32.totalorder %s34, %s35
    %p49 = scmp.eq.s32.totalorder %s27, 1
    %p50 = por %p48, %p49
    %p52 = scmp.ne.s32.totalorder %s35, %s51
    %p53 = scmp.eq.s32.totalorder %s27, 0
    %p54 = por %p52, %p53
    %s56 = sadd.s32 %s55, 1
    %p59 = scmp.eq.s32.totalorder %s21, 1
    %p60 = scmp.ne.s32.totalorder %s55, %s57
    %p61 = scmp.eq.s32.totalorder %s21, 0
    %p62 = por %p60, %p61
    %p63 = scmp.ne.s32.totalorder %s55, %s57
    %p64 = scmp.eq.s32.totalorder %s26, 1
    %p65 = por %p63, %p64
    %p66 = scmp.ne.s32.totalorder %s57, %s58
    %p67 = scmp.eq.s32.totalorder %s26, 0
    %p68 = por %p66, %p67
    %p69 = scmp.ne.s32.totalorder %s57, %s58
    %p70 = scmp.eq.s32.totalorder %s27, 1
    %p71 = por %p69, %p70
    %p73 = scmp.ne.s32.totalorder %s58, %s72
    %p74 = scmp.eq.s32.totalorder %s27, 0
    %p75 = por %p73, %p74
    %s77 = sadd.s32 %s76, 1
    %p80 = scmp.eq.s32.totalorder %s21, 1
    %p81 = scmp.ne.s32.totalorder %s76, %s78
    %p82 = scmp.eq.s32.totalorder %s21, 0
    %p83 = por %p81, %p82
    %p84 = scmp.ne.s32.totalorder %s76, %s78
    %p85 = scmp.eq.s32.totalorder %s26, 1
    %p86 = por %p84, %p85
    %p87 = scmp.ne.s32.totalorder %s78, %s79
    %p88 = scmp.eq.s32.totalorder %s26, 0
    %p89 = por %p87, %p88
    %p90 = scmp.ne.s32.totalorder %s78, %s79
    %p91 = scmp.eq.s32.totalorder %s27, 1
    %p92 = por %p90, %p91
    %p94 = scmp.ne.s32.totalorder %s79, %s93
    %p95 = scmp.eq.s32.totalorder %s27, 0
    %p96 = por %p94, %p95
    %s98 = sadd.s32 %s97, 1
    %p101 = scmp.eq.s32.totalorder %s21, 1
    %p102 = scmp.ne.s32.totalorder %s97, %s99
    %p103 = scmp.eq.s32.totalorder %s21, 0
    %p104 = por %p102, %p103
    %p105 = scmp.ne.s32.totalorder %s97, %s99
    %p106 = scmp.eq.s32.totalorder %s26, 1
    %p107 = por %p105, %p106
    %p108 = scmp.ne.s32.totalorder %s99, %s100
    %p109 = scmp.eq.s32.totalorder %s26, 0
    %p110 = por %p108, %p109
    %p111 = scmp.ne.s32.totalorder %s99, %s100
    %p112 = scmp.eq.s32.totalorder %s27, 1
    %p113 = por %p111, %p112
    %p115 = scmp.ne.s32.totalorder %s100, %s114
    %p116 = scmp.eq.s32.totalorder %s27, 0
    %p117 = por %p115, %p116
    %s119 = sadd.s32 %s118, 1
    %p122 = scmp.eq.s32.totalorder %s21, 1
    %p123 = scmp.ne.s32.totalorder %s118, %s120
    %p124 = scmp.eq.s32.totalorder %s21, 0
    %p125 = por %p123, %p124
    %p126 = scmp.ne.s32.totalorder %s118, %s120
    %p127 = scmp.eq.s32.totalorder %s26, 1
    %p128 = por %p126, %p127
    %p129 = scmp.ne.s32.totalorder %s120, %s121
    %p130 = scmp.eq.s32.totalorder %s26, 0
    %p131 = por %p129, %p130
    %p132 = scmp.ne.s32.totalorder %s120, %s121
    %p133 = scmp.eq.s32.totalorder %s27, 1
    %p134 = por %p132, %p133
    %p136 = scmp.ne.s32.totalorder %s121, %s135
    %p137 = scmp.eq.s32.totalorder %s27, 0
    %p138 = por %p136, %p137
    %s140 = sadd.s32 %s139, 1
    %p143 = scmp.eq.s32.totalorder %s21, 1
    %p144 = scmp.ne.s32.totalorder %s139, %s141
    %p145 = scmp.eq.s32.totalorder %s21, 0
    %p146 = por %p144, %p145
    %p147 = scmp.ne.s32.totalorder %s139, %s141
    %p148 = scmp.eq.s32.totalorder %s26, 1
    %p149 = por %p147, %p148
    %p150 = scmp.ne.s32.totalorder %s141, %s142
    %p151 = scmp.eq.s32.totalorder %s26, 0
    %p152 = por %p150, %p151
    %p153 = scmp.ne.s32.totalorder %s141, %s142
    %p154 = scmp.eq.s32.totalorder %s27, 1
    %p155 = por %p153, %p154
    %p157 = scmp.ne.s32.totalorder %s142, %s156
    %p158 = scmp.eq.s32.totalorder %s27, 0
    %p159 = por %p157, %p158
    %s161 = sadd.s32 %s160, 1
    %p164 = scmp.eq.s32.totalorder %s21, 1
    %p165 = scmp.ne.s32.totalorder %s160, %s162
    %p166 = scmp.eq.s32.totalorder %s21, 0
    %p167 = por %p165, %p166
    %p168 = scmp.ne.s32.totalorder %s160, %s162
    %p169 = scmp.eq.s32.totalorder %s26, 1
    %p170 = por %p168, %p169
    %p171 = scmp.ne.s32.totalorder %s162, %s163
    %p172 = scmp.eq.s32.totalorder %s26, 0
    %p173 = por %p171, %p172
    %p174 = scmp.ne.s32.totalorder %s162, %s163
    %p175 = scmp.eq.s32.totalorder %s27, 1
    %p176 = por %p174, %p175
    %p178 = scmp.ne.s32.totalorder %s163, %s177
    %p179 = scmp.eq.s32.totalorder %s27, 0
    %p180 = por %p178, %p179
    %s182 = sadd.s32 %s181, 1
    %p185 = scmp.eq.s32.totalorder %s21, 1
    %p186 = scmp.ne.s32.totalorder %s181, %s183
    %p187 = scmp.eq.s32.totalorder %s21, 0
    %p188 = por %p186, %p187
    %p189 = scmp.ne.s32.totalorder %s181, %s183
    %p190 = scmp.eq.s32.totalorder %s26, 1
    %p191 = por %p189, %p190
    %p192 = scmp.ne.s32.totalorder %s183, %s184
    %p193 = scmp.eq.s32.totalorder %s26, 0
    %p194 = por %p192, %p193
    %p195 = scmp.ne.s32.totalorder %s183, %s184
    %p196 = scmp.eq.s32.totalorder %s27, 1
    %p197 = por %p195, %p196
    %p199 = scmp.ne.s32.totalorder %s184, %s198
    %p200 = scmp.eq.s32.totalorder %s27, 0
    %p201 = por %p199, %p200
    %s203 = sadd.s32 %s202, 1
    %p206 = scmp.eq.s32.totalorder %s21, 1
    %p207 = scmp.ne.s32.totalorder %s202, %s204
    %p208 = scmp.eq.s32.totalorder %s21, 0
    %p209 = por %p207, %p208
    %p210 = scmp.ne.s32.totalorder %s202, %s204
    %p211 = scmp.eq.s32.totalorder %s26, 1
    %p212 = por %p210, %p211
    %p213 = scmp.ne.s32.totalorder %s204, %s205
    %p214 = scmp.eq.s32.totalorder %s26, 0
    %p215 = por %p213, %p214
    %p216 = scmp.ne.s32.totalorder %s204, %s205
    %p217 = scmp.eq.s32.totalorder %s27, 1
    %p218 = por %p216, %p217
    %p220 = scmp.ne.s32.totalorder %s205, %s219
    %p221 = scmp.eq.s32.totalorder %s27, 0
    %p222 = por %p220, %p221
    %s224 = sadd.s32 %s223, 1
    %p227 = scmp.eq.s32.totalorder %s21, 1
    %p228 = scmp.ne.s32.totalorder %s223, %s225
    %p229 = scmp.eq.s32.totalorder %s21, 0
    %p230 = por %p228, %p229
    %p231 = scmp.ne.s32.totalorder %s223, %s225
    %p232 = scmp.eq.s32.totalorder %s26, 1
    %p233 = por %p231, %p232
    %p234 = scmp.ne.s32.totalorder %s225, %s226
    %p235 = scmp.eq.s32.totalorder %s26, 0
    %p236 = por %p234, %p235
    %p237 = scmp.ne.s32.totalorder %s225, %s226
    %p238 = scmp.eq.s32.totalorder %s27, 1
    %p239 = por %p237, %p238
    %p241 = scmp.ne.s32.totalorder %s226, %s240
    %p242 = scmp.eq.s32.totalorder %s27, 0
    %p243 = por %p241, %p242
    %s245 = sadd.s32 %s244, 1
    %p248 = scmp.eq.s32.totalorder %s21, 1
    %p249 = scmp.ne.s32.totalorder %s244, %s246
    %p250 = scmp.eq.s32.totalorder %s21, 0
    %p251 = por %p249, %p250
    %p252 = scmp.ne.s32.totalorder %s244, %s246
    %p253 = scmp.eq.s32.totalorder %s26, 1
    %p254 = por %p252, %p253
    %p255 = scmp.ne.s32.totalorder %s246, %s247
    %p256 = scmp.eq.s32.totalorder %s26, 0
    %p257 = por %p255, %p256
    %p258 = scmp.ne.s32.totalorder %s246, %s247
    %p259 = scmp.eq.s32.totalorder %s27, 1
    %p260 = por %p258, %p259
    %p262 = scmp.ne.s32.totalorder %s247, %s261
    %p263 = scmp.eq.s32.totalorder %s27, 0
    %p264 = por %p262, %p263
    %s265 = ssub.s32 %s21, %s28
    %p266 = scmp.eq.s32.totalorder %s265, 0
    %s268 = sadd.s32 %s267, 1
    %s269 = scalar_select %p266, %s267, %s268
    %p272 = pneg %p266
    %p273 = scmp.eq.s32.totalorder %s21, 1
    %p274 = por %p272, %p273
    %p275 = scmp.ne.s32.totalorder %s267, %s270
    %p276 = scmp.eq.s32.totalorder %s21, 0
    %p277 = por %p275, %p276
    %p278 = scmp.ne.s32.totalorder %s267, %s270
    %p279 = scmp.eq.s32.totalorder %s26, 1
    %p280 = por %p278, %p279
    %p281 = scmp.ne.s32.totalorder %s270, %s271
    %p282 = scmp.eq.s32.totalorder %s26, 0
    %p283 = por %p281, %p282
    %p284 = scmp.ne.s32.totalorder %s270, %s271
    %p285 = scmp.eq.s32.totalorder %s27, 1
    %p286 = por %p284, %p285
    %p288 = scmp.ne.s32.totalorder %s271, %s287
    %p289 = scmp.eq.s32.totalorder %s27, 0
    %p290 = por %p288, %p289
    %s291 = ssub.s32 %s21, %s28
    %p292 = scmp.eq.s32.totalorder %s291, 0
    %s294 = sadd.s32 %s293, 1
    %s295 = scalar_select %p292, %s293, %s294
    %p298 = pneg %p292
    %p299 = scmp.eq.s32.totalorder %s21, 1
    %p300 = por %p298, %p299
    %p301 = scmp.ne.s32.totalorder %s293, %s296
    %p302 = scmp.eq.s32.totalorder %s21, 0
    %p303 = por %p301, %p302
    %p304 = scmp.ne.s32.totalorder %s293, %s296
    %p305 = scmp.eq.s32.totalorder %s26, 1
    %p306 = por %p304, %p305
    %p307 = scmp.ne.s32.totalorder %s296, %s297
    %p308 = scmp.eq.s32.totalorder %s26, 0
    %p309 = por %p307, %p308
    %p310 = scmp.ne.s32.totalorder %s296, %s297
    %p311 = scmp.eq.s32.totalorder %s27, 1
    %p312 = por %p310, %p311
    %p314 = scmp.ne.s32.totalorder %s297, %s313
    %p315 = scmp.eq.s32.totalorder %s27, 0
    %p316 = por %p314, %p315
    %p317 = scmp.le.s32.totalorder 1, %s21
    %p318 = scmp.lt.s32.totalorder %s21, 3
    %p319 = pnand %p317, %p318
    %p320 = pneg %p319
    // Predicated region
    $region9: #{_forward_one_level.1} parent=5 // pred_check
      _
    $region10: #{_forward_one_level.1} parent=5 // pred_check_branch
      %322 = sbr.rel (%p319) target = $region12
    $region11: #{_forward_one_level.1} parent=5 // pred_region
      %s323 = ssub.s32 %s21, 1
      // Predicated region
      $region13: #{_forward_one_level.1} parent=11 // pred_check
        %p324 = pneg %p68
      $region14: #{_forward_one_level.1} parent=11 // pred_check_branch
        %326 = sbr.rel (%p324) target = $region16
      $region15: #{_forward_one_level.1} parent=11 // pred_region
        _
      $region16: #{_forward_one_level.1} parent=11 // pred_fallthru
        _
      // Predicated region
      $region17: #{_forward_one_level.1} parent=11 // pred_check
        %p327 = pneg %p89
      $region18: #{_forward_one_level.1} parent=11 // pred_check_branch
        %329 = sbr.rel (%p327) target = $region20
      $region19: #{_forward_one_level.1} parent=11 // pred_region
        _
      $region20: #{_forward_one_level.1} parent=11 // pred_fallthru
        _
      // Predicated region
      $region21: #{_forward_one_level.1} parent=11 // pred_check
        %p330 = pneg %p110
      $region22: #{_forward_one_level.1} parent=11 // pred_check_branch
        %332 = sbr.rel (%p330) target = $region24
      $region23: #{_forward_one_level.1} parent=11 // pred_region
        _
      $region24: #{_forward_one_level.1} parent=11 // pred_fallthru
        _
      // Predicated region
      $region25: #{_forward_one_level.1} parent=11 // pred_check
        %p333 = pneg %p131
      $region26: #{_forward_one_level.1} parent=11 // pred_check_branch
        %335 = sbr.rel (%p333) target = $region28
      $region27: #{_forward_one_level.1} parent=11 // pred_region
        _
      $region28: #{_forward_one_level.1} parent=11 // pred_fallthru
        _
      // Predicated region
      $region29: #{_forward_one_level.1} parent=11 // pred_check
        %p336 = pneg %p152
      $region30: #{_forward_one_level.1} parent=11 // pred_check_branch
        %338 = sbr.rel (%p336) target = $region32
      $region31: #{_forward_one_level.1} parent=11 // pred_region
        _
      $region32: #{_forward_one_level.1} parent=11 // pred_fallthru
        _
      // Predicated region
      $region33: #{_forward_one_level.1} parent=11 // pred_check
        %p339 = pneg %p173
      $region34: #{_forward_one_level.1} parent=11 // pred_check_branch
        %341 = sbr.rel (%p339) target = $region36
      $region35: #{_forward_one_level.1} parent=11 // pred_region
        _
      $region36: #{_forward_one_level.1} parent=11 // pred_fallthru
        _
      // Predicated region
      $region37: #{_forward_one_level.1} parent=11 // pred_check
        %p342 = pneg %p194
      $region38: #{_forward_one_level.1} parent=11 // pred_check_branch
        %344 = sbr.rel (%p342) target = $region40
      $region39: #{_forward_one_level.1} parent=11 // pred_region
        _
      $region40: #{_forward_one_level.1} parent=11 // pred_fallthru
        _
      // Predicated region
      $region41: #{_forward_one_level.1} parent=11 // pred_check
        %p345 = pneg %p215
      $region42: #{_forward_one_level.1} parent=11 // pred_check_branch
        %347 = sbr.rel (%p345) target = $region44
      $region43: #{_forward_one_level.1} parent=11 // pred_region
        _
      $region44: #{_forward_one_level.1} parent=11 // pred_fallthru
        _
      // Predicated region
      $region45: #{_forward_one_level.1} parent=11 // pred_check
        %p348 = pneg %p236
      $region46: #{_forward_one_level.1} parent=11 // pred_check_branch
        %350 = sbr.rel (%p348) target = $region48
      $region47: #{_forward_one_level.1} parent=11 // pred_region
        _
      $region48: #{_forward_one_level.1} parent=11 // pred_fallthru
        _
      // Predicated region
      $region49: #{_forward_one_level.1} parent=11 // pred_check
        %p351 = pneg %p257
      $region50: #{_forward_one_level.1} parent=11 // pred_check_branch
        %353 = sbr.rel (%p351) target = $region52
      $region51: #{_forward_one_level.1} parent=11 // pred_region
        _
      $region52: #{_forward_one_level.1} parent=11 // pred_fallthru
        _
    $region12: #{_forward_one_level.1} parent=5 // pred_fallthru
      _
    %p354 = scmp.lt.s32.totalorder %s21, 2
    // Predicated region
    $region53: #{_forward_one_level.1} parent=5 // pred_check
      %p355 = pneg %p354
    $region54: #{_forward_one_level.1} parent=5 // pred_check_branch
      %357 = sbr.rel (%p355) target = $region56
    $region55: #{_forward_one_level.1} parent=5 // pred_region
      // Predicated region
      $region57: #{_forward_one_level.1} parent=55 // pred_check
        %p358 = pneg %p41
      $region58: #{_forward_one_level.1} parent=55 // pred_check_branch
        %360 = sbr.rel (%p358) target = $region60
      $region59: #{_forward_one_level.1} parent=55 // pred_region
        %p361 = scmp.lt.s32.totalorder %s21, 1
        %s362 = scalar_select %p361, %s21, 1
        %s363 = smul.addr %s362, 20
        %s364 = smul.addr %s363, 4
        %s365 = scalar_lea.vmem %s0, %s364
      $region60: #{_forward_one_level.1} parent=55 // pred_fallthru
        _
    $region56: #{_forward_one_level.1} parent=5 // pred_fallthru
      _
    %p366 = scmp.le.s32.totalorder 1, %s21
    %p367 = scmp.lt.s32.totalorder %s21, 3
    %p368 = pnand %p366, %p367
    %p369 = pneg %p368
    // Predicated region
    $region61: #{_forward_one_level.1} parent=5 // pred_check
      _
    $region62: #{_forward_one_level.1} parent=5 // pred_check_branch
      %371 = sbr.rel (%p368) target = $region64
    $region63: #{_forward_one_level.1} parent=5 // pred_region
      %s372 = ssub.s32 %s21, 1
      %p373 = scmp.lt.s32.totalorder %s26, 1
      %s374 = scalar_select %p373, %s26, 1
      %s375 = smul.addr %s374, 20
      %s376 = smul.addr %s375, 4
      %s377 = scalar_lea.vmem %s0, %s376
      %p378 = pneg %p47
      %p379 = pneg %p44
      %p380 = pneg %p68
      %p381 = pneg %p65
      %p382 = pneg %p89
      %p383 = pneg %p86
      %p384 = pneg %p110
      %p385 = pneg %p107
      %p386 = pneg %p131
      %p387 = pneg %p128
      %p388 = pneg %p152
      %p389 = pneg %p149
      %p390 = pneg %p173
      %p391 = pneg %p170
      %p392 = pneg %p194
      %p393 = pneg %p191
      %p394 = pneg %p215
      %p395 = pneg %p212
      %p396 = pneg %p236
      %p397 = pneg %p233
      %p398 = pneg %p257
      %p399 = pneg %p254
      %p400 = pneg %p283
      %p401 = pneg %p280
      %p402 = scmp.lt.s32.totalorder %s26, 1
      %s403 = scalar_select %p402, %s26, 1
      %s404 = smul.addr %s403, 4
      %s405 = scalar_lea.vmem %s11, %s404
      %p406 = pneg %p309
      %p407 = pneg %p306
      %p408 = scmp.lt.s32.totalorder %s26, 1
      %s409 = scalar_select %p408, %s26, 1
      %s410 = smul.addr %s409, 2
      %s411 = smul.addr %s410, 8
      %s412 = scalar_lea.vmem %s12, %s411
      %p413 = scmp.lt.s32.totalorder %s26, 1
      %s414 = scalar_select %p413, %s26, 1
      %s415 = smul.addr %s414, 20
      %s416 = smul.addr %s415, 4
      %s417 = scalar_lea.vmem %s0, %s416
      %p418 = scmp.lt.s32.totalorder %s26, 1
      %s419 = scalar_select %p418, %s26, 1
      %s420 = smul.addr %s419, 4
      %s421 = scalar_lea.vmem %s11, %s420
      %p422 = scmp.lt.s32.totalorder %s26, 1
      %s423 = scalar_select %p422, %s26, 1
      %s424 = smul.addr %s423, 2
      %s425 = smul.addr %s424, 8
      %s426 = scalar_lea.vmem %s12, %s425
      %v427 = vld [vmem:[%s417] sm:$0xf]
      %v428 = vld [vmem:[%s417 + $0x4] sm:$0x1]
      %v429 = vld [vmem:[%s417 + $0x8] sm:$0xf]
      %v430 = vld [vmem:[%s417 + $0xc] sm:$0x1]
      %v431 = vld [vmem:[%s417 + $0x10] sm:$0xf]
      %v432 = vld [vmem:[%s417 + $0x14] sm:$0x1]
      %v433 = vld [vmem:[%s417 + $0x18] sm:$0xf]
      %v434 = vld [vmem:[%s417 + $0x1c] sm:$0x1]
      %v435 = vld [vmem:[%s417 + $0x20] sm:$0xf]
      %v436 = vld [vmem:[%s417 + $0x24] sm:$0x1]
      %v437 = vld [vmem:[%s417 + $0x28] sm:$0xf]
      %v438 = vld [vmem:[%s417 + $0x2c] sm:$0x1]
      %v439 = vld [vmem:[%s417 + $0x30] sm:$0xf]
      %v440 = vld [vmem:[%s417 + $0x34] sm:$0x1]
      %v441 = vld [vmem:[%s417 + $0x38] sm:$0xf]
      %v442 = vld [vmem:[%s417 + $0x3c] sm:$0x1]
      %v443 = vld [vmem:[%s417 + $0x40] sm:$0xf]
      %v444 = vld [vmem:[%s417 + $0x44] sm:$0x1]
      %v445 = vld [vmem:[%s417 + $0x48] sm:$0xf]
      %v446 = vld [vmem:[%s417 + $0x4c] sm:$0x1]
      %v447 = vunpack.c.l.bf16 %v427
      %v448 = vunpack.c.l.bf16 %v428
      %v449 = vunpack.c.l.bf16 %v429
      %v450 = vunpack.c.l.bf16 %v430
      %v451 = vunpack.c.l.bf16 %v431
      %v452 = vunpack.c.l.bf16 %v432
      %v453 = vunpack.c.l.bf16 %v433
      %v454 = vunpack.c.l.bf16 %v434
      %v455 = vunpack.c.l.bf16 %v435
      %v456 = vunpack.c.l.bf16 %v436
      %v457 = vunpack.c.l.bf16 %v437
      %v458 = vunpack.c.l.bf16 %v438
      %v459 = vunpack.c.l.bf16 %v439
      %v460 = vunpack.c.l.bf16 %v440
      %v461 = vunpack.c.l.bf16 %v441
      %v462 = vunpack.c.l.bf16 %v442
      %v463 = vunpack.c.l.bf16 %v443
      %v464 = vunpack.c.l.bf16 %v444
      %v465 = vunpack.c.l.bf16 %v445
      %v466 = vunpack.c.l.bf16 %v446
      %v467 = vld [vmem:[%s1] sm:$0xff]
      %v468 = vld [vmem:[%s1 + $0x8] sm:$0xff]
      %v469 = vld [vmem:[%s1 + $0x10] sm:$0xff]
      %v470 = vld [vmem:[%s1 + $0x18] sm:$0xff]
      %vm487 = vcmask 1046528
      %v488 = vrot.slane %v447, 1
      %v489 = vrot.slane %v448, 1
      %v490 = vsel %vm487, %v488, %v489
      %v491 = vrot.slane %v449, 1
      %v492 = vrot.slane %v450, 1
      %v493 = vsel %vm487, %v491, %v492
      %v494 = vrot.slane %v451, 1
      %v495 = vrot.slane %v452, 1
      %v496 = vsel %vm487, %v494, %v495
      %v497 = vrot.slane %v453, 1
      %v498 = vrot.slane %v454, 1
      %v499 = vsel %vm487, %v497, %v498
      %v500 = vrot.slane %v455, 1
      %v501 = vrot.slane %v456, 1
      %v502 = vsel %vm487, %v500, %v501
      %v503 = vrot.slane %v457, 1
      %v504 = vrot.slane %v458, 1
      %v505 = vsel %vm487, %v503, %v504
      %v506 = vrot.slane %v459, 1
      %v507 = vrot.slane %v460, 1
      %v508 = vsel %vm487, %v506, %v507
      %v509 = vrot.slane %v461, 1
      %v510 = vrot.slane %v462, 1
      %v511 = vsel %vm487, %v509, %v510
      %s512 = scalar_lea.vmem %s1, 32
      %v513 = vld [vmem:[%s512] sm:$0xff]
      %v514 = vld [vmem:[%s512 + $0x8] sm:$0xff]
      %v515 = vld [vmem:[%s512 + $0x10] sm:$0xff]
      %v516 = vld [vmem:[%s512 + $0x18] sm:$0xff]
      %vm517 = vcmask 261120
      %v518 = vsel %vm517, %v490, 0
      %v520 = vsel %vm517, %v493, 0
      %v522 = vsel %vm517, %v496, 0
      %v524 = vsel %vm517, %v499, 0
      %v526 = vsel %vm517, %v502, 0
      %v528 = vsel %vm517, %v505, 0
      %v530 = vsel %vm517, %v508, 0
      %v532 = vsel %vm517, %v511, 0
      %534 = vmatprep.subr.mxu0 0.0
      %535 = vmatpush1.msra.mxu0 %v513
      %536 = vmatprep.subr.mxu0 0.0
      %537 = vmatpush1.msra.mxu0 %v514
      %538 = vmatprep.subr.mxu0 0.0
      %539 = vmatpush1.msra.mxu0 %v515
      %540 = vmatprep.subr.mxu0 0.0
      %541 = vmatpush1.msra.mxu0 %v516
      %542 = vmatprep.subr.mxu0 0.0
      %543 = vmatpush1.msra.mxu0 0.0
      %544 = vmatprep.subr.mxu0 0.0
      %545 = vmatpush1.msra.mxu0 0.0
      %546 = vmatprep.subr.mxu0 0.0
      %547 = vmatpush1.msra.mxu0 0.0
      %548 = vmatprep.subr.mxu0 0.0
      %549 = vmatpush1.msra.mxu0 0.0
      %550 = vmatprep.subr.mxu0 0.0
      %551 = vmatpush1.msra.mxu0 0.0
      %552 = vmatprep.subr.mxu0 0.0
      %553 = vmatpush1.msra.mxu0 0.0
      %554 = vmatprep.subr.mxu0 0.0
      %555 = vmatpush1.msra.mxu0 0.0
      %556 = vmatprep.subr.mxu0 0.0
      %557 = vmatpush1.msra.mxu0 0.0
      %558 = vmatprep.subr.mxu0 0.0
      %559 = vmatpush1.msra.mxu0 0.0
      %560 = vmatprep.subr.mxu0 0.0
      %561 = vmatpush1.msra.mxu0 0.0
      %562 = vmatprep.subr.mxu0 0.0
      %563 = vmatpush1.msra.mxu0 0.0
      %564 = vmatprep.subr.mxu0 0.0
      %565 = vmatpush1.msra.mxu0 0.0
      %566 = vmatprep.subr.mxu0 0.0
      %567 = vmatpush1.msra.mxu0 0.0
      %568 = vmatprep.subr.mxu0 0.0
      %569 = vmatpush1.msra.mxu0 0.0
      %570 = vmatprep.subr.mxu0 0.0
      %571 = vmatpush1.msra.mxu0 0.0
      %572 = vmatprep.subr.mxu0 0.0
      %573 = vmatpush1.msra.mxu0 0.0
      %574 = vmatprep.subr.mxu0 0.0
      %575 = vmatpush1.msra.mxu0 0.0
      %576 = vmatprep.subr.mxu0 0.0
      %577 = vmatpush1.msra.mxu0 0.0
      %578 = vmatprep.subr.mxu0 0.0
      %579 = vmatpush1.msra.mxu0 0.0
      %580 = vmatprep.subr.mxu0 0.0
      %581 = vmatpush1.msra.mxu0 0.0
      %582 = vmatprep.subr.mxu0 0.0
      %583 = vmatpush1.msra.mxu0 0.0
      %584 = vmatprep.subr.mxu0 0.0
      %585 = vmatpush1.msra.mxu0 0.0
      %586 = vmatprep.subr.mxu0 0.0
      %587 = vmatpush1.msra.mxu0 0.0
      %588 = vmatprep.subr.mxu0 0.0
      %589 = vmatpush1.msra.mxu0 0.0
      %590 = vmatprep.subr.mxu0 0.0
      %591 = vmatpush1.msra.mxu0 0.0
      %592 = vmatprep.subr.mxu0 0.0
      %593 = vmatpush1.msra.mxu0 0.0
      %594 = vmatprep.subr.mxu0 0.0
      %595 = vmatpush1.msra.mxu0 0.0
      %596 = vmatprep.subr.mxu0 0.0
      %597 = vmatpush1.msra.mxu0 0.0
      %598 = vmatprep.mubr.f32.mxu0 0.0
      %599 = vmatmul.mubr.f32.gmra.mrb[0].mxu0 %v518
      %v600 = vpop.f32.mrb[0].mxu0
      %v601 = vadd.f32 0.0, %v600
      %v602 = vpop.f32.mrb[0].mxu0
      %603 = vmatprep.mubr.f32.mxu0 0.0
      %604 = vmatmul.mubr.f32.gmra.mrb[0].mxu0 %v520
      %v605 = vpop.f32.mrb[0].mxu0
      %v606 = vadd.f32 0.0, %v605
      %v607 = vpop.f32.mrb[0].mxu0
      %608 = vmatprep.mubr.f32.mxu0 0.0
      %609 = vmatmul.mubr.f32.gmra.mrb[0].mxu0 %v522
      %v610 = vpop.f32.mrb[0].mxu0
      %v611 = vadd.f32 0.0, %v610
      %v612 = vpop.f32.mrb[0].mxu0
      %613 = vmatprep.mubr.f32.mxu0 0.0
      %614 = vmatmul.mubr.f32.gmra.mrb[0].mxu0 %v524
      %v615 = vpop.f32.mrb[0].mxu0
      %v616 = vadd.f32 0.0, %v615
      %v617 = vpop.f32.mrb[0].mxu0
      %618 = vmatprep.mubr.f32.mxu0 0.0
      %619 = vmatmul.mubr.f32.gmra.mrb[0].mxu0 %v526
      %v620 = vpop.f32.mrb[0].mxu0
      %v621 = vadd.f32 0.0, %v620
      %v622 = vpop.f32.mrb[0].mxu0
      %623 = vmatprep.mubr.f32.mxu0 0.0
      %624 = vmatmul.mubr.f32.gmra.mrb[0].mxu0 %v528
      %v625 = vpop.f32.mrb[0].mxu0
      %v626 = vadd.f32 0.0, %v625
      %v627 = vpop.f32.mrb[0].mxu0
      %628 = vmatprep.mubr.f32.mxu0 0.0
      %629 = vmatmul.mubr.f32.gmra.mrb[0].mxu0 %v530
      %v630 = vpop.f32.mrb[0].mxu0
      %v631 = vadd.f32 0.0, %v630
      %v632 = vpop.f32.mrb[0].mxu0
      %633 = vmatprep.mubr.f32.mxu0 0.0
      %634 = vmatmul.mubr.f32.gmra.mrb[0].mxu0 %v532
      %v635 = vpop.f32.mrb[0].mxu0
      %v636 = vadd.f32 0.0, %v635
      %v637 = vpop.f32.mrb[0].mxu0
      %638 = vdwg.mxu0
      %v639 = vsel %vm517, %v447, 0
      %v641 = vsel %vm517, %v449, 0
      %v643 = vsel %vm517, %v451, 0
      %v645 = vsel %vm517, %v453, 0
      %v647 = vsel %vm517, %v455, 0
      %v649 = vsel %vm517, %v457, 0
      %v651 = vsel %vm517, %v459, 0
      %v653 = vsel %vm517, %v461, 0
      %655 = vmatprep.subr.mxu0 0.0
      %656 = vmatpush1.msra.mxu0 %v467
      %657 = vmatprep.subr.mxu0 0.0
      %658 = vmatpush1.msra.mxu0 %v468
      %659 = vmatprep.subr.mxu0 0.0
      %660 = vmatpush1.msra.mxu0 %v469
      %661 = vmatprep.subr.mxu0 0.0
      %662 = vmatpush1.msra.mxu0 %v470
      %663 = vmatprep.subr.mxu0 0.0
      %664 = vmatpush1.msra.mxu0 0.0
      %665 = vmatprep.subr.mxu0 0.0
      %666 = vmatpush1.msra.mxu0 0.0
      %667 = vmatprep.subr.mxu0 0.0
      %668 = vmatpush1.msra.mxu0 0.0
      %669 = vmatprep.subr.mxu0 0.0
      %670 = vmatpush1.msra.mxu0 0.0
      %671 = vmatprep.subr.mxu0 0.0
      %672 = vmatpush1.msra.mxu0 0.0
      %673 = vmatprep.subr.mxu0 0.0
      %674 = vmatpush1.msra.mxu0 0.0
      %675 = vmatprep.subr.mxu0 0.0
      %676 = vmatpush1.msra.mxu0 0.0
      %677 = vmatprep.subr.mxu0 0.0
      %678 = vmatpush1.msra.mxu0 0.0
      %679 = vmatprep.subr.mxu0 0.0
      %680 = vmatpush1.msra.mxu0 0.0
      %681 = vmatprep.subr.mxu0 0.0
      %682 = vmatpush1.msra.mxu0 0.0
      %683 = vmatprep.subr.mxu0 0.0
      %684 = vmatpush1.msra.mxu0 0.0
      %685 = vmatprep.subr.mxu0 0.0
      %686 = vmatpush1.msra.mxu0 0.0
      %687 = vmatprep.subr.mxu0 0.0
      %688 = vmatpush1.msra.mxu0 0.0
      %689 = vmatprep.subr.mxu0 0.0
      %690 = vmatpush1.msra.mxu0 0.0
      %691 = vmatprep.subr.mxu0 0.0
      %692 = vmatpush1.msra.mxu0 0.0
      %693 = vmatprep.subr.mxu0 0.0
      %694 = vmatpush1.msra.mxu0 0.0
      %695 = vmatprep.subr.mxu0 0.0
      %696 = vmatpush1.msra.mxu0 0.0
      %697 = vmatprep.subr.mxu0 0.0
      %698 = vmatpush1.msra.mxu0 0.0
      %699 = vmatprep.subr.mxu0 0.0
      %700 = vmatpush1.msra.mxu0 0.0
      %701 = vmatprep.subr.mxu0 0.0
      %702 = vmatpush1.msra.mxu0 0.0
      %703 = vmatprep.subr.mxu0 0.0
      %704 = vmatpush1.msra.mxu0 0.0
      %705 = vmatprep.subr.mxu0 0.0
      %706 = vmatpush1.msra.mxu0 0.0
      %707 = vmatprep.subr.mxu0 0.0
      %708 = vmatpush1.msra.mxu0 0.0
      %709 = vmatprep.subr.mxu0 0.0
      %710 = vmatpush1.msra.mxu0 0.0
      %711 = vmatprep.subr.mxu0 0.0
      %712 = vmatpush1.msra.mxu0 0.0
      %713 = vmatprep.subr.mxu0 0.0
      %714 = vmatpush1.msra.mxu0 0.0
      %715 = vmatprep.subr.mxu0 0.0
      %716 = vmatpush1.msra.mxu0 0.0
      %717 = vmatprep.subr.mxu0 0.0
      %718 = vmatpush1.msra.mxu0 0.0
      %719 = vmatprep.mubr.f32.mxu0 0.0
      %720 = vmatmul.mubr.f32.gmra.mrb[0].mxu0 %v639
      %v721 = vpop.f32.mrb[0].mxu0
      %v722 = vadd.f32 %v601, %v721
      %v723 = vpop.f32.mrb[0].mxu0
      %724 = vmatprep.mubr.f32.mxu0 0.0
      %725 = vmatmul.mubr.f32.gmra.mrb[0].mxu0 %v641
      %v726 = vpop.f32.mrb[0].mxu0
      %v727 = vadd.f32 %v606, %v726
      %v728 = vpop.f32.mrb[0].mxu0
      %729 = vmatprep.mubr.f32.mxu0 0.0
      %730 = vmatmul.mubr.f32.gmra.mrb[0].mxu0 %v643
      %v731 = vpop.f32.mrb[0].mxu0
      %v732 = vadd.f32 %v611, %v731
      %v733 = vpop.f32.mrb[0].mxu0
      %734 = vmatprep.mubr.f32.mxu0 0.0
      %735 = vmatmul.mubr.f32.gmra.mrb[0].mxu0 %v645
      %v736 = vpop.f32.mrb[0].mxu0
      %v737 = vadd.f32 %v616, %v736
      %v738 = vpop.f32.mrb[0].mxu0
      %739 = vmatprep.mubr.f32.mxu0 0.0
      %740 = vmatmul.mubr.f32.gmra.mrb[0].mxu0 %v647
      %v741 = vpop.f32.mrb[0].mxu0
      %v742 = vadd.f32 %v621, %v741
      %v743 = vpop.f32.mrb[0].mxu0
      %744 = vmatprep.mubr.f32.mxu0 0.0
      %745 = vmatmul.mubr.f32.gmra.mrb[0].mxu0 %v649
      %v746 = vpop.f32.mrb[0].mxu0
      %v747 = vadd.f32 %v626, %v746
      %v748 = vpop.f32.mrb[0].mxu0
      %749 = vmatprep.mubr.f32.mxu0 0.0
      %750 = vmatmul.mubr.f32.gmra.mrb[0].mxu0 %v651
      %v751 = vpop.f32.mrb[0].mxu0
      %v752 = vadd.f32 %v631, %v751
      %v753 = vpop.f32.mrb[0].mxu0
      %754 = vmatprep.mubr.f32.mxu0 0.0
      %755 = vmatmul.mubr.f32.gmra.mrb[0].mxu0 %v653
      %v756 = vpop.f32.mrb[0].mxu0
      %v757 = vadd.f32 %v636, %v756
      %v758 = vpop.f32.mrb[0].mxu0
      %759 = vdwg.mxu0
      %vm760 = vcmask 1045504
      %v761 = vrot.slane %v447, 2
      %v762 = vrot.slane %v448, 2
      %v763 = vsel %vm760, %v761, %v762
      %v764 = vrot.slane %v449, 2
      %v765 = vrot.slane %v450, 2
      %v766 = vsel %vm760, %v764, %v765
      %v767 = vrot.slane %v451, 2
      %v768 = vrot.slane %v452, 2
      %v769 = vsel %vm760, %v767, %v768
      %v770 = vrot.slane %v453, 2
      %v771 = vrot.slane %v454, 2
      %v772 = vsel %vm760, %v770, %v771
      %v773 = vrot.slane %v455, 2
      %v774 = vrot.slane %v456, 2
      %v775 = vsel %vm760, %v773, %v774
      %v776 = vrot.slane %v457, 2
      %v777 = vrot.slane %v458, 2
      %v778 = vsel %vm760, %v776, %v777
      %v779 = vrot.slane %v459, 2
      %v780 = vrot.slane %v460, 2
      %v781 = vsel %vm760, %v779, %v780
      %v782 = vrot.slane %v461, 2
      %v783 = vrot.slane %v462, 2
      %v784 = vsel %vm760, %v782, %v783
      %s785 = scalar_lea.vmem %s1, 64
      %v786 = vld [vmem:[%s785] sm:$0xff]
      %v787 = vld [vmem:[%s785 + $0x8] sm:$0xff]
      %v788 = vld [vmem:[%s785 + $0x10] sm:$0xff]
      %v789 = vld [vmem:[%s785 + $0x18] sm:$0xff]
      %v790 = vsel %vm517, %v763, 0
      %v792 = vsel %vm517, %v766, 0
      %v794 = vsel %vm517, %v769, 0
      %v796 = vsel %vm517, %v772, 0
      %v798 = vsel %vm517, %v775, 0
      %v800 = vsel %vm517, %v778, 0
      %v802 = vsel %vm517, %v781, 0
      %v804 = vsel %vm517, %v784, 0
      %806 = vmatprep.subr.mxu0 0.0
      %807 = vmatpush1.msra.mxu0 %v786
      %808 = vmatprep.subr.mxu0 0.0
      %809 = vmatpush1.msra.mxu0 %v787
      %810 = vmatprep.subr.mxu0 0.0
      %811 = vmatpush1.msra.mxu0 %v788
      %812 = vmatprep.subr.mxu0 0.0
      %813 = vmatpush1.msra.mxu0 %v789
      %814 = vmatprep.subr.mxu0 0.0
      %815 = vmatpush1.msra.mxu0 0.0
      %816 = vmatprep.subr.mxu0 0.0
      %817 = vmatpush1.msra.mxu0 0.0
      %818 = vmatprep.subr.mxu0 0.0
      %819 = vmatpush1.msra.mxu0 0.0
      %820 = vmatprep.subr.mxu0 0.0
      %821 = vmatpush1.msra.mxu0 0.0
      %822 = vmatprep.subr.mxu0 0.0
      %823 = vmatpush1.msra.mxu0 0.0
      %824 = vmatprep.subr.mxu0 0.0
      %825 = vmatpush1.msra.mxu0 0.0
      %826 = vmatprep.subr.mxu0 0.0
      %827 = vmatpush1.msra.mxu0 0.0
      %828 = vmatprep.subr.mxu0 0.0
      %829 = vmatpush1.msra.mxu0 0.0
      %830 = vmatprep.subr.mxu0 0.0
      %831 = vmatpush1.msra.mxu0 0.0
      %832 = vmatprep.subr.mxu0 0.0
      %833 = vmatpush1.msra.mxu0 0.0
      %834 = vmatprep.subr.mxu0 0.0
      %835 = vmatpush1.msra.mxu0 0.0
      %836 = vmatprep.subr.mxu0 0.0
      %837 = vmatpush1.msra.mxu0 0.0
      %838 = vmatprep.subr.mxu0 0.0
      %839 = vmatpush1.msra.mxu0 0.0
      %840 = vmatprep.subr.mxu0 0.0
      %841 = vmatpush1.msra.mxu0 0.0
      %842 = vmatprep.subr.mxu0 0.0
      %843 = vmatpush1.msra.mxu0 0.0
      %844 = vmatprep.subr.mxu0 0.0
      %845 = vmatpush1.msra.mxu0 0.0
      %846 = vmatprep.subr.mxu0 0.0
      %847 = vmatpush1.msra.mxu0 0.0
      %848 = vmatprep.subr.mxu0 0.0
      %849 = vmatpush1.msra.mxu0 0.0
      %850 = vmatprep.subr.mxu0 0.0
      %851 = vmatpush1.msra.mxu0 0.0
      %852 = vmatprep.subr.mxu0 0.0
      %853 = vmatpush1.msra.mxu0 0.0
      %854 = vmatprep.subr.mxu0 0.0
      %855 = vmatpush1.msra.mxu0 0.0
      %856 = vmatprep.subr.mxu0 0.0
      %857 = vmatpush1.msra.mxu0 0.0
      %858 = vmatprep.subr.mxu0 0.0
      %859 = vmatpush1.msra.mxu0 0.0
      %860 = vmatprep.subr.mxu0 0.0
      %861 = vmatpush1.msra.mxu0 0.0
      %862 = vmatprep.subr.mxu0 0.0
      %863 = vmatpush1.msra.mxu0 0.0
      %864 = vmatprep.subr.mxu0 0.0
      %865 = vmatpush1.msra.mxu0 0.0
      %866 = vmatprep.subr.mxu0 0.0
      %867 = vmatpush1.msra.mxu0 0.0
      %868 = vmatprep.subr.mxu0 0.0
      %869 = vmatpush1.msra.mxu0 0.0
      %870 = vmatprep.mubr.f32.mxu0 0.0
      %871 = vmatmul.mubr.f32.gmra.mrb[0].mxu0 %v790
      %v872 = vpop.f32.mrb[0].mxu0
      %v873 = vadd.f32 0.0, %v872
      %v874 = vpop.f32.mrb[0].mxu0
      %875 = vmatprep.mubr.f32.mxu0 0.0
      %876 = vmatmul.mubr.f32.gmra.mrb[0].mxu0 %v792
      %v877 = vpop.f32.mrb[0].mxu0
      %v878 = vadd.f32 0.0, %v877
      %v879 = vpop.f32.mrb[0].mxu0
      %880 = vmatprep.mubr.f32.mxu0 0.0
      %881 = vmatmul.mubr.f32.gmra.mrb[0].mxu0 %v794
      %v882 = vpop.f32.mrb[0].mxu0
      %v883 = vadd.f32 0.0, %v882
      %v884 = vpop.f32.mrb[0].mxu0
      %885 = vmatprep.mubr.f32.mxu0 0.0
      %886 = vmatmul.mubr.f32.gmra.mrb[0].mxu0 %v796
      %v887 = vpop.f32.mrb[0].mxu0
      %v888 = vadd.f32 0.0, %v887
      %v889 = vpop.f32.mrb[0].mxu0
      %890 = vmatprep.mubr.f32.mxu0 0.0
      %891 = vmatmul.mubr.f32.gmra.mrb[0].mxu0 %v798
      %v892 = vpop.f32.mrb[0].mxu0
      %v893 = vadd.f32 0.0, %v892
      %v894 = vpop.f32.mrb[0].mxu0
      %895 = vmatprep.mubr.f32.mxu0 0.0
      %896 = vmatmul.mubr.f32.gmra.mrb[0].mxu0 %v800
      %v897 = vpop.f32.mrb[0].mxu0
      %v898 = vadd.f32 0.0, %v897
      %v899 = vpop.f32.mrb[0].mxu0
      %900 = vmatprep.mubr.f32.mxu0 0.0
      %901 = vmatmul.mubr.f32.gmra.mrb[0].mxu0 %v802
      %v902 = vpop.f32.mrb[0].mxu0
      %v903 = vadd.f32 0.0, %v902
      %v904 = vpop.f32.mrb[0].mxu0
      %905 = vmatprep.mubr.f32.mxu0 0.0
      %906 = vmatmul.mubr.f32.gmra.mrb[0].mxu0 %v804
      %v907 = vpop.f32.mrb[0].mxu0
      %v908 = vadd.f32 0.0, %v907
      %v909 = vpop.f32.mrb[0].mxu0
      %910 = vdwg.mxu0
      %v911 = vadd.f32 %v722, %v873
      %v912 = vadd.f32 %v727, %v878
      %v913 = vadd.f32 %v732, %v883
      %v914 = vadd.f32 %v737, %v888
      %v915 = vadd.f32 %v742, %v893
      %v916 = vadd.f32 %v747, %v898
      %v917 = vadd.f32 %v752, %v903
      %v918 = vadd.f32 %v757, %v908
      %s919 = scalar_lea.vmem %s1, 96
      %v920 = vld [vmem:[%s919] sm:$0xff]
      %v921 = vld [vmem:[%s919 + $0x8] sm:$0xff]
      %v922 = vld [vmem:[%s919 + $0x10] sm:$0xff]
      %v923 = vld [vmem:[%s919 + $0x18] sm:$0xff]
      %v925 = vsel %vm517, %v463, 0
      %927 = vmatprep.subr.mxu0 0.0
      %928 = vmatpush1.msra.mxu0 %v920
      %929 = vmatprep.subr.mxu0 0.0
      %930 = vmatpush1.msra.mxu0 %v921
      %931 = vmatprep.subr.mxu0 0.0
      %932 = vmatpush1.msra.mxu0 %v922
      %933 = vmatprep.subr.mxu0 0.0
      %934 = vmatpush1.msra.mxu0 %v923
      %935 = vmatprep.subr.mxu0 0.0
      %936 = vmatpush1.msra.mxu0 0.0
      %937 = vmatprep.subr.mxu0 0.0
      %938 = vmatpush1.msra.mxu0 0.0
      %939 = vmatprep.subr.mxu0 0.0
      %940 = vmatpush1.msra.mxu0 0.0
      %941 = vmatprep.subr.mxu0 0.0
      %942 = vmatpush1.msra.mxu0 0.0
      %943 = vmatprep.subr.mxu0 0.0
      %944 = vmatpush1.msra.mxu0 0.0
      %945 = vmatprep.subr.mxu0 0.0
      %946 = vmatpush1.msra.mxu0 0.0
      %947 = vmatprep.subr.mxu0 0.0
      %948 = vmatpush1.msra.mxu0 0.0
      %949 = vmatprep.subr.mxu0 0.0
      %950 = vmatpush1.msra.mxu0 0.0
      %951 = vmatprep.subr.mxu0 0.0
      %952 = vmatpush1.msra.mxu0 0.0
      %953 = vmatprep.subr.mxu0 0.0
      %954 = vmatpush1.msra.mxu0 0.0
      %955 = vmatprep.subr.mxu0 0.0
      %956 = vmatpush1.msra.mxu0 0.0
      %957 = vmatprep.subr.mxu0 0.0
      %958 = vmatpush1.msra.mxu0 0.0
      %959 = vmatprep.subr.mxu0 0.0
      %960 = vmatpush1.msra.mxu0 0.0
      %961 = vmatprep.subr.mxu0 0.0
      %962 = vmatpush1.msra.mxu0 0.0
      %963 = vmatprep.subr.mxu0 0.0
      %964 = vmatpush1.msra.mxu0 0.0
      %965 = vmatprep.subr.mxu0 0.0
      %966 = vmatpush1.msra.mxu0 0.0
      %967 = vmatprep.subr.mxu0 0.0
      %968 = vmatpush1.msra.mxu0 0.0
      %969 = vmatprep.subr.mxu0 0.0
      %970 = vmatpush1.msra.mxu0 0.0
      %971 = vmatprep.subr.mxu0 0.0
      %972 = vmatpush1.msra.mxu0 0.0
      %973 = vmatprep.subr.mxu0 0.0
      %974 = vmatpush1.msra.mxu0 0.0
      %975 = vmatprep.subr.mxu0 0.0
      %976 = vmatpush1.msra.mxu0 0.0
      %977 = vmatprep.subr.mxu0 0.0
      %978 = vmatpush1.msra.mxu0 0.0
      %979 = vmatprep.subr.mxu0 0.0
      %980 = vmatpush1.msra.mxu0 0.0
      %981 = vmatprep.subr.mxu0 0.0
      %982 = vmatpush1.msra.mxu0 0.0
      %983 = vmatprep.subr.mxu0 0.0
      %984 = vmatpush1.msra.mxu0 0.0
      %985 = vmatprep.subr.mxu0 0.0
      %986 = vmatpush1.msra.mxu0 0.0
      %987 = vmatprep.subr.mxu0 0.0
      %988 = vmatpush1.msra.mxu0 0.0
      %989 = vmatprep.subr.mxu0 0.0
      %990 = vmatpush1.msra.mxu0 0.0
      %991 = vmatprep.mubr.f32.mxu0 0.0
      %992 = vmatmul.mubr.f32.gmra.mrb[0].mxu0 %v641
      %v993 = vpop.f32.mrb[0].mxu0
      %v994 = vadd.f32 0.0, %v993
      %v995 = vpop.f32.mrb[0].mxu0
      %996 = vmatprep.mubr.f32.mxu0 0.0
      %997 = vmatmul.mubr.f32.gmra.mrb[0].mxu0 %v643
      %v998 = vpop.f32.mrb[0].mxu0
      %v999 = vadd.f32 0.0, %v998
      %v1000 = vpop.f32.mrb[0].mxu0
      %1001 = vmatprep.mubr.f32.mxu0 0.0
      %1002 = vmatmul.mubr.f32.gmra.mrb[0].mxu0 %v645
      %v1003 = vpop.f32.mrb[0].mxu0
      %v1004 = vadd.f32 0.0, %v1003
      %v1005 = vpop.f32.mrb[0].mxu0
      %1006 = vmatprep.mubr.f32.mxu0 0.0
      %1007 = vmatmul.mubr.f32.gmra.mrb[0].mxu0 %v647
      %v1008 = vpop.f32.mrb[0].mxu0
      %v1009 = vadd.f32 0.0, %v1008
      %v1010 = vpop.f32.mrb[0].mxu0
      %1011 = vmatprep.mubr.f32.mxu0 0.0
      %1012 = vmatmul.mubr.f32.gmra.mrb[0].mxu0 %v649
      %v1013 = vpop.f32.mrb[0].mxu0
      %v1014 = vadd.f32 0.0, %v1013
      %v1015 = vpop.f32.mrb[0].mxu0
      %1016 = vmatprep.mubr.f32.mxu0 0.0
      %1017 = vmatmul.mubr.f32.gmra.mrb[0].mxu0 %v651
      %v1018 = vpop.f32.mrb[0].mxu0
      %v1019 = vadd.f32 0.0, %v1018
      %v1020 = vpop.f32.mrb[0].mxu0
      %1021 = vmatprep.mubr.f32.mxu0 0.0
      %1022 = vmatmul.mubr.f32.gmra.mrb[0].mxu0 %v653
      %v1023 = vpop.f32.mrb[0].mxu0
      %v1024 = vadd.f32 0.0, %v1023
      %v1025 = vpop.f32.mrb[0].mxu0
      %1026 = vmatprep.mubr.f32.mxu0 0.0
      %1027 = vmatmul.mubr.f32.gmra.mrb[0].mxu0 %v925
      %v1028 = vpop.f32.mrb[0].mxu0
      %v1029 = vadd.f32 0.0, %v1028
      %v1030 = vpop.f32.mrb[0].mxu0
      %1031 = vdwg.mxu0
      %v1032 = vadd.f32 %v911, %v994
      %v1033 = vadd.f32 %v912, %v999
      %v1034 = vadd.f32 %v913, %v1004
      %v1035 = vadd.f32 %v914, %v1009
      %v1036 = vadd.f32 %v915, %v1014
      %v1037 = vadd.f32 %v916, %v1019
      %v1038 = vadd.f32 %v917, %v1024
      %v1039 = vadd.f32 %v918, %v1029
      %v1041 = vrot.slane %v463, 1
      %v1042 = vrot.slane %v464, 1
      %v1043 = vsel %vm487, %v1041, %v1042
      %s1044 = scalar_lea.vmem %s1, 128
      %v1045 = vld [vmem:[%s1044] sm:$0xff]
      %v1046 = vld [vmem:[%s1044 + $0x8] sm:$0xff]
      %v1047 = vld [vmem:[%s1044 + $0x10] sm:$0xff]
      %v1048 = vld [vmem:[%s1044 + $0x18] sm:$0xff]
      %v1049 = vsel %vm517, %v1043, 0
      %1051 = vmatprep.subr.mxu0 0.0
      %1052 = vmatpush1.msra.mxu0 %v1045
      %1053 = vmatprep.subr.mxu0 0.0
      %1054 = vmatpush1.msra.mxu0 %v1046
      %1055 = vmatprep.subr.mxu0 0.0
      %1056 = vmatpush1.msra.mxu0 %v1047
      %1057 = vmatprep.subr.mxu0 0.0
      %1058 = vmatpush1.msra.mxu0 %v1048
      %1059 = vmatprep.subr.mxu0 0.0
      %1060 = vmatpush1.msra.mxu0 0.0
      %1061 = vmatprep.subr.mxu0 0.0
      %1062 = vmatpush1.msra.mxu0 0.0
      %1063 = vmatprep.subr.mxu0 0.0
      %1064 = vmatpush1.msra.mxu0 0.0
      %1065 = vmatprep.subr.mxu0 0.0
      %1066 = vmatpush1.msra.mxu0 0.0
      %1067 = vmatprep.subr.mxu0 0.0
      %1068 = vmatpush1.msra.mxu0 0.0
      %1069 = vmatprep.subr.mxu0 0.0
      %1070 = vmatpush1.msra.mxu0 0.0
      %1071 = vmatprep.subr.mxu0 0.0
      %1072 = vmatpush1.msra.mxu0 0.0
      %1073 = vmatprep.subr.mxu0 0.0
      %1074 = vmatpush1.msra.mxu0 0.0
      %1075 = vmatprep.subr.mxu0 0.0
      %1076 = vmatpush1.msra.mxu0 0.0
      %1077 = vmatprep.subr.mxu0 0.0
      %1078 = vmatpush1.msra.mxu0 0.0
      %1079 = vmatprep.subr.mxu0 0.0
      %1080 = vmatpush1.msra.mxu0 0.0
      %1081 = vmatprep.subr.mxu0 0.0
      %1082 = vmatpush1.msra.mxu0 0.0
      %1083 = vmatprep.subr.mxu0 0.0
      %1084 = vmatpush1.msra.mxu0 0.0
      %1085 = vmatprep.subr.mxu0 0.0
      %1086 = vmatpush1.msra.mxu0 0.0
      %1087 = vmatprep.subr.mxu0 0.0
      %1088 = vmatpush1.msra.mxu0 0.0
      %1089 = vmatprep.subr.mxu0 0.0
      %1090 = vmatpush1.msra.mxu0 0.0
      %1091 = vmatprep.subr.mxu0 0.0
      %1092 = vmatpush1.msra.mxu0 0.0
      %1093 = vmatprep.subr.mxu0 0.0
      %1094 = vmatpush1.msra.mxu0 0.0
      %1095 = vmatprep.subr.mxu0 0.0
      %1096 = vmatpush1.msra.mxu0 0.0
      %1097 = vmatprep.subr.mxu0 0.0
      %1098 = vmatpush1.msra.mxu0 0.0
      %1099 = vmatprep.subr.mxu0 0.0
      %1100 = vmatpush1.msra.mxu0 0.0
      %1101 = vmatprep.subr.mxu0 0.0
      %1102 = vmatpush1.msra.mxu0 0.0
      %1103 = vmatprep.subr.mxu0 0.0
      %1104 = vmatpush1.msra.mxu0 0.0
      %1105 = vmatprep.subr.mxu0 0.0
      %1106 = vmatpush1.msra.mxu0 0.0
      %1107 = vmatprep.subr.mxu0 0.0
      %1108 = vmatpush1.msra.mxu0 0.0
      %1109 = vmatprep.subr.mxu0 0.0
      %1110 = vmatpush1.msra.mxu0 0.0
      %1111 = vmatprep.subr.mxu0 0.0
      %1112 = vmatpush1.msra.mxu0 0.0
      %1113 = vmatprep.subr.mxu0 0.0
      %1114 = vmatpush1.msra.mxu0 0.0
      %1115 = vmatprep.mubr.f32.mxu0 0.0
      %1116 = vmatmul.mubr.f32.gmra.mrb[0].mxu0 %v520
      %v1117 = vpop.f32.mrb[0].mxu0
      %v1118 = vadd.f32 0.0, %v1117
      %v1119 = vpop.f32.mrb[0].mxu0
      %1120 = vmatprep.mubr.f32.mxu0 0.0
      %1121 = vmatmul.mubr.f32.gmra.mrb[0].mxu0 %v522
      %v1122 = vpop.f32.mrb[0].mxu0
      %v1123 = vadd.f32 0.0, %v1122
      %v1124 = vpop.f32.mrb[0].mxu0
      %1125 = vmatprep.mubr.f32.mxu0 0.0
      %1126 = vmatmul.mubr.f32.gmra.mrb[0].mxu0 %v524
      %v1127 = vpop.f32.mrb[0].mxu0
      %v1128 = vadd.f32 0.0, %v1127
      %v1129 = vpop.f32.mrb[0].mxu0
      %1130 = vmatprep.mubr.f32.mxu0 0.0
      %1131 = vmatmul.mubr.f32.gmra.mrb[0].mxu0 %v526
      %v1132 = vpop.f32.mrb[0].mxu0
      %v1133 = vadd.f32 0.0, %v1132
      %v1134 = vpop.f32.mrb[0].mxu0
      %1135 = vmatprep.mubr.f32.mxu0 0.0
      %1136 = vmatmul.mubr.f32.gmra.mrb[0].mxu0 %v528
      %v1137 = vpop.f32.mrb[0].mxu0
      %v1138 = vadd.f32 0.0, %v1137
      %v1139 = vpop.f32.mrb[0].mxu0
      %1140 = vmatprep.mubr.f32.mxu0 0.0
      %1141 = vmatmul.mubr.f32.gmra.mrb[0].mxu0 %v530
      %v1142 = vpop.f32.mrb[0].mxu0
      %v1143 = vadd.f32 0.0, %v1142
      %v1144 = vpop.f32.mrb[0].mxu0
      %1145 = vmatprep.mubr.f32.mxu0 0.0
      %1146 = vmatmul.mubr.f32.gmra.mrb[0].mxu0 %v532
      %v1147 = vpop.f32.mrb[0].mxu0
      %v1148 = vadd.f32 0.0, %v1147
      %v1149 = vpop.f32.mrb[0].mxu0
      %1150 = vmatprep.mubr.f32.mxu0 0.0
      %1151 = vmatmul.mubr.f32.gmra.mrb[0].mxu0 %v1049
      %v1152 = vpop.f32.mrb[0].mxu0
      %v1153 = vadd.f32 0.0, %v1152
      %v1154 = vpop.f32.mrb[0].mxu0
      %1155 = vdwg.mxu0
      %v1156 = vadd.f32 %v1032, %v1118
      %v1157 = vadd.f32 %v1033, %v1123
      %v1158 = vadd.f32 %v1034, %v1128
      %v1159 = vadd.f32 %v1035, %v1133
      %v1160 = vadd.f32 %v1036, %v1138
      %v1161 = vadd.f32 %v1037, %v1143
      %v1162 = vadd.f32 %v1038, %v1148
      %v1163 = vadd.f32 %v1039, %v1153
      %v1164 = vrot.slane %v463, 2
      %v1165 = vrot.slane %v464, 2
      %v1166 = vsel %vm760, %v1164, %v1165
      %s1167 = scalar_lea.vmem %s1, 160
      %v1168 = vld [vmem:[%s1167] sm:$0xff]
      %v1169 = vld [vmem:[%s1167 + $0x8] sm:$0xff]
      %v1170 = vld [vmem:[%s1167 + $0x10] sm:$0xff]
      %v1171 = vld [vmem:[%s1167 + $0x18] sm:$0xff]
      %v1172 = vsel %vm517, %v1166, 0
      %1174 = vmatprep.subr.mxu0 0.0
      %1175 = vmatpush1.msra.mxu0 %v1168
      %1176 = vmatprep.subr.mxu0 0.0
      %1177 = vmatpush1.msra.mxu0 %v1169
      %1178 = vmatprep.subr.mxu0 0.0
      %1179 = vmatpush1.msra.mxu0 %v1170
      %1180 = vmatprep.subr.mxu0 0.0
      %1181 = vmatpush1.msra.mxu0 %v1171
      %1182 = vmatprep.subr.mxu0 0.0
      %1183 = vmatpush1.msra.mxu0 0.0
      %1184 = vmatprep.subr.mxu0 0.0
      %1185 = vmatpush1.msra.mxu0 0.0
      %1186 = vmatprep.subr.mxu0 0.0
      %1187 = vmatpush1.msra.mxu0 0.0
      %1188 = vmatprep.subr.mxu0 0.0
      %1189 = vmatpush1.msra.mxu0 0.0
      %1190 = vmatprep.subr.mxu0 0.0
      %1191 = vmatpush1.msra.mxu0 0.0
      %1192 = vmatprep.subr.mxu0 0.0
      %1193 = vmatpush1.msra.mxu0 0.0
      %1194 = vmatprep.subr.mxu0 0.0
      %1195 = vmatpush1.msra.mxu0 0.0
      %1196 = vmatprep.subr.mxu0 0.0
      %1197 = vmatpush1.msra.mxu0 0.0
      %1198 = vmatprep.subr.mxu0 0.0
      %1199 = vmatpush1.msra.mxu0 0.0
      %1200 = vmatprep.subr.mxu0 0.0
      %1201 = vmatpush1.msra.mxu0 0.0
      %1202 = vmatprep.subr.mxu0 0.0
      %1203 = vmatpush1.msra.mxu0 0.0
      %1204 = vmatprep.subr.mxu0 0.0
      %1205 = vmatpush1.msra.mxu0 0.0
      %1206 = vmatprep.subr.mxu0 0.0
      %1207 = vmatpush1.msra.mxu0 0.0
      %1208 = vmatprep.subr.mxu0 0.0
      %1209 = vmatpush1.msra.mxu0 0.0
      %1210 = vmatprep.subr.mxu0 0.0
      %1211 = vmatpush1.msra.mxu0 0.0
      %1212 = vmatprep.subr.mxu0 0.0
      %1213 = vmatpush1.msra.mxu0 0.0
      %1214 = vmatprep.subr.mxu0 0.0
      %1215 = vmatpush1.msra.mxu0 0.0
      %1216 = vmatprep.subr.mxu0 0.0
      %1217 = vmatpush1.msra.mxu0 0.0
      %1218 = vmatprep.subr.mxu0 0.0
      %1219 = vmatpush1.msra.mxu0 0.0
      %1220 = vmatprep.subr.mxu0 0.0
      %1221 = vmatpush1.msra.mxu0 0.0
      %1222 = vmatprep.subr.mxu0 0.0
      %1223 = vmatpush1.msra.mxu0 0.0
      %1224 = vmatprep.subr.mxu0 0.0
      %1225 = vmatpush1.msra.mxu0 0.0
      %1226 = vmatprep.subr.mxu0 0.0
      %1227 = vmatpush1.msra.mxu0 0.0
      %1228 = vmatprep.subr.mxu0 0.0
      %1229 = vmatpush1.msra.mxu0 0.0
      %1230 = vmatprep.subr.mxu0 0.0
      %1231 = vmatpush1.msra.mxu0 0.0
      %1232 = vmatprep.subr.mxu0 0.0
      %1233 = vmatpush1.msra.mxu0 0.0
      %1234 = vmatprep.subr.mxu0 0.0
      %1235 = vmatpush1.msra.mxu0 0.0
      %1236 = vmatprep.subr.mxu0 0.0
      %1237 = vmatpush1.msra.mxu0 0.0
      %1238 = vmatprep.mubr.f32.mxu0 0.0
      %1239 = vmatmul.mubr.f32.gmra.mrb[0].mxu0 %v792
      %v1240 = vpop.f32.mrb[0].mxu0
      %v1241 = vadd.f32 0.0, %v1240
      %v1242 = vpop.f32.mrb[0].mxu0
      %1243 = vmatprep.mubr.f32.mxu0 0.0
      %1244 = vmatmul.mubr.f32.gmra.mrb[0].mxu0 %v794
      %v1245 = vpop.f32.mrb[0].mxu0
      %v1246 = vadd.f32 0.0, %v1245
      %v1247 = vpop.f32.mrb[0].mxu0
      %1248 = vmatprep.mubr.f32.mxu0 0.0
      %1249 = vmatmul.mubr.f32.gmra.mrb[0].mxu0 %v796
      %v1250 = vpop.f32.mrb[0].mxu0
      %v1251 = vadd.f32 0.0, %v1250
      %v1252 = vpop.f32.mrb[0].mxu0
      %1253 = vmatprep.mubr.f32.mxu0 0.0
      %1254 = vmatmul.mubr.f32.gmra.mrb[0].mxu0 %v798
      %v1255 = vpop.f32.mrb[0].mxu0
      %v1256 = vadd.f32 0.0, %v1255
      %v1257 = vpop.f32.mrb[0].mxu0
      %1258 = vmatprep.mubr.f32.mxu0 0.0
      %1259 = vmatmul.mubr.f32.gmra.mrb[0].mxu0 %v800
      %v1260 = vpop.f32.mrb[0].mxu0
      %v1261 = vadd.f32 0.0, %v1260
      %v1262 = vpop.f32.mrb[0].mxu0
      %1263 = vmatprep.mubr.f32.mxu0 0.0
      %1264 = vmatmul.mubr.f32.gmra.mrb[0].mxu0 %v802
      %v1265 = vpop.f32.mrb[0].mxu0
      %v1266 = vadd.f32 0.0, %v1265
      %v1267 = vpop.f32.mrb[0].mxu0
      %1268 = vmatprep.mubr.f32.mxu0 0.0
      %1269 = vmatmul.mubr.f32.gmra.mrb[0].mxu0 %v804
      %v1270 = vpop.f32.mrb[0].mxu0
      %v1271 = vadd.f32 0.0, %v1270
      %v1272 = vpop.f32.mrb[0].mxu0
      %1273 = vmatprep.mubr.f32.mxu0 0.0
      %1274 = vmatmul.mubr.f32.gmra.mrb[0].mxu0 %v1172
      %v1275 = vpop.f32.mrb[0].mxu0
      %v1276 = vadd.f32 0.0, %v1275
      %v1277 = vpop.f32.mrb[0].mxu0
      %1278 = vdwg.mxu0
      %v1279 = vadd.f32 %v1156, %v1241
      %v1280 = vadd.f32 %v1157, %v1246
      %v1281 = vadd.f32 %v1158, %v1251
      %v1282 = vadd.f32 %v1159, %v1256
      %v1283 = vadd.f32 %v1160, %v1261
      %v1284 = vadd.f32 %v1161, %v1266
      %v1285 = vadd.f32 %v1162, %v1271
      %v1286 = vadd.f32 %v1163, %v1276
      %s1287 = scalar_lea.vmem %s1, 192
      %v1288 = vld [vmem:[%s1287] sm:$0xff]
      %v1289 = vld [vmem:[%s1287 + $0x8] sm:$0xff]
      %v1290 = vld [vmem:[%s1287 + $0x10] sm:$0xff]
      %v1291 = vld [vmem:[%s1287 + $0x18] sm:$0xff]
      %v1293 = vsel %vm517, %v465, 0
      %1295 = vmatprep.subr.mxu0 0.0
      %1296 = vmatpush1.msra.mxu0 %v1288
      %1297 = vmatprep.subr.mxu0 0.0
      %1298 = vmatpush1.msra.mxu0 %v1289
      %1299 = vmatprep.subr.mxu0 0.0
      %1300 = vmatpush1.msra.mxu0 %v1290
      %1301 = vmatprep.subr.mxu0 0.0
      %1302 = vmatpush1.msra.mxu0 %v1291
      %1303 = vmatprep.subr.mxu0 0.0
      %1304 = vmatpush1.msra.mxu0 0.0
      %1305 = vmatprep.subr.mxu0 0.0
      %1306 = vmatpush1.msra.mxu0 0.0
      %1307 = vmatprep.subr.mxu0 0.0
      %1308 = vmatpush1.msra.mxu0 0.0
      %1309 = vmatprep.subr.mxu0 0.0
      %1310 = vmatpush1.msra.mxu0 0.0
      %1311 = vmatprep.subr.mxu0 0.0
      %1312 = vmatpush1.msra.mxu0 0.0
      %1313 = vmatprep.subr.mxu0 0.0
      %1314 = vmatpush1.msra.mxu0 0.0
      %1315 = vmatprep.subr.mxu0 0.0
      %1316 = vmatpush1.msra.mxu0 0.0
      %1317 = vmatprep.subr.mxu0 0.0
      %1318 = vmatpush1.msra.mxu0 0.0
      %1319 = vmatprep.subr.mxu0 0.0
      %1320 = vmatpush1.msra.mxu0 0.0
      %1321 = vmatprep.subr.mxu0 0.0
      %1322 = vmatpush1.msra.mxu0 0.0
      %1323 = vmatprep.subr.mxu0 0.0
      %1324 = vmatpush1.msra.mxu0 0.0
      %1325 = vmatprep.subr.mxu0 0.0
      %1326 = vmatpush1.msra.mxu0 0.0
      %1327 = vmatprep.subr.mxu0 0.0
      %1328 = vmatpush1.msra.mxu0 0.0
      %1329 = vmatprep.subr.mxu0 0.0
      %1330 = vmatpush1.msra.mxu0 0.0
      %1331 = vmatprep.subr.mxu0 0.0
      %1332 = vmatpush1.msra.mxu0 0.0
      %1333 = vmatprep.subr.mxu0 0.0
      %1334 = vmatpush1.msra.mxu0 0.0
      %1335 = vmatprep.subr.mxu0 0.0
      %1336 = vmatpush1.msra.mxu0 0.0
      %1337 = vmatprep.subr.mxu0 0.0
      %1338 = vmatpush1.msra.mxu0 0.0
      %1339 = vmatprep.subr.mxu0 0.0
      %1340 = vmatpush1.msra.mxu0 0.0
      %1341 = vmatprep.subr.mxu0 0.0
      %1342 = vmatpush1.msra.mxu0 0.0
      %1343 = vmatprep.subr.mxu0 0.0
      %1344 = vmatpush1.msra.mxu0 0.0
      %1345 = vmatprep.subr.mxu0 0.0
      %1346 = vmatpush1.msra.mxu0 0.0
      %1347 = vmatprep.subr.mxu0 0.0
      %1348 = vmatpush1.msra.mxu0 0.0
      %1349 = vmatprep.subr.mxu0 0.0
      %1350 = vmatpush1.msra.mxu0 0.0
      %1351 = vmatprep.subr.mxu0 0.0
      %1352 = vmatpush1.msra.mxu0 0.0
      %1353 = vmatprep.subr.mxu0 0.0
      %1354 = vmatpush1.msra.mxu0 0.0
      %1355 = vmatprep.subr.mxu0 0.0
      %1356 = vmatpush1.msra.mxu0 0.0
      %1357 = vmatprep.subr.mxu0 0.0
      %1358 = vmatpush1.msra.mxu0 0.0
      %1359 = vmatprep.mubr.f32.mxu0 0.0
      %1360 = vmatmul.mubr.f32.gmra.mrb[0].mxu0 %v643
      %v1361 = vpop.f32.mrb[0].mxu0
      %v1362 = vadd.f32 0.0, %v1361
      %v1363 = vpop.f32.mrb[0].mxu0
      %1364 = vmatprep.mubr.f32.mxu0 0.0
      %1365 = vmatmul.mubr.f32.gmra.mrb[0].mxu0 %v645
      %v1366 = vpop.f32.mrb[0].mxu0
      %v1367 = vadd.f32 0.0, %v1366
      %v1368 = vpop.f32.mrb[0].mxu0
      %1369 = vmatprep.mubr.f32.mxu0 0.0
      %1370 = vmatmul.mubr.f32.gmra.mrb[0].mxu0 %v647
      %v1371 = vpop.f32.mrb[0].mxu0
      %v1372 = vadd.f32 0.0, %v1371
      %v1373 = vpop.f32.mrb[0].mxu0
      %1374 = vmatprep.mubr.f32.mxu0 0.0
      %1375 = vmatmul.mubr.f32.gmra.mrb[0].mxu0 %v649
      %v1376 = vpop.f32.mrb[0].mxu0
      %v1377 = vadd.f32 0.0, %v1376
      %v1378 = vpop.f32.mrb[0].mxu0
      %1379 = vmatprep.mubr.f32.mxu0 0.0
      %1380 = vmatmul.mubr.f32.gmra.mrb[0].mxu0 %v651
      %v1381 = vpop.f32.mrb[0].mxu0
      %v1382 = vadd.f32 0.0, %v1381
      %v1383 = vpop.f32.mrb[0].mxu0
      %1384 = vmatprep.mubr.f32.mxu0 0.0
      %1385 = vmatmul.mubr.f32.gmra.mrb[0].mxu0 %v653
      %v1386 = vpop.f32.mrb[0].mxu0
      %v1387 = vadd.f32 0.0, %v1386
      %v1388 = vpop.f32.mrb[0].mxu0
      %1389 = vmatprep.mubr.f32.mxu0 0.0
      %1390 = vmatmul.mubr.f32.gmra.mrb[0].mxu0 %v925
      %v1391 = vpop.f32.mrb[0].mxu0
      %v1392 = vadd.f32 0.0, %v1391
      %v1393 = vpop.f32.mrb[0].mxu0
      %1394 = vmatprep.mubr.f32.mxu0 0.0
      %1395 = vmatmul.mubr.f32.gmra.mrb[0].mxu0 %v1293
      %v1396 = vpop.f32.mrb[0].mxu0
      %v1397 = vadd.f32 0.0, %v1396
      %v1398 = vpop.f32.mrb[0].mxu0
      %1399 = vdwg.mxu0
      %v1400 = vadd.f32 %v1279, %v1362
      %v1401 = vadd.f32 %v1280, %v1367
      %v1402 = vadd.f32 %v1281, %v1372
      %v1403 = vadd.f32 %v1282, %v1377
      %v1404 = vadd.f32 %v1283, %v1382
      %v1405 = vadd.f32 %v1284, %v1387
      %v1406 = vadd.f32 %v1285, %v1392
      %v1407 = vadd.f32 %v1286, %v1397
      %v1409 = vrot.slane %v465, 1
      %v1410 = vrot.slane %v466, 1
      %v1411 = vsel %vm487, %v1409, %v1410
      %s1412 = scalar_lea.vmem %s1, 224
      %v1413 = vld [vmem:[%s1412] sm:$0xff]
      %v1414 = vld [vmem:[%s1412 + $0x8] sm:$0xff]
      %v1415 = vld [vmem:[%s1412 + $0x10] sm:$0xff]
      %v1416 = vld [vmem:[%s1412 + $0x18] sm:$0xff]
      %v1417 = vsel %vm517, %v1411, 0
      %1419 = vmatprep.subr.mxu0 0.0
      %1420 = vmatpush1.msra.mxu0 %v1413
      %1421 = vmatprep.subr.mxu0 0.0
      %1422 = vmatpush1.msra.mxu0 %v1414
      %1423 = vmatprep.subr.mxu0 0.0
      %1424 = vmatpush1.msra.mxu0 %v1415
      %1425 = vmatprep.subr.mxu0 0.0
      %1426 = vmatpush1.msra.mxu0 %v1416
      %1427 = vmatprep.subr.mxu0 0.0
      %1428 = vmatpush1.msra.mxu0 0.0
      %1429 = vmatprep.subr.mxu0 0.0
      %1430 = vmatpush1.msra.mxu0 0.0
      %1431 = vmatprep.subr.mxu0 0.0
      %1432 = vmatpush1.msra.mxu0 0.0
      %1433 = vmatprep.subr.mxu0 0.0
      %1434 = vmatpush1.msra.mxu0 0.0
      %1435 = vmatprep.subr.mxu0 0.0
      %1436 = vmatpush1.msra.mxu0 0.0
      %1437 = vmatprep.subr.mxu0 0.0
      %1438 = vmatpush1.msra.mxu0 0.0
      %1439 = vmatprep.subr.mxu0 0.0
      %1440 = vmatpush1.msra.mxu0 0.0
      %1441 = vmatprep.subr.mxu0 0.0
      %1442 = vmatpush1.msra.mxu0 0.0
      %1443 = vmatprep.subr.mxu0 0.0
      %1444 = vmatpush1.msra.mxu0 0.0
      %1445 = vmatprep.subr.mxu0 0.0
      %1446 = vmatpush1.msra.mxu0 0.0
      %1447 = vmatprep.subr.mxu0 0.0
      %1448 = vmatpush1.msra.mxu0 0.0
      %1449 = vmatprep.subr.mxu0 0.0
      %1450 = vmatpush1.msra.mxu0 0.0
      %1451 = vmatprep.subr.mxu0 0.0
      %1452 = vmatpush1.msra.mxu0 0.0
      %1453 = vmatprep.subr.mxu0 0.0
      %1454 = vmatpush1.msra.mxu0 0.0
      %1455 = vmatprep.subr.mxu0 0.0
      %1456 = vmatpush1.msra.mxu0 0.0
      %1457 = vmatprep.subr.mxu0 0.0
      %1458 = vmatpush1.msra.mxu0 0.0
      %1459 = vmatprep.subr.mxu0 0.0
      %1460 = vmatpush1.msra.mxu0 0.0
      %1461 = vmatprep.subr.mxu0 0.0
      %1462 = vmatpush1.msra.mxu0 0.0
      %1463 = vmatprep.subr.mxu0 0.0
      %1464 = vmatpush1.msra.mxu0 0.0
      %1465 = vmatprep.subr.mxu0 0.0
      %1466 = vmatpush1.msra.mxu0 0.0
      %1467 = vmatprep.subr.mxu0 0.0
      %1468 = vmatpush1.msra.mxu0 0.0
      %1469 = vmatprep.subr.mxu0 0.0
      %1470 = vmatpush1.msra.mxu0 0.0
      %1471 = vmatprep.subr.mxu0 0.0
      %1472 = vmatpush1.msra.mxu0 0.0
      %1473 = vmatprep.subr.mxu0 0.0
      %1474 = vmatpush1.msra.mxu0 0.0
      %1475 = vmatprep.subr.mxu0 0.0
      %1476 = vmatpush1.msra.mxu0 0.0
      %1477 = vmatprep.subr.mxu0 0.0
      %1478 = vmatpush1.msra.mxu0 0.0
      %1479 = vmatprep.subr.mxu0 0.0
      %1480 = vmatpush1.msra.mxu0 0.0
      %1481 = vmatprep.subr.mxu0 0.0
      %1482 = vmatpush1.msra.mxu0 0.0
      %1483 = vmatprep.mubr.f32.mxu0 0.0
      %1484 = vmatmul.mubr.f32.gmra.mrb[0].mxu0 %v522
      %v1485 = vpop.f32.mrb[0].mxu0
      %v1486 = vadd.f32 0.0, %v1485
      %v1487 = vpop.f32.mrb[0].mxu0
      %1488 = vmatprep.mubr.f32.mxu0 0.0
      %1489 = vmatmul.mubr.f32.gmra.mrb[0].mxu0 %v524
      %v1490 = vpop.f32.mrb[0].mxu0
      %v1491 = vadd.f32 0.0, %v1490
      %v1492 = vpop.f32.mrb[0].mxu0
      %1493 = vmatprep.mubr.f32.mxu0 0.0
      %1494 = vmatmul.mubr.f32.gmra.mrb[0].mxu0 %v526
      %v1495 = vpop.f32.mrb[0].mxu0
      %v1496 = vadd.f32 0.0, %v1495
      %v1497 = vpop.f32.mrb[0].mxu0
      %1498 = vmatprep.mubr.f32.mxu0 0.0
      %1499 = vmatmul.mubr.f32.gmra.mrb[0].mxu0 %v528
      %v1500 = vpop.f32.mrb[0].mxu0
      %v1501 = vadd.f32 0.0, %v1500
      %v1502 = vpop.f32.mrb[0].mxu0
      %1503 = vmatprep.mubr.f32.mxu0 0.0
      %1504 = vmatmul.mubr.f32.gmra.mrb[0].mxu0 %v530
      %v1505 = vpop.f32.mrb[0].mxu0
      %v1506 = vadd.f32 0.0, %v1505
      %v1507 = vpop.f32.mrb[0].mxu0
      %1508 = vmatprep.mubr.f32.mxu0 0.0
      %1509 = vmatmul.mubr.f32.gmra.mrb[0].mxu0 %v532
      %v1510 = vpop.f32.mrb[0].mxu0
      %v1511 = vadd.f32 0.0, %v1510
      %v1512 = vpop.f32.mrb[0].mxu0
      %1513 = vmatprep.mubr.f32.mxu0 0.0
      %1514 = vmatmul.mubr.f32.gmra.mrb[0].mxu0 %v1049
      %v1515 = vpop.f32.mrb[0].mxu0
      %v1516 = vadd.f32 0.0, %v1515
      %v1517 = vpop.f32.mrb[0].mxu0
      %1518 = vmatprep.mubr.f32.mxu0 0.0
      %1519 = vmatmul.mubr.f32.gmra.mrb[0].mxu0 %v1417
      %v1520 = vpop.f32.mrb[0].mxu0
      %v1521 = vadd.f32 0.0, %v1520
      %v1522 = vpop.f32.mrb[0].mxu0
      %1523 = vdwg.mxu0
      %v1524 = vadd.f32 %v1400, %v1486
      %v1525 = vadd.f32 %v1401, %v1491
      %v1526 = vadd.f32 %v1402, %v1496
      %v1527 = vadd.f32 %v1403, %v1501
      %v1528 = vadd.f32 %v1404, %v1506
      %v1529 = vadd.f32 %v1405, %v1511
      %v1530 = vadd.f32 %v1406, %v1516
      %v1531 = vadd.f32 %v1407, %v1521
      %v1532 = vrot.slane %v465, 2
      %v1533 = vrot.slane %v466, 2
      %v1534 = vsel %vm760, %v1532, %v1533
      %s1535 = scalar_lea.vmem %s1, 256
      %v1536 = vld [vmem:[%s1535] sm:$0xff]
      %v1537 = vld [vmem:[%s1535 + $0x8] sm:$0xff]
      %v1538 = vld [vmem:[%s1535 + $0x10] sm:$0xff]
      %v1539 = vld [vmem:[%s1535 + $0x18] sm:$0xff]
      %v1540 = vsel %vm517, %v1534, 0
      %1542 = vmatprep.subr.mxu0 0.0
      %1543 = vmatpush1.msra.mxu0 %v1536
      %1544 = vmatprep.subr.mxu0 0.0
      %1545 = vmatpush1.msra.mxu0 %v1537
      %1546 = vmatprep.subr.mxu0 0.0
      %1547 = vmatpush1.msra.mxu0 %v1538
      %1548 = vmatprep.subr.mxu0 0.0
      %1549 = vmatpush1.msra.mxu0 %v1539
      %1550 = vmatprep.subr.mxu0 0.0
      %1551 = vmatpush1.msra.mxu0 0.0
      %1552 = vmatprep.subr.mxu0 0.0
      %1553 = vmatpush1.msra.mxu0 0.0
      %1554 = vmatprep.subr.mxu0 0.0
      %1555 = vmatpush1.msra.mxu0 0.0
      %1556 = vmatprep.subr.mxu0 0.0
      %1557 = vmatpush1.msra.mxu0 0.0
      %1558 = vmatprep.subr.mxu0 0.0
      %1559 = vmatpush1.msra.mxu0 0.0
      %1560 = vmatprep.subr.mxu0 0.0
      %1561 = vmatpush1.msra.mxu0 0.0
      %1562 = vmatprep.subr.mxu0 0.0
      %1563 = vmatpush1.msra.mxu0 0.0
      %1564 = vmatprep.subr.mxu0 0.0
      %1565 = vmatpush1.msra.mxu0 0.0
      %1566 = vmatprep.subr.mxu0 0.0
      %1567 = vmatpush1.msra.mxu0 0.0
      %1568 = vmatprep.subr.mxu0 0.0
      %1569 = vmatpush1.msra.mxu0 0.0
      %1570 = vmatprep.subr.mxu0 0.0
      %1571 = vmatpush1.msra.mxu0 0.0
      %1572 = vmatprep.subr.mxu0 0.0
      %1573 = vmatpush1.msra.mxu0 0.0
      %1574 = vmatprep.subr.mxu0 0.0
      %1575 = vmatpush1.msra.mxu0 0.0
      %1576 = vmatprep.subr.mxu0 0.0
      %1577 = vmatpush1.msra.mxu0 0.0
      %1578 = vmatprep.subr.mxu0 0.0
      %1579 = vmatpush1.msra.mxu0 0.0
      %1580 = vmatprep.subr.mxu0 0.0
      %1581 = vmatpush1.msra.mxu0 0.0
      %1582 = vmatprep.subr.mxu0 0.0
      %1583 = vmatpush1.msra.mxu0 0.0
      %1584 = vmatprep.subr.mxu0 0.0
      %1585 = vmatpush1.msra.mxu0 0.0
      %1586 = vmatprep.subr.mxu0 0.0
      %1587 = vmatpush1.msra.mxu0 0.0
      %1588 = vmatprep.subr.mxu0 0.0
      %1589 = vmatpush1.msra.mxu0 0.0
      %1590 = vmatprep.subr.mxu0 0.0
      %1591 = vmatpush1.msra.mxu0 0.0
      %1592 = vmatprep.subr.mxu0 0.0
      %1593 = vmatpush1.msra.mxu0 0.0
      %1594 = vmatprep.subr.mxu0 0.0
      %1595 = vmatpush1.msra.mxu0 0.0
      %1596 = vmatprep.subr.mxu0 0.0
      %1597 = vmatpush1.msra.mxu0 0.0
      %1598 = vmatprep.subr.mxu0 0.0
      %1599 = vmatpush1.msra.mxu0 0.0
      %1600 = vmatprep.subr.mxu0 0.0
      %1601 = vmatpush1.msra.mxu0 0.0
      %1602 = vmatprep.subr.mxu0 0.0
      %1603 = vmatpush1.msra.mxu0 0.0
      %1604 = vmatprep.subr.mxu0 0.0
      %1605 = vmatpush1.msra.mxu0 0.0
      %1606 = vmatprep.mubr.f32.mxu0 0.0
      %1607 = vmatmul.mubr.f32.gmra.mrb[0].mxu0 %v794
      %v1608 = vpop.f32.mrb[0].mxu0
      %v1609 = vadd.f32 0.0, %v1608
      %v1610 = vpop.f32.mrb[0].mxu0
      %1611 = vmatprep.mubr.f32.mxu0 0.0
      %1612 = vmatmul.mubr.f32.gmra.mrb[0].mxu0 %v796
      %v1613 = vpop.f32.mrb[0].mxu0
      %v1614 = vadd.f32 0.0, %v1613
      %v1615 = vpop.f32.mrb[0].mxu0
      %1616 = vmatprep.mubr.f32.mxu0 0.0
      %1617 = vmatmul.mubr.f32.gmra.mrb[0].mxu0 %v798
      %v1618 = vpop.f32.mrb[0].mxu0
      %v1619 = vadd.f32 0.0, %v1618
      %v1620 = vpop.f32.mrb[0].mxu0
      %1621 = vmatprep.mubr.f32.mxu0 0.0
      %1622 = vmatmul.mubr.f32.gmra.mrb[0].mxu0 %v800
      %v1623 = vpop.f32.mrb[0].mxu0
      %v1624 = vadd.f32 0.0, %v1623
      %v1625 = vpop.f32.mrb[0].mxu0
      %1626 = vmatprep.mubr.f32.mxu0 0.0
      %1627 = vmatmul.mubr.f32.gmra.mrb[0].mxu0 %v802
      %v1628 = vpop.f32.mrb[0].mxu0
      %v1629 = vadd.f32 0.0, %v1628
      %v1630 = vpop.f32.mrb[0].mxu0
      %1631 = vmatprep.mubr.f32.mxu0 0.0
      %1632 = vmatmul.mubr.f32.gmra.mrb[0].mxu0 %v804
      %v1633 = vpop.f32.mrb[0].mxu0
      %v1634 = vadd.f32 0.0, %v1633
      %v1635 = vpop.f32.mrb[0].mxu0
      %1636 = vmatprep.mubr.f32.mxu0 0.0
      %1637 = vmatmul.mubr.f32.gmra.mrb[0].mxu0 %v1172
      %v1638 = vpop.f32.mrb[0].mxu0
      %v1639 = vadd.f32 0.0, %v1638
      %v1640 = vpop.f32.mrb[0].mxu0
      %1641 = vmatprep.mubr.f32.mxu0 0.0
      %1642 = vmatmul.mubr.f32.gmra.mrb[0].mxu0 %v1540
      %v1643 = vpop.f32.mrb[0].mxu0
      %v1644 = vadd.f32 0.0, %v1643
      %v1645 = vpop.f32.mrb[0].mxu0
      %1646 = vdwg.mxu0
      %v1647 = vadd.f32 %v1524, %v1609
      %v1648 = vadd.f32 %v1525, %v1614
      %v1649 = vadd.f32 %v1526, %v1619
      %v1650 = vadd.f32 %v1527, %v1624
      %v1651 = vadd.f32 %v1528, %v1629
      %v1652 = vadd.f32 %v1529, %v1634
      %v1653 = vadd.f32 %v1530, %v1639
      %v1654 = vadd.f32 %v1531, %v1644
      %v1655 = vld [vmem:[%s2] sm:$0x1]
      %v1657 = vlaneseq
      %v1658 = vshrl.u32 %v1657, 7
      %v1659 = vsub.s32 0, %v1658
      %v1660 = vrot.slane %v1655, %v1659
      %v1662 = vadd.f32 %v1647, %v1660
      %v1663 = vadd.f32 %v1648, %v1660
      %v1664 = vadd.f32 %v1649, %v1660
      %v1665 = vadd.f32 %v1650, %v1660
      %v1666 = vadd.f32 %v1651, %v1660
      %v1667 = vadd.f32 %v1652, %v1660
      %v1668 = vadd.f32 %v1653, %v1660
      %v1669 = vadd.f32 %v1654, %v1660
      %v1670 = vmax.f32 %v1662, 0.0
      %v1671 = vmax.f32 %v1663, 0.0
      %v1672 = vmax.f32 %v1664, 0.0
      %v1673 = vmax.f32 %v1665, 0.0
      %v1674 = vmax.f32 %v1666, 0.0
      %v1675 = vmax.f32 %v1667, 0.0
      %v1676 = vmax.f32 %v1668, 0.0
      %v1677 = vmax.f32 %v1669, 0.0
      %v1678 = vsel %vm517, %v1670, 0.0
      %v1679 = vsel %vm517, %v1671, 0.0
      %v1680 = vadd.f32 %v1678, %v1679
      %v1681 = vsel %vm517, %v1672, 0.0
      %v1682 = vadd.f32 %v1680, %v1681
      %v1683 = vsel %vm517, %v1673, 0.0
      %v1684 = vadd.f32 %v1682, %v1683
      %v1685 = vsel %vm517, %v1674, 0.0
      %v1686 = vadd.f32 %v1684, %v1685
      %v1687 = vsel %vm517, %v1675, 0.0
      %v1688 = vadd.f32 %v1686, %v1687
      %v1689 = vsel %vm517, %v1676, 0.0
      %v1690 = vadd.f32 %v1688, %v1689
      %v1691 = vsel %vm517, %v1677, 0.0
      %v1692 = vadd.f32 %v1690, %v1691
      %v1693 = vrot.slane %v1692, 4
      %v1694 = vadd.f32 %v1692, %v1693
      %v1695 = vrot.slane %v1694, 2
      %v1696 = vadd.f32 %v1694, %v1695
      %v1697 = vrot.slane %v1696, 1
      %v1698 = vadd.f32 %v1696, %v1697
      %v1699 = vrcp.pop 64.0
      %v1700 = vmul.f32 %v1698, %v1699
      %v1701 = vsel %vm517, %v1670, -inf
      %v1702 = vsel %vm517, %v1671, -inf
      %v1703 = vsel %vm517, %v1672, -inf
      %v1704 = vsel %vm517, %v1673, -inf
      %v1705 = vsel %vm517, %v1674, -inf
      %v1706 = vmax.f32 %v1701, %v1705
      %v1707 = vsel %vm517, %v1675, -inf
      %v1708 = vmax.f32 %v1702, %v1707
      %v1709 = vsel %vm517, %v1676, -inf
      %v1710 = vmax.f32 %v1703, %v1709
      %v1711 = vsel %vm517, %v1677, -inf
      %v1712 = vmax.f32 %v1704, %v1711
      %v1713 = vmax.f32 %v1706, %v1708
      %v1714 = vmax.f32 %v1710, %v1712
      %v1715 = vmax.f32 %v1713, %v1714
      %v1716 = vrot.slane %v1715, 4
      %v1717 = vmax.f32 %v1715, %v1716
      %v1718 = vrot.slane %v1717, 2
      %v1719 = vmax.f32 %v1717, %v1718
      %v1720 = vrot.slane %v1719, 1
      %v1721 = vmax.f32 %v1719, %v1720
      %vm1722 = vcmask 1040384
      %v1723 = vsel %vm1722, %v1700, %v1721
      %v1724 = vld [vmem:[%s3] sm:$0xff]
      %v1725 = vld [vmem:[%s3 + $0x8] sm:$0xff]
      %v1726 = vld [vmem:[%s3 + $0x10] sm:$0xff]
      %v1727 = vld [vmem:[%s3 + $0x18] sm:$0xff]
      %v1728 = vld [vmem:[%s4] sm:$0x1]
      %v1730 = vlaneseq
      %v1731 = vshrl.u32 %v1730, 7
      %v1732 = vsub.s32 0, %v1731
      %v1733 = vrot.slane %v1728, %v1732
      %v1736 = vsel %vm517, %v1723, 0
      %1738 = vmatprep.subr.mxu0 0.0
      %1739 = vmatpush1.msra.mxu0 %v1724
      %1740 = vmatprep.subr.mxu0 0.0
      %1741 = vmatpush1.msra.mxu0 %v1725
      %1742 = vmatprep.subr.mxu0 0.0
      %1743 = vmatpush1.msra.mxu0 %v1726
      %1744 = vmatprep.subr.mxu0 0.0
      %1745 = vmatpush1.msra.mxu0 %v1727
      %1746 = vmatprep.subr.mxu0 0.0
      %1747 = vmatpush1.msra.mxu0 0.0
      %1748 = vmatprep.subr.mxu0 0.0
      %1749 = vmatpush1.msra.mxu0 0.0
      %1750 = vmatprep.subr.mxu0 0.0
      %1751 = vmatpush1.msra.mxu0 0.0
      %1752 = vmatprep.subr.mxu0 0.0
      %1753 = vmatpush1.msra.mxu0 0.0
      %1754 = vmatprep.subr.mxu0 0.0
      %1755 = vmatpush1.msra.mxu0 0.0
      %1756 = vmatprep.subr.mxu0 0.0
      %1757 = vmatpush1.msra.mxu0 0.0
      %1758 = vmatprep.subr.mxu0 0.0
      %1759 = vmatpush1.msra.mxu0 0.0
      %1760 = vmatprep.subr.mxu0 0.0
      %1761 = vmatpush1.msra.mxu0 0.0
      %1762 = vmatprep.subr.mxu0 0.0
      %1763 = vmatpush1.msra.mxu0 0.0
      %1764 = vmatprep.subr.mxu0 0.0
      %1765 = vmatpush1.msra.mxu0 0.0
      %1766 = vmatprep.subr.mxu0 0.0
      %1767 = vmatpush1.msra.mxu0 0.0
      %1768 = vmatprep.subr.mxu0 0.0
      %1769 = vmatpush1.msra.mxu0 0.0
      %1770 = vmatprep.subr.mxu0 0.0
      %1771 = vmatpush1.msra.mxu0 0.0
      %1772 = vmatprep.subr.mxu0 0.0
      %1773 = vmatpush1.msra.mxu0 0.0
      %1774 = vmatprep.subr.mxu0 0.0
      %1775 = vmatpush1.msra.mxu0 0.0
      %1776 = vmatprep.subr.mxu0 0.0
      %1777 = vmatpush1.msra.mxu0 0.0
      %1778 = vmatprep.subr.mxu0 0.0
      %1779 = vmatpush1.msra.mxu0 0.0
      %1780 = vmatprep.subr.mxu0 0.0
      %1781 = vmatpush1.msra.mxu0 0.0
      %1782 = vmatprep.subr.mxu0 0.0
      %1783 = vmatpush1.msra.mxu0 0.0
      %1784 = vmatprep.subr.mxu0 0.0
      %1785 = vmatpush1.msra.mxu0 0.0
      %1786 = vmatprep.subr.mxu0 0.0
      %1787 = vmatpush1.msra.mxu0 0.0
      %1788 = vmatprep.subr.mxu0 0.0
      %1789 = vmatpush1.msra.mxu0 0.0
      %1790 = vmatprep.subr.mxu0 0.0
      %1791 = vmatpush1.msra.mxu0 0.0
      %1792 = vmatprep.subr.mxu0 0.0
      %1793 = vmatpush1.msra.mxu0 0.0
      %1794 = vmatprep.subr.mxu0 0.0
      %1795 = vmatpush1.msra.mxu0 0.0
      %1796 = vmatprep.subr.mxu0 0.0
      %1797 = vmatpush1.msra.mxu0 0.0
      %1798 = vmatprep.subr.mxu0 0.0
      %1799 = vmatpush1.msra.mxu0 0.0
      %1800 = vmatprep.subr.mxu0 0.0
      %1801 = vmatpush1.msra.mxu0 0.0
      %1802 = vmatprep.mubr.f32.mxu0 0.0
      %1803 = vmatmul.mubr.f32.gmra.mrb[0].mxu0 %v1736
      %v1804 = vpop.f32.mrb[0].mxu0
      %v1805 = vadd.f32 %v1733, %v1804
      %v1806 = vpop.f32.mrb[0].mxu0
      %1807 = vdwg.mxu0
      %v1808 = vmax.f32 %v1805, 0.0
      %v1809 = vld [vmem:[%s5] sm:$0x3]
      %v1810 = vld [vmem:[%s6] sm:$0x1]
      %v1812 = vlaneseq
      %v1813 = vshrl.u32 %v1812, 7
      %v1814 = vsub.s32 0, %v1813
      %v1815 = vrot.slane %v1810, %v1814
      %vm1817 = vcmask 15360
      %v1819 = vsel %vm1817, %v1808, 0
      %vm1821 = vcmask 1041408
      %v1823 = vsel %vm1821, %v1809, 0
      %1825 = vmatprep.subr.mxu0 0.0
      %1826 = vmatpush1.msra.mxu0 %v1823
      %1827 = vmatprep.subr.mxu0 0.0
      %1828 = vmatpush1.msra.mxu0 0.0
      %1829 = vmatprep.subr.mxu0 0.0
      %1830 = vmatpush1.msra.mxu0 0.0
      %1831 = vmatprep.subr.mxu0 0.0
      %1832 = vmatpush1.msra.mxu0 0.0
      %1833 = vmatprep.subr.mxu0 0.0
      %1834 = vmatpush1.msra.mxu0 0.0
      %1835 = vmatprep.subr.mxu0 0.0
      %1836 = vmatpush1.msra.mxu0 0.0
      %1837 = vmatprep.subr.mxu0 0.0
      %1838 = vmatpush1.msra.mxu0 0.0
      %1839 = vmatprep.subr.mxu0 0.0
      %1840 = vmatpush1.msra.mxu0 0.0
      %1841 = vmatprep.subr.mxu0 0.0
      %1842 = vmatpush1.msra.mxu0 0.0
      %1843 = vmatprep.subr.mxu0 0.0
      %1844 = vmatpush1.msra.mxu0 0.0
      %1845 = vmatprep.subr.mxu0 0.0
      %1846 = vmatpush1.msra.mxu0 0.0
      %1847 = vmatprep.subr.mxu0 0.0
      %1848 = vmatpush1.msra.mxu0 0.0
      %1849 = vmatprep.subr.mxu0 0.0
      %1850 = vmatpush1.msra.mxu0 0.0
      %1851 = vmatprep.subr.mxu0 0.0
      %1852 = vmatpush1.msra.mxu0 0.0
      %1853 = vmatprep.subr.mxu0 0.0
      %1854 = vmatpush1.msra.mxu0 0.0
      %1855 = vmatprep.subr.mxu0 0.0
      %1856 = vmatpush1.msra.mxu0 0.0
      %1857 = vmatprep.subr.mxu0 0.0
      %1858 = vmatpush1.msra.mxu0 0.0
      %1859 = vmatprep.subr.mxu0 0.0
      %1860 = vmatpush1.msra.mxu0 0.0
      %1861 = vmatprep.subr.mxu0 0.0
      %1862 = vmatpush1.msra.mxu0 0.0
      %1863 = vmatprep.subr.mxu0 0.0
      %1864 = vmatpush1.msra.mxu0 0.0
      %1865 = vmatprep.subr.mxu0 0.0
      %1866 = vmatpush1.msra.mxu0 0.0
      %1867 = vmatprep.subr.mxu0 0.0
      %1868 = vmatpush1.msra.mxu0 0.0
      %1869 = vmatprep.subr.mxu0 0.0
      %1870 = vmatpush1.msra.mxu0 0.0
      %1871 = vmatprep.subr.mxu0 0.0
      %1872 = vmatpush1.msra.mxu0 0.0
      %1873 = vmatprep.subr.mxu0 0.0
      %1874 = vmatpush1.msra.mxu0 0.0
      %1875 = vmatprep.subr.mxu0 0.0
      %1876 = vmatpush1.msra.mxu0 0.0
      %1877 = vmatprep.subr.mxu0 0.0
      %1878 = vmatpush1.msra.mxu0 0.0
      %1879 = vmatprep.subr.mxu0 0.0
      %1880 = vmatpush1.msra.mxu0 0.0
      %1881 = vmatprep.subr.mxu0 0.0
      %1882 = vmatpush1.msra.mxu0 0.0
      %1883 = vmatprep.subr.mxu0 0.0
      %1884 = vmatpush1.msra.mxu0 0.0
      %1885 = vmatprep.subr.mxu0 0.0
      %1886 = vmatpush1.msra.mxu0 0.0
      %1887 = vmatprep.subr.mxu0 0.0
      %1888 = vmatpush1.msra.mxu0 0.0
      %1889 = vmatprep.mubr.f32.mxu0 0.0
      %1890 = vmatmul.mubr.f32.gmra.mrb[0].mxu0 %v1819
      %v1891 = vpop.f32.mrb[0].mxu0
      %v1892 = vadd.f32 %v1815, %v1891
      %v1893 = vpop.f32.mrb[0].mxu0
      %1894 = vdwg.mxu0
      %v1896 = vrot.slane %v1892, 1
      %v1898 = vadd.f32 %v1892, %v1896
      %v1899 = vxor.u32 %v1898, 2147483648
      %v1900 = vmul.f32 %v1899, 1.442695
      %v1901 = vpow.pop %v1900
      %v1902 = vadd.f32 %v1901, 1.0
      %v1903 = vrcp.pop %v1902
      %v1904 = vmul.f32 1.0, %v1903
      %v1905 = vlaneseq
      %v1906 = vshrl.u32 %v1905, 7
      %v1907 = vsub.s32 0, %v1906
      %v1908 = vrot.slane %v1904, %v1907
      %v1909 = vmul.f32 %v1670, %v1908
      %v1910 = vmul.f32 %v1671, %v1908
      %v1911 = vmul.f32 %v1672, %v1908
      %v1912 = vmul.f32 %v1673, %v1908
      %v1913 = vmul.f32 %v1674, %v1908
      %v1914 = vmul.f32 %v1675, %v1908
      %v1915 = vmul.f32 %v1676, %v1908
      %v1916 = vmul.f32 %v1677, %v1908
      %v1917 = vsel %vm517, %v1909, 0.0
      %1918 = vadd.xlane.f32.xlu0 %v1917
      %v1919 = vpop.xlane.xlu0 %1918
      %v1920 = vsel %vm517, %v1910, 0.0
      %1921 = vadd.xlane.f32.xlu0 %v1920
      %v1922 = vpop.xlane.xlu0 %1921
      %v1923 = vsel %vm517, %v1911, 0.0
      %1924 = vadd.xlane.f32.xlu0 %v1923
      %v1925 = vpop.xlane.xlu0 %1924
      %v1926 = vsel %vm517, %v1912, 0.0
      %1927 = vadd.xlane.f32.xlu0 %v1926
      %v1928 = vpop.xlane.xlu0 %1927
      %v1929 = vsel %vm517, %v1913, 0.0
      %1930 = vadd.xlane.f32.xlu0 %v1929
      %v1931 = vpop.xlane.xlu0 %1930
      %v1932 = vsel %vm517, %v1914, 0.0
      %1933 = vadd.xlane.f32.xlu0 %v1932
      %v1934 = vpop.xlane.xlu0 %1933
      %v1935 = vsel %vm517, %v1915, 0.0
      %1936 = vadd.xlane.f32.xlu0 %v1935
      %v1937 = vpop.xlane.xlu0 %1936
      %v1938 = vsel %vm517, %v1916, 0.0
      %1939 = vadd.xlane.f32.xlu0 %v1938
      %v1940 = vpop.xlane.xlu0 %1939
      %v1941 = vrcp.pop 32.0
      %v1942 = vmul.f32 %v1919, %v1941
      %v1943 = vmul.f32 %v1922, %v1941
      %v1944 = vmul.f32 %v1925, %v1941
      %v1945 = vmul.f32 %v1928, %v1941
      %v1946 = vmul.f32 %v1931, %v1941
      %v1947 = vmul.f32 %v1934, %v1941
      %v1948 = vmul.f32 %v1937, %v1941
      %v1949 = vmul.f32 %v1940, %v1941
      %v1950 = vsel %vm517, %v1909, -inf
      %1951 = vmax.xlane.f32.xlu0 %v1950
      %v1952 = vpop.xlane.xlu0 %1951
      %v1953 = vsel %vm517, %v1910, -inf
      %1954 = vmax.xlane.f32.xlu0 %v1953
      %v1955 = vpop.xlane.xlu0 %1954
      %v1956 = vsel %vm517, %v1911, -inf
      %1957 = vmax.xlane.f32.xlu0 %v1956
      %v1958 = vpop.xlane.xlu0 %1957
      %v1959 = vsel %vm517, %v1912, -inf
      %1960 = vmax.xlane.f32.xlu0 %v1959
      %v1961 = vpop.xlane.xlu0 %1960
      %v1962 = vsel %vm517, %v1913, -inf
      %1963 = vmax.xlane.f32.xlu0 %v1962
      %v1964 = vpop.xlane.xlu0 %1963
      %v1965 = vsel %vm517, %v1914, -inf
      %1966 = vmax.xlane.f32.xlu0 %v1965
      %v1967 = vpop.xlane.xlu0 %1966
      %v1968 = vsel %vm517, %v1915, -inf
      %1969 = vmax.xlane.f32.xlu0 %v1968
      %v1970 = vpop.xlane.xlu0 %1969
      %v1971 = vsel %vm517, %v1916, -inf
      %1972 = vmax.xlane.f32.xlu0 %v1971
      %v1973 = vpop.xlane.xlu0 %1972
      %vm1974 = vcmask 7168
      %v1975 = vsel %vm1974, %v1942, %v1952
      %v1976 = vsel %vm1974, %v1943, %v1955
      %v1977 = vsel %vm1974, %v1944, %v1958
      %v1978 = vsel %vm1974, %v1945, %v1961
      %v1979 = vsel %vm1974, %v1946, %v1964
      %v1980 = vsel %vm1974, %v1947, %v1967
      %v1981 = vsel %vm1974, %v1948, %v1970
      %v1982 = vsel %vm1974, %v1949, %v1973
      %1983 = vst.msk [vmem:[#allocation2] sm:$0xff] %vm1817, 0.0
      %1984 = vst.msk [vmem:[#allocation2 + $0x8] sm:$0xff] %vm1817, 0.0
      %1985 = vst.msk [vmem:[#allocation2 + $0x10] sm:$0xff] %vm1817, 0.0
      %1986 = vst.msk [vmem:[#allocation2 + $0x18] sm:$0xff] %vm1817, 0.0
      %1987 = vst.msk [vmem:[#allocation2 + $0x20] sm:$0xff] %vm1817, 0.0
      %1988 = vst.msk [vmem:[#allocation2 + $0x28] sm:$0xff] %vm1817, 0.0
      %1989 = vst.msk [vmem:[#allocation2 + $0x30] sm:$0xff] %vm1817, 0.0
      %1990 = vst.msk [vmem:[#allocation2 + $0x38] sm:$0xff] %vm1817, 0.0
      %1991 = vst.msk [vmem:[#allocation2 + $0x40] sm:$0xff] %vm1817, 0.0
      %1992 = vst.msk [vmem:[#allocation2 + $0x48] sm:$0xff] %vm1817, 0.0
      %1993 = vst.msk [vmem:[#allocation2 + $0x50] sm:$0xff] %vm1817, 0.0
      %1994 = vst.msk [vmem:[#allocation2 + $0x58] sm:$0xff] %vm1817, 0.0
      %1995 = vst.msk [vmem:[#allocation2 + $0x60] sm:$0xff] %vm1817, 0.0
      %1996 = vst.msk [vmem:[#allocation2 + $0x68] sm:$0xff] %vm1817, 0.0
      %1997 = vst.msk [vmem:[#allocation2 + $0x70] sm:$0xff] %vm1817, 0.0
      %1998 = vst.msk [vmem:[#allocation2 + $0x78] sm:$0xff] %vm1817, 0.0
      %1999 = vst.msk [vmem:[#allocation2 + $0x80] sm:$0xff] %vm1817, 0.0
      %2000 = vst.msk [vmem:[#allocation2 + $0x88] sm:$0xff] %vm1817, 0.0
      %2001 = vst.msk [vmem:[#allocation2 + $0x90] sm:$0xff] %vm1817, 0.0
      %2002 = vst.msk [vmem:[#allocation2 + $0x98] sm:$0xff] %vm1817, 0.0
      %2003 = vst.msk [vmem:[#allocation2 + $0xa0] sm:$0xff] %vm1817, 0.0
      %2004 = vst.msk [vmem:[#allocation2 + $0xa8] sm:$0xff] %vm1817, 0.0
      %2005 = vst.msk [vmem:[#allocation2 + $0xb0] sm:$0xff] %vm1817, 0.0
      %2006 = vst.msk [vmem:[#allocation2 + $0xb8] sm:$0xff] %vm1817, 0.0
      %2007 = vst.msk [vmem:[#allocation2 + $0xc0] sm:$0xff] %vm1817, 0.0
      %2008 = vst.msk [vmem:[#allocation2 + $0xc8] sm:$0xff] %vm1817, 0.0
      %2009 = vst.msk [vmem:[#allocation2 + $0xd0] sm:$0xff] %vm1817, 0.0
      %2010 = vst.msk [vmem:[#allocation2 + $0xd8] sm:$0xff] %vm1817, 0.0
      %2011 = vst.msk [vmem:[#allocation2 + $0xe0] sm:$0xff] %vm1817, 0.0
      %2012 = vst.msk [vmem:[#allocation2 + $0xe8] sm:$0xff] %vm1817, 0.0
      %2013 = vst.msk [vmem:[#allocation2 + $0xf0] sm:$0xff] %vm1817, 0.0
      %2014 = vst.msk [vmem:[#allocation2 + $0xf8] sm:$0xff] %vm1817, 0.0
      %2015 = vst.msk [vmem:[#allocation2 + $0x100] sm:$0xff] %vm1817, 0.0
      %2016 = vst.msk [vmem:[#allocation2 + $0x108] sm:$0xff] %vm1817, 0.0
      %2017 = vst.msk [vmem:[#allocation2 + $0x110] sm:$0xff] %vm1817, 0.0
      %2018 = vst.msk [vmem:[#allocation2 + $0x118] sm:$0xff] %vm1817, 0.0
      %2019 = vst.msk [vmem:[#allocation2 + $0x120] sm:$0xff] %vm1817, 0.0
      %2020 = vst.msk [vmem:[#allocation2 + $0x128] sm:$0xff] %vm1817, 0.0
      %2021 = vst.msk [vmem:[#allocation2 + $0x130] sm:$0xff] %vm1817, 0.0
      %2022 = vst.msk [vmem:[#allocation2 + $0x138] sm:$0xff] %vm1817, 0.0
      %2023 = vst.msk [vmem:[#allocation2 + $0x140] sm:$0xff] %vm1817, 0.0
      %2024 = vst.msk [vmem:[#allocation2 + $0x148] sm:$0xff] %vm1817, 0.0
      %s2025 = scalar_lea.vmem [#allocation2], 72
      %2026 = vst.msk [vmem:[%s2025 + $0x8] sm:$0xff] %vm1817, %v1975
      %2027 = vst.msk [vmem:[%s2025 + $0x20] sm:$0xff] %vm1817, %v1976
      %2028 = vst.msk [vmem:[%s2025 + $0x38] sm:$0xff] %vm1817, %v1977
      %2029 = vst.msk [vmem:[%s2025 + $0x50] sm:$0xff] %vm1817, %v1978
      %2030 = vst.msk [vmem:[%s2025 + $0x68] sm:$0xff] %vm1817, %v1979
      %2031 = vst.msk [vmem:[%s2025 + $0x80] sm:$0xff] %vm1817, %v1980
      %2032 = vst.msk [vmem:[%s2025 + $0x98] sm:$0xff] %vm1817, %v1981
      %2033 = vst.msk [vmem:[%s2025 + $0xb0] sm:$0xff] %vm1817, %v1982
      %v2034 = vld [vmem:[#allocation2] sm:$0xff]
      %v2035 = vld [vmem:[#allocation2 + $0x8] sm:$0xff]
      %v2036 = vld [vmem:[#allocation2 + $0x10] sm:$0xff]
      %v2037 = vld [vmem:[#allocation2 + $0x18] sm:$0xff]
      %v2038 = vld [vmem:[#allocation2 + $0x20] sm:$0xff]
      %v2039 = vld [vmem:[#allocation2 + $0x28] sm:$0xff]
      %v2040 = vld [vmem:[#allocation2 + $0x30] sm:$0xff]
      %v2041 = vld [vmem:[#allocation2 + $0x38] sm:$0xff]
      %v2042 = vld [vmem:[#allocation2 + $0x40] sm:$0xff]
      %v2043 = vld [vmem:[#allocation2 + $0x48] sm:$0xff]
      %v2044 = vld [vmem:[#allocation2 + $0x50] sm:$0xff]
      %v2045 = vld [vmem:[#allocation2 + $0x58] sm:$0xff]
      %v2046 = vld [vmem:[#allocation2 + $0x60] sm:$0xff]
      %v2047 = vld [vmem:[#allocation2 + $0x68] sm:$0xff]
      %v2048 = vld [vmem:[#allocation2 + $0x70] sm:$0xff]
      %v2049 = vld [vmem:[#allocation2 + $0x78] sm:$0xff]
      %v2050 = vld [vmem:[#allocation2 + $0x80] sm:$0xff]
      %v2051 = vld [vmem:[#allocation2 + $0x88] sm:$0xff]
      %v2052 = vld [vmem:[#allocation2 + $0x90] sm:$0xff]
      %v2053 = vld [vmem:[#allocation2 + $0x98] sm:$0xff]
      %v2054 = vld [vmem:[#allocation2 + $0xa0] sm:$0xff]
      %v2055 = vld [vmem:[#allocation2 + $0xa8] sm:$0xff]
      %v2056 = vld [vmem:[#allocation2 + $0xb0] sm:$0xff]
      %v2057 = vld [vmem:[#allocation2 + $0xb8] sm:$0xff]
      %v2058 = vld [vmem:[#allocation2 + $0xc0] sm:$0xff]
      %v2059 = vld [vmem:[#allocation2 + $0xc8] sm:$0xff]
      %v2060 = vld [vmem:[#allocation2 + $0xd0] sm:$0xff]
      %v2061 = vld [vmem:[#allocation2 + $0xd8] sm:$0xff]
      %v2062 = vld [vmem:[#allocation2 + $0xe0] sm:$0xff]
      %v2063 = vld [vmem:[#allocation2 + $0xe8] sm:$0xff]
      %v2064 = vld [vmem:[#allocation2 + $0xf0] sm:$0xff]
      %v2065 = vld [vmem:[#allocation2 + $0xf8] sm:$0xff]
      %v2066 = vld [vmem:[#allocation2 + $0x100] sm:$0xff]
      %v2067 = vld [vmem:[#allocation2 + $0x108] sm:$0xff]
      %v2068 = vld [vmem:[#allocation2 + $0x110] sm:$0xff]
      %v2069 = vld [vmem:[#allocation2 + $0x118] sm:$0xff]
      %v2070 = vld [vmem:[#allocation2 + $0x120] sm:$0xff]
      %v2071 = vld [vmem:[#allocation2 + $0x128] sm:$0xff]
      %v2072 = vld [vmem:[#allocation2 + $0x130] sm:$0xff]
      %v2073 = vld [vmem:[#allocation2 + $0x138] sm:$0xff]
      %v2074 = vld [vmem:[#allocation2 + $0x140] sm:$0xff]
      %v2075 = vld [vmem:[#allocation2 + $0x148] sm:$0xff]
      %v2076 = vld [vmem:[%s9] sm:$0x7f]
      %v2077 = vld [vmem:[%s9 + $0x8] sm:$0x7f]
      %v2078 = vld [vmem:[%s9 + $0x10] sm:$0x7f]
      %v2079 = vld [vmem:[%s9 + $0x18] sm:$0x7f]
      %v2080 = vld [vmem:[%s9 + $0x20] sm:$0x7f]
      %v2081 = vld [vmem:[%s9 + $0x28] sm:$0x7f]
      %v2082 = vld [vmem:[%s9 + $0x30] sm:$0x7f]
      %v2083 = vlaneseq
      %v2084 = vshrl.u32 %v2083, 7
      %v2085 = vsub.s32 0, %v2084
      %v2086 = vrot.slane %v2076, %v2085
      %v2087 = vmul.f32 %v2034, %v2086
      %v2088 = vmul.f32 %v2035, %v2086
      %v2089 = vmul.f32 %v2037, %v2086
      %v2090 = vmul.f32 %v2038, %v2086
      %v2091 = vmul.f32 %v2040, %v2086
      %v2092 = vmul.f32 %v2041, %v2086
      %v2093 = vmul.f32 %v2043, %v2086
      %v2094 = vmul.f32 %v2044, %v2086
      %v2095 = vmul.f32 %v2046, %v2086
      %v2096 = vmul.f32 %v2047, %v2086
      %v2097 = vmul.f32 %v2049, %v2086
      %v2098 = vmul.f32 %v2050, %v2086
      %v2099 = vmul.f32 %v2052, %v2086
      %v2100 = vmul.f32 %v2053, %v2086
      %v2101 = vmul.f32 %v2055, %v2086
      %v2102 = vmul.f32 %v2056, %v2086
      %vm2103 = vcmask 15365
      %v2104 = vsel %vm2103, %v2087, 0.0
      %2105 = vadd.xlane.f32.xlu0 %v2104
      %v2106 = vpop.xlane.xlu0 %2105
      %vm2107 = vcmask 12288
      %v2108 = vsel %vm2107, %v2088, 0.0
      %2109 = vadd.xlane.f32.xlu0 %v2108
      %v2110 = vpop.xlane.xlu0 %2109
      %v2111 = vsel %vm2103, %v2089, 0.0
      %2112 = vadd.xlane.f32.xlu0 %v2111
      %v2113 = vpop.xlane.xlu0 %2112
      %v2114 = vsel %vm2107, %v2090, 0.0
      %2115 = vadd.xlane.f32.xlu0 %v2114
      %v2116 = vpop.xlane.xlu0 %2115
      %v2117 = vsel %vm2103, %v2091, 0.0
      %2118 = vadd.xlane.f32.xlu0 %v2117
      %v2119 = vpop.xlane.xlu0 %2118
      %v2120 = vsel %vm2107, %v2092, 0.0
      %2121 = vadd.xlane.f32.xlu0 %v2120
      %v2122 = vpop.xlane.xlu0 %2121
      %v2123 = vsel %vm2103, %v2093, 0.0
      %2124 = vadd.xlane.f32.xlu0 %v2123
      %v2125 = vpop.xlane.xlu0 %2124
      %v2126 = vsel %vm2107, %v2094, 0.0
      %2127 = vadd.xlane.f32.xlu0 %v2126
      %v2128 = vpop.xlane.xlu0 %2127
      %v2129 = vsel %vm2103, %v2095, 0.0
      %2130 = vadd.xlane.f32.xlu0 %v2129
      %v2131 = vpop.xlane.xlu0 %2130
      %v2132 = vsel %vm2107, %v2096, 0.0
      %2133 = vadd.xlane.f32.xlu0 %v2132
      %v2134 = vpop.xlane.xlu0 %2133
      %v2135 = vsel %vm2103, %v2097, 0.0
      %2136 = vadd.xlane.f32.xlu0 %v2135
      %v2137 = vpop.xlane.xlu0 %2136
      %v2138 = vsel %vm2107, %v2098, 0.0
      %2139 = vadd.xlane.f32.xlu0 %v2138
      %v2140 = vpop.xlane.xlu0 %2139
      %v2141 = vsel %vm2103, %v2099, 0.0
      %2142 = vadd.xlane.f32.xlu0 %v2141
      %v2143 = vpop.xlane.xlu0 %2142
      %v2144 = vsel %vm2107, %v2100, 0.0
      %2145 = vadd.xlane.f32.xlu0 %v2144
      %v2146 = vpop.xlane.xlu0 %2145
      %v2147 = vsel %vm2103, %v2101, 0.0
      %2148 = vadd.xlane.f32.xlu0 %v2147
      %v2149 = vpop.xlane.xlu0 %2148
      %v2150 = vsel %vm2107, %v2102, 0.0
      %2151 = vadd.xlane.f32.xlu0 %v2150
      %v2152 = vpop.xlane.xlu0 %2151
      %v2153 = vadd.f32 %v2106, 0.0
      %v2154 = vadd.f32 %v2110, 0.0
      %v2155 = vadd.f32 %v2113, 0.0
      %v2156 = vadd.f32 %v2116, 0.0
      %v2157 = vadd.f32 %v2119, 0.0
      %v2158 = vadd.f32 %v2122, 0.0
      %v2159 = vadd.f32 %v2125, 0.0
      %v2160 = vadd.f32 %v2128, 0.0
      %v2161 = vadd.f32 %v2131, 0.0
      %v2162 = vadd.f32 %v2134, 0.0
      %v2163 = vadd.f32 %v2137, 0.0
      %v2164 = vadd.f32 %v2140, 0.0
      %v2165 = vadd.f32 %v2143, 0.0
      %v2166 = vadd.f32 %v2146, 0.0
      %v2167 = vadd.f32 %v2149, 0.0
      %v2168 = vadd.f32 %v2152, 0.0
      %v2169 = vlaneseq
      %v2170 = vshrl.u32 %v2169, 7
      %v2171 = vsub.s32 1, %v2170
      %v2172 = vrot.slane %v2076, %v2171
      %v2173 = vmul.f32 %v2034, %v2172
      %v2174 = vmul.f32 %v2035, %v2172
      %v2175 = vmul.f32 %v2037, %v2172
      %v2176 = vmul.f32 %v2038, %v2172
      %v2177 = vmul.f32 %v2040, %v2172
      %v2178 = vmul.f32 %v2041, %v2172
      %v2179 = vmul.f32 %v2043, %v2172
      %v2180 = vmul.f32 %v2044, %v2172
      %v2181 = vmul.f32 %v2046, %v2172
      %v2182 = vmul.f32 %v2047, %v2172
      %v2183 = vmul.f32 %v2049, %v2172
      %v2184 = vmul.f32 %v2050, %v2172
      %v2185 = vmul.f32 %v2052, %v2172
      %v2186 = vmul.f32 %v2053, %v2172
      %v2187 = vmul.f32 %v2055, %v2172
      %v2188 = vmul.f32 %v2056, %v2172
      %vm2189 = vcmask 15366
      %v2190 = vsel %vm2189, %v2173, 0.0
      %2191 = vadd.xlane.f32.xlu0 %v2190
      %v2192 = vpop.xlane.xlu0 %2191
      %vm2193 = vcmask 13312
      %v2194 = vsel %vm2193, %v2174, 0.0
      %2195 = vadd.xlane.f32.xlu0 %v2194
      %v2196 = vpop.xlane.xlu0 %2195
      %v2197 = vsel %vm2189, %v2175, 0.0
      %2198 = vadd.xlane.f32.xlu0 %v2197
      %v2199 = vpop.xlane.xlu0 %2198
      %v2200 = vsel %vm2193, %v2176, 0.0
      %2201 = vadd.xlane.f32.xlu0 %v2200
      %v2202 = vpop.xlane.xlu0 %2201
      %v2203 = vsel %vm2189, %v2177, 0.0
      %2204 = vadd.xlane.f32.xlu0 %v2203
      %v2205 = vpop.xlane.xlu0 %2204
      %v2206 = vsel %vm2193, %v2178, 0.0
      %2207 = vadd.xlane.f32.xlu0 %v2206
      %v2208 = vpop.xlane.xlu0 %2207
      %v2209 = vsel %vm2189, %v2179, 0.0
      %2210 = vadd.xlane.f32.xlu0 %v2209
      %v2211 = vpop.xlane.xlu0 %2210
      %v2212 = vsel %vm2193, %v2180, 0.0
      %2213 = vadd.xlane.f32.xlu0 %v2212
      %v2214 = vpop.xlane.xlu0 %2213
      %v2215 = vsel %vm2189, %v2181, 0.0
      %2216 = vadd.xlane.f32.xlu0 %v2215
      %v2217 = vpop.xlane.xlu0 %2216
      %v2218 = vsel %vm2193, %v2182, 0.0
      %2219 = vadd.xlane.f32.xlu0 %v2218
      %v2220 = vpop.xlane.xlu0 %2219
      %v2221 = vsel %vm2189, %v2183, 0.0
      %2222 = vadd.xlane.f32.xlu0 %v2221
      %v2223 = vpop.xlane.xlu0 %2222
      %v2224 = vsel %vm2193, %v2184, 0.0
      %2225 = vadd.xlane.f32.xlu0 %v2224
      %v2226 = vpop.xlane.xlu0 %2225
      %v2227 = vsel %vm2189, %v2185, 0.0
      %2228 = vadd.xlane.f32.xlu0 %v2227
      %v2229 = vpop.xlane.xlu0 %2228
      %v2230 = vsel %vm2193, %v2186, 0.0
      %2231 = vadd.xlane.f32.xlu0 %v2230
      %v2232 = vpop.xlane.xlu0 %2231
      %v2233 = vsel %vm2189, %v2187, 0.0
      %2234 = vadd.xlane.f32.xlu0 %v2233
      %v2235 = vpop.xlane.xlu0 %2234
      %v2236 = vsel %vm2193, %v2188, 0.0
      %2237 = vadd.xlane.f32.xlu0 %v2236
      %v2238 = vpop.xlane.xlu0 %2237
      %v2255 = vrot.slane %v2192, 1
      %v2256 = vrot.slane %v2196, 1
      %v2257 = vsel %vm487, %v2255, %v2256
      %v2258 = vrot.slane %v2199, 1
      %v2259 = vrot.slane %v2202, 1
      %v2260 = vsel %vm487, %v2258, %v2259
      %v2261 = vrot.slane %v2205, 1
      %v2262 = vrot.slane %v2208, 1
      %v2263 = vsel %vm487, %v2261, %v2262
      %v2264 = vrot.slane %v2211, 1
      %v2265 = vrot.slane %v2214, 1
      %v2266 = vsel %vm487, %v2264, %v2265
      %v2267 = vrot.slane %v2217, 1
      %v2268 = vrot.slane %v2220, 1
      %v2269 = vsel %vm487, %v2267, %v2268
      %v2270 = vrot.slane %v2223, 1
      %v2271 = vrot.slane %v2226, 1
      %v2272 = vsel %vm487, %v2270, %v2271
      %v2273 = vrot.slane %v2229, 1
      %v2274 = vrot.slane %v2232, 1
      %v2275 = vsel %vm487, %v2273, %v2274
      %v2276 = vrot.slane %v2235, 1
      %v2277 = vrot.slane %v2238, 1
      %v2278 = vsel %vm487, %v2276, %v2277
      %v2295 = vadd.f32 %v2153, %v2257
      %v2296 = vadd.f32 %v2154, %v2256
      %v2297 = vadd.f32 %v2155, %v2260
      %v2298 = vadd.f32 %v2156, %v2259
      %v2299 = vadd.f32 %v2157, %v2263
      %v2300 = vadd.f32 %v2158, %v2262
      %v2301 = vadd.f32 %v2159, %v2266
      %v2302 = vadd.f32 %v2160, %v2265
      %v2303 = vadd.f32 %v2161, %v2269
      %v2304 = vadd.f32 %v2162, %v2268
      %v2305 = vadd.f32 %v2163, %v2272
      %v2306 = vadd.f32 %v2164, %v2271
      %v2307 = vadd.f32 %v2165, %v2275
      %v2308 = vadd.f32 %v2166, %v2274
      %v2309 = vadd.f32 %v2167, %v2278
      %v2310 = vadd.f32 %v2168, %v2277
      %v2311 = vlaneseq
      %v2312 = vshrl.u32 %v2311, 7
      %v2313 = vsub.s32 2, %v2312
      %v2314 = vrot.slane %v2076, %v2313
      %v2315 = vmul.f32 %v2034, %v2314
      %v2316 = vmul.f32 %v2035, %v2314
      %v2317 = vmul.f32 %v2037, %v2314
      %v2318 = vmul.f32 %v2038, %v2314
      %v2319 = vmul.f32 %v2040, %v2314
      %v2320 = vmul.f32 %v2041, %v2314
      %v2321 = vmul.f32 %v2043, %v2314
      %v2322 = vmul.f32 %v2044, %v2314
      %v2323 = vmul.f32 %v2046, %v2314
      %v2324 = vmul.f32 %v2047, %v2314
      %v2325 = vmul.f32 %v2049, %v2314
      %v2326 = vmul.f32 %v2050, %v2314
      %v2327 = vmul.f32 %v2052, %v2314
      %v2328 = vmul.f32 %v2053, %v2314
      %v2329 = vmul.f32 %v2055, %v2314
      %v2330 = vmul.f32 %v2056, %v2314
      %vm2331 = vcmask 15367
      %v2332 = vsel %vm2331, %v2315, 0.0
      %2333 = vadd.xlane.f32.xlu0 %v2332
      %v2334 = vpop.xlane.xlu0 %2333
      %vm2335 = vcmask 14336
      %v2336 = vsel %vm2335, %v2316, 0.0
      %2337 = vadd.xlane.f32.xlu0 %v2336
      %v2338 = vpop.xlane.xlu0 %2337
      %v2339 = vsel %vm2331, %v2317, 0.0
      %2340 = vadd.xlane.f32.xlu0 %v2339
      %v2341 = vpop.xlane.xlu0 %2340
      %v2342 = vsel %vm2335, %v2318, 0.0
      %2343 = vadd.xlane.f32.xlu0 %v2342
      %v2344 = vpop.xlane.xlu0 %2343
      %v2345 = vsel %vm2331, %v2319, 0.0
      %2346 = vadd.xlane.f32.xlu0 %v2345
      %v2347 = vpop.xlane.xlu0 %2346
      %v2348 = vsel %vm2335, %v2320, 0.0
      %2349 = vadd.xlane.f32.xlu0 %v2348
      %v2350 = vpop.xlane.xlu0 %2349
      %v2351 = vsel %vm2331, %v2321, 0.0
      %2352 = vadd.xlane.f32.xlu0 %v2351
      %v2353 = vpop.xlane.xlu0 %2352
      %v2354 = vsel %vm2335, %v2322, 0.0
      %2355 = vadd.xlane.f32.xlu0 %v2354
      %v2356 = vpop.xlane.xlu0 %2355
      %v2357 = vsel %vm2331, %v2323, 0.0
      %2358 = vadd.xlane.f32.xlu0 %v2357
      %v2359 = vpop.xlane.xlu0 %2358
      %v2360 = vsel %vm2335, %v2324, 0.0
      %2361 = vadd.xlane.f32.xlu0 %v2360
      %v2362 = vpop.xlane.xlu0 %2361
      %v2363 = vsel %vm2331, %v2325, 0.0
      %2364 = vadd.xlane.f32.xlu0 %v2363
      %v2365 = vpop.xlane.xlu0 %2364
      %v2366 = vsel %vm2335, %v2326, 0.0
      %2367 = vadd.xlane.f32.xlu0 %v2366
      %v2368 = vpop.xlane.xlu0 %2367
      %v2369 = vsel %vm2331, %v2327, 0.0
      %2370 = vadd.xlane.f32.xlu0 %v2369
      %v2371 = vpop.xlane.xlu0 %2370
      %v2372 = vsel %vm2335, %v2328, 0.0
      %2373 = vadd.xlane.f32.xlu0 %v2372
      %v2374 = vpop.xlane.xlu0 %2373
      %v2375 = vsel %vm2331, %v2329, 0.0
      %2376 = vadd.xlane.f32.xlu0 %v2375
      %v2377 = vpop.xlane.xlu0 %2376
      %v2378 = vsel %vm2335, %v2330, 0.0
      %2379 = vadd.xlane.f32.xlu0 %v2378
      %v2380 = vpop.xlane.xlu0 %2379
      %v2397 = vrot.slane %v2334, 2
      %v2398 = vrot.slane %v2338, 2
      %v2399 = vsel %vm760, %v2397, %v2398
      %v2400 = vrot.slane %v2341, 2
      %v2401 = vrot.slane %v2344, 2
      %v2402 = vsel %vm760, %v2400, %v2401
      %v2403 = vrot.slane %v2347, 2
      %v2404 = vrot.slane %v2350, 2
      %v2405 = vsel %vm760, %v2403, %v2404
      %v2406 = vrot.slane %v2353, 2
      %v2407 = vrot.slane %v2356, 2
      %v2408 = vsel %vm760, %v2406, %v2407
      %v2409 = vrot.slane %v2359, 2
      %v2410 = vrot.slane %v2362, 2
      %v2411 = vsel %vm760, %v2409, %v2410
      %v2412 = vrot.slane %v2365, 2
      %v2413 = vrot.slane %v2368, 2
      %v2414 = vsel %vm760, %v2412, %v2413
      %v2415 = vrot.slane %v2371, 2
      %v2416 = vrot.slane %v2374, 2
      %v2417 = vsel %vm760, %v2415, %v2416
      %v2418 = vrot.slane %v2377, 2
      %v2419 = vrot.slane %v2380, 2
      %v2420 = vsel %vm760, %v2418, %v2419
      %v2437 = vadd.f32 %v2295, %v2399
      %v2438 = vadd.f32 %v2296, %v2398
      %v2439 = vadd.f32 %v2297, %v2402
      %v2440 = vadd.f32 %v2298, %v2401
      %v2441 = vadd.f32 %v2299, %v2405
      %v2442 = vadd.f32 %v2300, %v2404
      %v2443 = vadd.f32 %v2301, %v2408
      %v2444 = vadd.f32 %v2302, %v2407
      %v2445 = vadd.f32 %v2303, %v2411
      %v2446 = vadd.f32 %v2304, %v2410
      %v2447 = vadd.f32 %v2305, %v2414
      %v2448 = vadd.f32 %v2306, %v2413
      %v2449 = vadd.f32 %v2307, %v2417
      %v2450 = vadd.f32 %v2308, %v2416
      %v2451 = vadd.f32 %v2309, %v2420
      %v2452 = vadd.f32 %v2310, %v2419
      %v2453 = vlaneseq
      %v2454 = vshrl.u32 %v2453, 7
      %v2455 = vsub.s32 3, %v2454
      %v2456 = vrot.slane %v2076, %v2455
      %v2457 = vmul.f32 %v2035, %v2456
      %v2458 = vmul.f32 %v2038, %v2456
      %v2459 = vmul.f32 %v2041, %v2456
      %v2460 = vmul.f32 %v2044, %v2456
      %v2461 = vmul.f32 %v2047, %v2456
      %v2462 = vmul.f32 %v2050, %v2456
      %v2463 = vmul.f32 %v2053, %v2456
      %v2464 = vmul.f32 %v2056, %v2456
      %v2465 = vsel %vm1817, %v2457, 0.0
      %2466 = vadd.xlane.f32.xlu0 %v2465
      %v2467 = vpop.xlane.xlu0 %2466
      %v2468 = vsel %vm1817, %v2458, 0.0
      %2469 = vadd.xlane.f32.xlu0 %v2468
      %v2470 = vpop.xlane.xlu0 %2469
      %v2471 = vsel %vm1817, %v2459, 0.0
      %2472 = vadd.xlane.f32.xlu0 %v2471
      %v2473 = vpop.xlane.xlu0 %2472
      %v2474 = vsel %vm1817, %v2460, 0.0
      %2475 = vadd.xlane.f32.xlu0 %v2474
      %v2476 = vpop.xlane.xlu0 %2475
      %v2477 = vsel %vm1817, %v2461, 0.0
      %2478 = vadd.xlane.f32.xlu0 %v2477
      %v2479 = vpop.xlane.xlu0 %2478
      %v2480 = vsel %vm1817, %v2462, 0.0
      %2481 = vadd.xlane.f32.xlu0 %v2480
      %v2482 = vpop.xlane.xlu0 %2481
      %v2483 = vsel %vm1817, %v2463, 0.0
      %2484 = vadd.xlane.f32.xlu0 %v2483
      %v2485 = vpop.xlane.xlu0 %2484
      %v2486 = vsel %vm1817, %v2464, 0.0
      %2487 = vadd.xlane.f32.xlu0 %v2486
      %v2488 = vpop.xlane.xlu0 %2487
      %v2497 = vrot.slane %v2467, 3
      %v2498 = vrot.slane %v2470, 3
      %v2499 = vrot.slane %v2473, 3
      %v2500 = vrot.slane %v2476, 3
      %v2501 = vrot.slane %v2479, 3
      %v2502 = vrot.slane %v2482, 3
      %v2503 = vrot.slane %v2485, 3
      %v2504 = vrot.slane %v2488, 3
      %v2513 = vadd.f32 %v2437, %v2497
      %v2514 = vadd.f32 %v2438, %v2497
      %v2515 = vadd.f32 %v2439, %v2498
      %v2516 = vadd.f32 %v2440, %v2498
      %v2517 = vadd.f32 %v2441, %v2499
      %v2518 = vadd.f32 %v2442, %v2499
      %v2519 = vadd.f32 %v2443, %v2500
      %v2520 = vadd.f32 %v2444, %v2500
      %v2521 = vadd.f32 %v2445, %v2501
      %v2522 = vadd.f32 %v2446, %v2501
      %v2523 = vadd.f32 %v2447, %v2502
      %v2524 = vadd.f32 %v2448, %v2502
      %v2525 = vadd.f32 %v2449, %v2503
      %v2526 = vadd.f32 %v2450, %v2503
      %v2527 = vadd.f32 %v2451, %v2504
      %v2528 = vadd.f32 %v2452, %v2504
      %v2529 = vlaneseq
      %v2530 = vshrl.u32 %v2529, 7
      %v2531 = vsub.s32 4, %v2530
      %v2532 = vrot.slane %v2076, %v2531
      %v2533 = vmul.f32 %v2035, %v2532
      %v2534 = vmul.f32 %v2036, %v2532
      %v2535 = vmul.f32 %v2038, %v2532
      %v2536 = vmul.f32 %v2039, %v2532
      %v2537 = vmul.f32 %v2041, %v2532
      %v2538 = vmul.f32 %v2042, %v2532
      %v2539 = vmul.f32 %v2044, %v2532
      %v2540 = vmul.f32 %v2045, %v2532
      %v2541 = vmul.f32 %v2047, %v2532
      %v2542 = vmul.f32 %v2048, %v2532
      %v2543 = vmul.f32 %v2050, %v2532
      %v2544 = vmul.f32 %v2051, %v2532
      %v2545 = vmul.f32 %v2053, %v2532
      %v2546 = vmul.f32 %v2054, %v2532
      %v2547 = vmul.f32 %v2056, %v2532
      %v2548 = vmul.f32 %v2057, %v2532
      %vm2549 = vcmask 15361
      %v2550 = vsel %vm2549, %v2533, 0.0
      %2551 = vadd.xlane.f32.xlu0 %v2550
      %v2552 = vpop.xlane.xlu0 %2551
      %vm2553 = vcmask 8192
      %v2554 = vsel %vm2553, %v2534, 0.0
      %2555 = vadd.xlane.f32.xlu0 %v2554
      %v2556 = vpop.xlane.xlu0 %2555
      %v2557 = vsel %vm2549, %v2535, 0.0
      %2558 = vadd.xlane.f32.xlu0 %v2557
      %v2559 = vpop.xlane.xlu0 %2558
      %v2560 = vsel %vm2553, %v2536, 0.0
      %2561 = vadd.xlane.f32.xlu0 %v2560
      %v2562 = vpop.xlane.xlu0 %2561
      %v2563 = vsel %vm2549, %v2537, 0.0
      %2564 = vadd.xlane.f32.xlu0 %v2563
      %v2565 = vpop.xlane.xlu0 %2564
      %v2566 = vsel %vm2553, %v2538, 0.0
      %2567 = vadd.xlane.f32.xlu0 %v2566
      %v2568 = vpop.xlane.xlu0 %2567
      %v2569 = vsel %vm2549, %v2539, 0.0
      %2570 = vadd.xlane.f32.xlu0 %v2569
      %v2571 = vpop.xlane.xlu0 %2570
      %v2572 = vsel %vm2553, %v2540, 0.0
      %2573 = vadd.xlane.f32.xlu0 %v2572
      %v2574 = vpop.xlane.xlu0 %2573
      %v2575 = vsel %vm2549, %v2541, 0.0
      %2576 = vadd.xlane.f32.xlu0 %v2575
      %v2577 = vpop.xlane.xlu0 %2576
      %v2578 = vsel %vm2553, %v2542, 0.0
      %2579 = vadd.xlane.f32.xlu0 %v2578
      %v2580 = vpop.xlane.xlu0 %2579
      %v2581 = vsel %vm2549, %v2543, 0.0
      %2582 = vadd.xlane.f32.xlu0 %v2581
      %v2583 = vpop.xlane.xlu0 %2582
      %v2584 = vsel %vm2553, %v2544, 0.0
      %2585 = vadd.xlane.f32.xlu0 %v2584
      %v2586 = vpop.xlane.xlu0 %2585
      %v2587 = vsel %vm2549, %v2545, 0.0
      %2588 = vadd.xlane.f32.xlu0 %v2587
      %v2589 = vpop.xlane.xlu0 %2588
      %v2590 = vsel %vm2553, %v2546, 0.0
      %2591 = vadd.xlane.f32.xlu0 %v2590
      %v2592 = vpop.xlane.xlu0 %2591
      %v2593 = vsel %vm2549, %v2547, 0.0
      %2594 = vadd.xlane.f32.xlu0 %v2593
      %v2595 = vpop.xlane.xlu0 %2594
      %v2596 = vsel %vm2553, %v2548, 0.0
      %2597 = vadd.xlane.f32.xlu0 %v2596
      %v2598 = vpop.xlane.xlu0 %2597
      %vm2615 = vcmask 1043456
      %v2616 = vrot.slane %v2552, 4
      %v2617 = vrot.slane %v2556, 4
      %v2618 = vsel %vm2615, %v2616, %v2617
      %v2619 = vrot.slane %v2559, 4
      %v2620 = vrot.slane %v2562, 4
      %v2621 = vsel %vm2615, %v2619, %v2620
      %v2622 = vrot.slane %v2565, 4
      %v2623 = vrot.slane %v2568, 4
      %v2624 = vsel %vm2615, %v2622, %v2623
      %v2625 = vrot.slane %v2571, 4
      %v2626 = vrot.slane %v2574, 4
      %v2627 = vsel %vm2615, %v2625, %v2626
      %v2628 = vrot.slane %v2577, 4
      %v2629 = vrot.slane %v2580, 4
      %v2630 = vsel %vm2615, %v2628, %v2629
      %v2631 = vrot.slane %v2583, 4
      %v2632 = vrot.slane %v2586, 4
      %v2633 = vsel %vm2615, %v2631, %v2632
      %v2634 = vrot.slane %v2589, 4
      %v2635 = vrot.slane %v2592, 4
      %v2636 = vsel %vm2615, %v2634, %v2635
      %v2637 = vrot.slane %v2595, 4
      %v2638 = vrot.slane %v2598, 4
      %v2639 = vsel %vm2615, %v2637, %v2638
      %v2656 = vadd.f32 %v2513, %v2616
      %v2657 = vadd.f32 %v2514, %v2618
      %v2658 = vadd.f32 %v2515, %v2619
      %v2659 = vadd.f32 %v2516, %v2621
      %v2660 = vadd.f32 %v2517, %v2622
      %v2661 = vadd.f32 %v2518, %v2624
      %v2662 = vadd.f32 %v2519, %v2625
      %v2663 = vadd.f32 %v2520, %v2627
      %v2664 = vadd.f32 %v2521, %v2628
      %v2665 = vadd.f32 %v2522, %v2630
      %v2666 = vadd.f32 %v2523, %v2631
      %v2667 = vadd.f32 %v2524, %v2633
      %v2668 = vadd.f32 %v2525, %v2634
      %v2669 = vadd.f32 %v2526, %v2636
      %v2670 = vadd.f32 %v2527, %v2637
      %v2671 = vadd.f32 %v2528, %v2639
      %v2672 = vlaneseq
      %v2673 = vshrl.u32 %v2672, 7
      %v2674 = vsub.s32 5, %v2673
      %v2675 = vrot.slane %v2076, %v2674
      %v2676 = vmul.f32 %v2035, %v2675
      %v2677 = vmul.f32 %v2036, %v2675
      %v2678 = vmul.f32 %v2038, %v2675
      %v2679 = vmul.f32 %v2039, %v2675
      %v2680 = vmul.f32 %v2041, %v2675
      %v2681 = vmul.f32 %v2042, %v2675
      %v2682 = vmul.f32 %v2044, %v2675
      %v2683 = vmul.f32 %v2045, %v2675
      %v2684 = vmul.f32 %v2047, %v2675
      %v2685 = vmul.f32 %v2048, %v2675
      %v2686 = vmul.f32 %v2050, %v2675
      %v2687 = vmul.f32 %v2051, %v2675
      %v2688 = vmul.f32 %v2053, %v2675
      %v2689 = vmul.f32 %v2054, %v2675
      %v2690 = vmul.f32 %v2056, %v2675
      %v2691 = vmul.f32 %v2057, %v2675
      %vm2692 = vcmask 15362
      %v2693 = vsel %vm2692, %v2676, 0.0
      %2694 = vadd.xlane.f32.xlu0 %v2693
      %v2695 = vpop.xlane.xlu0 %2694
      %vm2696 = vcmask 9216
      %v2697 = vsel %vm2696, %v2677, 0.0
      %2698 = vadd.xlane.f32.xlu0 %v2697
      %v2699 = vpop.xlane.xlu0 %2698
      %v2700 = vsel %vm2692, %v2678, 0.0
      %2701 = vadd.xlane.f32.xlu0 %v2700
      %v2702 = vpop.xlane.xlu0 %2701
      %v2703 = vsel %vm2696, %v2679, 0.0
      %2704 = vadd.xlane.f32.xlu0 %v2703
      %v2705 = vpop.xlane.xlu0 %2704
      %v2706 = vsel %vm2692, %v2680, 0.0
      %2707 = vadd.xlane.f32.xlu0 %v2706
      %v2708 = vpop.xlane.xlu0 %2707
      %v2709 = vsel %vm2696, %v2681, 0.0
      %2710 = vadd.xlane.f32.xlu0 %v2709
      %v2711 = vpop.xlane.xlu0 %2710
      %v2712 = vsel %vm2692, %v2682, 0.0
      %2713 = vadd.xlane.f32.xlu0 %v2712
      %v2714 = vpop.xlane.xlu0 %2713
      %v2715 = vsel %vm2696, %v2683, 0.0
      %2716 = vadd.xlane.f32.xlu0 %v2715
      %v2717 = vpop.xlane.xlu0 %2716
      %v2718 = vsel %vm2692, %v2684, 0.0
      %2719 = vadd.xlane.f32.xlu0 %v2718
      %v2720 = vpop.xlane.xlu0 %2719
      %v2721 = vsel %vm2696, %v2685, 0.0
      %2722 = vadd.xlane.f32.xlu0 %v2721
      %v2723 = vpop.xlane.xlu0 %2722
      %v2724 = vsel %vm2692, %v2686, 0.0
      %2725 = vadd.xlane.f32.xlu0 %v2724
      %v2726 = vpop.xlane.xlu0 %2725
      %v2727 = vsel %vm2696, %v2687, 0.0
      %2728 = vadd.xlane.f32.xlu0 %v2727
      %v2729 = vpop.xlane.xlu0 %2728
      %v2730 = vsel %vm2692, %v2688, 0.0
      %2731 = vadd.xlane.f32.xlu0 %v2730
      %v2732 = vpop.xlane.xlu0 %2731
      %v2733 = vsel %vm2696, %v2689, 0.0
      %2734 = vadd.xlane.f32.xlu0 %v2733
      %v2735 = vpop.xlane.xlu0 %2734
      %v2736 = vsel %vm2692, %v2690, 0.0
      %2737 = vadd.xlane.f32.xlu0 %v2736
      %v2738 = vpop.xlane.xlu0 %2737
      %v2739 = vsel %vm2696, %v2691, 0.0
      %2740 = vadd.xlane.f32.xlu0 %v2739
      %v2741 = vpop.xlane.xlu0 %2740
      %vm2758 = vcmask 1042432
      %v2759 = vrot.slane %v2695, 5
      %v2760 = vrot.slane %v2699, 5
      %v2761 = vsel %vm2758, %v2759, %v2760
      %v2762 = vrot.slane %v2702, 5
      %v2763 = vrot.slane %v2705, 5
      %v2764 = vsel %vm2758, %v2762, %v2763
      %v2765 = vrot.slane %v2708, 5
      %v2766 = vrot.slane %v2711, 5
      %v2767 = vsel %vm2758, %v2765, %v2766
      %v2768 = vrot.slane %v2714, 5
      %v2769 = vrot.slane %v2717, 5
      %v2770 = vsel %vm2758, %v2768, %v2769
      %v2771 = vrot.slane %v2720, 5
      %v2772 = vrot.slane %v2723, 5
      %v2773 = vsel %vm2758, %v2771, %v2772
      %v2774 = vrot.slane %v2726, 5
      %v2775 = vrot.slane %v2729, 5
      %v2776 = vsel %vm2758, %v2774, %v2775
      %v2777 = vrot.slane %v2732, 5
      %v2778 = vrot.slane %v2735, 5
      %v2779 = vsel %vm2758, %v2777, %v2778
      %v2780 = vrot.slane %v2738, 5
      %v2781 = vrot.slane %v2741, 5
      %v2782 = vsel %vm2758, %v2780, %v2781
      %v2799 = vadd.f32 %v2656, %v2759
      %v2800 = vadd.f32 %v2657, %v2761
      %v2801 = vadd.f32 %v2658, %v2762
      %v2802 = vadd.f32 %v2659, %v2764
      %v2803 = vadd.f32 %v2660, %v2765
      %v2804 = vadd.f32 %v2661, %v2767
      %v2805 = vadd.f32 %v2662, %v2768
      %v2806 = vadd.f32 %v2663, %v2770
      %v2807 = vadd.f32 %v2664, %v2771
      %v2808 = vadd.f32 %v2665, %v2773
      %v2809 = vadd.f32 %v2666, %v2774
      %v2810 = vadd.f32 %v2667, %v2776
      %v2811 = vadd.f32 %v2668, %v2777
      %v2812 = vadd.f32 %v2669, %v2779
      %v2813 = vadd.f32 %v2670, %v2780
      %v2814 = vadd.f32 %v2671, %v2782
      %v2815 = vlaneseq
      %v2816 = vshrl.u32 %v2815, 7
      %v2817 = vsub.s32 6, %v2816
      %v2818 = vrot.slane %v2076, %v2817
      %v2819 = vmul.f32 %v2035, %v2818
      %v2820 = vmul.f32 %v2036, %v2818
      %v2821 = vmul.f32 %v2038, %v2818
      %v2822 = vmul.f32 %v2039, %v2818
      %v2823 = vmul.f32 %v2041, %v2818
      %v2824 = vmul.f32 %v2042, %v2818
      %v2825 = vmul.f32 %v2044, %v2818
      %v2826 = vmul.f32 %v2045, %v2818
      %v2827 = vmul.f32 %v2047, %v2818
      %v2828 = vmul.f32 %v2048, %v2818
      %v2829 = vmul.f32 %v2050, %v2818
      %v2830 = vmul.f32 %v2051, %v2818
      %v2831 = vmul.f32 %v2053, %v2818
      %v2832 = vmul.f32 %v2054, %v2818
      %v2833 = vmul.f32 %v2056, %v2818
      %v2834 = vmul.f32 %v2057, %v2818
      %vm2835 = vcmask 15363
      %v2836 = vsel %vm2835, %v2819, 0.0
      %2837 = vadd.xlane.f32.xlu0 %v2836
      %v2838 = vpop.xlane.xlu0 %2837
      %vm2839 = vcmask 10240
      %v2840 = vsel %vm2839, %v2820, 0.0
      %2841 = vadd.xlane.f32.xlu0 %v2840
      %v2842 = vpop.xlane.xlu0 %2841
      %v2843 = vsel %vm2835, %v2821, 0.0
      %2844 = vadd.xlane.f32.xlu0 %v2843
      %v2845 = vpop.xlane.xlu0 %2844
      %v2846 = vsel %vm2839, %v2822, 0.0
      %2847 = vadd.xlane.f32.xlu0 %v2846
      %v2848 = vpop.xlane.xlu0 %2847
      %v2849 = vsel %vm2835, %v2823, 0.0
      %2850 = vadd.xlane.f32.xlu0 %v2849
      %v2851 = vpop.xlane.xlu0 %2850
      %v2852 = vsel %vm2839, %v2824, 0.0
      %2853 = vadd.xlane.f32.xlu0 %v2852
      %v2854 = vpop.xlane.xlu0 %2853
      %v2855 = vsel %vm2835, %v2825, 0.0
      %2856 = vadd.xlane.f32.xlu0 %v2855
      %v2857 = vpop.xlane.xlu0 %2856
      %v2858 = vsel %vm2839, %v2826, 0.0
      %2859 = vadd.xlane.f32.xlu0 %v2858
      %v2860 = vpop.xlane.xlu0 %2859
      %v2861 = vsel %vm2835, %v2827, 0.0
      %2862 = vadd.xlane.f32.xlu0 %v2861
      %v2863 = vpop.xlane.xlu0 %2862
      %v2864 = vsel %vm2839, %v2828, 0.0
      %2865 = vadd.xlane.f32.xlu0 %v2864
      %v2866 = vpop.xlane.xlu0 %2865
      %v2867 = vsel %vm2835, %v2829, 0.0
      %2868 = vadd.xlane.f32.xlu0 %v2867
      %v2869 = vpop.xlane.xlu0 %2868
      %v2870 = vsel %vm2839, %v2830, 0.0
      %2871 = vadd.xlane.f32.xlu0 %v2870
      %v2872 = vpop.xlane.xlu0 %2871
      %v2873 = vsel %vm2835, %v2831, 0.0
      %2874 = vadd.xlane.f32.xlu0 %v2873
      %v2875 = vpop.xlane.xlu0 %2874
      %v2876 = vsel %vm2839, %v2832, 0.0
      %2877 = vadd.xlane.f32.xlu0 %v2876
      %v2878 = vpop.xlane.xlu0 %2877
      %v2879 = vsel %vm2835, %v2833, 0.0
      %2880 = vadd.xlane.f32.xlu0 %v2879
      %v2881 = vpop.xlane.xlu0 %2880
      %v2882 = vsel %vm2839, %v2834, 0.0
      %2883 = vadd.xlane.f32.xlu0 %v2882
      %v2884 = vpop.xlane.xlu0 %2883
      %v2901 = vrot.slane %v2838, 6
      %v2902 = vrot.slane %v2842, 6
      %v2903 = vsel %vm1821, %v2901, %v2902
      %v2904 = vrot.slane %v2845, 6
      %v2905 = vrot.slane %v2848, 6
      %v2906 = vsel %vm1821, %v2904, %v2905
      %v2907 = vrot.slane %v2851, 6
      %v2908 = vrot.slane %v2854, 6
      %v2909 = vsel %vm1821, %v2907, %v2908
      %v2910 = vrot.slane %v2857, 6
      %v2911 = vrot.slane %v2860, 6
      %v2912 = vsel %vm1821, %v2910, %v2911
      %v2913 = vrot.slane %v2863, 6
      %v2914 = vrot.slane %v2866, 6
      %v2915 = vsel %vm1821, %v2913, %v2914
      %v2916 = vrot.slane %v2869, 6
      %v2917 = vrot.slane %v2872, 6
      %v2918 = vsel %vm1821, %v2916, %v2917
      %v2919 = vrot.slane %v2875, 6
      %v2920 = vrot.slane %v2878, 6
      %v2921 = vsel %vm1821, %v2919, %v2920
      %v2922 = vrot.slane %v2881, 6
      %v2923 = vrot.slane %v2884, 6
      %v2924 = vsel %vm1821, %v2922, %v2923
      %v2941 = vadd.f32 %v2799, %v2901
      %v2942 = vadd.f32 %v2800, %v2903
      %v2943 = vadd.f32 %v2801, %v2904
      %v2944 = vadd.f32 %v2802, %v2906
      %v2945 = vadd.f32 %v2803, %v2907
      %v2946 = vadd.f32 %v2804, %v2909
      %v2947 = vadd.f32 %v2805, %v2910
      %v2948 = vadd.f32 %v2806, %v2912
      %v2949 = vadd.f32 %v2807, %v2913
      %v2950 = vadd.f32 %v2808, %v2915
      %v2951 = vadd.f32 %v2809, %v2916
      %v2952 = vadd.f32 %v2810, %v2918
      %v2953 = vadd.f32 %v2811, %v2919
      %v2954 = vadd.f32 %v2812, %v2921
      %v2955 = vadd.f32 %v2813, %v2922
      %v2956 = vadd.f32 %v2814, %v2924
      %v2957 = vlaneseq
      %v2958 = vshrl.u32 %v2957, 7
      %v2959 = vsub.s32 0, %v2958
      %v2960 = vrot.slane %v2077, %v2959
      %v2961 = vmul.f32 %v2037, %v2960
      %v2962 = vmul.f32 %v2038, %v2960
      %v2963 = vmul.f32 %v2040, %v2960
      %v2964 = vmul.f32 %v2041, %v2960
      %v2965 = vmul.f32 %v2043, %v2960
      %v2966 = vmul.f32 %v2044, %v2960
      %v2967 = vmul.f32 %v2046, %v2960
      %v2968 = vmul.f32 %v2047, %v2960
      %v2969 = vmul.f32 %v2049, %v2960
      %v2970 = vmul.f32 %v2050, %v2960
      %v2971 = vmul.f32 %v2052, %v2960
      %v2972 = vmul.f32 %v2053, %v2960
      %v2973 = vmul.f32 %v2055, %v2960
      %v2974 = vmul.f32 %v2056, %v2960
      %v2975 = vmul.f32 %v2058, %v2960
      %v2976 = vmul.f32 %v2059, %v2960
      %v2977 = vsel %vm2103, %v2961, 0.0
      %2978 = vadd.xlane.f32.xlu0 %v2977
      %v2979 = vpop.xlane.xlu0 %2978
      %v2980 = vsel %vm2107, %v2962, 0.0
      %2981 = vadd.xlane.f32.xlu0 %v2980
      %v2982 = vpop.xlane.xlu0 %2981
      %v2983 = vsel %vm2103, %v2963, 0.0
      %2984 = vadd.xlane.f32.xlu0 %v2983
      %v2985 = vpop.xlane.xlu0 %2984
      %v2986 = vsel %vm2107, %v2964, 0.0
      %2987 = vadd.xlane.f32.xlu0 %v2986
      %v2988 = vpop.xlane.xlu0 %2987
      %v2989 = vsel %vm2103, %v2965, 0.0
      %2990 = vadd.xlane.f32.xlu0 %v2989
      %v2991 = vpop.xlane.xlu0 %2990
      %v2992 = vsel %vm2107, %v2966, 0.0
      %2993 = vadd.xlane.f32.xlu0 %v2992
      %v2994 = vpop.xlane.xlu0 %2993
      %v2995 = vsel %vm2103, %v2967, 0.0
      %2996 = vadd.xlane.f32.xlu0 %v2995
      %v2997 = vpop.xlane.xlu0 %2996
      %v2998 = vsel %vm2107, %v2968, 0.0
      %2999 = vadd.xlane.f32.xlu0 %v2998
      %v3000 = vpop.xlane.xlu0 %2999
      %v3001 = vsel %vm2103, %v2969, 0.0
      %3002 = vadd.xlane.f32.xlu0 %v3001
      %v3003 = vpop.xlane.xlu0 %3002
      %v3004 = vsel %vm2107, %v2970, 0.0
      %3005 = vadd.xlane.f32.xlu0 %v3004
      %v3006 = vpop.xlane.xlu0 %3005
      %v3007 = vsel %vm2103, %v2971, 0.0
      %3008 = vadd.xlane.f32.xlu0 %v3007
      %v3009 = vpop.xlane.xlu0 %3008
      %v3010 = vsel %vm2107, %v2972, 0.0
      %3011 = vadd.xlane.f32.xlu0 %v3010
      %v3012 = vpop.xlane.xlu0 %3011
      %v3013 = vsel %vm2103, %v2973, 0.0
      %3014 = vadd.xlane.f32.xlu0 %v3013
      %v3015 = vpop.xlane.xlu0 %3014
      %v3016 = vsel %vm2107, %v2974, 0.0
      %3017 = vadd.xlane.f32.xlu0 %v3016
      %v3018 = vpop.xlane.xlu0 %3017
      %v3019 = vsel %vm2103, %v2975, 0.0
      %3020 = vadd.xlane.f32.xlu0 %v3019
      %v3021 = vpop.xlane.xlu0 %3020
      %v3022 = vsel %vm2107, %v2976, 0.0
      %3023 = vadd.xlane.f32.xlu0 %v3022
      %v3024 = vpop.xlane.xlu0 %3023
      %v3025 = vadd.f32 %v2941, %v2979
      %v3026 = vadd.f32 %v2942, %v2982
      %v3027 = vadd.f32 %v2943, %v2985
      %v3028 = vadd.f32 %v2944, %v2988
      %v3029 = vadd.f32 %v2945, %v2991
      %v3030 = vadd.f32 %v2946, %v2994
      %v3031 = vadd.f32 %v2947, %v2997
      %v3032 = vadd.f32 %v2948, %v3000
      %v3033 = vadd.f32 %v2949, %v3003
      %v3034 = vadd.f32 %v2950, %v3006
      %v3035 = vadd.f32 %v2951, %v3009
      %v3036 = vadd.f32 %v2952, %v3012
      %v3037 = vadd.f32 %v2953, %v3015
      %v3038 = vadd.f32 %v2954, %v3018
      %v3039 = vadd.f32 %v2955, %v3021
      %v3040 = vadd.f32 %v2956, %v3024
      %v3041 = vlaneseq
      %v3042 = vshrl.u32 %v3041, 7
      %v3043 = vsub.s32 1, %v3042
      %v3044 = vrot.slane %v2077, %v3043
      %v3045 = vmul.f32 %v2037, %v3044
      %v3046 = vmul.f32 %v2038, %v3044
      %v3047 = vmul.f32 %v2040, %v3044
      %v3048 = vmul.f32 %v2041, %v3044
      %v3049 = vmul.f32 %v2043, %v3044
      %v3050 = vmul.f32 %v2044, %v3044
      %v3051 = vmul.f32 %v2046, %v3044
      %v3052 = vmul.f32 %v2047, %v3044
      %v3053 = vmul.f32 %v2049, %v3044
      %v3054 = vmul.f32 %v2050, %v3044
      %v3055 = vmul.f32 %v2052, %v3044
      %v3056 = vmul.f32 %v2053, %v3044
      %v3057 = vmul.f32 %v2055, %v3044
      %v3058 = vmul.f32 %v2056, %v3044
      %v3059 = vmul.f32 %v2058, %v3044
      %v3060 = vmul.f32 %v2059, %v3044
      %v3061 = vsel %vm2189, %v3045, 0.0
      %3062 = vadd.xlane.f32.xlu0 %v3061
      %v3063 = vpop.xlane.xlu0 %3062
      %v3064 = vsel %vm2193, %v3046, 0.0
      %3065 = vadd.xlane.f32.xlu0 %v3064
      %v3066 = vpop.xlane.xlu0 %3065
      %v3067 = vsel %vm2189, %v3047, 0.0
      %3068 = vadd.xlane.f32.xlu0 %v3067
      %v3069 = vpop.xlane.xlu0 %3068
      %v3070 = vsel %vm2193, %v3048, 0.0
      %3071 = vadd.xlane.f32.xlu0 %v3070
      %v3072 = vpop.xlane.xlu0 %3071
      %v3073 = vsel %vm2189, %v3049, 0.0
      %3074 = vadd.xlane.f32.xlu0 %v3073
      %v3075 = vpop.xlane.xlu0 %3074
      %v3076 = vsel %vm2193, %v3050, 0.0
      %3077 = vadd.xlane.f32.xlu0 %v3076
      %v3078 = vpop.xlane.xlu0 %3077
      %v3079 = vsel %vm2189, %v3051, 0.0
      %3080 = vadd.xlane.f32.xlu0 %v3079
      %v3081 = vpop.xlane.xlu0 %3080
      %v3082 = vsel %vm2193, %v3052, 0.0
      %3083 = vadd.xlane.f32.xlu0 %v3082
      %v3084 = vpop.xlane.xlu0 %3083
      %v3085 = vsel %vm2189, %v3053, 0.0
      %3086 = vadd.xlane.f32.xlu0 %v3085
      %v3087 = vpop.xlane.xlu0 %3086
      %v3088 = vsel %vm2193, %v3054, 0.0
      %3089 = vadd.xlane.f32.xlu0 %v3088
      %v3090 = vpop.xlane.xlu0 %3089
      %v3091 = vsel %vm2189, %v3055, 0.0
      %3092 = vadd.xlane.f32.xlu0 %v3091
      %v3093 = vpop.xlane.xlu0 %3092
      %v3094 = vsel %vm2193, %v3056, 0.0
      %3095 = vadd.xlane.f32.xlu0 %v3094
      %v3096 = vpop.xlane.xlu0 %3095
      %v3097 = vsel %vm2189, %v3057, 0.0
      %3098 = vadd.xlane.f32.xlu0 %v3097
      %v3099 = vpop.xlane.xlu0 %3098
      %v3100 = vsel %vm2193, %v3058, 0.0
      %3101 = vadd.xlane.f32.xlu0 %v3100
      %v3102 = vpop.xlane.xlu0 %3101
      %v3103 = vsel %vm2189, %v3059, 0.0
      %3104 = vadd.xlane.f32.xlu0 %v3103
      %v3105 = vpop.xlane.xlu0 %3104
      %v3106 = vsel %vm2193, %v3060, 0.0
      %3107 = vadd.xlane.f32.xlu0 %v3106
      %v3108 = vpop.xlane.xlu0 %3107
      %v3125 = vrot.slane %v3063, 1
      %v3126 = vrot.slane %v3066, 1
      %v3127 = vsel %vm487, %v3125, %v3126
      %v3128 = vrot.slane %v3069, 1
      %v3129 = vrot.slane %v3072, 1
      %v3130 = vsel %vm487, %v3128, %v3129
      %v3131 = vrot.slane %v3075, 1
      %v3132 = vrot.slane %v3078, 1
      %v3133 = vsel %vm487, %v3131, %v3132
      %v3134 = vrot.slane %v3081, 1
      %v3135 = vrot.slane %v3084, 1
      %v3136 = vsel %vm487, %v3134, %v3135
      %v3137 = vrot.slane %v3087, 1
      %v3138 = vrot.slane %v3090, 1
      %v3139 = vsel %vm487, %v3137, %v3138
      %v3140 = vrot.slane %v3093, 1
      %v3141 = vrot.slane %v3096, 1
      %v3142 = vsel %vm487, %v3140, %v3141
      %v3143 = vrot.slane %v3099, 1
      %v3144 = vrot.slane %v3102, 1
      %v3145 = vsel %vm487, %v3143, %v3144
      %v3146 = vrot.slane %v3105, 1
      %v3147 = vrot.slane %v3108, 1
      %v3148 = vsel %vm487, %v3146, %v3147
      %v3165 = vadd.f32 %v3025, %v3127
      %v3166 = vadd.f32 %v3026, %v3126
      %v3167 = vadd.f32 %v3027, %v3130
      %v3168 = vadd.f32 %v3028, %v3129
      %v3169 = vadd.f32 %v3029, %v3133
      %v3170 = vadd.f32 %v3030, %v3132
      %v3171 = vadd.f32 %v3031, %v3136
      %v3172 = vadd.f32 %v3032, %v3135
      %v3173 = vadd.f32 %v3033, %v3139
      %v3174 = vadd.f32 %v3034, %v3138
      %v3175 = vadd.f32 %v3035, %v3142
      %v3176 = vadd.f32 %v3036, %v3141
      %v3177 = vadd.f32 %v3037, %v3145
      %v3178 = vadd.f32 %v3038, %v3144
      %v3179 = vadd.f32 %v3039, %v3148
      %v3180 = vadd.f32 %v3040, %v3147
      %v3181 = vlaneseq
      %v3182 = vshrl.u32 %v3181, 7
      %v3183 = vsub.s32 2, %v3182
      %v3184 = vrot.slane %v2077, %v3183
      %v3185 = vmul.f32 %v2037, %v3184
      %v3186 = vmul.f32 %v2038, %v3184
      %v3187 = vmul.f32 %v2040, %v3184
      %v3188 = vmul.f32 %v2041, %v3184
      %v3189 = vmul.f32 %v2043, %v3184
      %v3190 = vmul.f32 %v2044, %v3184
      %v3191 = vmul.f32 %v2046, %v3184
      %v3192 = vmul.f32 %v2047, %v3184
      %v3193 = vmul.f32 %v2049, %v3184
      %v3194 = vmul.f32 %v2050, %v3184
      %v3195 = vmul.f32 %v2052, %v3184
      %v3196 = vmul.f32 %v2053, %v3184
      %v3197 = vmul.f32 %v2055, %v3184
      %v3198 = vmul.f32 %v2056, %v3184
      %v3199 = vmul.f32 %v2058, %v3184
      %v3200 = vmul.f32 %v2059, %v3184
      %v3201 = vsel %vm2331, %v3185, 0.0
      %3202 = vadd.xlane.f32.xlu0 %v3201
      %v3203 = vpop.xlane.xlu0 %3202
      %v3204 = vsel %vm2335, %v3186, 0.0
      %3205 = vadd.xlane.f32.xlu0 %v3204
      %v3206 = vpop.xlane.xlu0 %3205
      %v3207 = vsel %vm2331, %v3187, 0.0
      %3208 = vadd.xlane.f32.xlu0 %v3207
      %v3209 = vpop.xlane.xlu0 %3208
      %v3210 = vsel %vm2335, %v3188, 0.0
      %3211 = vadd.xlane.f32.xlu0 %v3210
      %v3212 = vpop.xlane.xlu0 %3211
      %v3213 = vsel %vm2331, %v3189, 0.0
      %3214 = vadd.xlane.f32.xlu0 %v3213
      %v3215 = vpop.xlane.xlu0 %3214
      %v3216 = vsel %vm2335, %v3190, 0.0
      %3217 = vadd.xlane.f32.xlu0 %v3216
      %v3218 = vpop.xlane.xlu0 %3217
      %v3219 = vsel %vm2331, %v3191, 0.0
      %3220 = vadd.xlane.f32.xlu0 %v3219
      %v3221 = vpop.xlane.xlu0 %3220
      %v3222 = vsel %vm2335, %v3192, 0.0
      %3223 = vadd.xlane.f32.xlu0 %v3222
      %v3224 = vpop.xlane.xlu0 %3223
      %v3225 = vsel %vm2331, %v3193, 0.0
      %3226 = vadd.xlane.f32.xlu0 %v3225
      %v3227 = vpop.xlane.xlu0 %3226
      %v3228 = vsel %vm2335, %v3194, 0.0
      %3229 = vadd.xlane.f32.xlu0 %v3228
      %v3230 = vpop.xlane.xlu0 %3229
      %v3231 = vsel %vm2331, %v3195, 0.0
      %3232 = vadd.xlane.f32.xlu0 %v3231
      %v3233 = vpop.xlane.xlu0 %3232
      %v3234 = vsel %vm2335, %v3196, 0.0
      %3235 = vadd.xlane.f32.xlu0 %v3234
      %v3236 = vpop.xlane.xlu0 %3235
      %v3237 = vsel %vm2331, %v3197, 0.0
      %3238 = vadd.xlane.f32.xlu0 %v3237
      %v3239 = vpop.xlane.xlu0 %3238
      %v3240 = vsel %vm2335, %v3198, 0.0
      %3241 = vadd.xlane.f32.xlu0 %v3240
      %v3242 = vpop.xlane.xlu0 %3241
      %v3243 = vsel %vm2331, %v3199, 0.0
      %3244 = vadd.xlane.f32.xlu0 %v3243
      %v3245 = vpop.xlane.xlu0 %3244
      %v3246 = vsel %vm2335, %v3200, 0.0
      %3247 = vadd.xlane.f32.xlu0 %v3246
      %v3248 = vpop.xlane.xlu0 %3247
      %v3265 = vrot.slane %v3203, 2
      %v3266 = vrot.slane %v3206, 2
      %v3267 = vsel %vm760, %v3265, %v3266
      %v3268 = vrot.slane %v3209, 2
      %v3269 = vrot.slane %v3212, 2
      %v3270 = vsel %vm760, %v3268, %v3269
      %v3271 = vrot.slane %v3215, 2
      %v3272 = vrot.slane %v3218, 2
      %v3273 = vsel %vm760, %v3271, %v3272
      %v3274 = vrot.slane %v3221, 2
      %v3275 = vrot.slane %v3224, 2
      %v3276 = vsel %vm760, %v3274, %v3275
      %v3277 = vrot.slane %v3227, 2
      %v3278 = vrot.slane %v3230, 2
      %v3279 = vsel %vm760, %v3277, %v3278
      %v3280 = vrot.slane %v3233, 2
      %v3281 = vrot.slane %v3236, 2
      %v3282 = vsel %vm760, %v3280, %v3281
      %v3283 = vrot.slane %v3239, 2
      %v3284 = vrot.slane %v3242, 2
      %v3285 = vsel %vm760, %v3283, %v3284
      %v3286 = vrot.slane %v3245, 2
      %v3287 = vrot.slane %v3248, 2
      %v3288 = vsel %vm760, %v3286, %v3287
      %v3305 = vadd.f32 %v3165, %v3267
      %v3306 = vadd.f32 %v3166, %v3266
      %v3307 = vadd.f32 %v3167, %v3270
      %v3308 = vadd.f32 %v3168, %v3269
      %v3309 = vadd.f32 %v3169, %v3273
      %v3310 = vadd.f32 %v3170, %v3272
      %v3311 = vadd.f32 %v3171, %v3276
      %v3312 = vadd.f32 %v3172, %v3275
      %v3313 = vadd.f32 %v3173, %v3279
      %v3314 = vadd.f32 %v3174, %v3278
      %v3315 = vadd.f32 %v3175, %v3282
      %v3316 = vadd.f32 %v3176, %v3281
      %v3317 = vadd.f32 %v3177, %v3285
      %v3318 = vadd.f32 %v3178, %v3284
      %v3319 = vadd.f32 %v3179, %v3288
      %v3320 = vadd.f32 %v3180, %v3287
      %v3321 = vlaneseq
      %v3322 = vshrl.u32 %v3321, 7
      %v3323 = vsub.s32 3, %v3322
      %v3324 = vrot.slane %v2077, %v3323
      %v3325 = vmul.f32 %v2038, %v3324
      %v3326 = vmul.f32 %v2041, %v3324
      %v3327 = vmul.f32 %v2044, %v3324
      %v3328 = vmul.f32 %v2047, %v3324
      %v3329 = vmul.f32 %v2050, %v3324
      %v3330 = vmul.f32 %v2053, %v3324
      %v3331 = vmul.f32 %v2056, %v3324
      %v3332 = vmul.f32 %v2059, %v3324
      %v3333 = vsel %vm1817, %v3325, 0.0
      %3334 = vadd.xlane.f32.xlu0 %v3333
      %v3335 = vpop.xlane.xlu0 %3334
      %v3336 = vsel %vm1817, %v3326, 0.0
      %3337 = vadd.xlane.f32.xlu0 %v3336
      %v3338 = vpop.xlane.xlu0 %3337
      %v3339 = vsel %vm1817, %v3327, 0.0
      %3340 = vadd.xlane.f32.xlu0 %v3339
      %v3341 = vpop.xlane.xlu0 %3340
      %v3342 = vsel %vm1817, %v3328, 0.0
      %3343 = vadd.xlane.f32.xlu0 %v3342
      %v3344 = vpop.xlane.xlu0 %3343
      %v3345 = vsel %vm1817, %v3329, 0.0
      %3346 = vadd.xlane.f32.xlu0 %v3345
      %v3347 = vpop.xlane.xlu0 %3346
      %v3348 = vsel %vm1817, %v3330, 0.0
      %3349 = vadd.xlane.f32.xlu0 %v3348
      %v3350 = vpop.xlane.xlu0 %3349
      %v3351 = vsel %vm1817, %v3331, 0.0
      %3352 = vadd.xlane.f32.xlu0 %v3351
      %v3353 = vpop.xlane.xlu0 %3352
      %v3354 = vsel %vm1817, %v3332, 0.0
      %3355 = vadd.xlane.f32.xlu0 %v3354
      %v3356 = vpop.xlane.xlu0 %3355
      %v3365 = vrot.slane %v3335, 3
      %v3366 = vrot.slane %v3338, 3
      %v3367 = vrot.slane %v3341, 3
      %v3368 = vrot.slane %v3344, 3
      %v3369 = vrot.slane %v3347, 3
      %v3370 = vrot.slane %v3350, 3
      %v3371 = vrot.slane %v3353, 3
      %v3372 = vrot.slane %v3356, 3
      %v3381 = vadd.f32 %v3305, %v3365
      %v3382 = vadd.f32 %v3306, %v3365
      %v3383 = vadd.f32 %v3307, %v3366
      %v3384 = vadd.f32 %v3308, %v3366
      %v3385 = vadd.f32 %v3309, %v3367
      %v3386 = vadd.f32 %v3310, %v3367
      %v3387 = vadd.f32 %v3311, %v3368
      %v3388 = vadd.f32 %v3312, %v3368
      %v3389 = vadd.f32 %v3313, %v3369
      %v3390 = vadd.f32 %v3314, %v3369
      %v3391 = vadd.f32 %v3315, %v3370
      %v3392 = vadd.f32 %v3316, %v3370
      %v3393 = vadd.f32 %v3317, %v3371
      %v3394 = vadd.f32 %v3318, %v3371
      %v3395 = vadd.f32 %v3319, %v3372
      %v3396 = vadd.f32 %v3320, %v3372
      %v3397 = vlaneseq
      %v3398 = vshrl.u32 %v3397, 7
      %v3399 = vsub.s32 4, %v3398
      %v3400 = vrot.slane %v2077, %v3399
      %v3401 = vmul.f32 %v2038, %v3400
      %v3402 = vmul.f32 %v2039, %v3400
      %v3403 = vmul.f32 %v2041, %v3400
      %v3404 = vmul.f32 %v2042, %v3400
      %v3405 = vmul.f32 %v2044, %v3400
      %v3406 = vmul.f32 %v2045, %v3400
      %v3407 = vmul.f32 %v2047, %v3400
      %v3408 = vmul.f32 %v2048, %v3400
      %v3409 = vmul.f32 %v2050, %v3400
      %v3410 = vmul.f32 %v2051, %v3400
      %v3411 = vmul.f32 %v2053, %v3400
      %v3412 = vmul.f32 %v2054, %v3400
      %v3413 = vmul.f32 %v2056, %v3400
      %v3414 = vmul.f32 %v2057, %v3400
      %v3415 = vmul.f32 %v2059, %v3400
      %v3416 = vmul.f32 %v2060, %v3400
      %v3417 = vsel %vm2549, %v3401, 0.0
      %3418 = vadd.xlane.f32.xlu0 %v3417
      %v3419 = vpop.xlane.xlu0 %3418
      %v3420 = vsel %vm2553, %v3402, 0.0
      %3421 = vadd.xlane.f32.xlu0 %v3420
      %v3422 = vpop.xlane.xlu0 %3421
      %v3423 = vsel %vm2549, %v3403, 0.0
      %3424 = vadd.xlane.f32.xlu0 %v3423
      %v3425 = vpop.xlane.xlu0 %3424
      %v3426 = vsel %vm2553, %v3404, 0.0
      %3427 = vadd.xlane.f32.xlu0 %v3426
      %v3428 = vpop.xlane.xlu0 %3427
      %v3429 = vsel %vm2549, %v3405, 0.0
      %3430 = vadd.xlane.f32.xlu0 %v3429
      %v3431 = vpop.xlane.xlu0 %3430
      %v3432 = vsel %vm2553, %v3406, 0.0
      %3433 = vadd.xlane.f32.xlu0 %v3432
      %v3434 = vpop.xlane.xlu0 %3433
      %v3435 = vsel %vm2549, %v3407, 0.0
      %3436 = vadd.xlane.f32.xlu0 %v3435
      %v3437 = vpop.xlane.xlu0 %3436
      %v3438 = vsel %vm2553, %v3408, 0.0
      %3439 = vadd.xlane.f32.xlu0 %v3438
      %v3440 = vpop.xlane.xlu0 %3439
      %v3441 = vsel %vm2549, %v3409, 0.0
      %3442 = vadd.xlane.f32.xlu0 %v3441
      %v3443 = vpop.xlane.xlu0 %3442
      %v3444 = vsel %vm2553, %v3410, 0.0
      %3445 = vadd.xlane.f32.xlu0 %v3444
      %v3446 = vpop.xlane.xlu0 %3445
      %v3447 = vsel %vm2549, %v3411, 0.0
      %3448 = vadd.xlane.f32.xlu0 %v3447
      %v3449 = vpop.xlane.xlu0 %3448
      %v3450 = vsel %vm2553, %v3412, 0.0
      %3451 = vadd.xlane.f32.xlu0 %v3450
      %v3452 = vpop.xlane.xlu0 %3451
      %v3453 = vsel %vm2549, %v3413, 0.0
      %3454 = vadd.xlane.f32.xlu0 %v3453
      %v3455 = vpop.xlane.xlu0 %3454
      %v3456 = vsel %vm2553, %v3414, 0.0
      %3457 = vadd.xlane.f32.xlu0 %v3456
      %v3458 = vpop.xlane.xlu0 %3457
      %v3459 = vsel %vm2549, %v3415, 0.0
      %3460 = vadd.xlane.f32.xlu0 %v3459
      %v3461 = vpop.xlane.xlu0 %3460
      %v3462 = vsel %vm2553, %v3416, 0.0
      %3463 = vadd.xlane.f32.xlu0 %v3462
      %v3464 = vpop.xlane.xlu0 %3463
      %v3481 = vrot.slane %v3419, 4
      %v3482 = vrot.slane %v3422, 4
      %v3483 = vsel %vm2615, %v3481, %v3482
      %v3484 = vrot.slane %v3425, 4
      %v3485 = vrot.slane %v3428, 4
      %v3486 = vsel %vm2615, %v3484, %v3485
      %v3487 = vrot.slane %v3431, 4
      %v3488 = vrot.slane %v3434, 4
      %v3489 = vsel %vm2615, %v3487, %v3488
      %v3490 = vrot.slane %v3437, 4
      %v3491 = vrot.slane %v3440, 4
      %v3492 = vsel %vm2615, %v3490, %v3491
      %v3493 = vrot.slane %v3443, 4
      %v3494 = vrot.slane %v3446, 4
      %v3495 = vsel %vm2615, %v3493, %v3494
      %v3496 = vrot.slane %v3449, 4
      %v3497 = vrot.slane %v3452, 4
      %v3498 = vsel %vm2615, %v3496, %v3497
      %v3499 = vrot.slane %v3455, 4
      %v3500 = vrot.slane %v3458, 4
      %v3501 = vsel %vm2615, %v3499, %v3500
      %v3502 = vrot.slane %v3461, 4
      %v3503 = vrot.slane %v3464, 4
      %v3504 = vsel %vm2615, %v3502, %v3503
      %v3521 = vadd.f32 %v3381, %v3481
      %v3522 = vadd.f32 %v3382, %v3483
      %v3523 = vadd.f32 %v3383, %v3484
      %v3524 = vadd.f32 %v3384, %v3486
      %v3525 = vadd.f32 %v3385, %v3487
      %v3526 = vadd.f32 %v3386, %v3489
      %v3527 = vadd.f32 %v3387, %v3490
      %v3528 = vadd.f32 %v3388, %v3492
      %v3529 = vadd.f32 %v3389, %v3493
      %v3530 = vadd.f32 %v3390, %v3495
      %v3531 = vadd.f32 %v3391, %v3496
      %v3532 = vadd.f32 %v3392, %v3498
      %v3533 = vadd.f32 %v3393, %v3499
      %v3534 = vadd.f32 %v3394, %v3501
      %v3535 = vadd.f32 %v3395, %v3502
      %v3536 = vadd.f32 %v3396, %v3504
      %v3537 = vlaneseq
      %v3538 = vshrl.u32 %v3537, 7
      %v3539 = vsub.s32 5, %v3538
      %v3540 = vrot.slane %v2077, %v3539
      %v3541 = vmul.f32 %v2038, %v3540
      %v3542 = vmul.f32 %v2039, %v3540
      %v3543 = vmul.f32 %v2041, %v3540
      %v3544 = vmul.f32 %v2042, %v3540
      %v3545 = vmul.f32 %v2044, %v3540
      %v3546 = vmul.f32 %v2045, %v3540
      %v3547 = vmul.f32 %v2047, %v3540
      %v3548 = vmul.f32 %v2048, %v3540
      %v3549 = vmul.f32 %v2050, %v3540
      %v3550 = vmul.f32 %v2051, %v3540
      %v3551 = vmul.f32 %v2053, %v3540
      %v3552 = vmul.f32 %v2054, %v3540
      %v3553 = vmul.f32 %v2056, %v3540
      %v3554 = vmul.f32 %v2057, %v3540
      %v3555 = vmul.f32 %v2059, %v3540
      %v3556 = vmul.f32 %v2060, %v3540
      %v3557 = vsel %vm2692, %v3541, 0.0
      %3558 = vadd.xlane.f32.xlu0 %v3557
      %v3559 = vpop.xlane.xlu0 %3558
      %v3560 = vsel %vm2696, %v3542, 0.0
      %3561 = vadd.xlane.f32.xlu0 %v3560
      %v3562 = vpop.xlane.xlu0 %3561
      %v3563 = vsel %vm2692, %v3543, 0.0
      %3564 = vadd.xlane.f32.xlu0 %v3563
      %v3565 = vpop.xlane.xlu0 %3564
      %v3566 = vsel %vm2696, %v3544, 0.0
      %3567 = vadd.xlane.f32.xlu0 %v3566
      %v3568 = vpop.xlane.xlu0 %3567
      %v3569 = vsel %vm2692, %v3545, 0.0
      %3570 = vadd.xlane.f32.xlu0 %v3569
      %v3571 = vpop.xlane.xlu0 %3570
      %v3572 = vsel %vm2696, %v3546, 0.0
      %3573 = vadd.xlane.f32.xlu0 %v3572
      %v3574 = vpop.xlane.xlu0 %3573
      %v3575 = vsel %vm2692, %v3547, 0.0
      %3576 = vadd.xlane.f32.xlu0 %v3575
      %v3577 = vpop.xlane.xlu0 %3576
      %v3578 = vsel %vm2696, %v3548, 0.0
      %3579 = vadd.xlane.f32.xlu0 %v3578
      %v3580 = vpop.xlane.xlu0 %3579
      %v3581 = vsel %vm2692, %v3549, 0.0
      %3582 = vadd.xlane.f32.xlu0 %v3581
      %v3583 = vpop.xlane.xlu0 %3582
      %v3584 = vsel %vm2696, %v3550, 0.0
      %3585 = vadd.xlane.f32.xlu0 %v3584
      %v3586 = vpop.xlane.xlu0 %3585
      %v3587 = vsel %vm2692, %v3551, 0.0
      %3588 = vadd.xlane.f32.xlu0 %v3587
      %v3589 = vpop.xlane.xlu0 %3588
      %v3590 = vsel %vm2696, %v3552, 0.0
      %3591 = vadd.xlane.f32.xlu0 %v3590
      %v3592 = vpop.xlane.xlu0 %3591
      %v3593 = vsel %vm2692, %v3553, 0.0
      %3594 = vadd.xlane.f32.xlu0 %v3593
      %v3595 = vpop.xlane.xlu0 %3594
      %v3596 = vsel %vm2696, %v3554, 0.0
      %3597 = vadd.xlane.f32.xlu0 %v3596
      %v3598 = vpop.xlane.xlu0 %3597
      %v3599 = vsel %vm2692, %v3555, 0.0
      %3600 = vadd.xlane.f32.xlu0 %v3599
      %v3601 = vpop.xlane.xlu0 %3600
      %v3602 = vsel %vm2696, %v3556, 0.0
      %3603 = vadd.xlane.f32.xlu0 %v3602
      %v3604 = vpop.xlane.xlu0 %3603
      %v3621 = vrot.slane %v3559, 5
      %v3622 = vrot.slane %v3562, 5
      %v3623 = vsel %vm2758, %v3621, %v3622
      %v3624 = vrot.slane %v3565, 5
      %v3625 = vrot.slane %v3568, 5
      %v3626 = vsel %vm2758, %v3624, %v3625
      %v3627 = vrot.slane %v3571, 5
      %v3628 = vrot.slane %v3574, 5
      %v3629 = vsel %vm2758, %v3627, %v3628
      %v3630 = vrot.slane %v3577, 5
      %v3631 = vrot.slane %v3580, 5
      %v3632 = vsel %vm2758, %v3630, %v3631
      %v3633 = vrot.slane %v3583, 5
      %v3634 = vrot.slane %v3586, 5
      %v3635 = vsel %vm2758, %v3633, %v3634
      %v3636 = vrot.slane %v3589, 5
      %v3637 = vrot.slane %v3592, 5
      %v3638 = vsel %vm2758, %v3636, %v3637
      %v3639 = vrot.slane %v3595, 5
      %v3640 = vrot.slane %v3598, 5
      %v3641 = vsel %vm2758, %v3639, %v3640
      %v3642 = vrot.slane %v3601, 5
      %v3643 = vrot.slane %v3604, 5
      %v3644 = vsel %vm2758, %v3642, %v3643
      %v3661 = vadd.f32 %v3521, %v3621
      %v3662 = vadd.f32 %v3522, %v3623
      %v3663 = vadd.f32 %v3523, %v3624
      %v3664 = vadd.f32 %v3524, %v3626
      %v3665 = vadd.f32 %v3525, %v3627
      %v3666 = vadd.f32 %v3526, %v3629
      %v3667 = vadd.f32 %v3527, %v3630
      %v3668 = vadd.f32 %v3528, %v3632
      %v3669 = vadd.f32 %v3529, %v3633
      %v3670 = vadd.f32 %v3530, %v3635
      %v3671 = vadd.f32 %v3531, %v3636
      %v3672 = vadd.f32 %v3532, %v3638
      %v3673 = vadd.f32 %v3533, %v3639
      %v3674 = vadd.f32 %v3534, %v3641
      %v3675 = vadd.f32 %v3535, %v3642
      %v3676 = vadd.f32 %v3536, %v3644
      %v3677 = vlaneseq
      %v3678 = vshrl.u32 %v3677, 7
      %v3679 = vsub.s32 6, %v3678
      %v3680 = vrot.slane %v2077, %v3679
      %v3681 = vmul.f32 %v2038, %v3680
      %v3682 = vmul.f32 %v2039, %v3680
      %v3683 = vmul.f32 %v2041, %v3680
      %v3684 = vmul.f32 %v2042, %v3680
      %v3685 = vmul.f32 %v2044, %v3680
      %v3686 = vmul.f32 %v2045, %v3680
      %v3687 = vmul.f32 %v2047, %v3680
      %v3688 = vmul.f32 %v2048, %v3680
      %v3689 = vmul.f32 %v2050, %v3680
      %v3690 = vmul.f32 %v2051, %v3680
      %v3691 = vmul.f32 %v2053, %v3680
      %v3692 = vmul.f32 %v2054, %v3680
      %v3693 = vmul.f32 %v2056, %v3680
      %v3694 = vmul.f32 %v2057, %v3680
      %v3695 = vmul.f32 %v2059, %v3680
      %v3696 = vmul.f32 %v2060, %v3680
      %v3697 = vsel %vm2835, %v3681, 0.0
      %3698 = vadd.xlane.f32.xlu0 %v3697
      %v3699 = vpop.xlane.xlu0 %3698
      %v3700 = vsel %vm2839, %v3682, 0.0
      %3701 = vadd.xlane.f32.xlu0 %v3700
      %v3702 = vpop.xlane.xlu0 %3701
      %v3703 = vsel %vm2835, %v3683, 0.0
      %3704 = vadd.xlane.f32.xlu0 %v3703
      %v3705 = vpop.xlane.xlu0 %3704
      %v3706 = vsel %vm2839, %v3684, 0.0
      %3707 = vadd.xlane.f32.xlu0 %v3706
      %v3708 = vpop.xlane.xlu0 %3707
      %v3709 = vsel %vm2835, %v3685, 0.0
      %3710 = vadd.xlane.f32.xlu0 %v3709
      %v3711 = vpop.xlane.xlu0 %3710
      %v3712 = vsel %vm2839, %v3686, 0.0
      %3713 = vadd.xlane.f32.xlu0 %v3712
      %v3714 = vpop.xlane.xlu0 %3713
      %v3715 = vsel %vm2835, %v3687, 0.0
      %3716 = vadd.xlane.f32.xlu0 %v3715
      %v3717 = vpop.xlane.xlu0 %3716
      %v3718 = vsel %vm2839, %v3688, 0.0
      %3719 = vadd.xlane.f32.xlu0 %v3718
      %v3720 = vpop.xlane.xlu0 %3719
      %v3721 = vsel %vm2835, %v3689, 0.0
      %3722 = vadd.xlane.f32.xlu0 %v3721
      %v3723 = vpop.xlane.xlu0 %3722
      %v3724 = vsel %vm2839, %v3690, 0.0
      %3725 = vadd.xlane.f32.xlu0 %v3724
      %v3726 = vpop.xlane.xlu0 %3725
      %v3727 = vsel %vm2835, %v3691, 0.0
      %3728 = vadd.xlane.f32.xlu0 %v3727
      %v3729 = vpop.xlane.xlu0 %3728
      %v3730 = vsel %vm2839, %v3692, 0.0
      %3731 = vadd.xlane.f32.xlu0 %v3730
      %v3732 = vpop.xlane.xlu0 %3731
      %v3733 = vsel %vm2835, %v3693, 0.0
      %3734 = vadd.xlane.f32.xlu0 %v3733
      %v3735 = vpop.xlane.xlu0 %3734
      %v3736 = vsel %vm2839, %v3694, 0.0
      %3737 = vadd.xlane.f32.xlu0 %v3736
      %v3738 = vpop.xlane.xlu0 %3737
      %v3739 = vsel %vm2835, %v3695, 0.0
      %3740 = vadd.xlane.f32.xlu0 %v3739
      %v3741 = vpop.xlane.xlu0 %3740
      %v3742 = vsel %vm2839, %v3696, 0.0
      %3743 = vadd.xlane.f32.xlu0 %v3742
      %v3744 = vpop.xlane.xlu0 %3743
      %v3761 = vrot.slane %v3699, 6
      %v3762 = vrot.slane %v3702, 6
      %v3763 = vsel %vm1821, %v3761, %v3762
      %v3764 = vrot.slane %v3705, 6
      %v3765 = vrot.slane %v3708, 6
      %v3766 = vsel %vm1821, %v3764, %v3765
      %v3767 = vrot.slane %v3711, 6
      %v3768 = vrot.slane %v3714, 6
      %v3769 = vsel %vm1821, %v3767, %v3768
      %v3770 = vrot.slane %v3717, 6
      %v3771 = vrot.slane %v3720, 6
      %v3772 = vsel %vm1821, %v3770, %v3771
      %v3773 = vrot.slane %v3723, 6
      %v3774 = vrot.slane %v3726, 6
      %v3775 = vsel %vm1821, %v3773, %v3774
      %v3776 = vrot.slane %v3729, 6
      %v3777 = vrot.slane %v3732, 6
      %v3778 = vsel %vm1821, %v3776, %v3777
      %v3779 = vrot.slane %v3735, 6
      %v3780 = vrot.slane %v3738, 6
      %v3781 = vsel %vm1821, %v3779, %v3780
      %v3782 = vrot.slane %v3741, 6
      %v3783 = vrot.slane %v3744, 6
      %v3784 = vsel %vm1821, %v3782, %v3783
      %v3801 = vadd.f32 %v3661, %v3761
      %v3802 = vadd.f32 %v3662, %v3763
      %v3803 = vadd.f32 %v3663, %v3764
      %v3804 = vadd.f32 %v3664, %v3766
      %v3805 = vadd.f32 %v3665, %v3767
      %v3806 = vadd.f32 %v3666, %v3769
      %v3807 = vadd.f32 %v3667, %v3770
      %v3808 = vadd.f32 %v3668, %v3772
      %v3809 = vadd.f32 %v3669, %v3773
      %v3810 = vadd.f32 %v3670, %v3775
      %v3811 = vadd.f32 %v3671, %v3776
      %v3812 = vadd.f32 %v3672, %v3778
      %v3813 = vadd.f32 %v3673, %v3779
      %v3814 = vadd.f32 %v3674, %v3781
      %v3815 = vadd.f32 %v3675, %v3782
      %v3816 = vadd.f32 %v3676, %v3784
      %v3817 = vlaneseq
      %v3818 = vshrl.u32 %v3817, 7
      %v3819 = vsub.s32 0, %v3818
      %v3820 = vrot.slane %v2078, %v3819
      %v3821 = vmul.f32 %v2040, %v3820
      %v3822 = vmul.f32 %v2041, %v3820
      %v3823 = vmul.f32 %v2043, %v3820
      %v3824 = vmul.f32 %v2044, %v3820
      %v3825 = vmul.f32 %v2046, %v3820
      %v3826 = vmul.f32 %v2047, %v3820
      %v3827 = vmul.f32 %v2049, %v3820
      %v3828 = vmul.f32 %v2050, %v3820
      %v3829 = vmul.f32 %v2052, %v3820
      %v3830 = vmul.f32 %v2053, %v3820
      %v3831 = vmul.f32 %v2055, %v3820
      %v3832 = vmul.f32 %v2056, %v3820
      %v3833 = vmul.f32 %v2058, %v3820
      %v3834 = vmul.f32 %v2059, %v3820
      %v3835 = vmul.f32 %v2061, %v3820
      %v3836 = vmul.f32 %v2062, %v3820
      %v3837 = vsel %vm2103, %v3821, 0.0
      %3838 = vadd.xlane.f32.xlu0 %v3837
      %v3839 = vpop.xlane.xlu0 %3838
      %v3840 = vsel %vm2107, %v3822, 0.0
      %3841 = vadd.xlane.f32.xlu0 %v3840
      %v3842 = vpop.xlane.xlu0 %3841
      %v3843 = vsel %vm2103, %v3823, 0.0
      %3844 = vadd.xlane.f32.xlu0 %v3843
      %v3845 = vpop.xlane.xlu0 %3844
      %v3846 = vsel %vm2107, %v3824, 0.0
      %3847 = vadd.xlane.f32.xlu0 %v3846
      %v3848 = vpop.xlane.xlu0 %3847
      %v3849 = vsel %vm2103, %v3825, 0.0
      %3850 = vadd.xlane.f32.xlu0 %v3849
      %v3851 = vpop.xlane.xlu0 %3850
      %v3852 = vsel %vm2107, %v3826, 0.0
      %3853 = vadd.xlane.f32.xlu0 %v3852
      %v3854 = vpop.xlane.xlu0 %3853
      %v3855 = vsel %vm2103, %v3827, 0.0
      %3856 = vadd.xlane.f32.xlu0 %v3855
      %v3857 = vpop.xlane.xlu0 %3856
      %v3858 = vsel %vm2107, %v3828, 0.0
      %3859 = vadd.xlane.f32.xlu0 %v3858
      %v3860 = vpop.xlane.xlu0 %3859
      %v3861 = vsel %vm2103, %v3829, 0.0
      %3862 = vadd.xlane.f32.xlu0 %v3861
      %v3863 = vpop.xlane.xlu0 %3862
      %v3864 = vsel %vm2107, %v3830, 0.0
      %3865 = vadd.xlane.f32.xlu0 %v3864
      %v3866 = vpop.xlane.xlu0 %3865
      %v3867 = vsel %vm2103, %v3831, 0.0
      %3868 = vadd.xlane.f32.xlu0 %v3867
      %v3869 = vpop.xlane.xlu0 %3868
      %v3870 = vsel %vm2107, %v3832, 0.0
      %3871 = vadd.xlane.f32.xlu0 %v3870
      %v3872 = vpop.xlane.xlu0 %3871
      %v3873 = vsel %vm2103, %v3833, 0.0
      %3874 = vadd.xlane.f32.xlu0 %v3873
      %v3875 = vpop.xlane.xlu0 %3874
      %v3876 = vsel %vm2107, %v3834, 0.0
      %3877 = vadd.xlane.f32.xlu0 %v3876
      %v3878 = vpop.xlane.xlu0 %3877
      %v3879 = vsel %vm2103, %v3835, 0.0
      %3880 = vadd.xlane.f32.xlu0 %v3879
      %v3881 = vpop.xlane.xlu0 %3880
      %v3882 = vsel %vm2107, %v3836, 0.0
      %3883 = vadd.xlane.f32.xlu0 %v3882
      %v3884 = vpop.xlane.xlu0 %3883
      %v3885 = vadd.f32 %v3801, %v3839
      %v3886 = vadd.f32 %v3802, %v3842
      %v3887 = vadd.f32 %v3803, %v3845
      %v3888 = vadd.f32 %v3804, %v3848
      %v3889 = vadd.f32 %v3805, %v3851
      %v3890 = vadd.f32 %v3806, %v3854
      %v3891 = vadd.f32 %v3807, %v3857
      %v3892 = vadd.f32 %v3808, %v3860
      %v3893 = vadd.f32 %v3809, %v3863
      %v3894 = vadd.f32 %v3810, %v3866
      %v3895 = vadd.f32 %v3811, %v3869
      %v3896 = vadd.f32 %v3812, %v3872
      %v3897 = vadd.f32 %v3813, %v3875
      %v3898 = vadd.f32 %v3814, %v3878
      %v3899 = vadd.f32 %v3815, %v3881
      %v3900 = vadd.f32 %v3816, %v3884
      %v3901 = vlaneseq
      %v3902 = vshrl.u32 %v3901, 7
      %v3903 = vsub.s32 1, %v3902
      %v3904 = vrot.slane %v2078, %v3903
      %v3905 = vmul.f32 %v2040, %v3904
      %v3906 = vmul.f32 %v2041, %v3904
      %v3907 = vmul.f32 %v2043, %v3904
      %v3908 = vmul.f32 %v2044, %v3904
      %v3909 = vmul.f32 %v2046, %v3904
      %v3910 = vmul.f32 %v2047, %v3904
      %v3911 = vmul.f32 %v2049, %v3904
      %v3912 = vmul.f32 %v2050, %v3904
      %v3913 = vmul.f32 %v2052, %v3904
      %v3914 = vmul.f32 %v2053, %v3904
      %v3915 = vmul.f32 %v2055, %v3904
      %v3916 = vmul.f32 %v2056, %v3904
      %v3917 = vmul.f32 %v2058, %v3904
      %v3918 = vmul.f32 %v2059, %v3904
      %v3919 = vmul.f32 %v2061, %v3904
      %v3920 = vmul.f32 %v2062, %v3904
      %v3921 = vsel %vm2189, %v3905, 0.0
      %3922 = vadd.xlane.f32.xlu0 %v3921
      %v3923 = vpop.xlane.xlu0 %3922
      %v3924 = vsel %vm2193, %v3906, 0.0
      %3925 = vadd.xlane.f32.xlu0 %v3924
      %v3926 = vpop.xlane.xlu0 %3925
      %v3927 = vsel %vm2189, %v3907, 0.0
      %3928 = vadd.xlane.f32.xlu0 %v3927
      %v3929 = vpop.xlane.xlu0 %3928
      %v3930 = vsel %vm2193, %v3908, 0.0
      %3931 = vadd.xlane.f32.xlu0 %v3930
      %v3932 = vpop.xlane.xlu0 %3931
      %v3933 = vsel %vm2189, %v3909, 0.0
      %3934 = vadd.xlane.f32.xlu0 %v3933
      %v3935 = vpop.xlane.xlu0 %3934
      %v3936 = vsel %vm2193, %v3910, 0.0
      %3937 = vadd.xlane.f32.xlu0 %v3936
      %v3938 = vpop.xlane.xlu0 %3937
      %v3939 = vsel %vm2189, %v3911, 0.0
      %3940 = vadd.xlane.f32.xlu0 %v3939
      %v3941 = vpop.xlane.xlu0 %3940
      %v3942 = vsel %vm2193, %v3912, 0.0
      %3943 = vadd.xlane.f32.xlu0 %v3942
      %v3944 = vpop.xlane.xlu0 %3943
      %v3945 = vsel %vm2189, %v3913, 0.0
      %3946 = vadd.xlane.f32.xlu0 %v3945
      %v3947 = vpop.xlane.xlu0 %3946
      %v3948 = vsel %vm2193, %v3914, 0.0
      %3949 = vadd.xlane.f32.xlu0 %v3948
      %v3950 = vpop.xlane.xlu0 %3949
      %v3951 = vsel %vm2189, %v3915, 0.0
      %3952 = vadd.xlane.f32.xlu0 %v3951
      %v3953 = vpop.xlane.xlu0 %3952
      %v3954 = vsel %vm2193, %v3916, 0.0
      %3955 = vadd.xlane.f32.xlu0 %v3954
      %v3956 = vpop.xlane.xlu0 %3955
      %v3957 = vsel %vm2189, %v3917, 0.0
      %3958 = vadd.xlane.f32.xlu0 %v3957
      %v3959 = vpop.xlane.xlu0 %3958
      %v3960 = vsel %vm2193, %v3918, 0.0
      %3961 = vadd.xlane.f32.xlu0 %v3960
      %v3962 = vpop.xlane.xlu0 %3961
      %v3963 = vsel %vm2189, %v3919, 0.0
      %3964 = vadd.xlane.f32.xlu0 %v3963
      %v3965 = vpop.xlane.xlu0 %3964
      %v3966 = vsel %vm2193, %v3920, 0.0
      %3967 = vadd.xlane.f32.xlu0 %v3966
      %v3968 = vpop.xlane.xlu0 %3967
      %v3985 = vrot.slane %v3923, 1
      %v3986 = vrot.slane %v3926, 1
      %v3987 = vsel %vm487, %v3985, %v3986
      %v3988 = vrot.slane %v3929, 1
      %v3989 = vrot.slane %v3932, 1
      %v3990 = vsel %vm487, %v3988, %v3989
      %v3991 = vrot.slane %v3935, 1
      %v3992 = vrot.slane %v3938, 1
      %v3993 = vsel %vm487, %v3991, %v3992
      %v3994 = vrot.slane %v3941, 1
      %v3995 = vrot.slane %v3944, 1
      %v3996 = vsel %vm487, %v3994, %v3995
      %v3997 = vrot.slane %v3947, 1
      %v3998 = vrot.slane %v3950, 1
      %v3999 = vsel %vm487, %v3997, %v3998
      %v4000 = vrot.slane %v3953, 1
      %v4001 = vrot.slane %v3956, 1
      %v4002 = vsel %vm487, %v4000, %v4001
      %v4003 = vrot.slane %v3959, 1
      %v4004 = vrot.slane %v3962, 1
      %v4005 = vsel %vm487, %v4003, %v4004
      %v4006 = vrot.slane %v3965, 1
      %v4007 = vrot.slane %v3968, 1
      %v4008 = vsel %vm487, %v4006, %v4007
      %v4025 = vadd.f32 %v3885, %v3987
      %v4026 = vadd.f32 %v3886, %v3986
      %v4027 = vadd.f32 %v3887, %v3990
      %v4028 = vadd.f32 %v3888, %v3989
      %v4029 = vadd.f32 %v3889, %v3993
      %v4030 = vadd.f32 %v3890, %v3992
      %v4031 = vadd.f32 %v3891, %v3996
      %v4032 = vadd.f32 %v3892, %v3995
      %v4033 = vadd.f32 %v3893, %v3999
      %v4034 = vadd.f32 %v3894, %v3998
      %v4035 = vadd.f32 %v3895, %v4002
      %v4036 = vadd.f32 %v3896, %v4001
      %v4037 = vadd.f32 %v3897, %v4005
      %v4038 = vadd.f32 %v3898, %v4004
      %v4039 = vadd.f32 %v3899, %v4008
      %v4040 = vadd.f32 %v3900, %v4007
      %v4041 = vlaneseq
      %v4042 = vshrl.u32 %v4041, 7
      %v4043 = vsub.s32 2, %v4042
      %v4044 = vrot.slane %v2078, %v4043
      %v4045 = vmul.f32 %v2040, %v4044
      %v4046 = vmul.f32 %v2041, %v4044
      %v4047 = vmul.f32 %v2043, %v4044
      %v4048 = vmul.f32 %v2044, %v4044
      %v4049 = vmul.f32 %v2046, %v4044
      %v4050 = vmul.f32 %v2047, %v4044
      %v4051 = vmul.f32 %v2049, %v4044
      %v4052 = vmul.f32 %v2050, %v4044
      %v4053 = vmul.f32 %v2052, %v4044
      %v4054 = vmul.f32 %v2053, %v4044
      %v4055 = vmul.f32 %v2055, %v4044
      %v4056 = vmul.f32 %v2056, %v4044
      %v4057 = vmul.f32 %v2058, %v4044
      %v4058 = vmul.f32 %v2059, %v4044
      %v4059 = vmul.f32 %v2061, %v4044
      %v4060 = vmul.f32 %v2062, %v4044
      %v4061 = vsel %vm2331, %v4045, 0.0
      %4062 = vadd.xlane.f32.xlu0 %v4061
      %v4063 = vpop.xlane.xlu0 %4062
      %v4064 = vsel %vm2335, %v4046, 0.0
      %4065 = vadd.xlane.f32.xlu0 %v4064
      %v4066 = vpop.xlane.xlu0 %4065
      %v4067 = vsel %vm2331, %v4047, 0.0
      %4068 = vadd.xlane.f32.xlu0 %v4067
      %v4069 = vpop.xlane.xlu0 %4068
      %v4070 = vsel %vm2335, %v4048, 0.0
      %4071 = vadd.xlane.f32.xlu0 %v4070
      %v4072 = vpop.xlane.xlu0 %4071
      %v4073 = vsel %vm2331, %v4049, 0.0
      %4074 = vadd.xlane.f32.xlu0 %v4073
      %v4075 = vpop.xlane.xlu0 %4074
      %v4076 = vsel %vm2335, %v4050, 0.0
      %4077 = vadd.xlane.f32.xlu0 %v4076
      %v4078 = vpop.xlane.xlu0 %4077
      %v4079 = vsel %vm2331, %v4051, 0.0
      %4080 = vadd.xlane.f32.xlu0 %v4079
      %v4081 = vpop.xlane.xlu0 %4080
      %v4082 = vsel %vm2335, %v4052, 0.0
      %4083 = vadd.xlane.f32.xlu0 %v4082
      %v4084 = vpop.xlane.xlu0 %4083
      %v4085 = vsel %vm2331, %v4053, 0.0
      %4086 = vadd.xlane.f32.xlu0 %v4085
      %v4087 = vpop.xlane.xlu0 %4086
      %v4088 = vsel %vm2335, %v4054, 0.0
      %4089 = vadd.xlane.f32.xlu0 %v4088
      %v4090 = vpop.xlane.xlu0 %4089
      %v4091 = vsel %vm2331, %v4055, 0.0
      %4092 = vadd.xlane.f32.xlu0 %v4091
      %v4093 = vpop.xlane.xlu0 %4092
      %v4094 = vsel %vm2335, %v4056, 0.0
      %4095 = vadd.xlane.f32.xlu0 %v4094
      %v4096 = vpop.xlane.xlu0 %4095
      %v4097 = vsel %vm2331, %v4057, 0.0
      %4098 = vadd.xlane.f32.xlu0 %v4097
      %v4099 = vpop.xlane.xlu0 %4098
      %v4100 = vsel %vm2335, %v4058, 0.0
      %4101 = vadd.xlane.f32.xlu0 %v4100
      %v4102 = vpop.xlane.xlu0 %4101
      %v4103 = vsel %vm2331, %v4059, 0.0
      %4104 = vadd.xlane.f32.xlu0 %v4103
      %v4105 = vpop.xlane.xlu0 %4104
      %v4106 = vsel %vm2335, %v4060, 0.0
      %4107 = vadd.xlane.f32.xlu0 %v4106
      %v4108 = vpop.xlane.xlu0 %4107
      %v4125 = vrot.slane %v4063, 2
      %v4126 = vrot.slane %v4066, 2
      %v4127 = vsel %vm760, %v4125, %v4126
      %v4128 = vrot.slane %v4069, 2
      %v4129 = vrot.slane %v4072, 2
      %v4130 = vsel %vm760, %v4128, %v4129
      %v4131 = vrot.slane %v4075, 2
      %v4132 = vrot.slane %v4078, 2
      %v4133 = vsel %vm760, %v4131, %v4132
      %v4134 = vrot.slane %v4081, 2
      %v4135 = vrot.slane %v4084, 2
      %v4136 = vsel %vm760, %v4134, %v4135
      %v4137 = vrot.slane %v4087, 2
      %v4138 = vrot.slane %v4090, 2
      %v4139 = vsel %vm760, %v4137, %v4138
      %v4140 = vrot.slane %v4093, 2
      %v4141 = vrot.slane %v4096, 2
      %v4142 = vsel %vm760, %v4140, %v4141
      %v4143 = vrot.slane %v4099, 2
      %v4144 = vrot.slane %v4102, 2
      %v4145 = vsel %vm760, %v4143, %v4144
      %v4146 = vrot.slane %v4105, 2
      %v4147 = vrot.slane %v4108, 2
      %v4148 = vsel %vm760, %v4146, %v4147
      %v4165 = vadd.f32 %v4025, %v4127
      %v4166 = vadd.f32 %v4026, %v4126
      %v4167 = vadd.f32 %v4027, %v4130
      %v4168 = vadd.f32 %v4028, %v4129
      %v4169 = vadd.f32 %v4029, %v4133
      %v4170 = vadd.f32 %v4030, %v4132
      %v4171 = vadd.f32 %v4031, %v4136
      %v4172 = vadd.f32 %v4032, %v4135
      %v4173 = vadd.f32 %v4033, %v4139
      %v4174 = vadd.f32 %v4034, %v4138
      %v4175 = vadd.f32 %v4035, %v4142
      %v4176 = vadd.f32 %v4036, %v4141
      %v4177 = vadd.f32 %v4037, %v4145
      %v4178 = vadd.f32 %v4038, %v4144
      %v4179 = vadd.f32 %v4039, %v4148
      %v4180 = vadd.f32 %v4040, %v4147
      %v4181 = vlaneseq
      %v4182 = vshrl.u32 %v4181, 7
      %v4183 = vsub.s32 3, %v4182
      %v4184 = vrot.slane %v2078, %v4183
      %v4185 = vmul.f32 %v2041, %v4184
      %v4186 = vmul.f32 %v2044, %v4184
      %v4187 = vmul.f32 %v2047, %v4184
      %v4188 = vmul.f32 %v2050, %v4184
      %v4189 = vmul.f32 %v2053, %v4184
      %v4190 = vmul.f32 %v2056, %v4184
      %v4191 = vmul.f32 %v2059, %v4184
      %v4192 = vmul.f32 %v2062, %v4184
      %v4193 = vsel %vm1817, %v4185, 0.0
      %4194 = vadd.xlane.f32.xlu0 %v4193
      %v4195 = vpop.xlane.xlu0 %4194
      %v4196 = vsel %vm1817, %v4186, 0.0
      %4197 = vadd.xlane.f32.xlu0 %v4196
      %v4198 = vpop.xlane.xlu0 %4197
      %v4199 = vsel %vm1817, %v4187, 0.0
      %4200 = vadd.xlane.f32.xlu0 %v4199
      %v4201 = vpop.xlane.xlu0 %4200
      %v4202 = vsel %vm1817, %v4188, 0.0
      %4203 = vadd.xlane.f32.xlu0 %v4202
      %v4204 = vpop.xlane.xlu0 %4203
      %v4205 = vsel %vm1817, %v4189, 0.0
      %4206 = vadd.xlane.f32.xlu0 %v4205
      %v4207 = vpop.xlane.xlu0 %4206
      %v4208 = vsel %vm1817, %v4190, 0.0
      %4209 = vadd.xlane.f32.xlu0 %v4208
      %v4210 = vpop.xlane.xlu0 %4209
      %v4211 = vsel %vm1817, %v4191, 0.0
      %4212 = vadd.xlane.f32.xlu0 %v4211
      %v4213 = vpop.xlane.xlu0 %4212
      %v4214 = vsel %vm1817, %v4192, 0.0
      %4215 = vadd.xlane.f32.xlu0 %v4214
      %v4216 = vpop.xlane.xlu0 %4215
      %v4225 = vrot.slane %v4195, 3
      %v4226 = vrot.slane %v4198, 3
      %v4227 = vrot.slane %v4201, 3
      %v4228 = vrot.slane %v4204, 3
      %v4229 = vrot.slane %v4207, 3
      %v4230 = vrot.slane %v4210, 3
      %v4231 = vrot.slane %v4213, 3
      %v4232 = vrot.slane %v4216, 3
      %v4241 = vadd.f32 %v4165, %v4225
      %v4242 = vadd.f32 %v4166, %v4225
      %v4243 = vadd.f32 %v4167, %v4226
      %v4244 = vadd.f32 %v4168, %v4226
      %v4245 = vadd.f32 %v4169, %v4227
      %v4246 = vadd.f32 %v4170, %v4227
      %v4247 = vadd.f32 %v4171, %v4228
      %v4248 = vadd.f32 %v4172, %v4228
      %v4249 = vadd.f32 %v4173, %v4229
      %v4250 = vadd.f32 %v4174, %v4229
      %v4251 = vadd.f32 %v4175, %v4230
      %v4252 = vadd.f32 %v4176, %v4230
      %v4253 = vadd.f32 %v4177, %v4231
      %v4254 = vadd.f32 %v4178, %v4231
      %v4255 = vadd.f32 %v4179, %v4232
      %v4256 = vadd.f32 %v4180, %v4232
      %v4257 = vlaneseq
      %v4258 = vshrl.u32 %v4257, 7
      %v4259 = vsub.s32 4, %v4258
      %v4260 = vrot.slane %v2078, %v4259
      %v4261 = vmul.f32 %v2041, %v4260
      %v4262 = vmul.f32 %v2042, %v4260
      %v4263 = vmul.f32 %v2044, %v4260
      %v4264 = vmul.f32 %v2045, %v4260
      %v4265 = vmul.f32 %v2047, %v4260
      %v4266 = vmul.f32 %v2048, %v4260
      %v4267 = vmul.f32 %v2050, %v4260
      %v4268 = vmul.f32 %v2051, %v4260
      %v4269 = vmul.f32 %v2053, %v4260
      %v4270 = vmul.f32 %v2054, %v4260
      %v4271 = vmul.f32 %v2056, %v4260
      %v4272 = vmul.f32 %v2057, %v4260
      %v4273 = vmul.f32 %v2059, %v4260
      %v4274 = vmul.f32 %v2060, %v4260
      %v4275 = vmul.f32 %v2062, %v4260
      %v4276 = vmul.f32 %v2063, %v4260
      %v4277 = vsel %vm2549, %v4261, 0.0
      %4278 = vadd.xlane.f32.xlu0 %v4277
      %v4279 = vpop.xlane.xlu0 %4278
      %v4280 = vsel %vm2553, %v4262, 0.0
      %4281 = vadd.xlane.f32.xlu0 %v4280
      %v4282 = vpop.xlane.xlu0 %4281
      %v4283 = vsel %vm2549, %v4263, 0.0
      %4284 = vadd.xlane.f32.xlu0 %v4283
      %v4285 = vpop.xlane.xlu0 %4284
      %v4286 = vsel %vm2553, %v4264, 0.0
      %4287 = vadd.xlane.f32.xlu0 %v4286
      %v4288 = vpop.xlane.xlu0 %4287
      %v4289 = vsel %vm2549, %v4265, 0.0
      %4290 = vadd.xlane.f32.xlu0 %v4289
      %v4291 = vpop.xlane.xlu0 %4290
      %v4292 = vsel %vm2553, %v4266, 0.0
      %4293 = vadd.xlane.f32.xlu0 %v4292
      %v4294 = vpop.xlane.xlu0 %4293
      %v4295 = vsel %vm2549, %v4267, 0.0
      %4296 = vadd.xlane.f32.xlu0 %v4295
      %v4297 = vpop.xlane.xlu0 %4296
      %v4298 = vsel %vm2553, %v4268, 0.0
      %4299 = vadd.xlane.f32.xlu0 %v4298
      %v4300 = vpop.xlane.xlu0 %4299
      %v4301 = vsel %vm2549, %v4269, 0.0
      %4302 = vadd.xlane.f32.xlu0 %v4301
      %v4303 = vpop.xlane.xlu0 %4302
      %v4304 = vsel %vm2553, %v4270, 0.0
      %4305 = vadd.xlane.f32.xlu0 %v4304
      %v4306 = vpop.xlane.xlu0 %4305
      %v4307 = vsel %vm2549, %v4271, 0.0
      %4308 = vadd.xlane.f32.xlu0 %v4307
      %v4309 = vpop.xlane.xlu0 %4308
      %v4310 = vsel %vm2553, %v4272, 0.0
      %4311 = vadd.xlane.f32.xlu0 %v4310
      %v4312 = vpop.xlane.xlu0 %4311
      %v4313 = vsel %vm2549, %v4273, 0.0
      %4314 = vadd.xlane.f32.xlu0 %v4313
      %v4315 = vpop.xlane.xlu0 %4314
      %v4316 = vsel %vm2553, %v4274, 0.0
      %4317 = vadd.xlane.f32.xlu0 %v4316
      %v4318 = vpop.xlane.xlu0 %4317
      %v4319 = vsel %vm2549, %v4275, 0.0
      %4320 = vadd.xlane.f32.xlu0 %v4319
      %v4321 = vpop.xlane.xlu0 %4320
      %v4322 = vsel %vm2553, %v4276, 0.0
      %4323 = vadd.xlane.f32.xlu0 %v4322
      %v4324 = vpop.xlane.xlu0 %4323
      %v4341 = vrot.slane %v4279, 4
      %v4342 = vrot.slane %v4282, 4
      %v4343 = vsel %vm2615, %v4341, %v4342
      %v4344 = vrot.slane %v4285, 4
      %v4345 = vrot.slane %v4288, 4
      %v4346 = vsel %vm2615, %v4344, %v4345
      %v4347 = vrot.slane %v4291, 4
      %v4348 = vrot.slane %v4294, 4
      %v4349 = vsel %vm2615, %v4347, %v4348
      %v4350 = vrot.slane %v4297, 4
      %v4351 = vrot.slane %v4300, 4
      %v4352 = vsel %vm2615, %v4350, %v4351
      %v4353 = vrot.slane %v4303, 4
      %v4354 = vrot.slane %v4306, 4
      %v4355 = vsel %vm2615, %v4353, %v4354
      %v4356 = vrot.slane %v4309, 4
      %v4357 = vrot.slane %v4312, 4
      %v4358 = vsel %vm2615, %v4356, %v4357
      %v4359 = vrot.slane %v4315, 4
      %v4360 = vrot.slane %v4318, 4
      %v4361 = vsel %vm2615, %v4359, %v4360
      %v4362 = vrot.slane %v4321, 4
      %v4363 = vrot.slane %v4324, 4
      %v4364 = vsel %vm2615, %v4362, %v4363
      %v4381 = vadd.f32 %v4241, %v4341
      %v4382 = vadd.f32 %v4242, %v4343
      %v4383 = vadd.f32 %v4243, %v4344
      %v4384 = vadd.f32 %v4244, %v4346
      %v4385 = vadd.f32 %v4245, %v4347
      %v4386 = vadd.f32 %v4246, %v4349
      %v4387 = vadd.f32 %v4247, %v4350
      %v4388 = vadd.f32 %v4248, %v4352
      %v4389 = vadd.f32 %v4249, %v4353
      %v4390 = vadd.f32 %v4250, %v4355
      %v4391 = vadd.f32 %v4251, %v4356
      %v4392 = vadd.f32 %v4252, %v4358
      %v4393 = vadd.f32 %v4253, %v4359
      %v4394 = vadd.f32 %v4254, %v4361
      %v4395 = vadd.f32 %v4255, %v4362
      %v4396 = vadd.f32 %v4256, %v4364
      %v4397 = vlaneseq
      %v4398 = vshrl.u32 %v4397, 7
      %v4399 = vsub.s32 5, %v4398
      %v4400 = vrot.slane %v2078, %v4399
      %v4401 = vmul.f32 %v2041, %v4400
      %v4402 = vmul.f32 %v2042, %v4400
      %v4403 = vmul.f32 %v2044, %v4400
      %v4404 = vmul.f32 %v2045, %v4400
      %v4405 = vmul.f32 %v2047, %v4400
      %v4406 = vmul.f32 %v2048, %v4400
      %v4407 = vmul.f32 %v2050, %v4400
      %v4408 = vmul.f32 %v2051, %v4400
      %v4409 = vmul.f32 %v2053, %v4400
      %v4410 = vmul.f32 %v2054, %v4400
      %v4411 = vmul.f32 %v2056, %v4400
      %v4412 = vmul.f32 %v2057, %v4400
      %v4413 = vmul.f32 %v2059, %v4400
      %v4414 = vmul.f32 %v2060, %v4400
      %v4415 = vmul.f32 %v2062, %v4400
      %v4416 = vmul.f32 %v2063, %v4400
      %v4417 = vsel %vm2692, %v4401, 0.0
      %4418 = vadd.xlane.f32.xlu0 %v4417
      %v4419 = vpop.xlane.xlu0 %4418
      %v4420 = vsel %vm2696, %v4402, 0.0
      %4421 = vadd.xlane.f32.xlu0 %v4420
      %v4422 = vpop.xlane.xlu0 %4421
      %v4423 = vsel %vm2692, %v4403, 0.0
      %4424 = vadd.xlane.f32.xlu0 %v4423
      %v4425 = vpop.xlane.xlu0 %4424
      %v4426 = vsel %vm2696, %v4404, 0.0
      %4427 = vadd.xlane.f32.xlu0 %v4426
      %v4428 = vpop.xlane.xlu0 %4427
      %v4429 = vsel %vm2692, %v4405, 0.0
      %4430 = vadd.xlane.f32.xlu0 %v4429
      %v4431 = vpop.xlane.xlu0 %4430
      %v4432 = vsel %vm2696, %v4406, 0.0
      %4433 = vadd.xlane.f32.xlu0 %v4432
      %v4434 = vpop.xlane.xlu0 %4433
      %v4435 = vsel %vm2692, %v4407, 0.0
      %4436 = vadd.xlane.f32.xlu0 %v4435
      %v4437 = vpop.xlane.xlu0 %4436
      %v4438 = vsel %vm2696, %v4408, 0.0
      %4439 = vadd.xlane.f32.xlu0 %v4438
      %v4440 = vpop.xlane.xlu0 %4439
      %v4441 = vsel %vm2692, %v4409, 0.0
      %4442 = vadd.xlane.f32.xlu0 %v4441
      %v4443 = vpop.xlane.xlu0 %4442
      %v4444 = vsel %vm2696, %v4410, 0.0
      %4445 = vadd.xlane.f32.xlu0 %v4444
      %v4446 = vpop.xlane.xlu0 %4445
      %v4447 = vsel %vm2692, %v4411, 0.0
      %4448 = vadd.xlane.f32.xlu0 %v4447
      %v4449 = vpop.xlane.xlu0 %4448
      %v4450 = vsel %vm2696, %v4412, 0.0
      %4451 = vadd.xlane.f32.xlu0 %v4450
      %v4452 = vpop.xlane.xlu0 %4451
      %v4453 = vsel %vm2692, %v4413, 0.0
      %4454 = vadd.xlane.f32.xlu0 %v4453
      %v4455 = vpop.xlane.xlu0 %4454
      %v4456 = vsel %vm2696, %v4414, 0.0
      %4457 = vadd.xlane.f32.xlu0 %v4456
      %v4458 = vpop.xlane.xlu0 %4457
      %v4459 = vsel %vm2692, %v4415, 0.0
      %4460 = vadd.xlane.f32.xlu0 %v4459
      %v4461 = vpop.xlane.xlu0 %4460
      %v4462 = vsel %vm2696, %v4416, 0.0
      %4463 = vadd.xlane.f32.xlu0 %v4462
      %v4464 = vpop.xlane.xlu0 %4463
      %v4481 = vrot.slane %v4419, 5
      %v4482 = vrot.slane %v4422, 5
      %v4483 = vsel %vm2758, %v4481, %v4482
      %v4484 = vrot.slane %v4425, 5
      %v4485 = vrot.slane %v4428, 5
      %v4486 = vsel %vm2758, %v4484, %v4485
      %v4487 = vrot.slane %v4431, 5
      %v4488 = vrot.slane %v4434, 5
      %v4489 = vsel %vm2758, %v4487, %v4488
      %v4490 = vrot.slane %v4437, 5
      %v4491 = vrot.slane %v4440, 5
      %v4492 = vsel %vm2758, %v4490, %v4491
      %v4493 = vrot.slane %v4443, 5
      %v4494 = vrot.slane %v4446, 5
      %v4495 = vsel %vm2758, %v4493, %v4494
      %v4496 = vrot.slane %v4449, 5
      %v4497 = vrot.slane %v4452, 5
      %v4498 = vsel %vm2758, %v4496, %v4497
      %v4499 = vrot.slane %v4455, 5
      %v4500 = vrot.slane %v4458, 5
      %v4501 = vsel %vm2758, %v4499, %v4500
      %v4502 = vrot.slane %v4461, 5
      %v4503 = vrot.slane %v4464, 5
      %v4504 = vsel %vm2758, %v4502, %v4503
      %v4521 = vadd.f32 %v4381, %v4481
      %v4522 = vadd.f32 %v4382, %v4483
      %v4523 = vadd.f32 %v4383, %v4484
      %v4524 = vadd.f32 %v4384, %v4486
      %v4525 = vadd.f32 %v4385, %v4487
      %v4526 = vadd.f32 %v4386, %v4489
      %v4527 = vadd.f32 %v4387, %v4490
      %v4528 = vadd.f32 %v4388, %v4492
      %v4529 = vadd.f32 %v4389, %v4493
      %v4530 = vadd.f32 %v4390, %v4495
      %v4531 = vadd.f32 %v4391, %v4496
      %v4532 = vadd.f32 %v4392, %v4498
      %v4533 = vadd.f32 %v4393, %v4499
      %v4534 = vadd.f32 %v4394, %v4501
      %v4535 = vadd.f32 %v4395, %v4502
      %v4536 = vadd.f32 %v4396, %v4504
      %v4537 = vlaneseq
      %v4538 = vshrl.u32 %v4537, 7
      %v4539 = vsub.s32 6, %v4538
      %v4540 = vrot.slane %v2078, %v4539
      %v4541 = vmul.f32 %v2041, %v4540
      %v4542 = vmul.f32 %v2042, %v4540
      %v4543 = vmul.f32 %v2044, %v4540
      %v4544 = vmul.f32 %v2045, %v4540
      %v4545 = vmul.f32 %v2047, %v4540
      %v4546 = vmul.f32 %v2048, %v4540
      %v4547 = vmul.f32 %v2050, %v4540
      %v4548 = vmul.f32 %v2051, %v4540
      %v4549 = vmul.f32 %v2053, %v4540
      %v4550 = vmul.f32 %v2054, %v4540
      %v4551 = vmul.f32 %v2056, %v4540
      %v4552 = vmul.f32 %v2057, %v4540
      %v4553 = vmul.f32 %v2059, %v4540
      %v4554 = vmul.f32 %v2060, %v4540
      %v4555 = vmul.f32 %v2062, %v4540
      %v4556 = vmul.f32 %v2063, %v4540
      %v4557 = vsel %vm2835, %v4541, 0.0
      %4558 = vadd.xlane.f32.xlu0 %v4557
      %v4559 = vpop.xlane.xlu0 %4558
      %v4560 = vsel %vm2839, %v4542, 0.0
      %4561 = vadd.xlane.f32.xlu0 %v4560
      %v4562 = vpop.xlane.xlu0 %4561
      %v4563 = vsel %vm2835, %v4543, 0.0
      %4564 = vadd.xlane.f32.xlu0 %v4563
      %v4565 = vpop.xlane.xlu0 %4564
      %v4566 = vsel %vm2839, %v4544, 0.0
      %4567 = vadd.xlane.f32.xlu0 %v4566
      %v4568 = vpop.xlane.xlu0 %4567
      %v4569 = vsel %vm2835, %v4545, 0.0
      %4570 = vadd.xlane.f32.xlu0 %v4569
      %v4571 = vpop.xlane.xlu0 %4570
      %v4572 = vsel %vm2839, %v4546, 0.0
      %4573 = vadd.xlane.f32.xlu0 %v4572
      %v4574 = vpop.xlane.xlu0 %4573
      %v4575 = vsel %vm2835, %v4547, 0.0
      %4576 = vadd.xlane.f32.xlu0 %v4575
      %v4577 = vpop.xlane.xlu0 %4576
      %v4578 = vsel %vm2839, %v4548, 0.0
      %4579 = vadd.xlane.f32.xlu0 %v4578
      %v4580 = vpop.xlane.xlu0 %4579
      %v4581 = vsel %vm2835, %v4549, 0.0
      %4582 = vadd.xlane.f32.xlu0 %v4581
      %v4583 = vpop.xlane.xlu0 %4582
      %v4584 = vsel %vm2839, %v4550, 0.0
      %4585 = vadd.xlane.f32.xlu0 %v4584
      %v4586 = vpop.xlane.xlu0 %4585
      %v4587 = vsel %vm2835, %v4551, 0.0
      %4588 = vadd.xlane.f32.xlu0 %v4587
      %v4589 = vpop.xlane.xlu0 %4588
      %v4590 = vsel %vm2839, %v4552, 0.0
      %4591 = vadd.xlane.f32.xlu0 %v4590
      %v4592 = vpop.xlane.xlu0 %4591
      %v4593 = vsel %vm2835, %v4553, 0.0
      %4594 = vadd.xlane.f32.xlu0 %v4593
      %v4595 = vpop.xlane.xlu0 %4594
      %v4596 = vsel %vm2839, %v4554, 0.0
      %4597 = vadd.xlane.f32.xlu0 %v4596
      %v4598 = vpop.xlane.xlu0 %4597
      %v4599 = vsel %vm2835, %v4555, 0.0
      %4600 = vadd.xlane.f32.xlu0 %v4599
      %v4601 = vpop.xlane.xlu0 %4600
      %v4602 = vsel %vm2839, %v4556, 0.0
      %4603 = vadd.xlane.f32.xlu0 %v4602
      %v4604 = vpop.xlane.xlu0 %4603
      %v4621 = vrot.slane %v4559, 6
      %v4622 = vrot.slane %v4562, 6
      %v4623 = vsel %vm1821, %v4621, %v4622
      %v4624 = vrot.slane %v4565, 6
      %v4625 = vrot.slane %v4568, 6
      %v4626 = vsel %vm1821, %v4624, %v4625
      %v4627 = vrot.slane %v4571, 6
      %v4628 = vrot.slane %v4574, 6
      %v4629 = vsel %vm1821, %v4627, %v4628
      %v4630 = vrot.slane %v4577, 6
      %v4631 = vrot.slane %v4580, 6
      %v4632 = vsel %vm1821, %v4630, %v4631
      %v4633 = vrot.slane %v4583, 6
      %v4634 = vrot.slane %v4586, 6
      %v4635 = vsel %vm1821, %v4633, %v4634
      %v4636 = vrot.slane %v4589, 6
      %v4637 = vrot.slane %v4592, 6
      %v4638 = vsel %vm1821, %v4636, %v4637
      %v4639 = vrot.slane %v4595, 6
      %v4640 = vrot.slane %v4598, 6
      %v4641 = vsel %vm1821, %v4639, %v4640
      %v4642 = vrot.slane %v4601, 6
      %v4643 = vrot.slane %v4604, 6
      %v4644 = vsel %vm1821, %v4642, %v4643
      %v4661 = vadd.f32 %v4521, %v4621
      %v4662 = vadd.f32 %v4522, %v4623
      %v4663 = vadd.f32 %v4523, %v4624
      %v4664 = vadd.f32 %v4524, %v4626
      %v4665 = vadd.f32 %v4525, %v4627
      %v4666 = vadd.f32 %v4526, %v4629
      %v4667 = vadd.f32 %v4527, %v4630
      %v4668 = vadd.f32 %v4528, %v4632
      %v4669 = vadd.f32 %v4529, %v4633
      %v4670 = vadd.f32 %v4530, %v4635
      %v4671 = vadd.f32 %v4531, %v4636
      %v4672 = vadd.f32 %v4532, %v4638
      %v4673 = vadd.f32 %v4533, %v4639
      %v4674 = vadd.f32 %v4534, %v4641
      %v4675 = vadd.f32 %v4535, %v4642
      %v4676 = vadd.f32 %v4536, %v4644
      %v4677 = vlaneseq
      %v4678 = vshrl.u32 %v4677, 7
      %v4679 = vsub.s32 0, %v4678
      %v4680 = vrot.slane %v2079, %v4679
      %v4681 = vmul.f32 %v2043, %v4680
      %v4682 = vmul.f32 %v2044, %v4680
      %v4683 = vmul.f32 %v2046, %v4680
      %v4684 = vmul.f32 %v2047, %v4680
      %v4685 = vmul.f32 %v2049, %v4680
      %v4686 = vmul.f32 %v2050, %v4680
      %v4687 = vmul.f32 %v2052, %v4680
      %v4688 = vmul.f32 %v2053, %v4680
      %v4689 = vmul.f32 %v2055, %v4680
      %v4690 = vmul.f32 %v2056, %v4680
      %v4691 = vmul.f32 %v2058, %v4680
      %v4692 = vmul.f32 %v2059, %v4680
      %v4693 = vmul.f32 %v2061, %v4680
      %v4694 = vmul.f32 %v2062, %v4680
      %v4695 = vmul.f32 %v2064, %v4680
      %v4696 = vmul.f32 %v2065, %v4680
      %v4697 = vsel %vm2103, %v4681, 0.0
      %4698 = vadd.xlane.f32.xlu0 %v4697
      %v4699 = vpop.xlane.xlu0 %4698
      %v4700 = vsel %vm2107, %v4682, 0.0
      %4701 = vadd.xlane.f32.xlu0 %v4700
      %v4702 = vpop.xlane.xlu0 %4701
      %v4703 = vsel %vm2103, %v4683, 0.0
      %4704 = vadd.xlane.f32.xlu0 %v4703
      %v4705 = vpop.xlane.xlu0 %4704
      %v4706 = vsel %vm2107, %v4684, 0.0
      %4707 = vadd.xlane.f32.xlu0 %v4706
      %v4708 = vpop.xlane.xlu0 %4707
      %v4709 = vsel %vm2103, %v4685, 0.0
      %4710 = vadd.xlane.f32.xlu0 %v4709
      %v4711 = vpop.xlane.xlu0 %4710
      %v4712 = vsel %vm2107, %v4686, 0.0
      %4713 = vadd.xlane.f32.xlu0 %v4712
      %v4714 = vpop.xlane.xlu0 %4713
      %v4715 = vsel %vm2103, %v4687, 0.0
      %4716 = vadd.xlane.f32.xlu0 %v4715
      %v4717 = vpop.xlane.xlu0 %4716
      %v4718 = vsel %vm2107, %v4688, 0.0
      %4719 = vadd.xlane.f32.xlu0 %v4718
      %v4720 = vpop.xlane.xlu0 %4719
      %v4721 = vsel %vm2103, %v4689, 0.0
      %4722 = vadd.xlane.f32.xlu0 %v4721
      %v4723 = vpop.xlane.xlu0 %4722
      %v4724 = vsel %vm2107, %v4690, 0.0
      %4725 = vadd.xlane.f32.xlu0 %v4724
      %v4726 = vpop.xlane.xlu0 %4725
      %v4727 = vsel %vm2103, %v4691, 0.0
      %4728 = vadd.xlane.f32.xlu0 %v4727
      %v4729 = vpop.xlane.xlu0 %4728
      %v4730 = vsel %vm2107, %v4692, 0.0
      %4731 = vadd.xlane.f32.xlu0 %v4730
      %v4732 = vpop.xlane.xlu0 %4731
      %v4733 = vsel %vm2103, %v4693, 0.0
      %4734 = vadd.xlane.f32.xlu0 %v4733
      %v4735 = vpop.xlane.xlu0 %4734
      %v4736 = vsel %vm2107, %v4694, 0.0
      %4737 = vadd.xlane.f32.xlu0 %v4736
      %v4738 = vpop.xlane.xlu0 %4737
      %v4739 = vsel %vm2103, %v4695, 0.0
      %4740 = vadd.xlane.f32.xlu0 %v4739
      %v4741 = vpop.xlane.xlu0 %4740
      %v4742 = vsel %vm2107, %v4696, 0.0
      %4743 = vadd.xlane.f32.xlu0 %v4742
      %v4744 = vpop.xlane.xlu0 %4743
      %v4745 = vadd.f32 %v4661, %v4699
      %v4746 = vadd.f32 %v4662, %v4702
      %v4747 = vadd.f32 %v4663, %v4705
      %v4748 = vadd.f32 %v4664, %v4708
      %v4749 = vadd.f32 %v4665, %v4711
      %v4750 = vadd.f32 %v4666, %v4714
      %v4751 = vadd.f32 %v4667, %v4717
      %v4752 = vadd.f32 %v4668, %v4720
      %v4753 = vadd.f32 %v4669, %v4723
      %v4754 = vadd.f32 %v4670, %v4726
      %v4755 = vadd.f32 %v4671, %v4729
      %v4756 = vadd.f32 %v4672, %v4732
      %v4757 = vadd.f32 %v4673, %v4735
      %v4758 = vadd.f32 %v4674, %v4738
      %v4759 = vadd.f32 %v4675, %v4741
      %v4760 = vadd.f32 %v4676, %v4744
      %v4761 = vlaneseq
      %v4762 = vshrl.u32 %v4761, 7
      %v4763 = vsub.s32 1, %v4762
      %v4764 = vrot.slane %v2079, %v4763
      %v4765 = vmul.f32 %v2043, %v4764
      %v4766 = vmul.f32 %v2044, %v4764
      %v4767 = vmul.f32 %v2046, %v4764
      %v4768 = vmul.f32 %v2047, %v4764
      %v4769 = vmul.f32 %v2049, %v4764
      %v4770 = vmul.f32 %v2050, %v4764
      %v4771 = vmul.f32 %v2052, %v4764
      %v4772 = vmul.f32 %v2053, %v4764
      %v4773 = vmul.f32 %v2055, %v4764
      %v4774 = vmul.f32 %v2056, %v4764
      %v4775 = vmul.f32 %v2058, %v4764
      %v4776 = vmul.f32 %v2059, %v4764
      %v4777 = vmul.f32 %v2061, %v4764
      %v4778 = vmul.f32 %v2062, %v4764
      %v4779 = vmul.f32 %v2064, %v4764
      %v4780 = vmul.f32 %v2065, %v4764
      %v4781 = vsel %vm2189, %v4765, 0.0
      %4782 = vadd.xlane.f32.xlu0 %v4781
      %v4783 = vpop.xlane.xlu0 %4782
      %v4784 = vsel %vm2193, %v4766, 0.0
      %4785 = vadd.xlane.f32.xlu0 %v4784
      %v4786 = vpop.xlane.xlu0 %4785
      %v4787 = vsel %vm2189, %v4767, 0.0
      %4788 = vadd.xlane.f32.xlu0 %v4787
      %v4789 = vpop.xlane.xlu0 %4788
      %v4790 = vsel %vm2193, %v4768, 0.0
      %4791 = vadd.xlane.f32.xlu0 %v4790
      %v4792 = vpop.xlane.xlu0 %4791
      %v4793 = vsel %vm2189, %v4769, 0.0
      %4794 = vadd.xlane.f32.xlu0 %v4793
      %v4795 = vpop.xlane.xlu0 %4794
      %v4796 = vsel %vm2193, %v4770, 0.0
      %4797 = vadd.xlane.f32.xlu0 %v4796
      %v4798 = vpop.xlane.xlu0 %4797
      %v4799 = vsel %vm2189, %v4771, 0.0
      %4800 = vadd.xlane.f32.xlu0 %v4799
      %v4801 = vpop.xlane.xlu0 %4800
      %v4802 = vsel %vm2193, %v4772, 0.0
      %4803 = vadd.xlane.f32.xlu0 %v4802
      %v4804 = vpop.xlane.xlu0 %4803
      %v4805 = vsel %vm2189, %v4773, 0.0
      %4806 = vadd.xlane.f32.xlu0 %v4805
      %v4807 = vpop.xlane.xlu0 %4806
      %v4808 = vsel %vm2193, %v4774, 0.0
      %4809 = vadd.xlane.f32.xlu0 %v4808
      %v4810 = vpop.xlane.xlu0 %4809
      %v4811 = vsel %vm2189, %v4775, 0.0
      %4812 = vadd.xlane.f32.xlu0 %v4811
      %v4813 = vpop.xlane.xlu0 %4812
      %v4814 = vsel %vm2193, %v4776, 0.0
      %4815 = vadd.xlane.f32.xlu0 %v4814
      %v4816 = vpop.xlane.xlu0 %4815
      %v4817 = vsel %vm2189, %v4777, 0.0
      %4818 = vadd.xlane.f32.xlu0 %v4817
      %v4819 = vpop.xlane.xlu0 %4818
      %v4820 = vsel %vm2193, %v4778, 0.0
      %4821 = vadd.xlane.f32.xlu0 %v4820
      %v4822 = vpop.xlane.xlu0 %4821
      %v4823 = vsel %vm2189, %v4779, 0.0
      %4824 = vadd.xlane.f32.xlu0 %v4823
      %v4825 = vpop.xlane.xlu0 %4824
      %v4826 = vsel %vm2193, %v4780, 0.0
      %4827 = vadd.xlane.f32.xlu0 %v4826
      %v4828 = vpop.xlane.xlu0 %4827
      %v4845 = vrot.slane %v4783, 1
      %v4846 = vrot.slane %v4786, 1
      %v4847 = vsel %vm487, %v4845, %v4846
      %v4848 = vrot.slane %v4789, 1
      %v4849 = vrot.slane %v4792, 1
      %v4850 = vsel %vm487, %v4848, %v4849
      %v4851 = vrot.slane %v4795, 1
      %v4852 = vrot.slane %v4798, 1
      %v4853 = vsel %vm487, %v4851, %v4852
      %v4854 = vrot.slane %v4801, 1
      %v4855 = vrot.slane %v4804, 1
      %v4856 = vsel %vm487, %v4854, %v4855
      %v4857 = vrot.slane %v4807, 1
      %v4858 = vrot.slane %v4810, 1
      %v4859 = vsel %vm487, %v4857, %v4858
      %v4860 = vrot.slane %v4813, 1
      %v4861 = vrot.slane %v4816, 1
      %v4862 = vsel %vm487, %v4860, %v4861
      %v4863 = vrot.slane %v4819, 1
      %v4864 = vrot.slane %v4822, 1
      %v4865 = vsel %vm487, %v4863, %v4864
      %v4866 = vrot.slane %v4825, 1
      %v4867 = vrot.slane %v4828, 1
      %v4868 = vsel %vm487, %v4866, %v4867
      %v4885 = vadd.f32 %v4745, %v4847
      %v4886 = vadd.f32 %v4746, %v4846
      %v4887 = vadd.f32 %v4747, %v4850
      %v4888 = vadd.f32 %v4748, %v4849
      %v4889 = vadd.f32 %v4749, %v4853
      %v4890 = vadd.f32 %v4750, %v4852
      %v4891 = vadd.f32 %v4751, %v4856
      %v4892 = vadd.f32 %v4752, %v4855
      %v4893 = vadd.f32 %v4753, %v4859
      %v4894 = vadd.f32 %v4754, %v4858
      %v4895 = vadd.f32 %v4755, %v4862
      %v4896 = vadd.f32 %v4756, %v4861
      %v4897 = vadd.f32 %v4757, %v4865
      %v4898 = vadd.f32 %v4758, %v4864
      %v4899 = vadd.f32 %v4759, %v4868
      %v4900 = vadd.f32 %v4760, %v4867
      %v4901 = vlaneseq
      %v4902 = vshrl.u32 %v4901, 7
      %v4903 = vsub.s32 2, %v4902
      %v4904 = vrot.slane %v2079, %v4903
      %v4905 = vmul.f32 %v2043, %v4904
      %v4906 = vmul.f32 %v2044, %v4904
      %v4907 = vmul.f32 %v2046, %v4904
      %v4908 = vmul.f32 %v2047, %v4904
      %v4909 = vmul.f32 %v2049, %v4904
      %v4910 = vmul.f32 %v2050, %v4904
      %v4911 = vmul.f32 %v2052, %v4904
      %v4912 = vmul.f32 %v2053, %v4904
      %v4913 = vmul.f32 %v2055, %v4904
      %v4914 = vmul.f32 %v2056, %v4904
      %v4915 = vmul.f32 %v2058, %v4904
      %v4916 = vmul.f32 %v2059, %v4904
      %v4917 = vmul.f32 %v2061, %v4904
      %v4918 = vmul.f32 %v2062, %v4904
      %v4919 = vmul.f32 %v2064, %v4904
      %v4920 = vmul.f32 %v2065, %v4904
      %v4921 = vsel %vm2331, %v4905, 0.0
      %4922 = vadd.xlane.f32.xlu0 %v4921
      %v4923 = vpop.xlane.xlu0 %4922
      %v4924 = vsel %vm2335, %v4906, 0.0
      %4925 = vadd.xlane.f32.xlu0 %v4924
      %v4926 = vpop.xlane.xlu0 %4925
      %v4927 = vsel %vm2331, %v4907, 0.0
      %4928 = vadd.xlane.f32.xlu0 %v4927
      %v4929 = vpop.xlane.xlu0 %4928
      %v4930 = vsel %vm2335, %v4908, 0.0
      %4931 = vadd.xlane.f32.xlu0 %v4930
      %v4932 = vpop.xlane.xlu0 %4931
      %v4933 = vsel %vm2331, %v4909, 0.0
      %4934 = vadd.xlane.f32.xlu0 %v4933
      %v4935 = vpop.xlane.xlu0 %4934
      %v4936 = vsel %vm2335, %v4910, 0.0
      %4937 = vadd.xlane.f32.xlu0 %v4936
      %v4938 = vpop.xlane.xlu0 %4937
      %v4939 = vsel %vm2331, %v4911, 0.0
      %4940 = vadd.xlane.f32.xlu0 %v4939
      %v4941 = vpop.xlane.xlu0 %4940
      %v4942 = vsel %vm2335, %v4912, 0.0
      %4943 = vadd.xlane.f32.xlu0 %v4942
      %v4944 = vpop.xlane.xlu0 %4943
      %v4945 = vsel %vm2331, %v4913, 0.0
      %4946 = vadd.xlane.f32.xlu0 %v4945
      %v4947 = vpop.xlane.xlu0 %4946
      %v4948 = vsel %vm2335, %v4914, 0.0
      %4949 = vadd.xlane.f32.xlu0 %v4948
      %v4950 = vpop.xlane.xlu0 %4949
      %v4951 = vsel %vm2331, %v4915, 0.0
      %4952 = vadd.xlane.f32.xlu0 %v4951
      %v4953 = vpop.xlane.xlu0 %4952
      %v4954 = vsel %vm2335, %v4916, 0.0
      %4955 = vadd.xlane.f32.xlu0 %v4954
      %v4956 = vpop.xlane.xlu0 %4955
      %v4957 = vsel %vm2331, %v4917, 0.0
      %4958 = vadd.xlane.f32.xlu0 %v4957
      %v4959 = vpop.xlane.xlu0 %4958
      %v4960 = vsel %vm2335, %v4918, 0.0
      %4961 = vadd.xlane.f32.xlu0 %v4960
      %v4962 = vpop.xlane.xlu0 %4961
      %v4963 = vsel %vm2331, %v4919, 0.0
      %4964 = vadd.xlane.f32.xlu0 %v4963
      %v4965 = vpop.xlane.xlu0 %4964
      %v4966 = vsel %vm2335, %v4920, 0.0
      %4967 = vadd.xlane.f32.xlu0 %v4966
      %v4968 = vpop.xlane.xlu0 %4967
      %v4985 = vrot.slane %v4923, 2
      %v4986 = vrot.slane %v4926, 2
      %v4987 = vsel %vm760, %v4985, %v4986
      %v4988 = vrot.slane %v4929, 2
      %v4989 = vrot.slane %v4932, 2
      %v4990 = vsel %vm760, %v4988, %v4989
      %v4991 = vrot.slane %v4935, 2
      %v4992 = vrot.slane %v4938, 2
      %v4993 = vsel %vm760, %v4991, %v4992
      %v4994 = vrot.slane %v4941, 2
      %v4995 = vrot.slane %v4944, 2
      %v4996 = vsel %vm760, %v4994, %v4995
      %v4997 = vrot.slane %v4947, 2
      %v4998 = vrot.slane %v4950, 2
      %v4999 = vsel %vm760, %v4997, %v4998
      %v5000 = vrot.slane %v4953, 2
      %v5001 = vrot.slane %v4956, 2
      %v5002 = vsel %vm760, %v5000, %v5001
      %v5003 = vrot.slane %v4959, 2
      %v5004 = vrot.slane %v4962, 2
      %v5005 = vsel %vm760, %v5003, %v5004
      %v5006 = vrot.slane %v4965, 2
      %v5007 = vrot.slane %v4968, 2
      %v5008 = vsel %vm760, %v5006, %v5007
      %v5025 = vadd.f32 %v4885, %v4987
      %v5026 = vadd.f32 %v4886, %v4986
      %v5027 = vadd.f32 %v4887, %v4990
      %v5028 = vadd.f32 %v4888, %v4989
      %v5029 = vadd.f32 %v4889, %v4993
      %v5030 = vadd.f32 %v4890, %v4992
      %v5031 = vadd.f32 %v4891, %v4996
      %v5032 = vadd.f32 %v4892, %v4995
      %v5033 = vadd.f32 %v4893, %v4999
      %v5034 = vadd.f32 %v4894, %v4998
      %v5035 = vadd.f32 %v4895, %v5002
      %v5036 = vadd.f32 %v4896, %v5001
      %v5037 = vadd.f32 %v4897, %v5005
      %v5038 = vadd.f32 %v4898, %v5004
      %v5039 = vadd.f32 %v4899, %v5008
      %v5040 = vadd.f32 %v4900, %v5007
      %v5041 = vlaneseq
      %v5042 = vshrl.u32 %v5041, 7
      %v5043 = vsub.s32 3, %v5042
      %v5044 = vrot.slane %v2079, %v5043
      %v5045 = vmul.f32 %v2044, %v5044
      %v5046 = vmul.f32 %v2047, %v5044
      %v5047 = vmul.f32 %v2050, %v5044
      %v5048 = vmul.f32 %v2053, %v5044
      %v5049 = vmul.f32 %v2056, %v5044
      %v5050 = vmul.f32 %v2059, %v5044
      %v5051 = vmul.f32 %v2062, %v5044
      %v5052 = vmul.f32 %v2065, %v5044
      %v5053 = vsel %vm1817, %v5045, 0.0
      %5054 = vadd.xlane.f32.xlu0 %v5053
      %v5055 = vpop.xlane.xlu0 %5054
      %v5056 = vsel %vm1817, %v5046, 0.0
      %5057 = vadd.xlane.f32.xlu0 %v5056
      %v5058 = vpop.xlane.xlu0 %5057
      %v5059 = vsel %vm1817, %v5047, 0.0
      %5060 = vadd.xlane.f32.xlu0 %v5059
      %v5061 = vpop.xlane.xlu0 %5060
      %v5062 = vsel %vm1817, %v5048, 0.0
      %5063 = vadd.xlane.f32.xlu0 %v5062
      %v5064 = vpop.xlane.xlu0 %5063
      %v5065 = vsel %vm1817, %v5049, 0.0
      %5066 = vadd.xlane.f32.xlu0 %v5065
      %v5067 = vpop.xlane.xlu0 %5066
      %v5068 = vsel %vm1817, %v5050, 0.0
      %5069 = vadd.xlane.f32.xlu0 %v5068
      %v5070 = vpop.xlane.xlu0 %5069
      %v5071 = vsel %vm1817, %v5051, 0.0
      %5072 = vadd.xlane.f32.xlu0 %v5071
      %v5073 = vpop.xlane.xlu0 %5072
      %v5074 = vsel %vm1817, %v5052, 0.0
      %5075 = vadd.xlane.f32.xlu0 %v5074
      %v5076 = vpop.xlane.xlu0 %5075
      %v5085 = vrot.slane %v5055, 3
      %v5086 = vrot.slane %v5058, 3
      %v5087 = vrot.slane %v5061, 3
      %v5088 = vrot.slane %v5064, 3
      %v5089 = vrot.slane %v5067, 3
      %v5090 = vrot.slane %v5070, 3
      %v5091 = vrot.slane %v5073, 3
      %v5092 = vrot.slane %v5076, 3
      %v5101 = vadd.f32 %v5025, %v5085
      %v5102 = vadd.f32 %v5026, %v5085
      %v5103 = vadd.f32 %v5027, %v5086
      %v5104 = vadd.f32 %v5028, %v5086
      %v5105 = vadd.f32 %v5029, %v5087
      %v5106 = vadd.f32 %v5030, %v5087
      %v5107 = vadd.f32 %v5031, %v5088
      %v5108 = vadd.f32 %v5032, %v5088
      %v5109 = vadd.f32 %v5033, %v5089
      %v5110 = vadd.f32 %v5034, %v5089
      %v5111 = vadd.f32 %v5035, %v5090
      %v5112 = vadd.f32 %v5036, %v5090
      %v5113 = vadd.f32 %v5037, %v5091
      %v5114 = vadd.f32 %v5038, %v5091
      %v5115 = vadd.f32 %v5039, %v5092
      %v5116 = vadd.f32 %v5040, %v5092
      %v5117 = vlaneseq
      %v5118 = vshrl.u32 %v5117, 7
      %v5119 = vsub.s32 4, %v5118
      %v5120 = vrot.slane %v2079, %v5119
      %v5121 = vmul.f32 %v2044, %v5120
      %v5122 = vmul.f32 %v2045, %v5120
      %v5123 = vmul.f32 %v2047, %v5120
      %v5124 = vmul.f32 %v2048, %v5120
      %v5125 = vmul.f32 %v2050, %v5120
      %v5126 = vmul.f32 %v2051, %v5120
      %v5127 = vmul.f32 %v2053, %v5120
      %v5128 = vmul.f32 %v2054, %v5120
      %v5129 = vmul.f32 %v2056, %v5120
      %v5130 = vmul.f32 %v2057, %v5120
      %v5131 = vmul.f32 %v2059, %v5120
      %v5132 = vmul.f32 %v2060, %v5120
      %v5133 = vmul.f32 %v2062, %v5120
      %v5134 = vmul.f32 %v2063, %v5120
      %v5135 = vmul.f32 %v2065, %v5120
      %v5136 = vmul.f32 %v2066, %v5120
      %v5137 = vsel %vm2549, %v5121, 0.0
      %5138 = vadd.xlane.f32.xlu0 %v5137
      %v5139 = vpop.xlane.xlu0 %5138
      %v5140 = vsel %vm2553, %v5122, 0.0
      %5141 = vadd.xlane.f32.xlu0 %v5140
      %v5142 = vpop.xlane.xlu0 %5141
      %v5143 = vsel %vm2549, %v5123, 0.0
      %5144 = vadd.xlane.f32.xlu0 %v5143
      %v5145 = vpop.xlane.xlu0 %5144
      %v5146 = vsel %vm2553, %v5124, 0.0
      %5147 = vadd.xlane.f32.xlu0 %v5146
      %v5148 = vpop.xlane.xlu0 %5147
      %v5149 = vsel %vm2549, %v5125, 0.0
      %5150 = vadd.xlane.f32.xlu0 %v5149
      %v5151 = vpop.xlane.xlu0 %5150
      %v5152 = vsel %vm2553, %v5126, 0.0
      %5153 = vadd.xlane.f32.xlu0 %v5152
      %v5154 = vpop.xlane.xlu0 %5153
      %v5155 = vsel %vm2549, %v5127, 0.0
      %5156 = vadd.xlane.f32.xlu0 %v5155
      %v5157 = vpop.xlane.xlu0 %5156
      %v5158 = vsel %vm2553, %v5128, 0.0
      %5159 = vadd.xlane.f32.xlu0 %v5158
      %v5160 = vpop.xlane.xlu0 %5159
      %v5161 = vsel %vm2549, %v5129, 0.0
      %5162 = vadd.xlane.f32.xlu0 %v5161
      %v5163 = vpop.xlane.xlu0 %5162
      %v5164 = vsel %vm2553, %v5130, 0.0
      %5165 = vadd.xlane.f32.xlu0 %v5164
      %v5166 = vpop.xlane.xlu0 %5165
      %v5167 = vsel %vm2549, %v5131, 0.0
      %5168 = vadd.xlane.f32.xlu0 %v5167
      %v5169 = vpop.xlane.xlu0 %5168
      %v5170 = vsel %vm2553, %v5132, 0.0
      %5171 = vadd.xlane.f32.xlu0 %v5170
      %v5172 = vpop.xlane.xlu0 %5171
      %v5173 = vsel %vm2549, %v5133, 0.0
      %5174 = vadd.xlane.f32.xlu0 %v5173
      %v5175 = vpop.xlane.xlu0 %5174
      %v5176 = vsel %vm2553, %v5134, 0.0
      %5177 = vadd.xlane.f32.xlu0 %v5176
      %v5178 = vpop.xlane.xlu0 %5177
      %v5179 = vsel %vm2549, %v5135, 0.0
      %5180 = vadd.xlane.f32.xlu0 %v5179
      %v5181 = vpop.xlane.xlu0 %5180
      %v5182 = vsel %vm2553, %v5136, 0.0
      %5183 = vadd.xlane.f32.xlu0 %v5182
      %v5184 = vpop.xlane.xlu0 %5183
      %v5201 = vrot.slane %v5139, 4
      %v5202 = vrot.slane %v5142, 4
      %v5203 = vsel %vm2615, %v5201, %v5202
      %v5204 = vrot.slane %v5145, 4
      %v5205 = vrot.slane %v5148, 4
      %v5206 = vsel %vm2615, %v5204, %v5205
      %v5207 = vrot.slane %v5151, 4
      %v5208 = vrot.slane %v5154, 4
      %v5209 = vsel %vm2615, %v5207, %v5208
      %v5210 = vrot.slane %v5157, 4
      %v5211 = vrot.slane %v5160, 4
      %v5212 = vsel %vm2615, %v5210, %v5211
      %v5213 = vrot.slane %v5163, 4
      %v5214 = vrot.slane %v5166, 4
      %v5215 = vsel %vm2615, %v5213, %v5214
      %v5216 = vrot.slane %v5169, 4
      %v5217 = vrot.slane %v5172, 4
      %v5218 = vsel %vm2615, %v5216, %v5217
      %v5219 = vrot.slane %v5175, 4
      %v5220 = vrot.slane %v5178, 4
      %v5221 = vsel %vm2615, %v5219, %v5220
      %v5222 = vrot.slane %v5181, 4
      %v5223 = vrot.slane %v5184, 4
      %v5224 = vsel %vm2615, %v5222, %v5223
      %v5241 = vadd.f32 %v5101, %v5201
      %v5242 = vadd.f32 %v5102, %v5203
      %v5243 = vadd.f32 %v5103, %v5204
      %v5244 = vadd.f32 %v5104, %v5206
      %v5245 = vadd.f32 %v5105, %v5207
      %v5246 = vadd.f32 %v5106, %v5209
      %v5247 = vadd.f32 %v5107, %v5210
      %v5248 = vadd.f32 %v5108, %v5212
      %v5249 = vadd.f32 %v5109, %v5213
      %v5250 = vadd.f32 %v5110, %v5215
      %v5251 = vadd.f32 %v5111, %v5216
      %v5252 = vadd.f32 %v5112, %v5218
      %v5253 = vadd.f32 %v5113, %v5219
      %v5254 = vadd.f32 %v5114, %v5221
      %v5255 = vadd.f32 %v5115, %v5222
      %v5256 = vadd.f32 %v5116, %v5224
      %v5257 = vlaneseq
      %v5258 = vshrl.u32 %v5257, 7
      %v5259 = vsub.s32 5, %v5258
      %v5260 = vrot.slane %v2079, %v5259
      %v5261 = vmul.f32 %v2044, %v5260
      %v5262 = vmul.f32 %v2045, %v5260
      %v5263 = vmul.f32 %v2047, %v5260
      %v5264 = vmul.f32 %v2048, %v5260
      %v5265 = vmul.f32 %v2050, %v5260
      %v5266 = vmul.f32 %v2051, %v5260
      %v5267 = vmul.f32 %v2053, %v5260
      %v5268 = vmul.f32 %v2054, %v5260
      %v5269 = vmul.f32 %v2056, %v5260
      %v5270 = vmul.f32 %v2057, %v5260
      %v5271 = vmul.f32 %v2059, %v5260
      %v5272 = vmul.f32 %v2060, %v5260
      %v5273 = vmul.f32 %v2062, %v5260
      %v5274 = vmul.f32 %v2063, %v5260
      %v5275 = vmul.f32 %v2065, %v5260
      %v5276 = vmul.f32 %v2066, %v5260
      %v5277 = vsel %vm2692, %v5261, 0.0
      %5278 = vadd.xlane.f32.xlu0 %v5277
      %v5279 = vpop.xlane.xlu0 %5278
      %v5280 = vsel %vm2696, %v5262, 0.0
      %5281 = vadd.xlane.f32.xlu0 %v5280
      %v5282 = vpop.xlane.xlu0 %5281
      %v5283 = vsel %vm2692, %v5263, 0.0
      %5284 = vadd.xlane.f32.xlu0 %v5283
      %v5285 = vpop.xlane.xlu0 %5284
      %v5286 = vsel %vm2696, %v5264, 0.0
      %5287 = vadd.xlane.f32.xlu0 %v5286
      %v5288 = vpop.xlane.xlu0 %5287
      %v5289 = vsel %vm2692, %v5265, 0.0
      %5290 = vadd.xlane.f32.xlu0 %v5289
      %v5291 = vpop.xlane.xlu0 %5290
      %v5292 = vsel %vm2696, %v5266, 0.0
      %5293 = vadd.xlane.f32.xlu0 %v5292
      %v5294 = vpop.xlane.xlu0 %5293
      %v5295 = vsel %vm2692, %v5267, 0.0
      %5296 = vadd.xlane.f32.xlu0 %v5295
      %v5297 = vpop.xlane.xlu0 %5296
      %v5298 = vsel %vm2696, %v5268, 0.0
      %5299 = vadd.xlane.f32.xlu0 %v5298
      %v5300 = vpop.xlane.xlu0 %5299
      %v5301 = vsel %vm2692, %v5269, 0.0
      %5302 = vadd.xlane.f32.xlu0 %v5301
      %v5303 = vpop.xlane.xlu0 %5302
      %v5304 = vsel %vm2696, %v5270, 0.0
      %5305 = vadd.xlane.f32.xlu0 %v5304
      %v5306 = vpop.xlane.xlu0 %5305
      %v5307 = vsel %vm2692, %v5271, 0.0
      %5308 = vadd.xlane.f32.xlu0 %v5307
      %v5309 = vpop.xlane.xlu0 %5308
      %v5310 = vsel %vm2696, %v5272, 0.0
      %5311 = vadd.xlane.f32.xlu0 %v5310
      %v5312 = vpop.xlane.xlu0 %5311
      %v5313 = vsel %vm2692, %v5273, 0.0
      %5314 = vadd.xlane.f32.xlu0 %v5313
      %v5315 = vpop.xlane.xlu0 %5314
      %v5316 = vsel %vm2696, %v5274, 0.0
      %5317 = vadd.xlane.f32.xlu0 %v5316
      %v5318 = vpop.xlane.xlu0 %5317
      %v5319 = vsel %vm2692, %v5275, 0.0
      %5320 = vadd.xlane.f32.xlu0 %v5319
      %v5321 = vpop.xlane.xlu0 %5320
      %v5322 = vsel %vm2696, %v5276, 0.0
      %5323 = vadd.xlane.f32.xlu0 %v5322
      %v5324 = vpop.xlane.xlu0 %5323
      %v5341 = vrot.slane %v5279, 5
      %v5342 = vrot.slane %v5282, 5
      %v5343 = vsel %vm2758, %v5341, %v5342
      %v5344 = vrot.slane %v5285, 5
      %v5345 = vrot.slane %v5288, 5
      %v5346 = vsel %vm2758, %v5344, %v5345
      %v5347 = vrot.slane %v5291, 5
      %v5348 = vrot.slane %v5294, 5
      %v5349 = vsel %vm2758, %v5347, %v5348
      %v5350 = vrot.slane %v5297, 5
      %v5351 = vrot.slane %v5300, 5
      %v5352 = vsel %vm2758, %v5350, %v5351
      %v5353 = vrot.slane %v5303, 5
      %v5354 = vrot.slane %v5306, 5
      %v5355 = vsel %vm2758, %v5353, %v5354
      %v5356 = vrot.slane %v5309, 5
      %v5357 = vrot.slane %v5312, 5
      %v5358 = vsel %vm2758, %v5356, %v5357
      %v5359 = vrot.slane %v5315, 5
      %v5360 = vrot.slane %v5318, 5
      %v5361 = vsel %vm2758, %v5359, %v5360
      %v5362 = vrot.slane %v5321, 5
      %v5363 = vrot.slane %v5324, 5
      %v5364 = vsel %vm2758, %v5362, %v5363
      %v5381 = vadd.f32 %v5241, %v5341
      %v5382 = vadd.f32 %v5242, %v5343
      %v5383 = vadd.f32 %v5243, %v5344
      %v5384 = vadd.f32 %v5244, %v5346
      %v5385 = vadd.f32 %v5245, %v5347
      %v5386 = vadd.f32 %v5246, %v5349
      %v5387 = vadd.f32 %v5247, %v5350
      %v5388 = vadd.f32 %v5248, %v5352
      %v5389 = vadd.f32 %v5249, %v5353
      %v5390 = vadd.f32 %v5250, %v5355
      %v5391 = vadd.f32 %v5251, %v5356
      %v5392 = vadd.f32 %v5252, %v5358
      %v5393 = vadd.f32 %v5253, %v5359
      %v5394 = vadd.f32 %v5254, %v5361
      %v5395 = vadd.f32 %v5255, %v5362
      %v5396 = vadd.f32 %v5256, %v5364
      %v5397 = vlaneseq
      %v5398 = vshrl.u32 %v5397, 7
      %v5399 = vsub.s32 6, %v5398
      %v5400 = vrot.slane %v2079, %v5399
      %v5401 = vmul.f32 %v2044, %v5400
      %v5402 = vmul.f32 %v2045, %v5400
      %v5403 = vmul.f32 %v2047, %v5400
      %v5404 = vmul.f32 %v2048, %v5400
      %v5405 = vmul.f32 %v2050, %v5400
      %v5406 = vmul.f32 %v2051, %v5400
      %v5407 = vmul.f32 %v2053, %v5400
      %v5408 = vmul.f32 %v2054, %v5400
      %v5409 = vmul.f32 %v2056, %v5400
      %v5410 = vmul.f32 %v2057, %v5400
      %v5411 = vmul.f32 %v2059, %v5400
      %v5412 = vmul.f32 %v2060, %v5400
      %v5413 = vmul.f32 %v2062, %v5400
      %v5414 = vmul.f32 %v2063, %v5400
      %v5415 = vmul.f32 %v2065, %v5400
      %v5416 = vmul.f32 %v2066, %v5400
      %v5417 = vsel %vm2835, %v5401, 0.0
      %5418 = vadd.xlane.f32.xlu0 %v5417
      %v5419 = vpop.xlane.xlu0 %5418
      %v5420 = vsel %vm2839, %v5402, 0.0
      %5421 = vadd.xlane.f32.xlu0 %v5420
      %v5422 = vpop.xlane.xlu0 %5421
      %v5423 = vsel %vm2835, %v5403, 0.0
      %5424 = vadd.xlane.f32.xlu0 %v5423
      %v5425 = vpop.xlane.xlu0 %5424
      %v5426 = vsel %vm2839, %v5404, 0.0
      %5427 = vadd.xlane.f32.xlu0 %v5426
      %v5428 = vpop.xlane.xlu0 %5427
      %v5429 = vsel %vm2835, %v5405, 0.0
      %5430 = vadd.xlane.f32.xlu0 %v5429
      %v5431 = vpop.xlane.xlu0 %5430
      %v5432 = vsel %vm2839, %v5406, 0.0
      %5433 = vadd.xlane.f32.xlu0 %v5432
      %v5434 = vpop.xlane.xlu0 %5433
      %v5435 = vsel %vm2835, %v5407, 0.0
      %5436 = vadd.xlane.f32.xlu0 %v5435
      %v5437 = vpop.xlane.xlu0 %5436
      %v5438 = vsel %vm2839, %v5408, 0.0
      %5439 = vadd.xlane.f32.xlu0 %v5438
      %v5440 = vpop.xlane.xlu0 %5439
      %v5441 = vsel %vm2835, %v5409, 0.0
      %5442 = vadd.xlane.f32.xlu0 %v5441
      %v5443 = vpop.xlane.xlu0 %5442
      %v5444 = vsel %vm2839, %v5410, 0.0
      %5445 = vadd.xlane.f32.xlu0 %v5444
      %v5446 = vpop.xlane.xlu0 %5445
      %v5447 = vsel %vm2835, %v5411, 0.0
      %5448 = vadd.xlane.f32.xlu0 %v5447
      %v5449 = vpop.xlane.xlu0 %5448
      %v5450 = vsel %vm2839, %v5412, 0.0
      %5451 = vadd.xlane.f32.xlu0 %v5450
      %v5452 = vpop.xlane.xlu0 %5451
      %v5453 = vsel %vm2835, %v5413, 0.0
      %5454 = vadd.xlane.f32.xlu0 %v5453
      %v5455 = vpop.xlane.xlu0 %5454
      %v5456 = vsel %vm2839, %v5414, 0.0
      %5457 = vadd.xlane.f32.xlu0 %v5456
      %v5458 = vpop.xlane.xlu0 %5457
      %v5459 = vsel %vm2835, %v5415, 0.0
      %5460 = vadd.xlane.f32.xlu0 %v5459
      %v5461 = vpop.xlane.xlu0 %5460
      %v5462 = vsel %vm2839, %v5416, 0.0
      %5463 = vadd.xlane.f32.xlu0 %v5462
      %v5464 = vpop.xlane.xlu0 %5463
      %v5481 = vrot.slane %v5419, 6
      %v5482 = vrot.slane %v5422, 6
      %v5483 = vsel %vm1821, %v5481, %v5482
      %v5484 = vrot.slane %v5425, 6
      %v5485 = vrot.slane %v5428, 6
      %v5486 = vsel %vm1821, %v5484, %v5485
      %v5487 = vrot.slane %v5431, 6
      %v5488 = vrot.slane %v5434, 6
      %v5489 = vsel %vm1821, %v5487, %v5488
      %v5490 = vrot.slane %v5437, 6
      %v5491 = vrot.slane %v5440, 6
      %v5492 = vsel %vm1821, %v5490, %v5491
      %v5493 = vrot.slane %v5443, 6
      %v5494 = vrot.slane %v5446, 6
      %v5495 = vsel %vm1821, %v5493, %v5494
      %v5496 = vrot.slane %v5449, 6
      %v5497 = vrot.slane %v5452, 6
      %v5498 = vsel %vm1821, %v5496, %v5497
      %v5499 = vrot.slane %v5455, 6
      %v5500 = vrot.slane %v5458, 6
      %v5501 = vsel %vm1821, %v5499, %v5500
      %v5502 = vrot.slane %v5461, 6
      %v5503 = vrot.slane %v5464, 6
      %v5504 = vsel %vm1821, %v5502, %v5503
      %v5521 = vadd.f32 %v5381, %v5481
      %v5522 = vadd.f32 %v5382, %v5483
      %v5523 = vadd.f32 %v5383, %v5484
      %v5524 = vadd.f32 %v5384, %v5486
      %v5525 = vadd.f32 %v5385, %v5487
      %v5526 = vadd.f32 %v5386, %v5489
      %v5527 = vadd.f32 %v5387, %v5490
      %v5528 = vadd.f32 %v5388, %v5492
      %v5529 = vadd.f32 %v5389, %v5493
      %v5530 = vadd.f32 %v5390, %v5495
      %v5531 = vadd.f32 %v5391, %v5496
      %v5532 = vadd.f32 %v5392, %v5498
      %v5533 = vadd.f32 %v5393, %v5499
      %v5534 = vadd.f32 %v5394, %v5501
      %v5535 = vadd.f32 %v5395, %v5502
      %v5536 = vadd.f32 %v5396, %v5504
      %v5537 = vlaneseq
      %v5538 = vshrl.u32 %v5537, 7
      %v5539 = vsub.s32 0, %v5538
      %v5540 = vrot.slane %v2080, %v5539
      %v5541 = vmul.f32 %v2046, %v5540
      %v5542 = vmul.f32 %v2047, %v5540
      %v5543 = vmul.f32 %v2049, %v5540
      %v5544 = vmul.f32 %v2050, %v5540
      %v5545 = vmul.f32 %v2052, %v5540
      %v5546 = vmul.f32 %v2053, %v5540
      %v5547 = vmul.f32 %v2055, %v5540
      %v5548 = vmul.f32 %v2056, %v5540
      %v5549 = vmul.f32 %v2058, %v5540
      %v5550 = vmul.f32 %v2059, %v5540
      %v5551 = vmul.f32 %v2061, %v5540
      %v5552 = vmul.f32 %v2062, %v5540
      %v5553 = vmul.f32 %v2064, %v5540
      %v5554 = vmul.f32 %v2065, %v5540
      %v5555 = vmul.f32 %v2067, %v5540
      %v5556 = vmul.f32 %v2068, %v5540
      %v5557 = vsel %vm2103, %v5541, 0.0
      %5558 = vadd.xlane.f32.xlu0 %v5557
      %v5559 = vpop.xlane.xlu0 %5558
      %v5560 = vsel %vm2107, %v5542, 0.0
      %5561 = vadd.xlane.f32.xlu0 %v5560
      %v5562 = vpop.xlane.xlu0 %5561
      %v5563 = vsel %vm2103, %v5543, 0.0
      %5564 = vadd.xlane.f32.xlu0 %v5563
      %v5565 = vpop.xlane.xlu0 %5564
      %v5566 = vsel %vm2107, %v5544, 0.0
      %5567 = vadd.xlane.f32.xlu0 %v5566
      %v5568 = vpop.xlane.xlu0 %5567
      %v5569 = vsel %vm2103, %v5545, 0.0
      %5570 = vadd.xlane.f32.xlu0 %v5569
      %v5571 = vpop.xlane.xlu0 %5570
      %v5572 = vsel %vm2107, %v5546, 0.0
      %5573 = vadd.xlane.f32.xlu0 %v5572
      %v5574 = vpop.xlane.xlu0 %5573
      %v5575 = vsel %vm2103, %v5547, 0.0
      %5576 = vadd.xlane.f32.xlu0 %v5575
      %v5577 = vpop.xlane.xlu0 %5576
      %v5578 = vsel %vm2107, %v5548, 0.0
      %5579 = vadd.xlane.f32.xlu0 %v5578
      %v5580 = vpop.xlane.xlu0 %5579
      %v5581 = vsel %vm2103, %v5549, 0.0
      %5582 = vadd.xlane.f32.xlu0 %v5581
      %v5583 = vpop.xlane.xlu0 %5582
      %v5584 = vsel %vm2107, %v5550, 0.0
      %5585 = vadd.xlane.f32.xlu0 %v5584
      %v5586 = vpop.xlane.xlu0 %5585
      %v5587 = vsel %vm2103, %v5551, 0.0
      %5588 = vadd.xlane.f32.xlu0 %v5587
      %v5589 = vpop.xlane.xlu0 %5588
      %v5590 = vsel %vm2107, %v5552, 0.0
      %5591 = vadd.xlane.f32.xlu0 %v5590
      %v5592 = vpop.xlane.xlu0 %5591
      %v5593 = vsel %vm2103, %v5553, 0.0
      %5594 = vadd.xlane.f32.xlu0 %v5593
      %v5595 = vpop.xlane.xlu0 %5594
      %v5596 = vsel %vm2107, %v5554, 0.0
      %5597 = vadd.xlane.f32.xlu0 %v5596
      %v5598 = vpop.xlane.xlu0 %5597
      %v5599 = vsel %vm2103, %v5555, 0.0
      %5600 = vadd.xlane.f32.xlu0 %v5599
      %v5601 = vpop.xlane.xlu0 %5600
      %v5602 = vsel %vm2107, %v5556, 0.0
      %5603 = vadd.xlane.f32.xlu0 %v5602
      %v5604 = vpop.xlane.xlu0 %5603
      %v5605 = vadd.f32 %v5521, %v5559
      %v5606 = vadd.f32 %v5522, %v5562
      %v5607 = vadd.f32 %v5523, %v5565
      %v5608 = vadd.f32 %v5524, %v5568
      %v5609 = vadd.f32 %v5525, %v5571
      %v5610 = vadd.f32 %v5526, %v5574
      %v5611 = vadd.f32 %v5527, %v5577
      %v5612 = vadd.f32 %v5528, %v5580
      %v5613 = vadd.f32 %v5529, %v5583
      %v5614 = vadd.f32 %v5530, %v5586
      %v5615 = vadd.f32 %v5531, %v5589
      %v5616 = vadd.f32 %v5532, %v5592
      %v5617 = vadd.f32 %v5533, %v5595
      %v5618 = vadd.f32 %v5534, %v5598
      %v5619 = vadd.f32 %v5535, %v5601
      %v5620 = vadd.f32 %v5536, %v5604
      %v5621 = vlaneseq
      %v5622 = vshrl.u32 %v5621, 7
      %v5623 = vsub.s32 1, %v5622
      %v5624 = vrot.slane %v2080, %v5623
      %v5625 = vmul.f32 %v2046, %v5624
      %v5626 = vmul.f32 %v2047, %v5624
      %v5627 = vmul.f32 %v2049, %v5624
      %v5628 = vmul.f32 %v2050, %v5624
      %v5629 = vmul.f32 %v2052, %v5624
      %v5630 = vmul.f32 %v2053, %v5624
      %v5631 = vmul.f32 %v2055, %v5624
      %v5632 = vmul.f32 %v2056, %v5624
      %v5633 = vmul.f32 %v2058, %v5624
      %v5634 = vmul.f32 %v2059, %v5624
      %v5635 = vmul.f32 %v2061, %v5624
      %v5636 = vmul.f32 %v2062, %v5624
      %v5637 = vmul.f32 %v2064, %v5624
      %v5638 = vmul.f32 %v2065, %v5624
      %v5639 = vmul.f32 %v2067, %v5624
      %v5640 = vmul.f32 %v2068, %v5624
      %v5641 = vsel %vm2189, %v5625, 0.0
      %5642 = vadd.xlane.f32.xlu0 %v5641
      %v5643 = vpop.xlane.xlu0 %5642
      %v5644 = vsel %vm2193, %v5626, 0.0
      %5645 = vadd.xlane.f32.xlu0 %v5644
      %v5646 = vpop.xlane.xlu0 %5645
      %v5647 = vsel %vm2189, %v5627, 0.0
      %5648 = vadd.xlane.f32.xlu0 %v5647
      %v5649 = vpop.xlane.xlu0 %5648
      %v5650 = vsel %vm2193, %v5628, 0.0
      %5651 = vadd.xlane.f32.xlu0 %v5650
      %v5652 = vpop.xlane.xlu0 %5651
      %v5653 = vsel %vm2189, %v5629, 0.0
      %5654 = vadd.xlane.f32.xlu0 %v5653
      %v5655 = vpop.xlane.xlu0 %5654
      %v5656 = vsel %vm2193, %v5630, 0.0
      %5657 = vadd.xlane.f32.xlu0 %v5656
      %v5658 = vpop.xlane.xlu0 %5657
      %v5659 = vsel %vm2189, %v5631, 0.0
      %5660 = vadd.xlane.f32.xlu0 %v5659
      %v5661 = vpop.xlane.xlu0 %5660
      %v5662 = vsel %vm2193, %v5632, 0.0
      %5663 = vadd.xlane.f32.xlu0 %v5662
      %v5664 = vpop.xlane.xlu0 %5663
      %v5665 = vsel %vm2189, %v5633, 0.0
      %5666 = vadd.xlane.f32.xlu0 %v5665
      %v5667 = vpop.xlane.xlu0 %5666
      %v5668 = vsel %vm2193, %v5634, 0.0
      %5669 = vadd.xlane.f32.xlu0 %v5668
      %v5670 = vpop.xlane.xlu0 %5669
      %v5671 = vsel %vm2189, %v5635, 0.0
      %5672 = vadd.xlane.f32.xlu0 %v5671
      %v5673 = vpop.xlane.xlu0 %5672
      %v5674 = vsel %vm2193, %v5636, 0.0
      %5675 = vadd.xlane.f32.xlu0 %v5674
      %v5676 = vpop.xlane.xlu0 %5675
      %v5677 = vsel %vm2189, %v5637, 0.0
      %5678 = vadd.xlane.f32.xlu0 %v5677
      %v5679 = vpop.xlane.xlu0 %5678
      %v5680 = vsel %vm2193, %v5638, 0.0
      %5681 = vadd.xlane.f32.xlu0 %v5680
      %v5682 = vpop.xlane.xlu0 %5681
      %v5683 = vsel %vm2189, %v5639, 0.0
      %5684 = vadd.xlane.f32.xlu0 %v5683
      %v5685 = vpop.xlane.xlu0 %5684
      %v5686 = vsel %vm2193, %v5640, 0.0
      %5687 = vadd.xlane.f32.xlu0 %v5686
      %v5688 = vpop.xlane.xlu0 %5687
      %v5705 = vrot.slane %v5643, 1
      %v5706 = vrot.slane %v5646, 1
      %v5707 = vsel %vm487, %v5705, %v5706
      %v5708 = vrot.slane %v5649, 1
      %v5709 = vrot.slane %v5652, 1
      %v5710 = vsel %vm487, %v5708, %v5709
      %v5711 = vrot.slane %v5655, 1
      %v5712 = vrot.slane %v5658, 1
      %v5713 = vsel %vm487, %v5711, %v5712
      %v5714 = vrot.slane %v5661, 1
      %v5715 = vrot.slane %v5664, 1
      %v5716 = vsel %vm487, %v5714, %v5715
      %v5717 = vrot.slane %v5667, 1
      %v5718 = vrot.slane %v5670, 1
      %v5719 = vsel %vm487, %v5717, %v5718
      %v5720 = vrot.slane %v5673, 1
      %v5721 = vrot.slane %v5676, 1
      %v5722 = vsel %vm487, %v5720, %v5721
      %v5723 = vrot.slane %v5679, 1
      %v5724 = vrot.slane %v5682, 1
      %v5725 = vsel %vm487, %v5723, %v5724
      %v5726 = vrot.slane %v5685, 1
      %v5727 = vrot.slane %v5688, 1
      %v5728 = vsel %vm487, %v5726, %v5727
      %v5745 = vadd.f32 %v5605, %v5707
      %v5746 = vadd.f32 %v5606, %v5706
      %v5747 = vadd.f32 %v5607, %v5710
      %v5748 = vadd.f32 %v5608, %v5709
      %v5749 = vadd.f32 %v5609, %v5713
      %v5750 = vadd.f32 %v5610, %v5712
      %v5751 = vadd.f32 %v5611, %v5716
      %v5752 = vadd.f32 %v5612, %v5715
      %v5753 = vadd.f32 %v5613, %v5719
      %v5754 = vadd.f32 %v5614, %v5718
      %v5755 = vadd.f32 %v5615, %v5722
      %v5756 = vadd.f32 %v5616, %v5721
      %v5757 = vadd.f32 %v5617, %v5725
      %v5758 = vadd.f32 %v5618, %v5724
      %v5759 = vadd.f32 %v5619, %v5728
      %v5760 = vadd.f32 %v5620, %v5727
      %v5761 = vlaneseq
      %v5762 = vshrl.u32 %v5761, 7
      %v5763 = vsub.s32 2, %v5762
      %v5764 = vrot.slane %v2080, %v5763
      %v5765 = vmul.f32 %v2046, %v5764
      %v5766 = vmul.f32 %v2047, %v5764
      %v5767 = vmul.f32 %v2049, %v5764
      %v5768 = vmul.f32 %v2050, %v5764
      %v5769 = vmul.f32 %v2052, %v5764
      %v5770 = vmul.f32 %v2053, %v5764
      %v5771 = vmul.f32 %v2055, %v5764
      %v5772 = vmul.f32 %v2056, %v5764
      %v5773 = vmul.f32 %v2058, %v5764
      %v5774 = vmul.f32 %v2059, %v5764
      %v5775 = vmul.f32 %v2061, %v5764
      %v5776 = vmul.f32 %v2062, %v5764
      %v5777 = vmul.f32 %v2064, %v5764
      %v5778 = vmul.f32 %v2065, %v5764
      %v5779 = vmul.f32 %v2067, %v5764
      %v5780 = vmul.f32 %v2068, %v5764
      %v5781 = vsel %vm2331, %v5765, 0.0
      %5782 = vadd.xlane.f32.xlu0 %v5781
      %v5783 = vpop.xlane.xlu0 %5782
      %v5784 = vsel %vm2335, %v5766, 0.0
      %5785 = vadd.xlane.f32.xlu0 %v5784
      %v5786 = vpop.xlane.xlu0 %5785
      %v5787 = vsel %vm2331, %v5767, 0.0
      %5788 = vadd.xlane.f32.xlu0 %v5787
      %v5789 = vpop.xlane.xlu0 %5788
      %v5790 = vsel %vm2335, %v5768, 0.0
      %5791 = vadd.xlane.f32.xlu0 %v5790
      %v5792 = vpop.xlane.xlu0 %5791
      %v5793 = vsel %vm2331, %v5769, 0.0
      %5794 = vadd.xlane.f32.xlu0 %v5793
      %v5795 = vpop.xlane.xlu0 %5794
      %v5796 = vsel %vm2335, %v5770, 0.0
      %5797 = vadd.xlane.f32.xlu0 %v5796
      %v5798 = vpop.xlane.xlu0 %5797
      %v5799 = vsel %vm2331, %v5771, 0.0
      %5800 = vadd.xlane.f32.xlu0 %v5799
      %v5801 = vpop.xlane.xlu0 %5800
      %v5802 = vsel %vm2335, %v5772, 0.0
      %5803 = vadd.xlane.f32.xlu0 %v5802
      %v5804 = vpop.xlane.xlu0 %5803
      %v5805 = vsel %vm2331, %v5773, 0.0
      %5806 = vadd.xlane.f32.xlu0 %v5805
      %v5807 = vpop.xlane.xlu0 %5806
      %v5808 = vsel %vm2335, %v5774, 0.0
      %5809 = vadd.xlane.f32.xlu0 %v5808
      %v5810 = vpop.xlane.xlu0 %5809
      %v5811 = vsel %vm2331, %v5775, 0.0
      %5812 = vadd.xlane.f32.xlu0 %v5811
      %v5813 = vpop.xlane.xlu0 %5812
      %v5814 = vsel %vm2335, %v5776, 0.0
      %5815 = vadd.xlane.f32.xlu0 %v5814
      %v5816 = vpop.xlane.xlu0 %5815
      %v5817 = vsel %vm2331, %v5777, 0.0
      %5818 = vadd.xlane.f32.xlu0 %v5817
      %v5819 = vpop.xlane.xlu0 %5818
      %v5820 = vsel %vm2335, %v5778, 0.0
      %5821 = vadd.xlane.f32.xlu0 %v5820
      %v5822 = vpop.xlane.xlu0 %5821
      %v5823 = vsel %vm2331, %v5779, 0.0
      %5824 = vadd.xlane.f32.xlu0 %v5823
      %v5825 = vpop.xlane.xlu0 %5824
      %v5826 = vsel %vm2335, %v5780, 0.0
      %5827 = vadd.xlane.f32.xlu0 %v5826
      %v5828 = vpop.xlane.xlu0 %5827
      %v5845 = vrot.slane %v5783, 2
      %v5846 = vrot.slane %v5786, 2
      %v5847 = vsel %vm760, %v5845, %v5846
      %v5848 = vrot.slane %v5789, 2
      %v5849 = vrot.slane %v5792, 2
      %v5850 = vsel %vm760, %v5848, %v5849
      %v5851 = vrot.slane %v5795, 2
      %v5852 = vrot.slane %v5798, 2
      %v5853 = vsel %vm760, %v5851, %v5852
      %v5854 = vrot.slane %v5801, 2
      %v5855 = vrot.slane %v5804, 2
      %v5856 = vsel %vm760, %v5854, %v5855
      %v5857 = vrot.slane %v5807, 2
      %v5858 = vrot.slane %v5810, 2
      %v5859 = vsel %vm760, %v5857, %v5858
      %v5860 = vrot.slane %v5813, 2
      %v5861 = vrot.slane %v5816, 2
      %v5862 = vsel %vm760, %v5860, %v5861
      %v5863 = vrot.slane %v5819, 2
      %v5864 = vrot.slane %v5822, 2
      %v5865 = vsel %vm760, %v5863, %v5864
      %v5866 = vrot.slane %v5825, 2
      %v5867 = vrot.slane %v5828, 2
      %v5868 = vsel %vm760, %v5866, %v5867
      %v5885 = vadd.f32 %v5745, %v5847
      %v5886 = vadd.f32 %v5746, %v5846
      %v5887 = vadd.f32 %v5747, %v5850
      %v5888 = vadd.f32 %v5748, %v5849
      %v5889 = vadd.f32 %v5749, %v5853
      %v5890 = vadd.f32 %v5750, %v5852
      %v5891 = vadd.f32 %v5751, %v5856
      %v5892 = vadd.f32 %v5752, %v5855
      %v5893 = vadd.f32 %v5753, %v5859
      %v5894 = vadd.f32 %v5754, %v5858
      %v5895 = vadd.f32 %v5755, %v5862
      %v5896 = vadd.f32 %v5756, %v5861
      %v5897 = vadd.f32 %v5757, %v5865
      %v5898 = vadd.f32 %v5758, %v5864
      %v5899 = vadd.f32 %v5759, %v5868
      %v5900 = vadd.f32 %v5760, %v5867
      %v5901 = vlaneseq
      %v5902 = vshrl.u32 %v5901, 7
      %v5903 = vsub.s32 3, %v5902
      %v5904 = vrot.slane %v2080, %v5903
      %v5905 = vmul.f32 %v2047, %v5904
      %v5906 = vmul.f32 %v2050, %v5904
      %v5907 = vmul.f32 %v2053, %v5904
      %v5908 = vmul.f32 %v2056, %v5904
      %v5909 = vmul.f32 %v2059, %v5904
      %v5910 = vmul.f32 %v2062, %v5904
      %v5911 = vmul.f32 %v2065, %v5904
      %v5912 = vmul.f32 %v2068, %v5904
      %v5913 = vsel %vm1817, %v5905, 0.0
      %5914 = vadd.xlane.f32.xlu0 %v5913
      %v5915 = vpop.xlane.xlu0 %5914
      %v5916 = vsel %vm1817, %v5906, 0.0
      %5917 = vadd.xlane.f32.xlu0 %v5916
      %v5918 = vpop.xlane.xlu0 %5917
      %v5919 = vsel %vm1817, %v5907, 0.0
      %5920 = vadd.xlane.f32.xlu0 %v5919
      %v5921 = vpop.xlane.xlu0 %5920
      %v5922 = vsel %vm1817, %v5908, 0.0
      %5923 = vadd.xlane.f32.xlu0 %v5922
      %v5924 = vpop.xlane.xlu0 %5923
      %v5925 = vsel %vm1817, %v5909, 0.0
      %5926 = vadd.xlane.f32.xlu0 %v5925
      %v5927 = vpop.xlane.xlu0 %5926
      %v5928 = vsel %vm1817, %v5910, 0.0
      %5929 = vadd.xlane.f32.xlu0 %v5928
      %v5930 = vpop.xlane.xlu0 %5929
      %v5931 = vsel %vm1817, %v5911, 0.0
      %5932 = vadd.xlane.f32.xlu0 %v5931
      %v5933 = vpop.xlane.xlu0 %5932
      %v5934 = vsel %vm1817, %v5912, 0.0
      %5935 = vadd.xlane.f32.xlu0 %v5934
      %v5936 = vpop.xlane.xlu0 %5935
      %v5945 = vrot.slane %v5915, 3
      %v5946 = vrot.slane %v5918, 3
      %v5947 = vrot.slane %v5921, 3
      %v5948 = vrot.slane %v5924, 3
      %v5949 = vrot.slane %v5927, 3
      %v5950 = vrot.slane %v5930, 3
      %v5951 = vrot.slane %v5933, 3
      %v5952 = vrot.slane %v5936, 3
      %v5961 = vadd.f32 %v5885, %v5945
      %v5962 = vadd.f32 %v5886, %v5945
      %v5963 = vadd.f32 %v5887, %v5946
      %v5964 = vadd.f32 %v5888, %v5946
      %v5965 = vadd.f32 %v5889, %v5947
      %v5966 = vadd.f32 %v5890, %v5947
      %v5967 = vadd.f32 %v5891, %v5948
      %v5968 = vadd.f32 %v5892, %v5948
      %v5969 = vadd.f32 %v5893, %v5949
      %v5970 = vadd.f32 %v5894, %v5949
      %v5971 = vadd.f32 %v5895, %v5950
      %v5972 = vadd.f32 %v5896, %v5950
      %v5973 = vadd.f32 %v5897, %v5951
      %v5974 = vadd.f32 %v5898, %v5951
      %v5975 = vadd.f32 %v5899, %v5952
      %v5976 = vadd.f32 %v5900, %v5952
      %v5977 = vlaneseq
      %v5978 = vshrl.u32 %v5977, 7
      %v5979 = vsub.s32 4, %v5978
      %v5980 = vrot.slane %v2080, %v5979
      %v5981 = vmul.f32 %v2047, %v5980
      %v5982 = vmul.f32 %v2048, %v5980
      %v5983 = vmul.f32 %v2050, %v5980
      %v5984 = vmul.f32 %v2051, %v5980
      %v5985 = vmul.f32 %v2053, %v5980
      %v5986 = vmul.f32 %v2054, %v5980
      %v5987 = vmul.f32 %v2056, %v5980
      %v5988 = vmul.f32 %v2057, %v5980
      %v5989 = vmul.f32 %v2059, %v5980
      %v5990 = vmul.f32 %v2060, %v5980
      %v5991 = vmul.f32 %v2062, %v5980
      %v5992 = vmul.f32 %v2063, %v5980
      %v5993 = vmul.f32 %v2065, %v5980
      %v5994 = vmul.f32 %v2066, %v5980
      %v5995 = vmul.f32 %v2068, %v5980
      %v5996 = vmul.f32 %v2069, %v5980
      %v5997 = vsel %vm2549, %v5981, 0.0
      %5998 = vadd.xlane.f32.xlu0 %v5997
      %v5999 = vpop.xlane.xlu0 %5998
      %v6000 = vsel %vm2553, %v5982, 0.0
      %6001 = vadd.xlane.f32.xlu0 %v6000
      %v6002 = vpop.xlane.xlu0 %6001
      %v6003 = vsel %vm2549, %v5983, 0.0
      %6004 = vadd.xlane.f32.xlu0 %v6003
      %v6005 = vpop.xlane.xlu0 %6004
      %v6006 = vsel %vm2553, %v5984, 0.0
      %6007 = vadd.xlane.f32.xlu0 %v6006
      %v6008 = vpop.xlane.xlu0 %6007
      %v6009 = vsel %vm2549, %v5985, 0.0
      %6010 = vadd.xlane.f32.xlu0 %v6009
      %v6011 = vpop.xlane.xlu0 %6010
      %v6012 = vsel %vm2553, %v5986, 0.0
      %6013 = vadd.xlane.f32.xlu0 %v6012
      %v6014 = vpop.xlane.xlu0 %6013
      %v6015 = vsel %vm2549, %v5987, 0.0
      %6016 = vadd.xlane.f32.xlu0 %v6015
      %v6017 = vpop.xlane.xlu0 %6016
      %v6018 = vsel %vm2553, %v5988, 0.0
      %6019 = vadd.xlane.f32.xlu0 %v6018
      %v6020 = vpop.xlane.xlu0 %6019
      %v6021 = vsel %vm2549, %v5989, 0.0
      %6022 = vadd.xlane.f32.xlu0 %v6021
      %v6023 = vpop.xlane.xlu0 %6022
      %v6024 = vsel %vm2553, %v5990, 0.0
      %6025 = vadd.xlane.f32.xlu0 %v6024
      %v6026 = vpop.xlane.xlu0 %6025
      %v6027 = vsel %vm2549, %v5991, 0.0
      %6028 = vadd.xlane.f32.xlu0 %v6027
      %v6029 = vpop.xlane.xlu0 %6028
      %v6030 = vsel %vm2553, %v5992, 0.0
      %6031 = vadd.xlane.f32.xlu0 %v6030
      %v6032 = vpop.xlane.xlu0 %6031
      %v6033 = vsel %vm2549, %v5993, 0.0
      %6034 = vadd.xlane.f32.xlu0 %v6033
      %v6035 = vpop.xlane.xlu0 %6034
      %v6036 = vsel %vm2553, %v5994, 0.0
      %6037 = vadd.xlane.f32.xlu0 %v6036
      %v6038 = vpop.xlane.xlu0 %6037
      %v6039 = vsel %vm2549, %v5995, 0.0
      %6040 = vadd.xlane.f32.xlu0 %v6039
      %v6041 = vpop.xlane.xlu0 %6040
      %v6042 = vsel %vm2553, %v5996, 0.0
      %6043 = vadd.xlane.f32.xlu0 %v6042
      %v6044 = vpop.xlane.xlu0 %6043
      %v6061 = vrot.slane %v5999, 4
      %v6062 = vrot.slane %v6002, 4
      %v6063 = vsel %vm2615, %v6061, %v6062
      %v6064 = vrot.slane %v6005, 4
      %v6065 = vrot.slane %v6008, 4
      %v6066 = vsel %vm2615, %v6064, %v6065
      %v6067 = vrot.slane %v6011, 4
      %v6068 = vrot.slane %v6014, 4
      %v6069 = vsel %vm2615, %v6067, %v6068
      %v6070 = vrot.slane %v6017, 4
      %v6071 = vrot.slane %v6020, 4
      %v6072 = vsel %vm2615, %v6070, %v6071
      %v6073 = vrot.slane %v6023, 4
      %v6074 = vrot.slane %v6026, 4
      %v6075 = vsel %vm2615, %v6073, %v6074
      %v6076 = vrot.slane %v6029, 4
      %v6077 = vrot.slane %v6032, 4
      %v6078 = vsel %vm2615, %v6076, %v6077
      %v6079 = vrot.slane %v6035, 4
      %v6080 = vrot.slane %v6038, 4
      %v6081 = vsel %vm2615, %v6079, %v6080
      %v6082 = vrot.slane %v6041, 4
      %v6083 = vrot.slane %v6044, 4
      %v6084 = vsel %vm2615, %v6082, %v6083
      %v6101 = vadd.f32 %v5961, %v6061
      %v6102 = vadd.f32 %v5962, %v6063
      %v6103 = vadd.f32 %v5963, %v6064
      %v6104 = vadd.f32 %v5964, %v6066
      %v6105 = vadd.f32 %v5965, %v6067
      %v6106 = vadd.f32 %v5966, %v6069
      %v6107 = vadd.f32 %v5967, %v6070
      %v6108 = vadd.f32 %v5968, %v6072
      %v6109 = vadd.f32 %v5969, %v6073
      %v6110 = vadd.f32 %v5970, %v6075
      %v6111 = vadd.f32 %v5971, %v6076
      %v6112 = vadd.f32 %v5972, %v6078
      %v6113 = vadd.f32 %v5973, %v6079
      %v6114 = vadd.f32 %v5974, %v6081
      %v6115 = vadd.f32 %v5975, %v6082
      %v6116 = vadd.f32 %v5976, %v6084
      %v6117 = vlaneseq
      %v6118 = vshrl.u32 %v6117, 7
      %v6119 = vsub.s32 5, %v6118
      %v6120 = vrot.slane %v2080, %v6119
      %v6121 = vmul.f32 %v2047, %v6120
      %v6122 = vmul.f32 %v2048, %v6120
      %v6123 = vmul.f32 %v2050, %v6120
      %v6124 = vmul.f32 %v2051, %v6120
      %v6125 = vmul.f32 %v2053, %v6120
      %v6126 = vmul.f32 %v2054, %v6120
      %v6127 = vmul.f32 %v2056, %v6120
      %v6128 = vmul.f32 %v2057, %v6120
      %v6129 = vmul.f32 %v2059, %v6120
      %v6130 = vmul.f32 %v2060, %v6120
      %v6131 = vmul.f32 %v2062, %v6120
      %v6132 = vmul.f32 %v2063, %v6120
      %v6133 = vmul.f32 %v2065, %v6120
      %v6134 = vmul.f32 %v2066, %v6120
      %v6135 = vmul.f32 %v2068, %v6120
      %v6136 = vmul.f32 %v2069, %v6120
      %v6137 = vsel %vm2692, %v6121, 0.0
      %6138 = vadd.xlane.f32.xlu0 %v6137
      %v6139 = vpop.xlane.xlu0 %6138
      %v6140 = vsel %vm2696, %v6122, 0.0
      %6141 = vadd.xlane.f32.xlu0 %v6140
      %v6142 = vpop.xlane.xlu0 %6141
      %v6143 = vsel %vm2692, %v6123, 0.0
      %6144 = vadd.xlane.f32.xlu0 %v6143
      %v6145 = vpop.xlane.xlu0 %6144
      %v6146 = vsel %vm2696, %v6124, 0.0
      %6147 = vadd.xlane.f32.xlu0 %v6146
      %v6148 = vpop.xlane.xlu0 %6147
      %v6149 = vsel %vm2692, %v6125, 0.0
      %6150 = vadd.xlane.f32.xlu0 %v6149
      %v6151 = vpop.xlane.xlu0 %6150
      %v6152 = vsel %vm2696, %v6126, 0.0
      %6153 = vadd.xlane.f32.xlu0 %v6152
      %v6154 = vpop.xlane.xlu0 %6153
      %v6155 = vsel %vm2692, %v6127, 0.0
      %6156 = vadd.xlane.f32.xlu0 %v6155
      %v6157 = vpop.xlane.xlu0 %6156
      %v6158 = vsel %vm2696, %v6128, 0.0
      %6159 = vadd.xlane.f32.xlu0 %v6158
      %v6160 = vpop.xlane.xlu0 %6159
      %v6161 = vsel %vm2692, %v6129, 0.0
      %6162 = vadd.xlane.f32.xlu0 %v6161
      %v6163 = vpop.xlane.xlu0 %6162
      %v6164 = vsel %vm2696, %v6130, 0.0
      %6165 = vadd.xlane.f32.xlu0 %v6164
      %v6166 = vpop.xlane.xlu0 %6165
      %v6167 = vsel %vm2692, %v6131, 0.0
      %6168 = vadd.xlane.f32.xlu0 %v6167
      %v6169 = vpop.xlane.xlu0 %6168
      %v6170 = vsel %vm2696, %v6132, 0.0
      %6171 = vadd.xlane.f32.xlu0 %v6170
      %v6172 = vpop.xlane.xlu0 %6171
      %v6173 = vsel %vm2692, %v6133, 0.0
      %6174 = vadd.xlane.f32.xlu0 %v6173
      %v6175 = vpop.xlane.xlu0 %6174
      %v6176 = vsel %vm2696, %v6134, 0.0
      %6177 = vadd.xlane.f32.xlu0 %v6176
      %v6178 = vpop.xlane.xlu0 %6177
      %v6179 = vsel %vm2692, %v6135, 0.0
      %6180 = vadd.xlane.f32.xlu0 %v6179
      %v6181 = vpop.xlane.xlu0 %6180
      %v6182 = vsel %vm2696, %v6136, 0.0
      %6183 = vadd.xlane.f32.xlu0 %v6182
      %v6184 = vpop.xlane.xlu0 %6183
      %v6201 = vrot.slane %v6139, 5
      %v6202 = vrot.slane %v6142, 5
      %v6203 = vsel %vm2758, %v6201, %v6202
      %v6204 = vrot.slane %v6145, 5
      %v6205 = vrot.slane %v6148, 5
      %v6206 = vsel %vm2758, %v6204, %v6205
      %v6207 = vrot.slane %v6151, 5
      %v6208 = vrot.slane %v6154, 5
      %v6209 = vsel %vm2758, %v6207, %v6208
      %v6210 = vrot.slane %v6157, 5
      %v6211 = vrot.slane %v6160, 5
      %v6212 = vsel %vm2758, %v6210, %v6211
      %v6213 = vrot.slane %v6163, 5
      %v6214 = vrot.slane %v6166, 5
      %v6215 = vsel %vm2758, %v6213, %v6214
      %v6216 = vrot.slane %v6169, 5
      %v6217 = vrot.slane %v6172, 5
      %v6218 = vsel %vm2758, %v6216, %v6217
      %v6219 = vrot.slane %v6175, 5
      %v6220 = vrot.slane %v6178, 5
      %v6221 = vsel %vm2758, %v6219, %v6220
      %v6222 = vrot.slane %v6181, 5
      %v6223 = vrot.slane %v6184, 5
      %v6224 = vsel %vm2758, %v6222, %v6223
      %v6241 = vadd.f32 %v6101, %v6201
      %v6242 = vadd.f32 %v6102, %v6203
      %v6243 = vadd.f32 %v6103, %v6204
      %v6244 = vadd.f32 %v6104, %v6206
      %v6245 = vadd.f32 %v6105, %v6207
      %v6246 = vadd.f32 %v6106, %v6209
      %v6247 = vadd.f32 %v6107, %v6210
      %v6248 = vadd.f32 %v6108, %v6212
      %v6249 = vadd.f32 %v6109, %v6213
      %v6250 = vadd.f32 %v6110, %v6215
      %v6251 = vadd.f32 %v6111, %v6216
      %v6252 = vadd.f32 %v6112, %v6218
      %v6253 = vadd.f32 %v6113, %v6219
      %v6254 = vadd.f32 %v6114, %v6221
      %v6255 = vadd.f32 %v6115, %v6222
      %v6256 = vadd.f32 %v6116, %v6224
      %v6257 = vlaneseq
      %v6258 = vshrl.u32 %v6257, 7
      %v6259 = vsub.s32 6, %v6258
      %v6260 = vrot.slane %v2080, %v6259
      %v6261 = vmul.f32 %v2047, %v6260
      %v6262 = vmul.f32 %v2048, %v6260
      %v6263 = vmul.f32 %v2050, %v6260
      %v6264 = vmul.f32 %v2051, %v6260
      %v6265 = vmul.f32 %v2053, %v6260
      %v6266 = vmul.f32 %v2054, %v6260
      %v6267 = vmul.f32 %v2056, %v6260
      %v6268 = vmul.f32 %v2057, %v6260
      %v6269 = vmul.f32 %v2059, %v6260
      %v6270 = vmul.f32 %v2060, %v6260
      %v6271 = vmul.f32 %v2062, %v6260
      %v6272 = vmul.f32 %v2063, %v6260
      %v6273 = vmul.f32 %v2065, %v6260
      %v6274 = vmul.f32 %v2066, %v6260
      %v6275 = vmul.f32 %v2068, %v6260
      %v6276 = vmul.f32 %v2069, %v6260
      %v6277 = vsel %vm2835, %v6261, 0.0
      %6278 = vadd.xlane.f32.xlu0 %v6277
      %v6279 = vpop.xlane.xlu0 %6278
      %v6280 = vsel %vm2839, %v6262, 0.0
      %6281 = vadd.xlane.f32.xlu0 %v6280
      %v6282 = vpop.xlane.xlu0 %6281
      %v6283 = vsel %vm2835, %v6263, 0.0
      %6284 = vadd.xlane.f32.xlu0 %v6283
      %v6285 = vpop.xlane.xlu0 %6284
      %v6286 = vsel %vm2839, %v6264, 0.0
      %6287 = vadd.xlane.f32.xlu0 %v6286
      %v6288 = vpop.xlane.xlu0 %6287
      %v6289 = vsel %vm2835, %v6265, 0.0
      %6290 = vadd.xlane.f32.xlu0 %v6289
      %v6291 = vpop.xlane.xlu0 %6290
      %v6292 = vsel %vm2839, %v6266, 0.0
      %6293 = vadd.xlane.f32.xlu0 %v6292
      %v6294 = vpop.xlane.xlu0 %6293
      %v6295 = vsel %vm2835, %v6267, 0.0
      %6296 = vadd.xlane.f32.xlu0 %v6295
      %v6297 = vpop.xlane.xlu0 %6296
      %v6298 = vsel %vm2839, %v6268, 0.0
      %6299 = vadd.xlane.f32.xlu0 %v6298
      %v6300 = vpop.xlane.xlu0 %6299
      %v6301 = vsel %vm2835, %v6269, 0.0
      %6302 = vadd.xlane.f32.xlu0 %v6301
      %v6303 = vpop.xlane.xlu0 %6302
      %v6304 = vsel %vm2839, %v6270, 0.0
      %6305 = vadd.xlane.f32.xlu0 %v6304
      %v6306 = vpop.xlane.xlu0 %6305
      %v6307 = vsel %vm2835, %v6271, 0.0
      %6308 = vadd.xlane.f32.xlu0 %v6307
      %v6309 = vpop.xlane.xlu0 %6308
      %v6310 = vsel %vm2839, %v6272, 0.0
      %6311 = vadd.xlane.f32.xlu0 %v6310
      %v6312 = vpop.xlane.xlu0 %6311
      %v6313 = vsel %vm2835, %v6273, 0.0
      %6314 = vadd.xlane.f32.xlu0 %v6313
      %v6315 = vpop.xlane.xlu0 %6314
      %v6316 = vsel %vm2839, %v6274, 0.0
      %6317 = vadd.xlane.f32.xlu0 %v6316
      %v6318 = vpop.xlane.xlu0 %6317
      %v6319 = vsel %vm2835, %v6275, 0.0
      %6320 = vadd.xlane.f32.xlu0 %v6319
      %v6321 = vpop.xlane.xlu0 %6320
      %v6322 = vsel %vm2839, %v6276, 0.0
      %6323 = vadd.xlane.f32.xlu0 %v6322
      %v6324 = vpop.xlane.xlu0 %6323
      %v6341 = vrot.slane %v6279, 6
      %v6342 = vrot.slane %v6282, 6
      %v6343 = vsel %vm1821, %v6341, %v6342
      %v6344 = vrot.slane %v6285, 6
      %v6345 = vrot.slane %v6288, 6
      %v6346 = vsel %vm1821, %v6344, %v6345
      %v6347 = vrot.slane %v6291, 6
      %v6348 = vrot.slane %v6294, 6
      %v6349 = vsel %vm1821, %v6347, %v6348
      %v6350 = vrot.slane %v6297, 6
      %v6351 = vrot.slane %v6300, 6
      %v6352 = vsel %vm1821, %v6350, %v6351
      %v6353 = vrot.slane %v6303, 6
      %v6354 = vrot.slane %v6306, 6
      %v6355 = vsel %vm1821, %v6353, %v6354
      %v6356 = vrot.slane %v6309, 6
      %v6357 = vrot.slane %v6312, 6
      %v6358 = vsel %vm1821, %v6356, %v6357
      %v6359 = vrot.slane %v6315, 6
      %v6360 = vrot.slane %v6318, 6
      %v6361 = vsel %vm1821, %v6359, %v6360
      %v6362 = vrot.slane %v6321, 6
      %v6363 = vrot.slane %v6324, 6
      %v6364 = vsel %vm1821, %v6362, %v6363
      %v6381 = vadd.f32 %v6241, %v6341
      %v6382 = vadd.f32 %v6242, %v6343
      %v6383 = vadd.f32 %v6243, %v6344
      %v6384 = vadd.f32 %v6244, %v6346
      %v6385 = vadd.f32 %v6245, %v6347
      %v6386 = vadd.f32 %v6246, %v6349
      %v6387 = vadd.f32 %v6247, %v6350
      %v6388 = vadd.f32 %v6248, %v6352
      %v6389 = vadd.f32 %v6249, %v6353
      %v6390 = vadd.f32 %v6250, %v6355
      %v6391 = vadd.f32 %v6251, %v6356
      %v6392 = vadd.f32 %v6252, %v6358
      %v6393 = vadd.f32 %v6253, %v6359
      %v6394 = vadd.f32 %v6254, %v6361
      %v6395 = vadd.f32 %v6255, %v6362
      %v6396 = vadd.f32 %v6256, %v6364
      %v6397 = vlaneseq
      %v6398 = vshrl.u32 %v6397, 7
      %v6399 = vsub.s32 0, %v6398
      %v6400 = vrot.slane %v2081, %v6399
      %v6401 = vmul.f32 %v2049, %v6400
      %v6402 = vmul.f32 %v2050, %v6400
      %v6403 = vmul.f32 %v2052, %v6400
      %v6404 = vmul.f32 %v2053, %v6400
      %v6405 = vmul.f32 %v2055, %v6400
      %v6406 = vmul.f32 %v2056, %v6400
      %v6407 = vmul.f32 %v2058, %v6400
      %v6408 = vmul.f32 %v2059, %v6400
      %v6409 = vmul.f32 %v2061, %v6400
      %v6410 = vmul.f32 %v2062, %v6400
      %v6411 = vmul.f32 %v2064, %v6400
      %v6412 = vmul.f32 %v2065, %v6400
      %v6413 = vmul.f32 %v2067, %v6400
      %v6414 = vmul.f32 %v2068, %v6400
      %v6415 = vmul.f32 %v2070, %v6400
      %v6416 = vmul.f32 %v2071, %v6400
      %v6417 = vsel %vm2103, %v6401, 0.0
      %6418 = vadd.xlane.f32.xlu0 %v6417
      %v6419 = vpop.xlane.xlu0 %6418
      %v6420 = vsel %vm2107, %v6402, 0.0
      %6421 = vadd.xlane.f32.xlu0 %v6420
      %v6422 = vpop.xlane.xlu0 %6421
      %v6423 = vsel %vm2103, %v6403, 0.0
      %6424 = vadd.xlane.f32.xlu0 %v6423
      %v6425 = vpop.xlane.xlu0 %6424
      %v6426 = vsel %vm2107, %v6404, 0.0
      %6427 = vadd.xlane.f32.xlu0 %v6426
      %v6428 = vpop.xlane.xlu0 %6427
      %v6429 = vsel %vm2103, %v6405, 0.0
      %6430 = vadd.xlane.f32.xlu0 %v6429
      %v6431 = vpop.xlane.xlu0 %6430
      %v6432 = vsel %vm2107, %v6406, 0.0
      %6433 = vadd.xlane.f32.xlu0 %v6432
      %v6434 = vpop.xlane.xlu0 %6433
      %v6435 = vsel %vm2103, %v6407, 0.0
      %6436 = vadd.xlane.f32.xlu0 %v6435
      %v6437 = vpop.xlane.xlu0 %6436
      %v6438 = vsel %vm2107, %v6408, 0.0
      %6439 = vadd.xlane.f32.xlu0 %v6438
      %v6440 = vpop.xlane.xlu0 %6439
      %v6441 = vsel %vm2103, %v6409, 0.0
      %6442 = vadd.xlane.f32.xlu0 %v6441
      %v6443 = vpop.xlane.xlu0 %6442
      %v6444 = vsel %vm2107, %v6410, 0.0
      %6445 = vadd.xlane.f32.xlu0 %v6444
      %v6446 = vpop.xlane.xlu0 %6445
      %v6447 = vsel %vm2103, %v6411, 0.0
      %6448 = vadd.xlane.f32.xlu0 %v6447
      %v6449 = vpop.xlane.xlu0 %6448
      %v6450 = vsel %vm2107, %v6412, 0.0
      %6451 = vadd.xlane.f32.xlu0 %v6450
      %v6452 = vpop.xlane.xlu0 %6451
      %v6453 = vsel %vm2103, %v6413, 0.0
      %6454 = vadd.xlane.f32.xlu0 %v6453
      %v6455 = vpop.xlane.xlu0 %6454
      %v6456 = vsel %vm2107, %v6414, 0.0
      %6457 = vadd.xlane.f32.xlu0 %v6456
      %v6458 = vpop.xlane.xlu0 %6457
      %v6459 = vsel %vm2103, %v6415, 0.0
      %6460 = vadd.xlane.f32.xlu0 %v6459
      %v6461 = vpop.xlane.xlu0 %6460
      %v6462 = vsel %vm2107, %v6416, 0.0
      %6463 = vadd.xlane.f32.xlu0 %v6462
      %v6464 = vpop.xlane.xlu0 %6463
      %v6465 = vadd.f32 %v6381, %v6419
      %v6466 = vadd.f32 %v6382, %v6422
      %v6467 = vadd.f32 %v6383, %v6425
      %v6468 = vadd.f32 %v6384, %v6428
      %v6469 = vadd.f32 %v6385, %v6431
      %v6470 = vadd.f32 %v6386, %v6434
      %v6471 = vadd.f32 %v6387, %v6437
      %v6472 = vadd.f32 %v6388, %v6440
      %v6473 = vadd.f32 %v6389, %v6443
      %v6474 = vadd.f32 %v6390, %v6446
      %v6475 = vadd.f32 %v6391, %v6449
      %v6476 = vadd.f32 %v6392, %v6452
      %v6477 = vadd.f32 %v6393, %v6455
      %v6478 = vadd.f32 %v6394, %v6458
      %v6479 = vadd.f32 %v6395, %v6461
      %v6480 = vadd.f32 %v6396, %v6464
      %v6481 = vlaneseq
      %v6482 = vshrl.u32 %v6481, 7
      %v6483 = vsub.s32 1, %v6482
      %v6484 = vrot.slane %v2081, %v6483
      %v6485 = vmul.f32 %v2049, %v6484
      %v6486 = vmul.f32 %v2050, %v6484
      %v6487 = vmul.f32 %v2052, %v6484
      %v6488 = vmul.f32 %v2053, %v6484
      %v6489 = vmul.f32 %v2055, %v6484
      %v6490 = vmul.f32 %v2056, %v6484
      %v6491 = vmul.f32 %v2058, %v6484
      %v6492 = vmul.f32 %v2059, %v6484
      %v6493 = vmul.f32 %v2061, %v6484
      %v6494 = vmul.f32 %v2062, %v6484
      %v6495 = vmul.f32 %v2064, %v6484
      %v6496 = vmul.f32 %v2065, %v6484
      %v6497 = vmul.f32 %v2067, %v6484
      %v6498 = vmul.f32 %v2068, %v6484
      %v6499 = vmul.f32 %v2070, %v6484
      %v6500 = vmul.f32 %v2071, %v6484
      %v6501 = vsel %vm2189, %v6485, 0.0
      %6502 = vadd.xlane.f32.xlu0 %v6501
      %v6503 = vpop.xlane.xlu0 %6502
      %v6504 = vsel %vm2193, %v6486, 0.0
      %6505 = vadd.xlane.f32.xlu0 %v6504
      %v6506 = vpop.xlane.xlu0 %6505
      %v6507 = vsel %vm2189, %v6487, 0.0
      %6508 = vadd.xlane.f32.xlu0 %v6507
      %v6509 = vpop.xlane.xlu0 %6508
      %v6510 = vsel %vm2193, %v6488, 0.0
      %6511 = vadd.xlane.f32.xlu0 %v6510
      %v6512 = vpop.xlane.xlu0 %6511
      %v6513 = vsel %vm2189, %v6489, 0.0
      %6514 = vadd.xlane.f32.xlu0 %v6513
      %v6515 = vpop.xlane.xlu0 %6514
      %v6516 = vsel %vm2193, %v6490, 0.0
      %6517 = vadd.xlane.f32.xlu0 %v6516
      %v6518 = vpop.xlane.xlu0 %6517
      %v6519 = vsel %vm2189, %v6491, 0.0
      %6520 = vadd.xlane.f32.xlu0 %v6519
      %v6521 = vpop.xlane.xlu0 %6520
      %v6522 = vsel %vm2193, %v6492, 0.0
      %6523 = vadd.xlane.f32.xlu0 %v6522
      %v6524 = vpop.xlane.xlu0 %6523
      %v6525 = vsel %vm2189, %v6493, 0.0
      %6526 = vadd.xlane.f32.xlu0 %v6525
      %v6527 = vpop.xlane.xlu0 %6526
      %v6528 = vsel %vm2193, %v6494, 0.0
      %6529 = vadd.xlane.f32.xlu0 %v6528
      %v6530 = vpop.xlane.xlu0 %6529
      %v6531 = vsel %vm2189, %v6495, 0.0
      %6532 = vadd.xlane.f32.xlu0 %v6531
      %v6533 = vpop.xlane.xlu0 %6532
      %v6534 = vsel %vm2193, %v6496, 0.0
      %6535 = vadd.xlane.f32.xlu0 %v6534
      %v6536 = vpop.xlane.xlu0 %6535
      %v6537 = vsel %vm2189, %v6497, 0.0
      %6538 = vadd.xlane.f32.xlu0 %v6537
      %v6539 = vpop.xlane.xlu0 %6538
      %v6540 = vsel %vm2193, %v6498, 0.0
      %6541 = vadd.xlane.f32.xlu0 %v6540
      %v6542 = vpop.xlane.xlu0 %6541
      %v6543 = vsel %vm2189, %v6499, 0.0
      %6544 = vadd.xlane.f32.xlu0 %v6543
      %v6545 = vpop.xlane.xlu0 %6544
      %v6546 = vsel %vm2193, %v6500, 0.0
      %6547 = vadd.xlane.f32.xlu0 %v6546
      %v6548 = vpop.xlane.xlu0 %6547
      %v6565 = vrot.slane %v6503, 1
      %v6566 = vrot.slane %v6506, 1
      %v6567 = vsel %vm487, %v6565, %v6566
      %v6568 = vrot.slane %v6509, 1
      %v6569 = vrot.slane %v6512, 1
      %v6570 = vsel %vm487, %v6568, %v6569
      %v6571 = vrot.slane %v6515, 1
      %v6572 = vrot.slane %v6518, 1
      %v6573 = vsel %vm487, %v6571, %v6572
      %v6574 = vrot.slane %v6521, 1
      %v6575 = vrot.slane %v6524, 1
      %v6576 = vsel %vm487, %v6574, %v6575
      %v6577 = vrot.slane %v6527, 1
      %v6578 = vrot.slane %v6530, 1
      %v6579 = vsel %vm487, %v6577, %v6578
      %v6580 = vrot.slane %v6533, 1
      %v6581 = vrot.slane %v6536, 1
      %v6582 = vsel %vm487, %v6580, %v6581
      %v6583 = vrot.slane %v6539, 1
      %v6584 = vrot.slane %v6542, 1
      %v6585 = vsel %vm487, %v6583, %v6584
      %v6586 = vrot.slane %v6545, 1
      %v6587 = vrot.slane %v6548, 1
      %v6588 = vsel %vm487, %v6586, %v6587
      %v6605 = vadd.f32 %v6465, %v6567
      %v6606 = vadd.f32 %v6466, %v6566
      %v6607 = vadd.f32 %v6467, %v6570
      %v6608 = vadd.f32 %v6468, %v6569
      %v6609 = vadd.f32 %v6469, %v6573
      %v6610 = vadd.f32 %v6470, %v6572
      %v6611 = vadd.f32 %v6471, %v6576
      %v6612 = vadd.f32 %v6472, %v6575
      %v6613 = vadd.f32 %v6473, %v6579
      %v6614 = vadd.f32 %v6474, %v6578
      %v6615 = vadd.f32 %v6475, %v6582
      %v6616 = vadd.f32 %v6476, %v6581
      %v6617 = vadd.f32 %v6477, %v6585
      %v6618 = vadd.f32 %v6478, %v6584
      %v6619 = vadd.f32 %v6479, %v6588
      %v6620 = vadd.f32 %v6480, %v6587
      %v6621 = vlaneseq
      %v6622 = vshrl.u32 %v6621, 7
      %v6623 = vsub.s32 2, %v6622
      %v6624 = vrot.slane %v2081, %v6623
      %v6625 = vmul.f32 %v2049, %v6624
      %v6626 = vmul.f32 %v2050, %v6624
      %v6627 = vmul.f32 %v2052, %v6624
      %v6628 = vmul.f32 %v2053, %v6624
      %v6629 = vmul.f32 %v2055, %v6624
      %v6630 = vmul.f32 %v2056, %v6624
      %v6631 = vmul.f32 %v2058, %v6624
      %v6632 = vmul.f32 %v2059, %v6624
      %v6633 = vmul.f32 %v2061, %v6624
      %v6634 = vmul.f32 %v2062, %v6624
      %v6635 = vmul.f32 %v2064, %v6624
      %v6636 = vmul.f32 %v2065, %v6624
      %v6637 = vmul.f32 %v2067, %v6624
      %v6638 = vmul.f32 %v2068, %v6624
      %v6639 = vmul.f32 %v2070, %v6624
      %v6640 = vmul.f32 %v2071, %v6624
      %v6641 = vsel %vm2331, %v6625, 0.0
      %6642 = vadd.xlane.f32.xlu0 %v6641
      %v6643 = vpop.xlane.xlu0 %6642
      %v6644 = vsel %vm2335, %v6626, 0.0
      %6645 = vadd.xlane.f32.xlu0 %v6644
      %v6646 = vpop.xlane.xlu0 %6645
      %v6647 = vsel %vm2331, %v6627, 0.0
      %6648 = vadd.xlane.f32.xlu0 %v6647
      %v6649 = vpop.xlane.xlu0 %6648
      %v6650 = vsel %vm2335, %v6628, 0.0
      %6651 = vadd.xlane.f32.xlu0 %v6650
      %v6652 = vpop.xlane.xlu0 %6651
      %v6653 = vsel %vm2331, %v6629, 0.0
      %6654 = vadd.xlane.f32.xlu0 %v6653
      %v6655 = vpop.xlane.xlu0 %6654
      %v6656 = vsel %vm2335, %v6630, 0.0
      %6657 = vadd.xlane.f32.xlu0 %v6656
      %v6658 = vpop.xlane.xlu0 %6657
      %v6659 = vsel %vm2331, %v6631, 0.0
      %6660 = vadd.xlane.f32.xlu0 %v6659
      %v6661 = vpop.xlane.xlu0 %6660
      %v6662 = vsel %vm2335, %v6632, 0.0
      %6663 = vadd.xlane.f32.xlu0 %v6662
      %v6664 = vpop.xlane.xlu0 %6663
      %v6665 = vsel %vm2331, %v6633, 0.0
      %6666 = vadd.xlane.f32.xlu0 %v6665
      %v6667 = vpop.xlane.xlu0 %6666
      %v6668 = vsel %vm2335, %v6634, 0.0
      %6669 = vadd.xlane.f32.xlu0 %v6668
      %v6670 = vpop.xlane.xlu0 %6669
      %v6671 = vsel %vm2331, %v6635, 0.0
      %6672 = vadd.xlane.f32.xlu0 %v6671
      %v6673 = vpop.xlane.xlu0 %6672
      %v6674 = vsel %vm2335, %v6636, 0.0
      %6675 = vadd.xlane.f32.xlu0 %v6674
      %v6676 = vpop.xlane.xlu0 %6675
      %v6677 = vsel %vm2331, %v6637, 0.0
      %6678 = vadd.xlane.f32.xlu0 %v6677
      %v6679 = vpop.xlane.xlu0 %6678
      %v6680 = vsel %vm2335, %v6638, 0.0
      %6681 = vadd.xlane.f32.xlu0 %v6680
      %v6682 = vpop.xlane.xlu0 %6681
      %v6683 = vsel %vm2331, %v6639, 0.0
      %6684 = vadd.xlane.f32.xlu0 %v6683
      %v6685 = vpop.xlane.xlu0 %6684
      %v6686 = vsel %vm2335, %v6640, 0.0
      %6687 = vadd.xlane.f32.xlu0 %v6686
      %v6688 = vpop.xlane.xlu0 %6687
      %v6705 = vrot.slane %v6643, 2
      %v6706 = vrot.slane %v6646, 2
      %v6707 = vsel %vm760, %v6705, %v6706
      %v6708 = vrot.slane %v6649, 2
      %v6709 = vrot.slane %v6652, 2
      %v6710 = vsel %vm760, %v6708, %v6709
      %v6711 = vrot.slane %v6655, 2
      %v6712 = vrot.slane %v6658, 2
      %v6713 = vsel %vm760, %v6711, %v6712
      %v6714 = vrot.slane %v6661, 2
      %v6715 = vrot.slane %v6664, 2
      %v6716 = vsel %vm760, %v6714, %v6715
      %v6717 = vrot.slane %v6667, 2
      %v6718 = vrot.slane %v6670, 2
      %v6719 = vsel %vm760, %v6717, %v6718
      %v6720 = vrot.slane %v6673, 2
      %v6721 = vrot.slane %v6676, 2
      %v6722 = vsel %vm760, %v6720, %v6721
      %v6723 = vrot.slane %v6679, 2
      %v6724 = vrot.slane %v6682, 2
      %v6725 = vsel %vm760, %v6723, %v6724
      %v6726 = vrot.slane %v6685, 2
      %v6727 = vrot.slane %v6688, 2
      %v6728 = vsel %vm760, %v6726, %v6727
      %v6745 = vadd.f32 %v6605, %v6707
      %v6746 = vadd.f32 %v6606, %v6706
      %v6747 = vadd.f32 %v6607, %v6710
      %v6748 = vadd.f32 %v6608, %v6709
      %v6749 = vadd.f32 %v6609, %v6713
      %v6750 = vadd.f32 %v6610, %v6712
      %v6751 = vadd.f32 %v6611, %v6716
      %v6752 = vadd.f32 %v6612, %v6715
      %v6753 = vadd.f32 %v6613, %v6719
      %v6754 = vadd.f32 %v6614, %v6718
      %v6755 = vadd.f32 %v6615, %v6722
      %v6756 = vadd.f32 %v6616, %v6721
      %v6757 = vadd.f32 %v6617, %v6725
      %v6758 = vadd.f32 %v6618, %v6724
      %v6759 = vadd.f32 %v6619, %v6728
      %v6760 = vadd.f32 %v6620, %v6727
      %v6761 = vlaneseq
      %v6762 = vshrl.u32 %v6761, 7
      %v6763 = vsub.s32 3, %v6762
      %v6764 = vrot.slane %v2081, %v6763
      %v6765 = vmul.f32 %v2050, %v6764
      %v6766 = vmul.f32 %v2053, %v6764
      %v6767 = vmul.f32 %v2056, %v6764
      %v6768 = vmul.f32 %v2059, %v6764
      %v6769 = vmul.f32 %v2062, %v6764
      %v6770 = vmul.f32 %v2065, %v6764
      %v6771 = vmul.f32 %v2068, %v6764
      %v6772 = vmul.f32 %v2071, %v6764
      %v6773 = vsel %vm1817, %v6765, 0.0
      %6774 = vadd.xlane.f32.xlu0 %v6773
      %v6775 = vpop.xlane.xlu0 %6774
      %v6776 = vsel %vm1817, %v6766, 0.0
      %6777 = vadd.xlane.f32.xlu0 %v6776
      %v6778 = vpop.xlane.xlu0 %6777
      %v6779 = vsel %vm1817, %v6767, 0.0
      %6780 = vadd.xlane.f32.xlu0 %v6779
      %v6781 = vpop.xlane.xlu0 %6780
      %v6782 = vsel %vm1817, %v6768, 0.0
      %6783 = vadd.xlane.f32.xlu0 %v6782
      %v6784 = vpop.xlane.xlu0 %6783
      %v6785 = vsel %vm1817, %v6769, 0.0
      %6786 = vadd.xlane.f32.xlu0 %v6785
      %v6787 = vpop.xlane.xlu0 %6786
      %v6788 = vsel %vm1817, %v6770, 0.0
      %6789 = vadd.xlane.f32.xlu0 %v6788
      %v6790 = vpop.xlane.xlu0 %6789
      %v6791 = vsel %vm1817, %v6771, 0.0
      %6792 = vadd.xlane.f32.xlu0 %v6791
      %v6793 = vpop.xlane.xlu0 %6792
      %v6794 = vsel %vm1817, %v6772, 0.0
      %6795 = vadd.xlane.f32.xlu0 %v6794
      %v6796 = vpop.xlane.xlu0 %6795
      %v6805 = vrot.slane %v6775, 3
      %v6806 = vrot.slane %v6778, 3
      %v6807 = vrot.slane %v6781, 3
      %v6808 = vrot.slane %v6784, 3
      %v6809 = vrot.slane %v6787, 3
      %v6810 = vrot.slane %v6790, 3
      %v6811 = vrot.slane %v6793, 3
      %v6812 = vrot.slane %v6796, 3
      %v6821 = vadd.f32 %v6745, %v6805
      %v6822 = vadd.f32 %v6746, %v6805
      %v6823 = vadd.f32 %v6747, %v6806
      %v6824 = vadd.f32 %v6748, %v6806
      %v6825 = vadd.f32 %v6749, %v6807
      %v6826 = vadd.f32 %v6750, %v6807
      %v6827 = vadd.f32 %v6751, %v6808
      %v6828 = vadd.f32 %v6752, %v6808
      %v6829 = vadd.f32 %v6753, %v6809
      %v6830 = vadd.f32 %v6754, %v6809
      %v6831 = vadd.f32 %v6755, %v6810
      %v6832 = vadd.f32 %v6756, %v6810
      %v6833 = vadd.f32 %v6757, %v6811
      %v6834 = vadd.f32 %v6758, %v6811
      %v6835 = vadd.f32 %v6759, %v6812
      %v6836 = vadd.f32 %v6760, %v6812
      %v6837 = vlaneseq
      %v6838 = vshrl.u32 %v6837, 7
      %v6839 = vsub.s32 4, %v6838
      %v6840 = vrot.slane %v2081, %v6839
      %v6841 = vmul.f32 %v2050, %v6840
      %v6842 = vmul.f32 %v2051, %v6840
      %v6843 = vmul.f32 %v2053, %v6840
      %v6844 = vmul.f32 %v2054, %v6840
      %v6845 = vmul.f32 %v2056, %v6840
      %v6846 = vmul.f32 %v2057, %v6840
      %v6847 = vmul.f32 %v2059, %v6840
      %v6848 = vmul.f32 %v2060, %v6840
      %v6849 = vmul.f32 %v2062, %v6840
      %v6850 = vmul.f32 %v2063, %v6840
      %v6851 = vmul.f32 %v2065, %v6840
      %v6852 = vmul.f32 %v2066, %v6840
      %v6853 = vmul.f32 %v2068, %v6840
      %v6854 = vmul.f32 %v2069, %v6840
      %v6855 = vmul.f32 %v2071, %v6840
      %v6856 = vmul.f32 %v2072, %v6840
      %v6857 = vsel %vm2549, %v6841, 0.0
      %6858 = vadd.xlane.f32.xlu0 %v6857
      %v6859 = vpop.xlane.xlu0 %6858
      %v6860 = vsel %vm2553, %v6842, 0.0
      %6861 = vadd.xlane.f32.xlu0 %v6860
      %v6862 = vpop.xlane.xlu0 %6861
      %v6863 = vsel %vm2549, %v6843, 0.0
      %6864 = vadd.xlane.f32.xlu0 %v6863
      %v6865 = vpop.xlane.xlu0 %6864
      %v6866 = vsel %vm2553, %v6844, 0.0
      %6867 = vadd.xlane.f32.xlu0 %v6866
      %v6868 = vpop.xlane.xlu0 %6867
      %v6869 = vsel %vm2549, %v6845, 0.0
      %6870 = vadd.xlane.f32.xlu0 %v6869
      %v6871 = vpop.xlane.xlu0 %6870
      %v6872 = vsel %vm2553, %v6846, 0.0
      %6873 = vadd.xlane.f32.xlu0 %v6872
      %v6874 = vpop.xlane.xlu0 %6873
      %v6875 = vsel %vm2549, %v6847, 0.0
      %6876 = vadd.xlane.f32.xlu0 %v6875
      %v6877 = vpop.xlane.xlu0 %6876
      %v6878 = vsel %vm2553, %v6848, 0.0
      %6879 = vadd.xlane.f32.xlu0 %v6878
      %v6880 = vpop.xlane.xlu0 %6879
      %v6881 = vsel %vm2549, %v6849, 0.0
      %6882 = vadd.xlane.f32.xlu0 %v6881
      %v6883 = vpop.xlane.xlu0 %6882
      %v6884 = vsel %vm2553, %v6850, 0.0
      %6885 = vadd.xlane.f32.xlu0 %v6884
      %v6886 = vpop.xlane.xlu0 %6885
      %v6887 = vsel %vm2549, %v6851, 0.0
      %6888 = vadd.xlane.f32.xlu0 %v6887
      %v6889 = vpop.xlane.xlu0 %6888
      %v6890 = vsel %vm2553, %v6852, 0.0
      %6891 = vadd.xlane.f32.xlu0 %v6890
      %v6892 = vpop.xlane.xlu0 %6891
      %v6893 = vsel %vm2549, %v6853, 0.0
      %6894 = vadd.xlane.f32.xlu0 %v6893
      %v6895 = vpop.xlane.xlu0 %6894
      %v6896 = vsel %vm2553, %v6854, 0.0
      %6897 = vadd.xlane.f32.xlu0 %v6896
      %v6898 = vpop.xlane.xlu0 %6897
      %v6899 = vsel %vm2549, %v6855, 0.0
      %6900 = vadd.xlane.f32.xlu0 %v6899
      %v6901 = vpop.xlane.xlu0 %6900
      %v6902 = vsel %vm2553, %v6856, 0.0
      %6903 = vadd.xlane.f32.xlu0 %v6902
      %v6904 = vpop.xlane.xlu0 %6903
      %v6921 = vrot.slane %v6859, 4
      %v6922 = vrot.slane %v6862, 4
      %v6923 = vsel %vm2615, %v6921, %v6922
      %v6924 = vrot.slane %v6865, 4
      %v6925 = vrot.slane %v6868, 4
      %v6926 = vsel %vm2615, %v6924, %v6925
      %v6927 = vrot.slane %v6871, 4
      %v6928 = vrot.slane %v6874, 4
      %v6929 = vsel %vm2615, %v6927, %v6928
      %v6930 = vrot.slane %v6877, 4
      %v6931 = vrot.slane %v6880, 4
      %v6932 = vsel %vm2615, %v6930, %v6931
      %v6933 = vrot.slane %v6883, 4
      %v6934 = vrot.slane %v6886, 4
      %v6935 = vsel %vm2615, %v6933, %v6934
      %v6936 = vrot.slane %v6889, 4
      %v6937 = vrot.slane %v6892, 4
      %v6938 = vsel %vm2615, %v6936, %v6937
      %v6939 = vrot.slane %v6895, 4
      %v6940 = vrot.slane %v6898, 4
      %v6941 = vsel %vm2615, %v6939, %v6940
      %v6942 = vrot.slane %v6901, 4
      %v6943 = vrot.slane %v6904, 4
      %v6944 = vsel %vm2615, %v6942, %v6943
      %v6961 = vadd.f32 %v6821, %v6921
      %v6962 = vadd.f32 %v6822, %v6923
      %v6963 = vadd.f32 %v6823, %v6924
      %v6964 = vadd.f32 %v6824, %v6926
      %v6965 = vadd.f32 %v6825, %v6927
      %v6966 = vadd.f32 %v6826, %v6929
      %v6967 = vadd.f32 %v6827, %v6930
      %v6968 = vadd.f32 %v6828, %v6932
      %v6969 = vadd.f32 %v6829, %v6933
      %v6970 = vadd.f32 %v6830, %v6935
      %v6971 = vadd.f32 %v6831, %v6936
      %v6972 = vadd.f32 %v6832, %v6938
      %v6973 = vadd.f32 %v6833, %v6939
      %v6974 = vadd.f32 %v6834, %v6941
      %v6975 = vadd.f32 %v6835, %v6942
      %v6976 = vadd.f32 %v6836, %v6944
      %v6977 = vlaneseq
      %v6978 = vshrl.u32 %v6977, 7
      %v6979 = vsub.s32 5, %v6978
      %v6980 = vrot.slane %v2081, %v6979
      %v6981 = vmul.f32 %v2050, %v6980
      %v6982 = vmul.f32 %v2051, %v6980
      %v6983 = vmul.f32 %v2053, %v6980
      %v6984 = vmul.f32 %v2054, %v6980
      %v6985 = vmul.f32 %v2056, %v6980
      %v6986 = vmul.f32 %v2057, %v6980
      %v6987 = vmul.f32 %v2059, %v6980
      %v6988 = vmul.f32 %v2060, %v6980
      %v6989 = vmul.f32 %v2062, %v6980
      %v6990 = vmul.f32 %v2063, %v6980
      %v6991 = vmul.f32 %v2065, %v6980
      %v6992 = vmul.f32 %v2066, %v6980
      %v6993 = vmul.f32 %v2068, %v6980
      %v6994 = vmul.f32 %v2069, %v6980
      %v6995 = vmul.f32 %v2071, %v6980
      %v6996 = vmul.f32 %v2072, %v6980
      %v6997 = vsel %vm2692, %v6981, 0.0
      %6998 = vadd.xlane.f32.xlu0 %v6997
      %v6999 = vpop.xlane.xlu0 %6998
      %v7000 = vsel %vm2696, %v6982, 0.0
      %7001 = vadd.xlane.f32.xlu0 %v7000
      %v7002 = vpop.xlane.xlu0 %7001
      %v7003 = vsel %vm2692, %v6983, 0.0
      %7004 = vadd.xlane.f32.xlu0 %v7003
      %v7005 = vpop.xlane.xlu0 %7004
      %v7006 = vsel %vm2696, %v6984, 0.0
      %7007 = vadd.xlane.f32.xlu0 %v7006
      %v7008 = vpop.xlane.xlu0 %7007
      %v7009 = vsel %vm2692, %v6985, 0.0
      %7010 = vadd.xlane.f32.xlu0 %v7009
      %v7011 = vpop.xlane.xlu0 %7010
      %v7012 = vsel %vm2696, %v6986, 0.0
      %7013 = vadd.xlane.f32.xlu0 %v7012
      %v7014 = vpop.xlane.xlu0 %7013
      %v7015 = vsel %vm2692, %v6987, 0.0
      %7016 = vadd.xlane.f32.xlu0 %v7015
      %v7017 = vpop.xlane.xlu0 %7016
      %v7018 = vsel %vm2696, %v6988, 0.0
      %7019 = vadd.xlane.f32.xlu0 %v7018
      %v7020 = vpop.xlane.xlu0 %7019
      %v7021 = vsel %vm2692, %v6989, 0.0
      %7022 = vadd.xlane.f32.xlu0 %v7021
      %v7023 = vpop.xlane.xlu0 %7022
      %v7024 = vsel %vm2696, %v6990, 0.0
      %7025 = vadd.xlane.f32.xlu0 %v7024
      %v7026 = vpop.xlane.xlu0 %7025
      %v7027 = vsel %vm2692, %v6991, 0.0
      %7028 = vadd.xlane.f32.xlu0 %v7027
      %v7029 = vpop.xlane.xlu0 %7028
      %v7030 = vsel %vm2696, %v6992, 0.0
      %7031 = vadd.xlane.f32.xlu0 %v7030
      %v7032 = vpop.xlane.xlu0 %7031
      %v7033 = vsel %vm2692, %v6993, 0.0
      %7034 = vadd.xlane.f32.xlu0 %v7033
      %v7035 = vpop.xlane.xlu0 %7034
      %v7036 = vsel %vm2696, %v6994, 0.0
      %7037 = vadd.xlane.f32.xlu0 %v7036
      %v7038 = vpop.xlane.xlu0 %7037
      %v7039 = vsel %vm2692, %v6995, 0.0
      %7040 = vadd.xlane.f32.xlu0 %v7039
      %v7041 = vpop.xlane.xlu0 %7040
      %v7042 = vsel %vm2696, %v6996, 0.0
      %7043 = vadd.xlane.f32.xlu0 %v7042
      %v7044 = vpop.xlane.xlu0 %7043
      %v7061 = vrot.slane %v6999, 5
      %v7062 = vrot.slane %v7002, 5
      %v7063 = vsel %vm2758, %v7061, %v7062
      %v7064 = vrot.slane %v7005, 5
      %v7065 = vrot.slane %v7008, 5
      %v7066 = vsel %vm2758, %v7064, %v7065
      %v7067 = vrot.slane %v7011, 5
      %v7068 = vrot.slane %v7014, 5
      %v7069 = vsel %vm2758, %v7067, %v7068
      %v7070 = vrot.slane %v7017, 5
      %v7071 = vrot.slane %v7020, 5
      %v7072 = vsel %vm2758, %v7070, %v7071
      %v7073 = vrot.slane %v7023, 5
      %v7074 = vrot.slane %v7026, 5
      %v7075 = vsel %vm2758, %v7073, %v7074
      %v7076 = vrot.slane %v7029, 5
      %v7077 = vrot.slane %v7032, 5
      %v7078 = vsel %vm2758, %v7076, %v7077
      %v7079 = vrot.slane %v7035, 5
      %v7080 = vrot.slane %v7038, 5
      %v7081 = vsel %vm2758, %v7079, %v7080
      %v7082 = vrot.slane %v7041, 5
      %v7083 = vrot.slane %v7044, 5
      %v7084 = vsel %vm2758, %v7082, %v7083
      %v7101 = vadd.f32 %v6961, %v7061
      %v7102 = vadd.f32 %v6962, %v7063
      %v7103 = vadd.f32 %v6963, %v7064
      %v7104 = vadd.f32 %v6964, %v7066
      %v7105 = vadd.f32 %v6965, %v7067
      %v7106 = vadd.f32 %v6966, %v7069
      %v7107 = vadd.f32 %v6967, %v7070
      %v7108 = vadd.f32 %v6968, %v7072
      %v7109 = vadd.f32 %v6969, %v7073
      %v7110 = vadd.f32 %v6970, %v7075
      %v7111 = vadd.f32 %v6971, %v7076
      %v7112 = vadd.f32 %v6972, %v7078
      %v7113 = vadd.f32 %v6973, %v7079
      %v7114 = vadd.f32 %v6974, %v7081
      %v7115 = vadd.f32 %v6975, %v7082
      %v7116 = vadd.f32 %v6976, %v7084
      %v7117 = vlaneseq
      %v7118 = vshrl.u32 %v7117, 7
      %v7119 = vsub.s32 6, %v7118
      %v7120 = vrot.slane %v2081, %v7119
      %v7121 = vmul.f32 %v2050, %v7120
      %v7122 = vmul.f32 %v2051, %v7120
      %v7123 = vmul.f32 %v2053, %v7120
      %v7124 = vmul.f32 %v2054, %v7120
      %v7125 = vmul.f32 %v2056, %v7120
      %v7126 = vmul.f32 %v2057, %v7120
      %v7127 = vmul.f32 %v2059, %v7120
      %v7128 = vmul.f32 %v2060, %v7120
      %v7129 = vmul.f32 %v2062, %v7120
      %v7130 = vmul.f32 %v2063, %v7120
      %v7131 = vmul.f32 %v2065, %v7120
      %v7132 = vmul.f32 %v2066, %v7120
      %v7133 = vmul.f32 %v2068, %v7120
      %v7134 = vmul.f32 %v2069, %v7120
      %v7135 = vmul.f32 %v2071, %v7120
      %v7136 = vmul.f32 %v2072, %v7120
      %v7137 = vsel %vm2835, %v7121, 0.0
      %7138 = vadd.xlane.f32.xlu0 %v7137
      %v7139 = vpop.xlane.xlu0 %7138
      %v7140 = vsel %vm2839, %v7122, 0.0
      %7141 = vadd.xlane.f32.xlu0 %v7140
      %v7142 = vpop.xlane.xlu0 %7141
      %v7143 = vsel %vm2835, %v7123, 0.0
      %7144 = vadd.xlane.f32.xlu0 %v7143
      %v7145 = vpop.xlane.xlu0 %7144
      %v7146 = vsel %vm2839, %v7124, 0.0
      %7147 = vadd.xlane.f32.xlu0 %v7146
      %v7148 = vpop.xlane.xlu0 %7147
      %v7149 = vsel %vm2835, %v7125, 0.0
      %7150 = vadd.xlane.f32.xlu0 %v7149
      %v7151 = vpop.xlane.xlu0 %7150
      %v7152 = vsel %vm2839, %v7126, 0.0
      %7153 = vadd.xlane.f32.xlu0 %v7152
      %v7154 = vpop.xlane.xlu0 %7153
      %v7155 = vsel %vm2835, %v7127, 0.0
      %7156 = vadd.xlane.f32.xlu0 %v7155
      %v7157 = vpop.xlane.xlu0 %7156
      %v7158 = vsel %vm2839, %v7128, 0.0
      %7159 = vadd.xlane.f32.xlu0 %v7158
      %v7160 = vpop.xlane.xlu0 %7159
      %v7161 = vsel %vm2835, %v7129, 0.0
      %7162 = vadd.xlane.f32.xlu0 %v7161
      %v7163 = vpop.xlane.xlu0 %7162
      %v7164 = vsel %vm2839, %v7130, 0.0
      %7165 = vadd.xlane.f32.xlu0 %v7164
      %v7166 = vpop.xlane.xlu0 %7165
      %v7167 = vsel %vm2835, %v7131, 0.0
      %7168 = vadd.xlane.f32.xlu0 %v7167
      %v7169 = vpop.xlane.xlu0 %7168
      %v7170 = vsel %vm2839, %v7132, 0.0
      %7171 = vadd.xlane.f32.xlu0 %v7170
      %v7172 = vpop.xlane.xlu0 %7171
      %v7173 = vsel %vm2835, %v7133, 0.0
      %7174 = vadd.xlane.f32.xlu0 %v7173
      %v7175 = vpop.xlane.xlu0 %7174
      %v7176 = vsel %vm2839, %v7134, 0.0
      %7177 = vadd.xlane.f32.xlu0 %v7176
      %v7178 = vpop.xlane.xlu0 %7177
      %v7179 = vsel %vm2835, %v7135, 0.0
      %7180 = vadd.xlane.f32.xlu0 %v7179
      %v7181 = vpop.xlane.xlu0 %7180
      %v7182 = vsel %vm2839, %v7136, 0.0
      %7183 = vadd.xlane.f32.xlu0 %v7182
      %v7184 = vpop.xlane.xlu0 %7183
      %v7201 = vrot.slane %v7139, 6
      %v7202 = vrot.slane %v7142, 6
      %v7203 = vsel %vm1821, %v7201, %v7202
      %v7204 = vrot.slane %v7145, 6
      %v7205 = vrot.slane %v7148, 6
      %v7206 = vsel %vm1821, %v7204, %v7205
      %v7207 = vrot.slane %v7151, 6
      %v7208 = vrot.slane %v7154, 6
      %v7209 = vsel %vm1821, %v7207, %v7208
      %v7210 = vrot.slane %v7157, 6
      %v7211 = vrot.slane %v7160, 6
      %v7212 = vsel %vm1821, %v7210, %v7211
      %v7213 = vrot.slane %v7163, 6
      %v7214 = vrot.slane %v7166, 6
      %v7215 = vsel %vm1821, %v7213, %v7214
      %v7216 = vrot.slane %v7169, 6
      %v7217 = vrot.slane %v7172, 6
      %v7218 = vsel %vm1821, %v7216, %v7217
      %v7219 = vrot.slane %v7175, 6
      %v7220 = vrot.slane %v7178, 6
      %v7221 = vsel %vm1821, %v7219, %v7220
      %v7222 = vrot.slane %v7181, 6
      %v7223 = vrot.slane %v7184, 6
      %v7224 = vsel %vm1821, %v7222, %v7223
      %v7241 = vadd.f32 %v7101, %v7201
      %v7242 = vadd.f32 %v7102, %v7203
      %v7243 = vadd.f32 %v7103, %v7204
      %v7244 = vadd.f32 %v7104, %v7206
      %v7245 = vadd.f32 %v7105, %v7207
      %v7246 = vadd.f32 %v7106, %v7209
      %v7247 = vadd.f32 %v7107, %v7210
      %v7248 = vadd.f32 %v7108, %v7212
      %v7249 = vadd.f32 %v7109, %v7213
      %v7250 = vadd.f32 %v7110, %v7215
      %v7251 = vadd.f32 %v7111, %v7216
      %v7252 = vadd.f32 %v7112, %v7218
      %v7253 = vadd.f32 %v7113, %v7219
      %v7254 = vadd.f32 %v7114, %v7221
      %v7255 = vadd.f32 %v7115, %v7222
      %v7256 = vadd.f32 %v7116, %v7224
      %v7257 = vlaneseq
      %v7258 = vshrl.u32 %v7257, 7
      %v7259 = vsub.s32 0, %v7258
      %v7260 = vrot.slane %v2082, %v7259
      %v7261 = vmul.f32 %v2052, %v7260
      %v7262 = vmul.f32 %v2053, %v7260
      %v7263 = vmul.f32 %v2055, %v7260
      %v7264 = vmul.f32 %v2056, %v7260
      %v7265 = vmul.f32 %v2058, %v7260
      %v7266 = vmul.f32 %v2059, %v7260
      %v7267 = vmul.f32 %v2061, %v7260
      %v7268 = vmul.f32 %v2062, %v7260
      %v7269 = vmul.f32 %v2064, %v7260
      %v7270 = vmul.f32 %v2065, %v7260
      %v7271 = vmul.f32 %v2067, %v7260
      %v7272 = vmul.f32 %v2068, %v7260
      %v7273 = vmul.f32 %v2070, %v7260
      %v7274 = vmul.f32 %v2071, %v7260
      %v7275 = vmul.f32 %v2073, %v7260
      %v7276 = vmul.f32 %v2074, %v7260
      %v7277 = vsel %vm2103, %v7261, 0.0
      %7278 = vadd.xlane.f32.xlu0 %v7277
      %v7279 = vpop.xlane.xlu0 %7278
      %v7280 = vsel %vm2107, %v7262, 0.0
      %7281 = vadd.xlane.f32.xlu0 %v7280
      %v7282 = vpop.xlane.xlu0 %7281
      %v7283 = vsel %vm2103, %v7263, 0.0
      %7284 = vadd.xlane.f32.xlu0 %v7283
      %v7285 = vpop.xlane.xlu0 %7284
      %v7286 = vsel %vm2107, %v7264, 0.0
      %7287 = vadd.xlane.f32.xlu0 %v7286
      %v7288 = vpop.xlane.xlu0 %7287
      %v7289 = vsel %vm2103, %v7265, 0.0
      %7290 = vadd.xlane.f32.xlu0 %v7289
      %v7291 = vpop.xlane.xlu0 %7290
      %v7292 = vsel %vm2107, %v7266, 0.0
      %7293 = vadd.xlane.f32.xlu0 %v7292
      %v7294 = vpop.xlane.xlu0 %7293
      %v7295 = vsel %vm2103, %v7267, 0.0
      %7296 = vadd.xlane.f32.xlu0 %v7295
      %v7297 = vpop.xlane.xlu0 %7296
      %v7298 = vsel %vm2107, %v7268, 0.0
      %7299 = vadd.xlane.f32.xlu0 %v7298
      %v7300 = vpop.xlane.xlu0 %7299
      %v7301 = vsel %vm2103, %v7269, 0.0
      %7302 = vadd.xlane.f32.xlu0 %v7301
      %v7303 = vpop.xlane.xlu0 %7302
      %v7304 = vsel %vm2107, %v7270, 0.0
      %7305 = vadd.xlane.f32.xlu0 %v7304
      %v7306 = vpop.xlane.xlu0 %7305
      %v7307 = vsel %vm2103, %v7271, 0.0
      %7308 = vadd.xlane.f32.xlu0 %v7307
      %v7309 = vpop.xlane.xlu0 %7308
      %v7310 = vsel %vm2107, %v7272, 0.0
      %7311 = vadd.xlane.f32.xlu0 %v7310
      %v7312 = vpop.xlane.xlu0 %7311
      %v7313 = vsel %vm2103, %v7273, 0.0
      %7314 = vadd.xlane.f32.xlu0 %v7313
      %v7315 = vpop.xlane.xlu0 %7314
      %v7316 = vsel %vm2107, %v7274, 0.0
      %7317 = vadd.xlane.f32.xlu0 %v7316
      %v7318 = vpop.xlane.xlu0 %7317
      %v7319 = vsel %vm2103, %v7275, 0.0
      %7320 = vadd.xlane.f32.xlu0 %v7319
      %v7321 = vpop.xlane.xlu0 %7320
      %v7322 = vsel %vm2107, %v7276, 0.0
      %7323 = vadd.xlane.f32.xlu0 %v7322
      %v7324 = vpop.xlane.xlu0 %7323
      %v7325 = vadd.f32 %v7241, %v7279
      %v7326 = vadd.f32 %v7242, %v7282
      %v7327 = vadd.f32 %v7243, %v7285
      %v7328 = vadd.f32 %v7244, %v7288
      %v7329 = vadd.f32 %v7245, %v7291
      %v7330 = vadd.f32 %v7246, %v7294
      %v7331 = vadd.f32 %v7247, %v7297
      %v7332 = vadd.f32 %v7248, %v7300
      %v7333 = vadd.f32 %v7249, %v7303
      %v7334 = vadd.f32 %v7250, %v7306
      %v7335 = vadd.f32 %v7251, %v7309
      %v7336 = vadd.f32 %v7252, %v7312
      %v7337 = vadd.f32 %v7253, %v7315
      %v7338 = vadd.f32 %v7254, %v7318
      %v7339 = vadd.f32 %v7255, %v7321
      %v7340 = vadd.f32 %v7256, %v7324
      %v7341 = vlaneseq
      %v7342 = vshrl.u32 %v7341, 7
      %v7343 = vsub.s32 1, %v7342
      %v7344 = vrot.slane %v2082, %v7343
      %v7345 = vmul.f32 %v2052, %v7344
      %v7346 = vmul.f32 %v2053, %v7344
      %v7347 = vmul.f32 %v2055, %v7344
      %v7348 = vmul.f32 %v2056, %v7344
      %v7349 = vmul.f32 %v2058, %v7344
      %v7350 = vmul.f32 %v2059, %v7344
      %v7351 = vmul.f32 %v2061, %v7344
      %v7352 = vmul.f32 %v2062, %v7344
      %v7353 = vmul.f32 %v2064, %v7344
      %v7354 = vmul.f32 %v2065, %v7344
      %v7355 = vmul.f32 %v2067, %v7344
      %v7356 = vmul.f32 %v2068, %v7344
      %v7357 = vmul.f32 %v2070, %v7344
      %v7358 = vmul.f32 %v2071, %v7344
      %v7359 = vmul.f32 %v2073, %v7344
      %v7360 = vmul.f32 %v2074, %v7344
      %v7361 = vsel %vm2189, %v7345, 0.0
      %7362 = vadd.xlane.f32.xlu0 %v7361
      %v7363 = vpop.xlane.xlu0 %7362
      %v7364 = vsel %vm2193, %v7346, 0.0
      %7365 = vadd.xlane.f32.xlu0 %v7364
      %v7366 = vpop.xlane.xlu0 %7365
      %v7367 = vsel %vm2189, %v7347, 0.0
      %7368 = vadd.xlane.f32.xlu0 %v7367
      %v7369 = vpop.xlane.xlu0 %7368
      %v7370 = vsel %vm2193, %v7348, 0.0
      %7371 = vadd.xlane.f32.xlu0 %v7370
      %v7372 = vpop.xlane.xlu0 %7371
      %v7373 = vsel %vm2189, %v7349, 0.0
      %7374 = vadd.xlane.f32.xlu0 %v7373
      %v7375 = vpop.xlane.xlu0 %7374
      %v7376 = vsel %vm2193, %v7350, 0.0
      %7377 = vadd.xlane.f32.xlu0 %v7376
      %v7378 = vpop.xlane.xlu0 %7377
      %v7379 = vsel %vm2189, %v7351, 0.0
      %7380 = vadd.xlane.f32.xlu0 %v7379
      %v7381 = vpop.xlane.xlu0 %7380
      %v7382 = vsel %vm2193, %v7352, 0.0
      %7383 = vadd.xlane.f32.xlu0 %v7382
      %v7384 = vpop.xlane.xlu0 %7383
      %v7385 = vsel %vm2189, %v7353, 0.0
      %7386 = vadd.xlane.f32.xlu0 %v7385
      %v7387 = vpop.xlane.xlu0 %7386
      %v7388 = vsel %vm2193, %v7354, 0.0
      %7389 = vadd.xlane.f32.xlu0 %v7388
      %v7390 = vpop.xlane.xlu0 %7389
      %v7391 = vsel %vm2189, %v7355, 0.0
      %7392 = vadd.xlane.f32.xlu0 %v7391
      %v7393 = vpop.xlane.xlu0 %7392
      %v7394 = vsel %vm2193, %v7356, 0.0
      %7395 = vadd.xlane.f32.xlu0 %v7394
      %v7396 = vpop.xlane.xlu0 %7395
      %v7397 = vsel %vm2189, %v7357, 0.0
      %7398 = vadd.xlane.f32.xlu0 %v7397
      %v7399 = vpop.xlane.xlu0 %7398
      %v7400 = vsel %vm2193, %v7358, 0.0
      %7401 = vadd.xlane.f32.xlu0 %v7400
      %v7402 = vpop.xlane.xlu0 %7401
      %v7403 = vsel %vm2189, %v7359, 0.0
      %7404 = vadd.xlane.f32.xlu0 %v7403
      %v7405 = vpop.xlane.xlu0 %7404
      %v7406 = vsel %vm2193, %v7360, 0.0
      %7407 = vadd.xlane.f32.xlu0 %v7406
      %v7408 = vpop.xlane.xlu0 %7407
      %v7425 = vrot.slane %v7363, 1
      %v7426 = vrot.slane %v7366, 1
      %v7427 = vsel %vm487, %v7425, %v7426
      %v7428 = vrot.slane %v7369, 1
      %v7429 = vrot.slane %v7372, 1
      %v7430 = vsel %vm487, %v7428, %v7429
      %v7431 = vrot.slane %v7375, 1
      %v7432 = vrot.slane %v7378, 1
      %v7433 = vsel %vm487, %v7431, %v7432
      %v7434 = vrot.slane %v7381, 1
      %v7435 = vrot.slane %v7384, 1
      %v7436 = vsel %vm487, %v7434, %v7435
      %v7437 = vrot.slane %v7387, 1
      %v7438 = vrot.slane %v7390, 1
      %v7439 = vsel %vm487, %v7437, %v7438
      %v7440 = vrot.slane %v7393, 1
      %v7441 = vrot.slane %v7396, 1
      %v7442 = vsel %vm487, %v7440, %v7441
      %v7443 = vrot.slane %v7399, 1
      %v7444 = vrot.slane %v7402, 1
      %v7445 = vsel %vm487, %v7443, %v7444
      %v7446 = vrot.slane %v7405, 1
      %v7447 = vrot.slane %v7408, 1
      %v7448 = vsel %vm487, %v7446, %v7447
      %v7465 = vadd.f32 %v7325, %v7427
      %v7466 = vadd.f32 %v7326, %v7426
      %v7467 = vadd.f32 %v7327, %v7430
      %v7468 = vadd.f32 %v7328, %v7429
      %v7469 = vadd.f32 %v7329, %v7433
      %v7470 = vadd.f32 %v7330, %v7432
      %v7471 = vadd.f32 %v7331, %v7436
      %v7472 = vadd.f32 %v7332, %v7435
      %v7473 = vadd.f32 %v7333, %v7439
      %v7474 = vadd.f32 %v7334, %v7438
      %v7475 = vadd.f32 %v7335, %v7442
      %v7476 = vadd.f32 %v7336, %v7441
      %v7477 = vadd.f32 %v7337, %v7445
      %v7478 = vadd.f32 %v7338, %v7444
      %v7479 = vadd.f32 %v7339, %v7448
      %v7480 = vadd.f32 %v7340, %v7447
      %v7481 = vlaneseq
      %v7482 = vshrl.u32 %v7481, 7
      %v7483 = vsub.s32 2, %v7482
      %v7484 = vrot.slane %v2082, %v7483
      %v7485 = vmul.f32 %v2052, %v7484
      %v7486 = vmul.f32 %v2053, %v7484
      %v7487 = vmul.f32 %v2055, %v7484
      %v7488 = vmul.f32 %v2056, %v7484
      %v7489 = vmul.f32 %v2058, %v7484
      %v7490 = vmul.f32 %v2059, %v7484
      %v7491 = vmul.f32 %v2061, %v7484
      %v7492 = vmul.f32 %v2062, %v7484
      %v7493 = vmul.f32 %v2064, %v7484
      %v7494 = vmul.f32 %v2065, %v7484
      %v7495 = vmul.f32 %v2067, %v7484
      %v7496 = vmul.f32 %v2068, %v7484
      %v7497 = vmul.f32 %v2070, %v7484
      %v7498 = vmul.f32 %v2071, %v7484
      %v7499 = vmul.f32 %v2073, %v7484
      %v7500 = vmul.f32 %v2074, %v7484
      %v7501 = vsel %vm2331, %v7485, 0.0
      %7502 = vadd.xlane.f32.xlu0 %v7501
      %v7503 = vpop.xlane.xlu0 %7502
      %v7504 = vsel %vm2335, %v7486, 0.0
      %7505 = vadd.xlane.f32.xlu0 %v7504
      %v7506 = vpop.xlane.xlu0 %7505
      %v7507 = vsel %vm2331, %v7487, 0.0
      %7508 = vadd.xlane.f32.xlu0 %v7507
      %v7509 = vpop.xlane.xlu0 %7508
      %v7510 = vsel %vm2335, %v7488, 0.0
      %7511 = vadd.xlane.f32.xlu0 %v7510
      %v7512 = vpop.xlane.xlu0 %7511
      %v7513 = vsel %vm2331, %v7489, 0.0
      %7514 = vadd.xlane.f32.xlu0 %v7513
      %v7515 = vpop.xlane.xlu0 %7514
      %v7516 = vsel %vm2335, %v7490, 0.0
      %7517 = vadd.xlane.f32.xlu0 %v7516
      %v7518 = vpop.xlane.xlu0 %7517
      %v7519 = vsel %vm2331, %v7491, 0.0
      %7520 = vadd.xlane.f32.xlu0 %v7519
      %v7521 = vpop.xlane.xlu0 %7520
      %v7522 = vsel %vm2335, %v7492, 0.0
      %7523 = vadd.xlane.f32.xlu0 %v7522
      %v7524 = vpop.xlane.xlu0 %7523
      %v7525 = vsel %vm2331, %v7493, 0.0
      %7526 = vadd.xlane.f32.xlu0 %v7525
      %v7527 = vpop.xlane.xlu0 %7526
      %v7528 = vsel %vm2335, %v7494, 0.0
      %7529 = vadd.xlane.f32.xlu0 %v7528
      %v7530 = vpop.xlane.xlu0 %7529
      %v7531 = vsel %vm2331, %v7495, 0.0
      %7532 = vadd.xlane.f32.xlu0 %v7531
      %v7533 = vpop.xlane.xlu0 %7532
      %v7534 = vsel %vm2335, %v7496, 0.0
      %7535 = vadd.xlane.f32.xlu0 %v7534
      %v7536 = vpop.xlane.xlu0 %7535
      %v7537 = vsel %vm2331, %v7497, 0.0
      %7538 = vadd.xlane.f32.xlu0 %v7537
      %v7539 = vpop.xlane.xlu0 %7538
      %v7540 = vsel %vm2335, %v7498, 0.0
      %7541 = vadd.xlane.f32.xlu0 %v7540
      %v7542 = vpop.xlane.xlu0 %7541
      %v7543 = vsel %vm2331, %v7499, 0.0
      %7544 = vadd.xlane.f32.xlu0 %v7543
      %v7545 = vpop.xlane.xlu0 %7544
      %v7546 = vsel %vm2335, %v7500, 0.0
      %7547 = vadd.xlane.f32.xlu0 %v7546
      %v7548 = vpop.xlane.xlu0 %7547
      %v7565 = vrot.slane %v7503, 2
      %v7566 = vrot.slane %v7506, 2
      %v7567 = vsel %vm760, %v7565, %v7566
      %v7568 = vrot.slane %v7509, 2
      %v7569 = vrot.slane %v7512, 2
      %v7570 = vsel %vm760, %v7568, %v7569
      %v7571 = vrot.slane %v7515, 2
      %v7572 = vrot.slane %v7518, 2
      %v7573 = vsel %vm760, %v7571, %v7572
      %v7574 = vrot.slane %v7521, 2
      %v7575 = vrot.slane %v7524, 2
      %v7576 = vsel %vm760, %v7574, %v7575
      %v7577 = vrot.slane %v7527, 2
      %v7578 = vrot.slane %v7530, 2
      %v7579 = vsel %vm760, %v7577, %v7578
      %v7580 = vrot.slane %v7533, 2
      %v7581 = vrot.slane %v7536, 2
      %v7582 = vsel %vm760, %v7580, %v7581
      %v7583 = vrot.slane %v7539, 2
      %v7584 = vrot.slane %v7542, 2
      %v7585 = vsel %vm760, %v7583, %v7584
      %v7586 = vrot.slane %v7545, 2
      %v7587 = vrot.slane %v7548, 2
      %v7588 = vsel %vm760, %v7586, %v7587
      %v7605 = vadd.f32 %v7465, %v7567
      %v7606 = vadd.f32 %v7466, %v7566
      %v7607 = vadd.f32 %v7467, %v7570
      %v7608 = vadd.f32 %v7468, %v7569
      %v7609 = vadd.f32 %v7469, %v7573
      %v7610 = vadd.f32 %v7470, %v7572
      %v7611 = vadd.f32 %v7471, %v7576
      %v7612 = vadd.f32 %v7472, %v7575
      %v7613 = vadd.f32 %v7473, %v7579
      %v7614 = vadd.f32 %v7474, %v7578
      %v7615 = vadd.f32 %v7475, %v7582
      %v7616 = vadd.f32 %v7476, %v7581
      %v7617 = vadd.f32 %v7477, %v7585
      %v7618 = vadd.f32 %v7478, %v7584
      %v7619 = vadd.f32 %v7479, %v7588
      %v7620 = vadd.f32 %v7480, %v7587
      %v7621 = vlaneseq
      %v7622 = vshrl.u32 %v7621, 7
      %v7623 = vsub.s32 3, %v7622
      %v7624 = vrot.slane %v2082, %v7623
      %v7625 = vmul.f32 %v2053, %v7624
      %v7626 = vmul.f32 %v2056, %v7624
      %v7627 = vmul.f32 %v2059, %v7624
      %v7628 = vmul.f32 %v2062, %v7624
      %v7629 = vmul.f32 %v2065, %v7624
      %v7630 = vmul.f32 %v2068, %v7624
      %v7631 = vmul.f32 %v2071, %v7624
      %v7632 = vmul.f32 %v2074, %v7624
      %v7633 = vsel %vm1817, %v7625, 0.0
      %7634 = vadd.xlane.f32.xlu0 %v7633
      %v7635 = vpop.xlane.xlu0 %7634
      %v7636 = vsel %vm1817, %v7626, 0.0
      %7637 = vadd.xlane.f32.xlu0 %v7636
      %v7638 = vpop.xlane.xlu0 %7637
      %v7639 = vsel %vm1817, %v7627, 0.0
      %7640 = vadd.xlane.f32.xlu0 %v7639
      %v7641 = vpop.xlane.xlu0 %7640
      %v7642 = vsel %vm1817, %v7628, 0.0
      %7643 = vadd.xlane.f32.xlu0 %v7642
      %v7644 = vpop.xlane.xlu0 %7643
      %v7645 = vsel %vm1817, %v7629, 0.0
      %7646 = vadd.xlane.f32.xlu0 %v7645
      %v7647 = vpop.xlane.xlu0 %7646
      %v7648 = vsel %vm1817, %v7630, 0.0
      %7649 = vadd.xlane.f32.xlu0 %v7648
      %v7650 = vpop.xlane.xlu0 %7649
      %v7651 = vsel %vm1817, %v7631, 0.0
      %7652 = vadd.xlane.f32.xlu0 %v7651
      %v7653 = vpop.xlane.xlu0 %7652
      %v7654 = vsel %vm1817, %v7632, 0.0
      %7655 = vadd.xlane.f32.xlu0 %v7654
      %v7656 = vpop.xlane.xlu0 %7655
      %v7665 = vrot.slane %v7635, 3
      %v7666 = vrot.slane %v7638, 3
      %v7667 = vrot.slane %v7641, 3
      %v7668 = vrot.slane %v7644, 3
      %v7669 = vrot.slane %v7647, 3
      %v7670 = vrot.slane %v7650, 3
      %v7671 = vrot.slane %v7653, 3
      %v7672 = vrot.slane %v7656, 3
      %v7681 = vadd.f32 %v7605, %v7665
      %v7682 = vadd.f32 %v7606, %v7665
      %v7683 = vadd.f32 %v7607, %v7666
      %v7684 = vadd.f32 %v7608, %v7666
      %v7685 = vadd.f32 %v7609, %v7667
      %v7686 = vadd.f32 %v7610, %v7667
      %v7687 = vadd.f32 %v7611, %v7668
      %v7688 = vadd.f32 %v7612, %v7668
      %v7689 = vadd.f32 %v7613, %v7669
      %v7690 = vadd.f32 %v7614, %v7669
      %v7691 = vadd.f32 %v7615, %v7670
      %v7692 = vadd.f32 %v7616, %v7670
      %v7693 = vadd.f32 %v7617, %v7671
      %v7694 = vadd.f32 %v7618, %v7671
      %v7695 = vadd.f32 %v7619, %v7672
      %v7696 = vadd.f32 %v7620, %v7672
      %v7697 = vlaneseq
      %v7698 = vshrl.u32 %v7697, 7
      %v7699 = vsub.s32 4, %v7698
      %v7700 = vrot.slane %v2082, %v7699
      %v7701 = vmul.f32 %v2053, %v7700
      %v7702 = vmul.f32 %v2054, %v7700
      %v7703 = vmul.f32 %v2056, %v7700
      %v7704 = vmul.f32 %v2057, %v7700
      %v7705 = vmul.f32 %v2059, %v7700
      %v7706 = vmul.f32 %v2060, %v7700
      %v7707 = vmul.f32 %v2062, %v7700
      %v7708 = vmul.f32 %v2063, %v7700
      %v7709 = vmul.f32 %v2065, %v7700
      %v7710 = vmul.f32 %v2066, %v7700
      %v7711 = vmul.f32 %v2068, %v7700
      %v7712 = vmul.f32 %v2069, %v7700
      %v7713 = vmul.f32 %v2071, %v7700
      %v7714 = vmul.f32 %v2072, %v7700
      %v7715 = vmul.f32 %v2074, %v7700
      %v7716 = vmul.f32 %v2075, %v7700
      %v7717 = vsel %vm2549, %v7701, 0.0
      %7718 = vadd.xlane.f32.xlu0 %v7717
      %v7719 = vpop.xlane.xlu0 %7718
      %v7720 = vsel %vm2553, %v7702, 0.0
      %7721 = vadd.xlane.f32.xlu0 %v7720
      %v7722 = vpop.xlane.xlu0 %7721
      %v7723 = vsel %vm2549, %v7703, 0.0
      %7724 = vadd.xlane.f32.xlu0 %v7723
      %v7725 = vpop.xlane.xlu0 %7724
      %v7726 = vsel %vm2553, %v7704, 0.0
      %7727 = vadd.xlane.f32.xlu0 %v7726
      %v7728 = vpop.xlane.xlu0 %7727
      %v7729 = vsel %vm2549, %v7705, 0.0
      %7730 = vadd.xlane.f32.xlu0 %v7729
      %v7731 = vpop.xlane.xlu0 %7730
      %v7732 = vsel %vm2553, %v7706, 0.0
      %7733 = vadd.xlane.f32.xlu0 %v7732
      %v7734 = vpop.xlane.xlu0 %7733
      %v7735 = vsel %vm2549, %v7707, 0.0
      %7736 = vadd.xlane.f32.xlu0 %v7735
      %v7737 = vpop.xlane.xlu0 %7736
      %v7738 = vsel %vm2553, %v7708, 0.0
      %7739 = vadd.xlane.f32.xlu0 %v7738
      %v7740 = vpop.xlane.xlu0 %7739
      %v7741 = vsel %vm2549, %v7709, 0.0
      %7742 = vadd.xlane.f32.xlu0 %v7741
      %v7743 = vpop.xlane.xlu0 %7742
      %v7744 = vsel %vm2553, %v7710, 0.0
      %7745 = vadd.xlane.f32.xlu0 %v7744
      %v7746 = vpop.xlane.xlu0 %7745
      %v7747 = vsel %vm2549, %v7711, 0.0
      %7748 = vadd.xlane.f32.xlu0 %v7747
      %v7749 = vpop.xlane.xlu0 %7748
      %v7750 = vsel %vm2553, %v7712, 0.0
      %7751 = vadd.xlane.f32.xlu0 %v7750
      %v7752 = vpop.xlane.xlu0 %7751
      %v7753 = vsel %vm2549, %v7713, 0.0
      %7754 = vadd.xlane.f32.xlu0 %v7753
      %v7755 = vpop.xlane.xlu0 %7754
      %v7756 = vsel %vm2553, %v7714, 0.0
      %7757 = vadd.xlane.f32.xlu0 %v7756
      %v7758 = vpop.xlane.xlu0 %7757
      %v7759 = vsel %vm2549, %v7715, 0.0
      %7760 = vadd.xlane.f32.xlu0 %v7759
      %v7761 = vpop.xlane.xlu0 %7760
      %v7762 = vsel %vm2553, %v7716, 0.0
      %7763 = vadd.xlane.f32.xlu0 %v7762
      %v7764 = vpop.xlane.xlu0 %7763
      %v7781 = vrot.slane %v7719, 4
      %v7782 = vrot.slane %v7722, 4
      %v7783 = vsel %vm2615, %v7781, %v7782
      %v7784 = vrot.slane %v7725, 4
      %v7785 = vrot.slane %v7728, 4
      %v7786 = vsel %vm2615, %v7784, %v7785
      %v7787 = vrot.slane %v7731, 4
      %v7788 = vrot.slane %v7734, 4
      %v7789 = vsel %vm2615, %v7787, %v7788
      %v7790 = vrot.slane %v7737, 4
      %v7791 = vrot.slane %v7740, 4
      %v7792 = vsel %vm2615, %v7790, %v7791
      %v7793 = vrot.slane %v7743, 4
      %v7794 = vrot.slane %v7746, 4
      %v7795 = vsel %vm2615, %v7793, %v7794
      %v7796 = vrot.slane %v7749, 4
      %v7797 = vrot.slane %v7752, 4
      %v7798 = vsel %vm2615, %v7796, %v7797
      %v7799 = vrot.slane %v7755, 4
      %v7800 = vrot.slane %v7758, 4
      %v7801 = vsel %vm2615, %v7799, %v7800
      %v7802 = vrot.slane %v7761, 4
      %v7803 = vrot.slane %v7764, 4
      %v7804 = vsel %vm2615, %v7802, %v7803
      %v7821 = vadd.f32 %v7681, %v7781
      %v7822 = vadd.f32 %v7682, %v7783
      %v7823 = vadd.f32 %v7683, %v7784
      %v7824 = vadd.f32 %v7684, %v7786
      %v7825 = vadd.f32 %v7685, %v7787
      %v7826 = vadd.f32 %v7686, %v7789
      %v7827 = vadd.f32 %v7687, %v7790
      %v7828 = vadd.f32 %v7688, %v7792
      %v7829 = vadd.f32 %v7689, %v7793
      %v7830 = vadd.f32 %v7690, %v7795
      %v7831 = vadd.f32 %v7691, %v7796
      %v7832 = vadd.f32 %v7692, %v7798
      %v7833 = vadd.f32 %v7693, %v7799
      %v7834 = vadd.f32 %v7694, %v7801
      %v7835 = vadd.f32 %v7695, %v7802
      %v7836 = vadd.f32 %v7696, %v7804
      %v7837 = vlaneseq
      %v7838 = vshrl.u32 %v7837, 7
      %v7839 = vsub.s32 5, %v7838
      %v7840 = vrot.slane %v2082, %v7839
      %v7841 = vmul.f32 %v2053, %v7840
      %v7842 = vmul.f32 %v2054, %v7840
      %v7843 = vmul.f32 %v2056, %v7840
      %v7844 = vmul.f32 %v2057, %v7840
      %v7845 = vmul.f32 %v2059, %v7840
      %v7846 = vmul.f32 %v2060, %v7840
      %v7847 = vmul.f32 %v2062, %v7840
      %v7848 = vmul.f32 %v2063, %v7840
      %v7849 = vmul.f32 %v2065, %v7840
      %v7850 = vmul.f32 %v2066, %v7840
      %v7851 = vmul.f32 %v2068, %v7840
      %v7852 = vmul.f32 %v2069, %v7840
      %v7853 = vmul.f32 %v2071, %v7840
      %v7854 = vmul.f32 %v2072, %v7840
      %v7855 = vmul.f32 %v2074, %v7840
      %v7856 = vmul.f32 %v2075, %v7840
      %v7857 = vsel %vm2692, %v7841, 0.0
      %7858 = vadd.xlane.f32.xlu0 %v7857
      %v7859 = vpop.xlane.xlu0 %7858
      %v7860 = vsel %vm2696, %v7842, 0.0
      %7861 = vadd.xlane.f32.xlu0 %v7860
      %v7862 = vpop.xlane.xlu0 %7861
      %v7863 = vsel %vm2692, %v7843, 0.0
      %7864 = vadd.xlane.f32.xlu0 %v7863
      %v7865 = vpop.xlane.xlu0 %7864
      %v7866 = vsel %vm2696, %v7844, 0.0
      %7867 = vadd.xlane.f32.xlu0 %v7866
      %v7868 = vpop.xlane.xlu0 %7867
      %v7869 = vsel %vm2692, %v7845, 0.0
      %7870 = vadd.xlane.f32.xlu0 %v7869
      %v7871 = vpop.xlane.xlu0 %7870
      %v7872 = vsel %vm2696, %v7846, 0.0
      %7873 = vadd.xlane.f32.xlu0 %v7872
      %v7874 = vpop.xlane.xlu0 %7873
      %v7875 = vsel %vm2692, %v7847, 0.0
      %7876 = vadd.xlane.f32.xlu0 %v7875
      %v7877 = vpop.xlane.xlu0 %7876
      %v7878 = vsel %vm2696, %v7848, 0.0
      %7879 = vadd.xlane.f32.xlu0 %v7878
      %v7880 = vpop.xlane.xlu0 %7879
      %v7881 = vsel %vm2692, %v7849, 0.0
      %7882 = vadd.xlane.f32.xlu0 %v7881
      %v7883 = vpop.xlane.xlu0 %7882
      %v7884 = vsel %vm2696, %v7850, 0.0
      %7885 = vadd.xlane.f32.xlu0 %v7884
      %v7886 = vpop.xlane.xlu0 %7885
      %v7887 = vsel %vm2692, %v7851, 0.0
      %7888 = vadd.xlane.f32.xlu0 %v7887
      %v7889 = vpop.xlane.xlu0 %7888
      %v7890 = vsel %vm2696, %v7852, 0.0
      %7891 = vadd.xlane.f32.xlu0 %v7890
      %v7892 = vpop.xlane.xlu0 %7891
      %v7893 = vsel %vm2692, %v7853, 0.0
      %7894 = vadd.xlane.f32.xlu0 %v7893
      %v7895 = vpop.xlane.xlu0 %7894
      %v7896 = vsel %vm2696, %v7854, 0.0
      %7897 = vadd.xlane.f32.xlu0 %v7896
      %v7898 = vpop.xlane.xlu0 %7897
      %v7899 = vsel %vm2692, %v7855, 0.0
      %7900 = vadd.xlane.f32.xlu0 %v7899
      %v7901 = vpop.xlane.xlu0 %7900
      %v7902 = vsel %vm2696, %v7856, 0.0
      %7903 = vadd.xlane.f32.xlu0 %v7902
      %v7904 = vpop.xlane.xlu0 %7903
      %v7921 = vrot.slane %v7859, 5
      %v7922 = vrot.slane %v7862, 5
      %v7923 = vsel %vm2758, %v7921, %v7922
      %v7924 = vrot.slane %v7865, 5
      %v7925 = vrot.slane %v7868, 5
      %v7926 = vsel %vm2758, %v7924, %v7925
      %v7927 = vrot.slane %v7871, 5
      %v7928 = vrot.slane %v7874, 5
      %v7929 = vsel %vm2758, %v7927, %v7928
      %v7930 = vrot.slane %v7877, 5
      %v7931 = vrot.slane %v7880, 5
      %v7932 = vsel %vm2758, %v7930, %v7931
      %v7933 = vrot.slane %v7883, 5
      %v7934 = vrot.slane %v7886, 5
      %v7935 = vsel %vm2758, %v7933, %v7934
      %v7936 = vrot.slane %v7889, 5
      %v7937 = vrot.slane %v7892, 5
      %v7938 = vsel %vm2758, %v7936, %v7937
      %v7939 = vrot.slane %v7895, 5
      %v7940 = vrot.slane %v7898, 5
      %v7941 = vsel %vm2758, %v7939, %v7940
      %v7942 = vrot.slane %v7901, 5
      %v7943 = vrot.slane %v7904, 5
      %v7944 = vsel %vm2758, %v7942, %v7943
      %v7961 = vadd.f32 %v7821, %v7921
      %v7962 = vadd.f32 %v7822, %v7923
      %v7963 = vadd.f32 %v7823, %v7924
      %v7964 = vadd.f32 %v7824, %v7926
      %v7965 = vadd.f32 %v7825, %v7927
      %v7966 = vadd.f32 %v7826, %v7929
      %v7967 = vadd.f32 %v7827, %v7930
      %v7968 = vadd.f32 %v7828, %v7932
      %v7969 = vadd.f32 %v7829, %v7933
      %v7970 = vadd.f32 %v7830, %v7935
      %v7971 = vadd.f32 %v7831, %v7936
      %v7972 = vadd.f32 %v7832, %v7938
      %v7973 = vadd.f32 %v7833, %v7939
      %v7974 = vadd.f32 %v7834, %v7941
      %v7975 = vadd.f32 %v7835, %v7942
      %v7976 = vadd.f32 %v7836, %v7944
      %v7977 = vlaneseq
      %v7978 = vshrl.u32 %v7977, 7
      %v7979 = vsub.s32 6, %v7978
      %v7980 = vrot.slane %v2082, %v7979
      %v7981 = vmul.f32 %v2053, %v7980
      %v7982 = vmul.f32 %v2054, %v7980
      %v7983 = vmul.f32 %v2056, %v7980
      %v7984 = vmul.f32 %v2057, %v7980
      %v7985 = vmul.f32 %v2059, %v7980
      %v7986 = vmul.f32 %v2060, %v7980
      %v7987 = vmul.f32 %v2062, %v7980
      %v7988 = vmul.f32 %v2063, %v7980
      %v7989 = vmul.f32 %v2065, %v7980
      %v7990 = vmul.f32 %v2066, %v7980
      %v7991 = vmul.f32 %v2068, %v7980
      %v7992 = vmul.f32 %v2069, %v7980
      %v7993 = vmul.f32 %v2071, %v7980
      %v7994 = vmul.f32 %v2072, %v7980
      %v7995 = vmul.f32 %v2074, %v7980
      %v7996 = vmul.f32 %v2075, %v7980
      %v7997 = vsel %vm2835, %v7981, 0.0
      %7998 = vadd.xlane.f32.xlu0 %v7997
      %v7999 = vpop.xlane.xlu0 %7998
      %v8000 = vsel %vm2839, %v7982, 0.0
      %8001 = vadd.xlane.f32.xlu0 %v8000
      %v8002 = vpop.xlane.xlu0 %8001
      %v8003 = vsel %vm2835, %v7983, 0.0
      %8004 = vadd.xlane.f32.xlu0 %v8003
      %v8005 = vpop.xlane.xlu0 %8004
      %v8006 = vsel %vm2839, %v7984, 0.0
      %8007 = vadd.xlane.f32.xlu0 %v8006
      %v8008 = vpop.xlane.xlu0 %8007
      %v8009 = vsel %vm2835, %v7985, 0.0
      %8010 = vadd.xlane.f32.xlu0 %v8009
      %v8011 = vpop.xlane.xlu0 %8010
      %v8012 = vsel %vm2839, %v7986, 0.0
      %8013 = vadd.xlane.f32.xlu0 %v8012
      %v8014 = vpop.xlane.xlu0 %8013
      %v8015 = vsel %vm2835, %v7987, 0.0
      %8016 = vadd.xlane.f32.xlu0 %v8015
      %v8017 = vpop.xlane.xlu0 %8016
      %v8018 = vsel %vm2839, %v7988, 0.0
      %8019 = vadd.xlane.f32.xlu0 %v8018
      %v8020 = vpop.xlane.xlu0 %8019
      %v8021 = vsel %vm2835, %v7989, 0.0
      %8022 = vadd.xlane.f32.xlu0 %v8021
      %v8023 = vpop.xlane.xlu0 %8022
      %v8024 = vsel %vm2839, %v7990, 0.0
      %8025 = vadd.xlane.f32.xlu0 %v8024
      %v8026 = vpop.xlane.xlu0 %8025
      %v8027 = vsel %vm2835, %v7991, 0.0
      %8028 = vadd.xlane.f32.xlu0 %v8027
      %v8029 = vpop.xlane.xlu0 %8028
      %v8030 = vsel %vm2839, %v7992, 0.0
      %8031 = vadd.xlane.f32.xlu0 %v8030
      %v8032 = vpop.xlane.xlu0 %8031
      %v8033 = vsel %vm2835, %v7993, 0.0
      %8034 = vadd.xlane.f32.xlu0 %v8033
      %v8035 = vpop.xlane.xlu0 %8034
      %v8036 = vsel %vm2839, %v7994, 0.0
      %8037 = vadd.xlane.f32.xlu0 %v8036
      %v8038 = vpop.xlane.xlu0 %8037
      %v8039 = vsel %vm2835, %v7995, 0.0
      %8040 = vadd.xlane.f32.xlu0 %v8039
      %v8041 = vpop.xlane.xlu0 %8040
      %v8042 = vsel %vm2839, %v7996, 0.0
      %8043 = vadd.xlane.f32.xlu0 %v8042
      %v8044 = vpop.xlane.xlu0 %8043
      %v8061 = vrot.slane %v7999, 6
      %v8062 = vrot.slane %v8002, 6
      %v8063 = vsel %vm1821, %v8061, %v8062
      %v8064 = vrot.slane %v8005, 6
      %v8065 = vrot.slane %v8008, 6
      %v8066 = vsel %vm1821, %v8064, %v8065
      %v8067 = vrot.slane %v8011, 6
      %v8068 = vrot.slane %v8014, 6
      %v8069 = vsel %vm1821, %v8067, %v8068
      %v8070 = vrot.slane %v8017, 6
      %v8071 = vrot.slane %v8020, 6
      %v8072 = vsel %vm1821, %v8070, %v8071
      %v8073 = vrot.slane %v8023, 6
      %v8074 = vrot.slane %v8026, 6
      %v8075 = vsel %vm1821, %v8073, %v8074
      %v8076 = vrot.slane %v8029, 6
      %v8077 = vrot.slane %v8032, 6
      %v8078 = vsel %vm1821, %v8076, %v8077
      %v8079 = vrot.slane %v8035, 6
      %v8080 = vrot.slane %v8038, 6
      %v8081 = vsel %vm1821, %v8079, %v8080
      %v8082 = vrot.slane %v8041, 6
      %v8083 = vrot.slane %v8044, 6
      %v8084 = vsel %vm1821, %v8082, %v8083
      %v8101 = vadd.f32 %v7961, %v8061
      %v8102 = vadd.f32 %v7962, %v8063
      %v8103 = vadd.f32 %v7963, %v8064
      %v8104 = vadd.f32 %v7964, %v8066
      %v8105 = vadd.f32 %v7965, %v8067
      %v8106 = vadd.f32 %v7966, %v8069
      %v8107 = vadd.f32 %v7967, %v8070
      %v8108 = vadd.f32 %v7968, %v8072
      %v8109 = vadd.f32 %v7969, %v8073
      %v8110 = vadd.f32 %v7970, %v8075
      %v8111 = vadd.f32 %v7971, %v8076
      %v8112 = vadd.f32 %v7972, %v8078
      %v8113 = vadd.f32 %v7973, %v8079
      %v8114 = vadd.f32 %v7974, %v8081
      %v8115 = vadd.f32 %v7975, %v8082
      %v8116 = vadd.f32 %v7976, %v8084
      %v8117 = vld [vmem:[#allocation3] sm:$0x1]
      %v8119 = vlaneseq
      %v8120 = vshrl.u32 %v8119, 7
      %v8121 = vsub.s32 0, %v8120
      %v8122 = vrot.slane %v8117, %v8121
      %v8124 = vadd.f32 %v8101, %v8122
      %v8125 = vadd.f32 %v8102, %v8122
      %v8126 = vadd.f32 %v8103, %v8122
      %v8127 = vadd.f32 %v8104, %v8122
      %v8128 = vadd.f32 %v8105, %v8122
      %v8129 = vadd.f32 %v8106, %v8122
      %v8130 = vadd.f32 %v8107, %v8122
      %v8131 = vadd.f32 %v8108, %v8122
      %v8132 = vadd.f32 %v8109, %v8122
      %v8133 = vadd.f32 %v8110, %v8122
      %v8134 = vadd.f32 %v8111, %v8122
      %v8135 = vadd.f32 %v8112, %v8122
      %v8136 = vadd.f32 %v8113, %v8122
      %v8137 = vadd.f32 %v8114, %v8122
      %v8138 = vadd.f32 %v8115, %v8122
      %v8139 = vadd.f32 %v8116, %v8122
      %v8140 = vxor.u32 %v8124, 2147483648
      %v8141 = vxor.u32 %v8125, 2147483648
      %v8142 = vxor.u32 %v8126, 2147483648
      %v8143 = vxor.u32 %v8127, 2147483648
      %v8144 = vxor.u32 %v8128, 2147483648
      %v8145 = vxor.u32 %v8129, 2147483648
      %v8146 = vxor.u32 %v8130, 2147483648
      %v8147 = vxor.u32 %v8131, 2147483648
      %v8148 = vxor.u32 %v8132, 2147483648
      %v8149 = vxor.u32 %v8133, 2147483648
      %v8150 = vxor.u32 %v8134, 2147483648
      %v8151 = vxor.u32 %v8135, 2147483648
      %v8152 = vxor.u32 %v8136, 2147483648
      %v8153 = vxor.u32 %v8137, 2147483648
      %v8154 = vxor.u32 %v8138, 2147483648
      %v8155 = vxor.u32 %v8139, 2147483648
      %v8156 = vmul.f32 %v8140, 1.442695
      %v8157 = vpow.pop %v8156
      %v8158 = vmul.f32 %v8141, 1.442695
      %v8159 = vpow.pop %v8158
      %v8160 = vmul.f32 %v8142, 1.442695
      %v8161 = vpow.pop %v8160
      %v8162 = vmul.f32 %v8143, 1.442695
      %v8163 = vpow.pop %v8162
      %v8164 = vmul.f32 %v8144, 1.442695
      %v8165 = vpow.pop %v8164
      %v8166 = vmul.f32 %v8145, 1.442695
      %v8167 = vpow.pop %v8166
      %v8168 = vmul.f32 %v8146, 1.442695
      %v8169 = vpow.pop %v8168
      %v8170 = vmul.f32 %v8147, 1.442695
      %v8171 = vpow.pop %v8170
      %v8172 = vmul.f32 %v8148, 1.442695
      %v8173 = vpow.pop %v8172
      %v8174 = vmul.f32 %v8149, 1.442695
      %v8175 = vpow.pop %v8174
      %v8176 = vmul.f32 %v8150, 1.442695
      %v8177 = vpow.pop %v8176
      %v8178 = vmul.f32 %v8151, 1.442695
      %v8179 = vpow.pop %v8178
      %v8180 = vmul.f32 %v8152, 1.442695
      %v8181 = vpow.pop %v8180
      %v8182 = vmul.f32 %v8153, 1.442695
      %v8183 = vpow.pop %v8182
      %v8184 = vmul.f32 %v8154, 1.442695
      %v8185 = vpow.pop %v8184
      %v8186 = vmul.f32 %v8155, 1.442695
      %v8187 = vpow.pop %v8186
      %v8188 = vadd.f32 %v8157, 1.0
      %v8189 = vadd.f32 %v8159, 1.0
      %v8190 = vadd.f32 %v8161, 1.0
      %v8191 = vadd.f32 %v8163, 1.0
      %v8192 = vadd.f32 %v8165, 1.0
      %v8193 = vadd.f32 %v8167, 1.0
      %v8194 = vadd.f32 %v8169, 1.0
      %v8195 = vadd.f32 %v8171, 1.0
      %v8196 = vadd.f32 %v8173, 1.0
      %v8197 = vadd.f32 %v8175, 1.0
      %v8198 = vadd.f32 %v8177, 1.0
      %v8199 = vadd.f32 %v8179, 1.0
      %v8200 = vadd.f32 %v8181, 1.0
      %v8201 = vadd.f32 %v8183, 1.0
      %v8202 = vadd.f32 %v8185, 1.0
      %v8203 = vadd.f32 %v8187, 1.0
      %v8204 = vrcp.pop %v8188
      %v8205 = vmul.f32 1.0, %v8204
      %v8206 = vrcp.pop %v8189
      %v8207 = vmul.f32 1.0, %v8206
      %v8208 = vrcp.pop %v8190
      %v8209 = vmul.f32 1.0, %v8208
      %v8210 = vrcp.pop %v8191
      %v8211 = vmul.f32 1.0, %v8210
      %v8212 = vrcp.pop %v8192
      %v8213 = vmul.f32 1.0, %v8212
      %v8214 = vrcp.pop %v8193
      %v8215 = vmul.f32 1.0, %v8214
      %v8216 = vrcp.pop %v8194
      %v8217 = vmul.f32 1.0, %v8216
      %v8218 = vrcp.pop %v8195
      %v8219 = vmul.f32 1.0, %v8218
      %v8220 = vrcp.pop %v8196
      %v8221 = vmul.f32 1.0, %v8220
      %v8222 = vrcp.pop %v8197
      %v8223 = vmul.f32 1.0, %v8222
      %v8224 = vrcp.pop %v8198
      %v8225 = vmul.f32 1.0, %v8224
      %v8226 = vrcp.pop %v8199
      %v8227 = vmul.f32 1.0, %v8226
      %v8228 = vrcp.pop %v8200
      %v8229 = vmul.f32 1.0, %v8228
      %v8230 = vrcp.pop %v8201
      %v8231 = vmul.f32 1.0, %v8230
      %v8232 = vrcp.pop %v8202
      %v8233 = vmul.f32 1.0, %v8232
      %v8234 = vrcp.pop %v8203
      %v8235 = vmul.f32 1.0, %v8234
      %v8252 = vrot.slane %v8205, 5
      %v8253 = vrot.slane %v8207, 5
      %v8254 = vsel %vm2758, %v8252, %v8253
      %v8255 = vrot.slane %v8209, 5
      %v8256 = vrot.slane %v8211, 5
      %v8257 = vsel %vm2758, %v8255, %v8256
      %v8258 = vrot.slane %v8213, 5
      %v8259 = vrot.slane %v8215, 5
      %v8260 = vsel %vm2758, %v8258, %v8259
      %v8261 = vrot.slane %v8217, 5
      %v8262 = vrot.slane %v8219, 5
      %v8263 = vsel %vm2758, %v8261, %v8262
      %v8264 = vrot.slane %v8221, 5
      %v8265 = vrot.slane %v8223, 5
      %v8266 = vsel %vm2758, %v8264, %v8265
      %v8267 = vrot.slane %v8225, 5
      %v8268 = vrot.slane %v8227, 5
      %v8269 = vsel %vm2758, %v8267, %v8268
      %v8270 = vrot.slane %v8229, 5
      %v8271 = vrot.slane %v8231, 5
      %v8272 = vsel %vm2758, %v8270, %v8271
      %v8273 = vrot.slane %v8233, 5
      %v8274 = vrot.slane %v8235, 5
      %v8275 = vsel %vm2758, %v8273, %v8274
      %8276 = vset.pattern.permute.xlu0 0
      %8277 = vperm.xlu0 %8276, %v8254
      %v8278 = vpop.permute.xlu0 %8277
      %8280 = vset.pattern.permute.xlu0 0
      %8281 = vperm.xlu0 %8280, %v8257
      %v8282 = vpop.permute.xlu0 %8281
      %8284 = vset.pattern.permute.xlu0 0
      %8285 = vperm.xlu0 %8284, %v8260
      %v8286 = vpop.permute.xlu0 %8285
      %8288 = vset.pattern.permute.xlu0 0
      %8289 = vperm.xlu0 %8288, %v8263
      %v8290 = vpop.permute.xlu0 %8289
      %8292 = vset.pattern.permute.xlu0 0
      %8293 = vperm.xlu0 %8292, %v8266
      %v8294 = vpop.permute.xlu0 %8293
      %8296 = vset.pattern.permute.xlu0 0
      %8297 = vperm.xlu0 %8296, %v8269
      %v8298 = vpop.permute.xlu0 %8297
      %8300 = vset.pattern.permute.xlu0 0
      %8301 = vperm.xlu0 %8300, %v8272
      %v8302 = vpop.permute.xlu0 %8301
      %8304 = vset.pattern.permute.xlu0 0
      %8305 = vperm.xlu0 %8304, %v8275
      %v8306 = vpop.permute.xlu0 %8305
      %v8308 = vmul.f32 %v1670, %v8278
      %v8309 = vmul.f32 %v1671, %v8282
      %v8310 = vmul.f32 %v1672, %v8286
      %v8311 = vmul.f32 %v1673, %v8290
      %v8312 = vmul.f32 %v1674, %v8294
      %v8313 = vmul.f32 %v1675, %v8298
      %v8314 = vmul.f32 %v1676, %v8302
      %v8315 = vmul.f32 %v1677, %v8306
      %8316 = vrot.lane.b32.xlu0 %v8254, 32
      %v8317 = vpop.permute.xlu0 %8316
      %8318 = vrot.lane.b32.xlu0 %v8257, 32
      %v8319 = vpop.permute.xlu0 %8318
      %8320 = vrot.lane.b32.xlu0 %v8260, 32
      %v8321 = vpop.permute.xlu0 %8320
      %8322 = vrot.lane.b32.xlu0 %v8263, 32
      %v8323 = vpop.permute.xlu0 %8322
      %8324 = vrot.lane.b32.xlu0 %v8266, 32
      %v8325 = vpop.permute.xlu0 %8324
      %8326 = vrot.lane.b32.xlu0 %v8269, 32
      %v8327 = vpop.permute.xlu0 %8326
      %8328 = vrot.lane.b32.xlu0 %v8272, 32
      %v8329 = vpop.permute.xlu0 %8328
      %8330 = vrot.lane.b32.xlu0 %v8275, 32
      %v8331 = vpop.permute.xlu0 %8330
      %v8340 = vsel %vm517, %v8308, %v8317
      %v8341 = vsel %vm517, %v8309, %v8319
      %v8342 = vsel %vm517, %v8310, %v8321
      %v8343 = vsel %vm517, %v8311, %v8323
      %v8344 = vsel %vm517, %v8312, %v8325
      %v8345 = vsel %vm517, %v8313, %v8327
      %v8346 = vsel %vm517, %v8314, %v8329
      %v8347 = vsel %vm517, %v8315, %v8331
      %v8348 = vsel %vm517, %v1670, 1.0
      %v8349 = vsel %vm517, %v1671, 1.0
      %v8350 = vsel %vm517, %v1672, 1.0
      %v8351 = vsel %vm517, %v1673, 1.0
      %v8352 = vsel %vm517, %v1674, 1.0
      %v8353 = vsel %vm517, %v1675, 1.0
      %v8354 = vsel %vm517, %v1676, 1.0
      %v8355 = vsel %vm517, %v1677, 1.0
      %v8356 = vld [vmem:[%s7] sm:$0x7]
      %vm8357 = vcmask 269312
      %v8359 = vsel %vm8357, %v8356, 0
      %v8362 = vsel %vm8357, %v8340, 0
      %v8365 = vsel %vm8357, %v8341, 0
      %v8368 = vsel %vm8357, %v8342, 0
      %v8371 = vsel %vm8357, %v8343, 0
      %v8374 = vsel %vm8357, %v8344, 0
      %v8377 = vsel %vm8357, %v8345, 0
      %v8380 = vsel %vm8357, %v8346, 0
      %v8383 = vsel %vm8357, %v8347, 0
      %8385 = vmatprep.subr.mxu0 0.0
      %8386 = vmatpush1.xpose.msra.mxu0 %v8362
      %8387 = vmatprep.subr.mxu0 0.0
      %8388 = vmatpush1.xpose.msra.mxu0 %v8365
      %8389 = vmatprep.subr.mxu0 0.0
      %8390 = vmatpush1.xpose.msra.mxu0 %v8368
      %8391 = vmatprep.subr.mxu0 0.0
      %8392 = vmatpush1.xpose.msra.mxu0 %v8371
      %8393 = vmatprep.subr.mxu0 0.0
      %8394 = vmatpush1.xpose.msra.mxu0 %v8374
      %8395 = vmatprep.subr.mxu0 0.0
      %8396 = vmatpush1.xpose.msra.mxu0 %v8377
      %8397 = vmatprep.subr.mxu0 0.0
      %8398 = vmatpush1.xpose.msra.mxu0 %v8380
      %8399 = vmatprep.subr.mxu0 0.0
      %8400 = vmatpush1.xpose.msra.mxu0 %v8383
      %8401 = vmatprep.subr.mxu0 0.0
      %8402 = vmatpush1.xpose.msra.mxu0 0.0
      %8403 = vmatprep.subr.mxu0 0.0
      %8404 = vmatpush1.xpose.msra.mxu0 0.0
      %8405 = vmatprep.subr.mxu0 0.0
      %8406 = vmatpush1.xpose.msra.mxu0 0.0
      %8407 = vmatprep.subr.mxu0 0.0
      %8408 = vmatpush1.xpose.msra.mxu0 0.0
      %8409 = vmatprep.subr.mxu0 0.0
      %8410 = vmatpush1.xpose.msra.mxu0 0.0
      %8411 = vmatprep.subr.mxu0 0.0
      %8412 = vmatpush1.xpose.msra.mxu0 0.0
      %8413 = vmatprep.subr.mxu0 0.0
      %8414 = vmatpush1.xpose.msra.mxu0 0.0
      %8415 = vmatprep.subr.mxu0 0.0
      %8416 = vmatpush1.xpose.msra.mxu0 0.0
      %8417 = vmatprep.subr.mxu0 0.0
      %8418 = vmatpush1.xpose.msra.mxu0 0.0
      %8419 = vmatprep.subr.mxu0 0.0
      %8420 = vmatpush1.xpose.msra.mxu0 0.0
      %8421 = vmatprep.subr.mxu0 0.0
      %8422 = vmatpush1.xpose.msra.mxu0 0.0
      %8423 = vmatprep.subr.mxu0 0.0
      %8424 = vmatpush1.xpose.msra.mxu0 0.0
      %8425 = vmatprep.subr.mxu0 0.0
      %8426 = vmatpush1.xpose.msra.mxu0 0.0
      %8427 = vmatprep.subr.mxu0 0.0
      %8428 = vmatpush1.xpose.msra.mxu0 0.0
      %8429 = vmatprep.subr.mxu0 0.0
      %8430 = vmatpush1.xpose.msra.mxu0 0.0
      %8431 = vmatprep.subr.mxu0 0.0
      %8432 = vmatpush1.xpose.msra.mxu0 0.0
      %8433 = vmatprep.subr.mxu0 0.0
      %8434 = vmatpush1.xpose.msra.mxu0 0.0
      %8435 = vmatprep.subr.mxu0 0.0
      %8436 = vmatpush1.xpose.msra.mxu0 0.0
      %8437 = vmatprep.subr.mxu0 0.0
      %8438 = vmatpush1.xpose.msra.mxu0 0.0
      %8439 = vmatprep.subr.mxu0 0.0
      %8440 = vmatpush1.xpose.msra.mxu0 0.0
      %8441 = vmatprep.subr.mxu0 0.0
      %8442 = vmatpush1.xpose.msra.mxu0 0.0
      %8443 = vmatprep.subr.mxu0 0.0
      %8444 = vmatpush1.xpose.msra.mxu0 0.0
      %8445 = vmatprep.subr.mxu0 0.0
      %8446 = vmatpush1.xpose.msra.mxu0 0.0
      %8447 = vmatprep.subr.mxu0 0.0
      %8448 = vmatpush1.xpose.msra.mxu0 0.0
      %8449 = vmatprep.mubr.f32.mxu0 0.0
      %8450 = vmatmul.mubr.f32.gmra.mrb[0].mxu0 %v8359
      %v8451 = vpop.f32.mrb[0].mxu0
      %v8452 = vadd.f32 0.0, %v8451
      %v8453 = vpop.f32.mrb[0].mxu0
      %8454 = vdwg.mxu0
      %vm8455 = vcmask 518144
      %8456 = vst.msk [vmem:[%s421] sm:$0x7] %vm8455, %v8452
      %v8457 = vld [vmem:[%s8] sm:$0xff]
      %v8458 = vld [vmem:[%s8 + $0x8] sm:$0xf]
      %v8460 = vsel %vm8357, %v8457, 0
      %v8463 = vsel %vm8357, %v8458, 0
      %v8466 = vsel %vm8357, %v8348, 0
      %v8469 = vsel %vm8357, %v8349, 0
      %v8472 = vsel %vm8357, %v8350, 0
      %v8475 = vsel %vm8357, %v8351, 0
      %v8478 = vsel %vm8357, %v8352, 0
      %v8481 = vsel %vm8357, %v8353, 0
      %v8484 = vsel %vm8357, %v8354, 0
      %v8487 = vsel %vm8357, %v8355, 0
      %8489 = vmatprep.subr.mxu0 0.0
      %8490 = vmatpush1.xpose.msra.mxu0 %v8466
      %8491 = vmatprep.subr.mxu0 0.0
      %8492 = vmatpush1.xpose.msra.mxu0 %v8469
      %8493 = vmatprep.subr.mxu0 0.0
      %8494 = vmatpush1.xpose.msra.mxu0 %v8472
      %8495 = vmatprep.subr.mxu0 0.0
      %8496 = vmatpush1.xpose.msra.mxu0 %v8475
      %8497 = vmatprep.subr.mxu0 0.0
      %8498 = vmatpush1.xpose.msra.mxu0 %v8478
      %8499 = vmatprep.subr.mxu0 0.0
      %8500 = vmatpush1.xpose.msra.mxu0 %v8481
      %8501 = vmatprep.subr.mxu0 0.0
      %8502 = vmatpush1.xpose.msra.mxu0 %v8484
      %8503 = vmatprep.subr.mxu0 0.0
      %8504 = vmatpush1.xpose.msra.mxu0 %v8487
      %8505 = vmatprep.subr.mxu0 0.0
      %8506 = vmatpush1.xpose.msra.mxu0 0.0
      %8507 = vmatprep.subr.mxu0 0.0
      %8508 = vmatpush1.xpose.msra.mxu0 0.0
      %8509 = vmatprep.subr.mxu0 0.0
      %8510 = vmatpush1.xpose.msra.mxu0 0.0
      %8511 = vmatprep.subr.mxu0 0.0
      %8512 = vmatpush1.xpose.msra.mxu0 0.0
      %8513 = vmatprep.subr.mxu0 0.0
      %8514 = vmatpush1.xpose.msra.mxu0 0.0
      %8515 = vmatprep.subr.mxu0 0.0
      %8516 = vmatpush1.xpose.msra.mxu0 0.0
      %8517 = vmatprep.subr.mxu0 0.0
      %8518 = vmatpush1.xpose.msra.mxu0 0.0
      %8519 = vmatprep.subr.mxu0 0.0
      %8520 = vmatpush1.xpose.msra.mxu0 0.0
      %8521 = vmatprep.subr.mxu0 0.0
      %8522 = vmatpush1.xpose.msra.mxu0 0.0
      %8523 = vmatprep.subr.mxu0 0.0
      %8524 = vmatpush1.xpose.msra.mxu0 0.0
      %8525 = vmatprep.subr.mxu0 0.0
      %8526 = vmatpush1.xpose.msra.mxu0 0.0
      %8527 = vmatprep.subr.mxu0 0.0
      %8528 = vmatpush1.xpose.msra.mxu0 0.0
      %8529 = vmatprep.subr.mxu0 0.0
      %8530 = vmatpush1.xpose.msra.mxu0 0.0
      %8531 = vmatprep.subr.mxu0 0.0
      %8532 = vmatpush1.xpose.msra.mxu0 0.0
      %8533 = vmatprep.subr.mxu0 0.0
      %8534 = vmatpush1.xpose.msra.mxu0 0.0
      %8535 = vmatprep.subr.mxu0 0.0
      %8536 = vmatpush1.xpose.msra.mxu0 0.0
      %8537 = vmatprep.subr.mxu0 0.0
      %8538 = vmatpush1.xpose.msra.mxu0 0.0
      %8539 = vmatprep.subr.mxu0 0.0
      %8540 = vmatpush1.xpose.msra.mxu0 0.0
      %8541 = vmatprep.subr.mxu0 0.0
      %8542 = vmatpush1.xpose.msra.mxu0 0.0
      %8543 = vmatprep.subr.mxu0 0.0
      %8544 = vmatpush1.xpose.msra.mxu0 0.0
      %8545 = vmatprep.subr.mxu0 0.0
      %8546 = vmatpush1.xpose.msra.mxu0 0.0
      %8547 = vmatprep.subr.mxu0 0.0
      %8548 = vmatpush1.xpose.msra.mxu0 0.0
      %8549 = vmatprep.subr.mxu0 0.0
      %8550 = vmatpush1.xpose.msra.mxu0 0.0
      %8551 = vmatprep.subr.mxu0 0.0
      %8552 = vmatpush1.xpose.msra.mxu0 0.0
      %8553 = vmatprep.mubr.f32.mxu0 0.0
      %8554 = vmatmul.mubr.f32.gmra.mrb[0].mxu0 %v8460
      %v8555 = vpop.f32.mrb[0].mxu0
      %v8556 = vadd.f32 0.0, %v8555
      %v8557 = vpop.f32.mrb[0].mxu0
      %8558 = vmatprep.mubr.f32.mxu0 0.0
      %8559 = vmatmul.mubr.f32.gmra.mrb[0].mxu0 %v8463
      %v8560 = vpop.f32.mrb[0].mxu0
      %v8561 = vadd.f32 0.0, %v8560
      %v8562 = vpop.f32.mrb[0].mxu0
      %8563 = vdwg.mxu0
      %vm8564 = vcmask 523264
      %8565 = vst.msk [vmem:[%s426] sm:$0xff] %vm8564, %v8556
      %vm8566 = vcmask 519168
      %8567 = vst.msk [vmem:[%s426 + $0x8] sm:$0xf] %vm8566, %v8561
      %p8568 = scmp.lt.s32.totalorder %s26, 1
      %s8569 = scalar_select %p8568, %s26, 1
      %s8570 = smul.addr %s8569, 4
      %s8571 = scalar_lea.vmem %s11, %s8570
      %p8572 = scmp.lt.s32.totalorder %s26, 1
      %s8573 = scalar_select %p8572, %s26, 1
      %s8574 = smul.addr %s8573, 2
      %s8575 = smul.addr %s8574, 8
      %s8576 = scalar_lea.vmem %s12, %s8575
      // Predicated region
      $region65: #{_forward_one_level.1} parent=63 // pred_check
        %p8577 = pneg %p280
      $region66: #{_forward_one_level.1} parent=63 // pred_check_branch
        %8579 = sbr.rel (%p8577) target = $region68
      $region67: #{_forward_one_level.1} parent=63 // pred_region
        _
      $region68: #{_forward_one_level.1} parent=63 // pred_fallthru
        _
      // Predicated region
      $region69: #{_forward_one_level.1} parent=63 // pred_check
        %p8580 = pneg %p306
      $region70: #{_forward_one_level.1} parent=63 // pred_check_branch
        %8582 = sbr.rel (%p8580) target = $region72
      $region71: #{_forward_one_level.1} parent=63 // pred_region
        _
      $region72: #{_forward_one_level.1} parent=63 // pred_fallthru
        _
    $region64: #{_forward_one_level.1} parent=5 // pred_fallthru
      _
    %p8583 = scmp.le.s32.totalorder 2, %s21
    // Predicated region
    $region73: #{_forward_one_level.1} parent=5 // pred_check
      %p8584 = pneg %p8583
    $region74: #{_forward_one_level.1} parent=5 // pred_check_branch
      %8586 = sbr.rel (%p8584) target = $region76
    $region75: #{_forward_one_level.1} parent=5 // pred_region
      %s8587 = ssub.s32 %s21, 2
      // Predicated region
      $region77: #{_forward_one_level.1} parent=75 // pred_check
        %p8588 = pneg %p286
      $region78: #{_forward_one_level.1} parent=75 // pred_check_branch
        %8590 = sbr.rel (%p8588) target = $region80
      $region79: #{_forward_one_level.1} parent=75 // pred_region
        %p8591 = scmp.lt.s32.totalorder %s27, 1
        %s8592 = scalar_select %p8591, %s27, 1
        %s8593 = smul.addr %s8592, 4
        %s8594 = scalar_lea.vmem %s11, %s8593
      $region80: #{_forward_one_level.1} parent=75 // pred_fallthru
        _
      // Predicated region
      $region81: #{_forward_one_level.1} parent=75 // pred_check
        %p8595 = pneg %p312
      $region82: #{_forward_one_level.1} parent=75 // pred_check_branch
        %8597 = sbr.rel (%p8595) target = $region84
      $region83: #{_forward_one_level.1} parent=75 // pred_region
        %p8598 = scmp.lt.s32.totalorder %s27, 1
        %s8599 = scalar_select %p8598, %s27, 1
        %s8600 = smul.addr %s8599, 2
        %s8601 = smul.addr %s8600, 8
        %s8602 = scalar_lea.vmem %s12, %s8601
      $region84: #{_forward_one_level.1} parent=75 // pred_fallthru
        _
    $region76: #{_forward_one_level.1} parent=5 // pred_fallthru
      _
  $region6: #{_forward_one_level.1} parent=0 // loop_footer
    %s25 = sadd.s32 1, %s21
  $region7: #{_forward_one_level.1} parent=0 // loop_footer_branch
    %20 = sbr.rel target = $region3
  $region8: #{_forward_one_level.1} parent=0 // loop_exit
    _

</llo_original>
